<compile_context>
chip_gen: v5e
topology: v5e:2x2
jax: 0.10.0
libtpu: 0.0.40
codegen_flags: <defaults>
</compile_context>

<pallas_src>
import functools

import jax
import jax.numpy as jnp
import numpy as np
from jax.experimental import pallas as pl
from jax.experimental.pallas import tpu as pltpu


def _dag_kernel(archs_ref, mats_ref, init_ref, out_ref, *,
                steps, num_op, op_chunk, compute_dtype):
    tb = archs_ref.shape[0]          # batch tile
    d = init_ref.shape[1]            # d_model
    f32 = jnp.float32

    # states[0] = init broadcast; out_ref doubles as the state store (write-once per state).
    out_ref[0, :, :] = jnp.broadcast_to(init_ref[...], (tb, d)).astype(f32)

    zero_h = jnp.zeros((tb, d), compute_dtype)   # hoisted: JAX does not CSE broadcasts

    for i in range(steps):                                   # target state i+1
        acc = jnp.zeros((tb, d), f32)                        # vreg accumulator (no VMEM RMW)
        base = i * (i + 1) // 2
        for j in range(i + 1):                               # source state j (edge e = base+j)
            e = base + j
            arch_col = archs_ref[:, e:e + 1]                 # (tb, 1) int32, loaded once per edge
            h = out_ref[j, :, :].astype(compute_dtype)       # (tb, d) bf16 state reload

            # K-axis op select: x = concat_o( [arch==o] * h ), one wide matmul per K-chunk.
            # sum_c x[b, o*d + c] * W[o*d + c, r] == sum_o [arch_b==o] * (matrices[o] @ h_b)[r]
            for o0 in range(0, num_op, op_chunk):
                o1 = min(o0 + op_chunk, num_op)
                x = jnp.concatenate(
                    [jnp.where(arch_col == o, h, zero_h) for o in range(o0, o1)],
                    axis=1)                                  # (tb, (o1-o0)*d) bf16
                acc = acc + jnp.dot(x, mats_ref[o0 * d:o1 * d, :],
                                    preferred_element_type=f32)

        # Single store per state, with the 1/len(states) finalize fused in.
        out_ref[i + 1, :, :] = acc * (1.0 / float(i + 1))


def dag_forward(archs, matrices, init_vec, *, steps, block_b=None,
                compute_dtype=jnp.bfloat16, op_chunk=None):
    """Pallas DAG forward. Returns a list of (bs, d_model) float32 arrays (len steps+1)."""
    num_op, d, d2 = matrices.shape
    assert d == d2
    bs, num_edges = archs.shape
    assert num_edges == steps * (steps + 1) // 2

    if block_b is None:
        # Keep >=2 "parallel" grid steps so both v7x TensorCores get work; fill the
        # 256-row MXU M dimension (v6e/v7x) only once bs >= 512 allows both.
        if bs >= 512 and bs % 256 == 0:
            block_b = 256
        elif bs % 128 == 0:
            block_b = 128
        else:
            block_b = bs
    block_b = min(block_b, bs)
    assert bs % block_b == 0
    assert block_b % 8 == 0 and d % 128 == 0, "keep (block_b, d) a multiple of (8,128)"

    if op_chunk is None:
        # Fuse ops along K so each matmul chunk is ~256 wide (one full MXU pass on
        # v6e/v7x) while x stays comfortably inside the 64-vreg register file.
        op_chunk = max(1, min(num_op, 256 // d))

    # Glue: stack transposed operator matrices along K and cast to bf16 (f32 accumulation
    # stays in the MXU via preferred_element_type).
    mats_stack = jnp.swapaxes(matrices, -1, -2).reshape(num_op * d, d).astype(compute_dtype)
    init2 = init_vec.reshape(1, d).astype(jnp.float32)
    archs_i32 = archs.astype(jnp.int32)

    kernel = functools.partial(_dag_kernel, steps=steps, num_op=num_op,
                               op_chunk=op_chunk, compute_dtype=compute_dtype)

    w_bytes = int(mats_stack.size) * jnp.dtype(compute_dtype).itemsize
    cost = pl.CostEstimate(
        flops=2 * num_edges * num_op * bs * d * d,           # K-fused matmuls per edge
        transcendentals=0,
        bytes_accessed=(w_bytes + int(archs_i32.size) * 4 + d * 4
                        + (steps + 1) * bs * d * 4),
    )

    # Explicit VMEM budget (double-buffered blocks + headroom); well under 64 MiB on v7x.
    block_bytes = 2 * ((steps + 1) * block_b * d * 4        # out block
                       + block_b * num_edges * 4            # archs block
                       + num_op * d * d * jnp.dtype(compute_dtype).itemsize
                       + d * 4)
    vmem_limit = int(min(96 << 20, max(16 << 20, block_bytes + (8 << 20))))

    out = pl.pallas_call(
        kernel,
        out_shape=jax.ShapeDtypeStruct((steps + 1, bs, d), jnp.float32),
        grid_spec=pltpu.PrefetchScalarGridSpec(
            num_scalar_prefetch=0,
            grid=(bs // block_b,),
            in_specs=[
                pl.BlockSpec((block_b, num_edges), lambda b: (b, 0)),
                # Constant-index weight block (same tile for every grid step).
                # TODO(synk): at large d_model/num_op, single-buffer it via
                # pipeline_mode=pl.Buffered(1) to halve its VMEM footprint.
                pl.BlockSpec((num_op * d, d), lambda b: (0, 0)),
                pl.BlockSpec((1, d), lambda b: (0, 0)),
            ],
            out_specs=pl.BlockSpec((steps + 1, block_b, d), lambda b: (0, b, 0)),
        ),
        compiler_params=pltpu.CompilerParams(
            dimension_semantics=("parallel",),
            vmem_limit_bytes=vmem_limit),
        cost_estimate=cost,
    )(archs_i32, mats_stack, init2)

    return [out[i] for i in range(steps + 1)]


def dag_reference(archs, matrices, init_vec, *, steps):
    """Pure-JAX f32 reference mirroring the PyTorch forward."""
    bs = archs.shape[0]
    d = init_vec.shape[0]
    states = [jnp.broadcast_to(init_vec[None, :], (bs, d)).astype(jnp.float32)]
    offset = 0
    for _ in range(steps):
        terms = []
        for j, h in enumerate(states):
            M = matrices[archs[:, offset + j]]          # (bs, d, d)
            terms.append(jnp.einsum("brc,bc->br", M, h))
        s = sum(terms) / len(states)
        offset += len(states)
        states.append(s)
    return states


if __name__ == "__main__":
    d_model = 128
    num_op = 4
    steps = 4
    bs = 256                                  # 2 parallel grid steps of block_b=128
    num_edges = steps * (steps + 1) // 2      # 10

    key = jax.random.PRNGKey(0)
    k_mat, k_init, k_arch = jax.random.split(key, 3)

    # Deterministic parameter init (mirrors shapes of nn.Parameter in __init__).
    fan_in = d_model
    bound = float(np.sqrt(6.0 / fan_in))            # kaiming_uniform-style bound
    matrices = jax.random.uniform(
        k_mat, (num_op, d_model, d_model), jnp.float32, -bound, bound)
    stdv = 1.0 / float(np.sqrt(d_model))
    init_vec = jax.random.uniform(k_init, (d_model,), jnp.float32, -stdv, stdv)

    # Architecture encoding: one op id per DAG edge (within [0, num_op) — precondition).
    archs = jax.random.randint(k_arch, (bs, num_edges), 0, num_op, jnp.int32)

    states = dag_forward(archs, matrices, init_vec, steps=steps)
    jax.block_until_ready(states)

    ref_states = dag_reference(archs, matrices, init_vec, steps=steps)
    # bf16 matmul operands with f32 accumulation -> slightly looser tolerance vs f32 ref.
    for got, want in zip(states, ref_states):
        np.testing.assert_allclose(np.asarray(got), np.asarray(want),
                                   rtol=5e-2, atol=2e-2)

    print("KERNEL_OK")
</pallas_src>

<mosaic_0001>
module attributes {stable_mosaic.version = 11 : i64} {
  func.func @_dag_kernel(%arg0: i32, %arg1: memref<128x10xi32, #tpu.memory_space<vmem>>, %arg2: memref<512x128xbf16, #tpu.memory_space<vmem>>, %arg3: memref<1x128xf32, #tpu.memory_space<vmem>>, %arg4: memref<5x128x128xf32, #tpu.memory_space<vmem>>) attributes {dimension_semantics = [#tpu.dimension_semantics<parallel>], iteration_bounds = array<i64: 2>, scalar_prefetch = 0 : i64, scratch_operands = 0 : i64, tpu.core_type = #tpu.core_type<tc>, window_params = [{transform_indices = @transform_0, window_bounds = array<i64: 128, 10>}, {pipeline_mode = #tpu.pipeline_mode<synchronous>, transform_indices = @transform_1, window_bounds = array<i64: 512, 128>}, {pipeline_mode = #tpu.pipeline_mode<synchronous>, transform_indices = @transform_2, window_bounds = array<i64: 1, 128>}, {transform_indices = @transform_3, window_bounds = array<i64: 5, 128, 128>}]} {
    %c0 = arith.constant 0 : index
    %c0_0 = arith.constant 0 : index
    %0 = vector.load %arg3[%c0, %c0_0] : memref<1x128xf32, #tpu.memory_space<vmem>>, vector<1x128xf32>
    %1 = vector.shape_cast %0 : vector<1x128xf32> to vector<1x128xf32>
    %2 = vector.broadcast %1 : vector<1x128xf32> to vector<128x128xf32>
    %c0_1 = arith.constant 0 : index
    %c0_2 = arith.constant 0 : index
    %c0_3 = arith.constant 0 : index
    %3 = vector.load %arg4[%c0_1, %c0_2, %c0_3] : memref<5x128x128xf32, #tpu.memory_space<vmem>>, vector<1x128x128xf32>
    %4 = vector.shape_cast %3 : vector<1x128x128xf32> to vector<128x128xf32>
    %5 = vector.shape_cast %2 : vector<128x128xf32> to vector<1x128x128xf32>
    tpu.vector_store %arg4[%c0_1, %c0_2, %c0_3], %5 {strides = array<i32>} : memref<5x128x128xf32, #tpu.memory_space<vmem>>, vector<1x128x128xf32>,
    %cst = arith.constant 0.000000e+00 : bf16
    %6 = vector.broadcast %cst : bf16 to vector<128x128xbf16>
    %cst_4 = arith.constant 0.000000e+00 : f32
    %7 = vector.broadcast %cst_4 : f32 to vector<128x128xf32>
    %c0_5 = arith.constant 0 : index
    %c0_6 = arith.constant 0 : index
    %8 = vector.load %arg1[%c0_5, %c0_6] : memref<128x10xi32, #tpu.memory_space<vmem>>, vector<128x1xi32>
    %c0_7 = arith.constant 0 : index
    %c0_8 = arith.constant 0 : index
    %c0_9 = arith.constant 0 : index
    %9 = vector.load %arg4[%c0_7, %c0_8, %c0_9] : memref<5x128x128xf32, #tpu.memory_space<vmem>>, vector<1x128x128xf32>
    %10 = vector.shape_cast %9 : vector<1x128x128xf32> to vector<128x128xf32>
    %11 = arith.truncf %10 : vector<128x128xf32> to vector<128x128xbf16>
    %c0_i32 = arith.constant 0 : i32
    %12 = vector.broadcast %c0_i32 : i32 to vector<128x1xi32>
    %13 = arith.cmpi eq, %8, %12 : vector<128x1xi32>
    %14 = vector.shape_cast %13 : vector<128x1xi1> to vector<128x1xi1>
    %15 = vector.broadcast %14 : vector<128x1xi1> to vector<128x128xi1>
    %16 = arith.select %15, %11, %6 : vector<128x128xi1>, vector<128x128xbf16>
    %c1_i32 = arith.constant 1 : i32
    %17 = vector.broadcast %c1_i32 : i32 to vector<128x1xi32>
    %18 = arith.cmpi eq, %8, %17 : vector<128x1xi32>
    %19 = vector.shape_cast %18 : vector<128x1xi1> to vector<128x1xi1>
    %20 = vector.broadcast %19 : vector<128x1xi1> to vector<128x128xi1>
    %21 = arith.select %20, %11, %6 : vector<128x128xi1>, vector<128x128xbf16>
    %22 = tpu.concatenate %16, %21 in 1 : vector<128x128xbf16>, vector<128x128xbf16> -> vector<128x256xbf16>
    %c0_10 = arith.constant 0 : index
    %c0_11 = arith.constant 0 : index
    %23 = vector.load %arg2[%c0_10, %c0_11] : memref<512x128xbf16, #tpu.memory_space<vmem>>, vector<256x128xbf16>
    %cst_12 = arith.constant dense<0.000000e+00> : vector<128x128xf32>
    %24 = tpu.matmul %22, %23, %cst_12 {dimension_numbers = #tpu.dot_dimension_numbers<[1], [0], [0], [1], [0, 0, 1, 1], [], []>} : vector<128x256xbf16>, vector<256x128xbf16>, vector<128x128xf32> -> vector<128x128xf32>
    %25 = arith.addf %7, %24 : vector<128x128xf32>
    %c2_i32 = arith.constant 2 : i32
    %26 = vector.broadcast %c2_i32 : i32 to vector<128x1xi32>
    %27 = arith.cmpi eq, %8, %26 : vector<128x1xi32>
    %28 = vector.shape_cast %27 : vector<128x1xi1> to vector<128x1xi1>
    %29 = vector.broadcast %28 : vector<128x1xi1> to vector<128x128xi1>
    %30 = arith.select %29, %11, %6 : vector<128x128xi1>, vector<128x128xbf16>
    %c3_i32 = arith.constant 3 : i32
    %31 = vector.broadcast %c3_i32 : i32 to vector<128x1xi32>
    %32 = arith.cmpi eq, %8, %31 : vector<128x1xi32>
    %33 = vector.shape_cast %32 : vector<128x1xi1> to vector<128x1xi1>
    %34 = vector.broadcast %33 : vector<128x1xi1> to vector<128x128xi1>
    %35 = arith.select %34, %11, %6 : vector<128x128xi1>, vector<128x128xbf16>
    %36 = tpu.concatenate %30, %35 in 1 : vector<128x128xbf16>, vector<128x128xbf16> -> vector<128x256xbf16>
    %c256 = arith.constant 256 : index
    %c0_13 = arith.constant 0 : index
    %37 = vector.load %arg2[%c256, %c0_13] : memref<512x128xbf16, #tpu.memory_space<vmem>>, vector<256x128xbf16>
    %cst_14 = arith.constant dense<0.000000e+00> : vector<128x128xf32>
    %38 = tpu.matmul %36, %37, %cst_14 {dimension_numbers = #tpu.dot_dimension_numbers<[1], [0], [0], [1], [0, 0, 1, 1], [], []>} : vector<128x256xbf16>, vector<256x128xbf16>, vector<128x128xf32> -> vector<128x128xf32>
    %39 = arith.addf %25, %38 : vector<128x128xf32>
    %cst_15 = arith.constant 1.000000e+00 : f32
    %40 = vector.broadcast %cst_15 : f32 to vector<128x128xf32>
    %41 = arith.mulf %39, %40 : vector<128x128xf32>
    %c1 = arith.constant 1 : index
    %c0_16 = arith.constant 0 : index
    %c0_17 = arith.constant 0 : index
    %42 = vector.load %arg4[%c1, %c0_16, %c0_17] : memref<5x128x128xf32, #tpu.memory_space<vmem>>, vector<1x128x128xf32>
    %43 = vector.shape_cast %42 : vector<1x128x128xf32> to vector<128x128xf32>
    %44 = vector.shape_cast %41 : vector<128x128xf32> to vector<1x128x128xf32>
    tpu.vector_store %arg4[%c1, %c0_16, %c0_17], %44 {strides = array<i32>} : memref<5x128x128xf32, #tpu.memory_space<vmem>>, vector<1x128x128xf32>,
    %cst_18 = arith.constant 0.000000e+00 : f32
    %45 = vector.broadcast %cst_18 : f32 to vector<128x128xf32>
    %c0_19 = arith.constant 0 : index
    %c1_20 = arith.constant 1 : index
    %46 = vector.load %arg1[%c0_19, %c1_20] : memref<128x10xi32, #tpu.memory_space<vmem>>, vector<128x1xi32>
    %c0_21 = arith.constant 0 : index
    %c0_22 = arith.constant 0 : index
    %c0_23 = arith.constant 0 : index
    %47 = vector.load %arg4[%c0_21, %c0_22, %c0_23] : memref<5x128x128xf32, #tpu.memory_space<vmem>>, vector<1x128x128xf32>
    %48 = vector.shape_cast %47 : vector<1x128x128xf32> to vector<128x128xf32>
    %49 = arith.truncf %48 : vector<128x128xf32> to vector<128x128xbf16>
    %c0_i32_24 = arith.constant 0 : i32
    %50 = vector.broadcast %c0_i32_24 : i32 to vector<128x1xi32>
    %51 = arith.cmpi eq, %46, %50 : vector<128x1xi32>
    %52 = vector.shape_cast %51 : vector<128x1xi1> to vector<128x1xi1>
    %53 = vector.broadcast %52 : vector<128x1xi1> to vector<128x128xi1>
    %54 = arith.select %53, %49, %6 : vector<128x128xi1>, vector<128x128xbf16>
    %c1_i32_25 = arith.constant 1 : i32
    %55 = vector.broadcast %c1_i32_25 : i32 to vector<128x1xi32>
    %56 = arith.cmpi eq, %46, %55 : vector<128x1xi32>
    %57 = vector.shape_cast %56 : vector<128x1xi1> to vector<128x1xi1>
    %58 = vector.broadcast %57 : vector<128x1xi1> to vector<128x128xi1>
    %59 = arith.select %58, %49, %6 : vector<128x128xi1>, vector<128x128xbf16>
    %60 = tpu.concatenate %54, %59 in 1 : vector<128x128xbf16>, vector<128x128xbf16> -> vector<128x256xbf16>
    %c0_26 = arith.constant 0 : index
    %c0_27 = arith.constant 0 : index
    %61 = vector.load %arg2[%c0_26, %c0_27] : memref<512x128xbf16, #tpu.memory_space<vmem>>, vector<256x128xbf16>
    %cst_28 = arith.constant dense<0.000000e+00> : vector<128x128xf32>
    %62 = tpu.matmul %60, %61, %cst_28 {dimension_numbers = #tpu.dot_dimension_numbers<[1], [0], [0], [1], [0, 0, 1, 1], [], []>} : vector<128x256xbf16>, vector<256x128xbf16>, vector<128x128xf32> -> vector<128x128xf32>
    %63 = arith.addf %45, %62 : vector<128x128xf32>
    %c2_i32_29 = arith.constant 2 : i32
    %64 = vector.broadcast %c2_i32_29 : i32 to vector<128x1xi32>
    %65 = arith.cmpi eq, %46, %64 : vector<128x1xi32>
    %66 = vector.shape_cast %65 : vector<128x1xi1> to vector<128x1xi1>
    %67 = vector.broadcast %66 : vector<128x1xi1> to vector<128x128xi1>
    %68 = arith.select %67, %49, %6 : vector<128x128xi1>, vector<128x128xbf16>
    %c3_i32_30 = arith.constant 3 : i32
    %69 = vector.broadcast %c3_i32_30 : i32 to vector<128x1xi32>
    %70 = arith.cmpi eq, %46, %69 : vector<128x1xi32>
    %71 = vector.shape_cast %70 : vector<128x1xi1> to vector<128x1xi1>
    %72 = vector.broadcast %71 : vector<128x1xi1> to vector<128x128xi1>
    %73 = arith.select %72, %49, %6 : vector<128x128xi1>, vector<128x128xbf16>
    %74 = tpu.concatenate %68, %73 in 1 : vector<128x128xbf16>, vector<128x128xbf16> -> vector<128x256xbf16>
    %c256_31 = arith.constant 256 : index
    %c0_32 = arith.constant 0 : index
    %75 = vector.load %arg2[%c256_31, %c0_32] : memref<512x128xbf16, #tpu.memory_space<vmem>>, vector<256x128xbf16>
    %cst_33 = arith.constant dense<0.000000e+00> : vector<128x128xf32>
    %76 = tpu.matmul %74, %75, %cst_33 {dimension_numbers = #tpu.dot_dimension_numbers<[1], [0], [0], [1], [0, 0, 1, 1], [], []>} : vector<128x256xbf16>, vector<256x128xbf16>, vector<128x128xf32> -> vector<128x128xf32>
    %77 = arith.addf %63, %76 : vector<128x128xf32>
    %c0_34 = arith.constant 0 : index
    %c2 = arith.constant 2 : index
    %78 = vector.load %arg1[%c0_34, %c2] : memref<128x10xi32, #tpu.memory_space<vmem>>, vector<128x1xi32>
    %c1_35 = arith.constant 1 : index
    %c0_36 = arith.constant 0 : index
    %c0_37 = arith.constant 0 : index
    %79 = vector.load %arg4[%c1_35, %c0_36, %c0_37] : memref<5x128x128xf32, #tpu.memory_space<vmem>>, vector<1x128x128xf32>
    %80 = vector.shape_cast %79 : vector<1x128x128xf32> to vector<128x128xf32>
    %81 = arith.truncf %80 : vector<128x128xf32> to vector<128x128xbf16>
    %c0_i32_38 = arith.constant 0 : i32
    %82 = vector.broadcast %c0_i32_38 : i32 to vector<128x1xi32>
    %83 = arith.cmpi eq, %78, %82 : vector<128x1xi32>
    %84 = vector.shape_cast %83 : vector<128x1xi1> to vector<128x1xi1>
    %85 = vector.broadcast %84 : vector<128x1xi1> to vector<128x128xi1>
    %86 = arith.select %85, %81, %6 : vector<128x128xi1>, vector<128x128xbf16>
    %c1_i32_39 = arith.constant 1 : i32
    %87 = vector.broadcast %c1_i32_39 : i32 to vector<128x1xi32>
    %88 = arith.cmpi eq, %78, %87 : vector<128x1xi32>
    %89 = vector.shape_cast %88 : vector<128x1xi1> to vector<128x1xi1>
    %90 = vector.broadcast %89 : vector<128x1xi1> to vector<128x128xi1>
    %91 = arith.select %90, %81, %6 : vector<128x128xi1>, vector<128x128xbf16>
    %92 = tpu.concatenate %86, %91 in 1 : vector<128x128xbf16>, vector<128x128xbf16> -> vector<128x256xbf16>
    %c0_40 = arith.constant 0 : index
    %c0_41 = arith.constant 0 : index
    %93 = vector.load %arg2[%c0_40, %c0_41] : memref<512x128xbf16, #tpu.memory_space<vmem>>, vector<256x128xbf16>
    %cst_42 = arith.constant dense<0.000000e+00> : vector<128x128xf32>
    %94 = tpu.matmul %92, %93, %cst_42 {dimension_numbers = #tpu.dot_dimension_numbers<[1], [0], [0], [1], [0, 0, 1, 1], [], []>} : vector<128x256xbf16>, vector<256x128xbf16>, vector<128x128xf32> -> vector<128x128xf32>
    %95 = arith.addf %77, %94 : vector<128x128xf32>
    %c2_i32_43 = arith.constant 2 : i32
    %96 = vector.broadcast %c2_i32_43 : i32 to vector<128x1xi32>
    %97 = arith.cmpi eq, %78, %96 : vector<128x1xi32>
    %98 = vector.shape_cast %97 : vector<128x1xi1> to vector<128x1xi1>
    %99 = vector.broadcast %98 : vector<128x1xi1> to vector<128x128xi1>
    %100 = arith.select %99, %81, %6 : vector<128x128xi1>, vector<128x128xbf16>
    %c3_i32_44 = arith.constant 3 : i32
    %101 = vector.broadcast %c3_i32_44 : i32 to vector<128x1xi32>
    %102 = arith.cmpi eq, %78, %101 : vector<128x1xi32>
    %103 = vector.shape_cast %102 : vector<128x1xi1> to vector<128x1xi1>
    %104 = vector.broadcast %103 : vector<128x1xi1> to vector<128x128xi1>
    %105 = arith.select %104, %81, %6 : vector<128x128xi1>, vector<128x128xbf16>
    %106 = tpu.concatenate %100, %105 in 1 : vector<128x128xbf16>, vector<128x128xbf16> -> vector<128x256xbf16>
    %c256_45 = arith.constant 256 : index
    %c0_46 = arith.constant 0 : index
    %107 = vector.load %arg2[%c256_45, %c0_46] : memref<512x128xbf16, #tpu.memory_space<vmem>>, vector<256x128xbf16>
    %cst_47 = arith.constant dense<0.000000e+00> : vector<128x128xf32>
    %108 = tpu.matmul %106, %107, %cst_47 {dimension_numbers = #tpu.dot_dimension_numbers<[1], [0], [0], [1], [0, 0, 1, 1], [], []>} : vector<128x256xbf16>, vector<256x128xbf16>, vector<128x128xf32> -> vector<128x128xf32>
    %109 = arith.addf %95, %108 : vector<128x128xf32>
    %cst_48 = arith.constant 5.000000e-01 : f32
    %110 = vector.broadcast %cst_48 : f32 to vector<128x128xf32>
    %111 = arith.mulf %109, %110 : vector<128x128xf32>
    %c2_49 = arith.constant 2 : index
    %c0_50 = arith.constant 0 : index
    %c0_51 = arith.constant 0 : index
    %112 = vector.load %arg4[%c2_49, %c0_50, %c0_51] : memref<5x128x128xf32, #tpu.memory_space<vmem>>, vector<1x128x128xf32>
    %113 = vector.shape_cast %112 : vector<1x128x128xf32> to vector<128x128xf32>
    %114 = vector.shape_cast %111 : vector<128x128xf32> to vector<1x128x128xf32>
    tpu.vector_store %arg4[%c2_49, %c0_50, %c0_51], %114 {strides = array<i32>} : memref<5x128x128xf32, #tpu.memory_space<vmem>>, vector<1x128x128xf32>,
    %cst_52 = arith.constant 0.000000e+00 : f32
    %115 = vector.broadcast %cst_52 : f32 to vector<128x128xf32>
    %c0_53 = arith.constant 0 : index
    %c3 = arith.constant 3 : index
    %116 = vector.load %arg1[%c0_53, %c3] : memref<128x10xi32, #tpu.memory_space<vmem>>, vector<128x1xi32>
    %c0_54 = arith.constant 0 : index
    %c0_55 = arith.constant 0 : index
    %c0_56 = arith.constant 0 : index
    %117 = vector.load %arg4[%c0_54, %c0_55, %c0_56] : memref<5x128x128xf32, #tpu.memory_space<vmem>>, vector<1x128x128xf32>
    %118 = vector.shape_cast %117 : vector<1x128x128xf32> to vector<128x128xf32>
    %119 = arith.truncf %118 : vector<128x128xf32> to vector<128x128xbf16>
    %c0_i32_57 = arith.constant 0 : i32
    %120 = vector.broadcast %c0_i32_57 : i32 to vector<128x1xi32>
    %121 = arith.cmpi eq, %116, %120 : vector<128x1xi32>
    %122 = vector.shape_cast %121 : vector<128x1xi1> to vector<128x1xi1>
    %123 = vector.broadcast %122 : vector<128x1xi1> to vector<128x128xi1>
    %124 = arith.select %123, %119, %6 : vector<128x128xi1>, vector<128x128xbf16>
    %c1_i32_58 = arith.constant 1 : i32
    %125 = vector.broadcast %c1_i32_58 : i32 to vector<128x1xi32>
    %126 = arith.cmpi eq, %116, %125 : vector<128x1xi32>
    %127 = vector.shape_cast %126 : vector<128x1xi1> to vector<128x1xi1>
    %128 = vector.broadcast %127 : vector<128x1xi1> to vector<128x128xi1>
    %129 = arith.select %128, %119, %6 : vector<128x128xi1>, vector<128x128xbf16>
    %130 = tpu.concatenate %124, %129 in 1 : vector<128x128xbf16>, vector<128x128xbf16> -> vector<128x256xbf16>
    %c0_59 = arith.constant 0 : index
    %c0_60 = arith.constant 0 : index
    %131 = vector.load %arg2[%c0_59, %c0_60] : memref<512x128xbf16, #tpu.memory_space<vmem>>, vector<256x128xbf16>
    %cst_61 = arith.constant dense<0.000000e+00> : vector<128x128xf32>
    %132 = tpu.matmul %130, %131, %cst_61 {dimension_numbers = #tpu.dot_dimension_numbers<[1], [0], [0], [1], [0, 0, 1, 1], [], []>} : vector<128x256xbf16>, vector<256x128xbf16>, vector<128x128xf32> -> vector<128x128xf32>
    %133 = arith.addf %115, %132 : vector<128x128xf32>
    %c2_i32_62 = arith.constant 2 : i32
    %134 = vector.broadcast %c2_i32_62 : i32 to vector<128x1xi32>
    %135 = arith.cmpi eq, %116, %134 : vector<128x1xi32>
    %136 = vector.shape_cast %135 : vector<128x1xi1> to vector<128x1xi1>
    %137 = vector.broadcast %136 : vector<128x1xi1> to vector<128x128xi1>
    %138 = arith.select %137, %119, %6 : vector<128x128xi1>, vector<128x128xbf16>
    %c3_i32_63 = arith.constant 3 : i32
    %139 = vector.broadcast %c3_i32_63 : i32 to vector<128x1xi32>
    %140 = arith.cmpi eq, %116, %139 : vector<128x1xi32>
    %141 = vector.shape_cast %140 : vector<128x1xi1> to vector<128x1xi1>
    %142 = vector.broadcast %141 : vector<128x1xi1> to vector<128x128xi1>
    %143 = arith.select %142, %119, %6 : vector<128x128xi1>, vector<128x128xbf16>
    %144 = tpu.concatenate %138, %143 in 1 : vector<128x128xbf16>, vector<128x128xbf16> -> vector<128x256xbf16>
    %c256_64 = arith.constant 256 : index
    %c0_65 = arith.constant 0 : index
    %145 = vector.load %arg2[%c256_64, %c0_65] : memref<512x128xbf16, #tpu.memory_space<vmem>>, vector<256x128xbf16>
    %cst_66 = arith.constant dense<0.000000e+00> : vector<128x128xf32>
    %146 = tpu.matmul %144, %145, %cst_66 {dimension_numbers = #tpu.dot_dimension_numbers<[1], [0], [0], [1], [0, 0, 1, 1], [], []>} : vector<128x256xbf16>, vector<256x128xbf16>, vector<128x128xf32> -> vector<128x128xf32>
    %147 = arith.addf %133, %146 : vector<128x128xf32>
    %c0_67 = arith.constant 0 : index
    %c4 = arith.constant 4 : index
    %148 = vector.load %arg1[%c0_67, %c4] : memref<128x10xi32, #tpu.memory_space<vmem>>, vector<128x1xi32>
    %c1_68 = arith.constant 1 : index
    %c0_69 = arith.constant 0 : index
    %c0_70 = arith.constant 0 : index
    %149 = vector.load %arg4[%c1_68, %c0_69, %c0_70] : memref<5x128x128xf32, #tpu.memory_space<vmem>>, vector<1x128x128xf32>
    %150 = vector.shape_cast %149 : vector<1x128x128xf32> to vector<128x128xf32>
    %151 = arith.truncf %150 : vector<128x128xf32> to vector<128x128xbf16>
    %c0_i32_71 = arith.constant 0 : i32
    %152 = vector.broadcast %c0_i32_71 : i32 to vector<128x1xi32>
    %153 = arith.cmpi eq, %148, %152 : vector<128x1xi32>
    %154 = vector.shape_cast %153 : vector<128x1xi1> to vector<128x1xi1>
    %155 = vector.broadcast %154 : vector<128x1xi1> to vector<128x128xi1>
    %156 = arith.select %155, %151, %6 : vector<128x128xi1>, vector<128x128xbf16>
    %c1_i32_72 = arith.constant 1 : i32
    %157 = vector.broadcast %c1_i32_72 : i32 to vector<128x1xi32>
    %158 = arith.cmpi eq, %148, %157 : vector<128x1xi32>
    %159 = vector.shape_cast %158 : vector<128x1xi1> to vector<128x1xi1>
    %160 = vector.broadcast %159 : vector<128x1xi1> to vector<128x128xi1>
    %161 = arith.select %160, %151, %6 : vector<128x128xi1>, vector<128x128xbf16>
    %162 = tpu.concatenate %156, %161 in 1 : vector<128x128xbf16>, vector<128x128xbf16> -> vector<128x256xbf16>
    %c0_73 = arith.constant 0 : index
    %c0_74 = arith.constant 0 : index
    %163 = vector.load %arg2[%c0_73, %c0_74] : memref<512x128xbf16, #tpu.memory_space<vmem>>, vector<256x128xbf16>
    %cst_75 = arith.constant dense<0.000000e+00> : vector<128x128xf32>
    %164 = tpu.matmul %162, %163, %cst_75 {dimension_numbers = #tpu.dot_dimension_numbers<[1], [0], [0], [1], [0, 0, 1, 1], [], []>} : vector<128x256xbf16>, vector<256x128xbf16>, vector<128x128xf32> -> vector<128x128xf32>
    %165 = arith.addf %147, %164 : vector<128x128xf32>
    %c2_i32_76 = arith.constant 2 : i32
    %166 = vector.broadcast %c2_i32_76 : i32 to vector<128x1xi32>
    %167 = arith.cmpi eq, %148, %166 : vector<128x1xi32>
    %168 = vector.shape_cast %167 : vector<128x1xi1> to vector<128x1xi1>
    %169 = vector.broadcast %168 : vector<128x1xi1> to vector<128x128xi1>
    %170 = arith.select %169, %151, %6 : vector<128x128xi1>, vector<128x128xbf16>
    %c3_i32_77 = arith.constant 3 : i32
    %171 = vector.broadcast %c3_i32_77 : i32 to vector<128x1xi32>
    %172 = arith.cmpi eq, %148, %171 : vector<128x1xi32>
    %173 = vector.shape_cast %172 : vector<128x1xi1> to vector<128x1xi1>
    %174 = vector.broadcast %173 : vector<128x1xi1> to vector<128x128xi1>
    %175 = arith.select %174, %151, %6 : vector<128x128xi1>, vector<128x128xbf16>
    %176 = tpu.concatenate %170, %175 in 1 : vector<128x128xbf16>, vector<128x128xbf16> -> vector<128x256xbf16>
    %c256_78 = arith.constant 256 : index
    %c0_79 = arith.constant 0 : index
    %177 = vector.load %arg2[%c256_78, %c0_79] : memref<512x128xbf16, #tpu.memory_space<vmem>>, vector<256x128xbf16>
    %cst_80 = arith.constant dense<0.000000e+00> : vector<128x128xf32>
    %178 = tpu.matmul %176, %177, %cst_80 {dimension_numbers = #tpu.dot_dimension_numbers<[1], [0], [0], [1], [0, 0, 1, 1], [], []>} : vector<128x256xbf16>, vector<256x128xbf16>, vector<128x128xf32> -> vector<128x128xf32>
    %179 = arith.addf %165, %178 : vector<128x128xf32>
    %c0_81 = arith.constant 0 : index
    %c5 = arith.constant 5 : index
    %180 = vector.load %arg1[%c0_81, %c5] : memref<128x10xi32, #tpu.memory_space<vmem>>, vector<128x1xi32>
    %c2_82 = arith.constant 2 : index
    %c0_83 = arith.constant 0 : index
    %c0_84 = arith.constant 0 : index
    %181 = vector.load %arg4[%c2_82, %c0_83, %c0_84] : memref<5x128x128xf32, #tpu.memory_space<vmem>>, vector<1x128x128xf32>
    %182 = vector.shape_cast %181 : vector<1x128x128xf32> to vector<128x128xf32>
    %183 = arith.truncf %182 : vector<128x128xf32> to vector<128x128xbf16>
    %c0_i32_85 = arith.constant 0 : i32
    %184 = vector.broadcast %c0_i32_85 : i32 to vector<128x1xi32>
    %185 = arith.cmpi eq, %180, %184 : vector<128x1xi32>
    %186 = vector.shape_cast %185 : vector<128x1xi1> to vector<128x1xi1>
    %187 = vector.broadcast %186 : vector<128x1xi1> to vector<128x128xi1>
    %188 = arith.select %187, %183, %6 : vector<128x128xi1>, vector<128x128xbf16>
    %c1_i32_86 = arith.constant 1 : i32
    %189 = vector.broadcast %c1_i32_86 : i32 to vector<128x1xi32>
    %190 = arith.cmpi eq, %180, %189 : vector<128x1xi32>
    %191 = vector.shape_cast %190 : vector<128x1xi1> to vector<128x1xi1>
    %192 = vector.broadcast %191 : vector<128x1xi1> to vector<128x128xi1>
    %193 = arith.select %192, %183, %6 : vector<128x128xi1>, vector<128x128xbf16>
    %194 = tpu.concatenate %188, %193 in 1 : vector<128x128xbf16>, vector<128x128xbf16> -> vector<128x256xbf16>
    %c0_87 = arith.constant 0 : index
    %c0_88 = arith.constant 0 : index
    %195 = vector.load %arg2[%c0_87, %c0_88] : memref<512x128xbf16, #tpu.memory_space<vmem>>, vector<256x128xbf16>
    %cst_89 = arith.constant dense<0.000000e+00> : vector<128x128xf32>
    %196 = tpu.matmul %194, %195, %cst_89 {dimension_numbers = #tpu.dot_dimension_numbers<[1], [0], [0], [1], [0, 0, 1, 1], [], []>} : vector<128x256xbf16>, vector<256x128xbf16>, vector<128x128xf32> -> vector<128x128xf32>
    %197 = arith.addf %179, %196 : vector<128x128xf32>
    %c2_i32_90 = arith.constant 2 : i32
    %198 = vector.broadcast %c2_i32_90 : i32 to vector<128x1xi32>
    %199 = arith.cmpi eq, %180, %198 : vector<128x1xi32>
    %200 = vector.shape_cast %199 : vector<128x1xi1> to vector<128x1xi1>
    %201 = vector.broadcast %200 : vector<128x1xi1> to vector<128x128xi1>
    %202 = arith.select %201, %183, %6 : vector<128x128xi1>, vector<128x128xbf16>
    %c3_i32_91 = arith.constant 3 : i32
    %203 = vector.broadcast %c3_i32_91 : i32 to vector<128x1xi32>
    %204 = arith.cmpi eq, %180, %203 : vector<128x1xi32>
    %205 = vector.shape_cast %204 : vector<128x1xi1> to vector<128x1xi1>
    %206 = vector.broadcast %205 : vector<128x1xi1> to vector<128x128xi1>
    %207 = arith.select %206, %183, %6 : vector<128x128xi1>, vector<128x128xbf16>
    %208 = tpu.concatenate %202, %207 in 1 : vector<128x128xbf16>, vector<128x128xbf16> -> vector<128x256xbf16>
    %c256_92 = arith.constant 256 : index
    %c0_93 = arith.constant 0 : index
    %209 = vector.load %arg2[%c256_92, %c0_93] : memref<512x128xbf16, #tpu.memory_space<vmem>>, vector<256x128xbf16>
    %cst_94 = arith.constant dense<0.000000e+00> : vector<128x128xf32>
    %210 = tpu.matmul %208, %209, %cst_94 {dimension_numbers = #tpu.dot_dimension_numbers<[1], [0], [0], [1], [0, 0, 1, 1], [], []>} : vector<128x256xbf16>, vector<256x128xbf16>, vector<128x128xf32> -> vector<128x128xf32>
    %211 = arith.addf %197, %210 : vector<128x128xf32>
    %cst_95 = arith.constant 0.333333343 : f32
    %212 = vector.broadcast %cst_95 : f32 to vector<128x128xf32>
    %213 = arith.mulf %211, %212 : vector<128x128xf32>
    %c3_96 = arith.constant 3 : index
    %c0_97 = arith.constant 0 : index
    %c0_98 = arith.constant 0 : index
    %214 = vector.load %arg4[%c3_96, %c0_97, %c0_98] : memref<5x128x128xf32, #tpu.memory_space<vmem>>, vector<1x128x128xf32>
    %215 = vector.shape_cast %214 : vector<1x128x128xf32> to vector<128x128xf32>
    %216 = vector.shape_cast %213 : vector<128x128xf32> to vector<1x128x128xf32>
    tpu.vector_store %arg4[%c3_96, %c0_97, %c0_98], %216 {strides = array<i32>} : memref<5x128x128xf32, #tpu.memory_space<vmem>>, vector<1x128x128xf32>,
    %cst_99 = arith.constant 0.000000e+00 : f32
    %217 = vector.broadcast %cst_99 : f32 to vector<128x128xf32>
    %c0_100 = arith.constant 0 : index
    %c6 = arith.constant 6 : index
    %218 = vector.load %arg1[%c0_100, %c6] : memref<128x10xi32, #tpu.memory_space<vmem>>, vector<128x1xi32>
    %c0_101 = arith.constant 0 : index
    %c0_102 = arith.constant 0 : index
    %c0_103 = arith.constant 0 : index
    %219 = vector.load %arg4[%c0_101, %c0_102, %c0_103] : memref<5x128x128xf32, #tpu.memory_space<vmem>>, vector<1x128x128xf32>
    %220 = vector.shape_cast %219 : vector<1x128x128xf32> to vector<128x128xf32>
    %221 = arith.truncf %220 : vector<128x128xf32> to vector<128x128xbf16>
    %c0_i32_104 = arith.constant 0 : i32
    %222 = vector.broadcast %c0_i32_104 : i32 to vector<128x1xi32>
    %223 = arith.cmpi eq, %218, %222 : vector<128x1xi32>
    %224 = vector.shape_cast %223 : vector<128x1xi1> to vector<128x1xi1>
    %225 = vector.broadcast %224 : vector<128x1xi1> to vector<128x128xi1>
    %226 = arith.select %225, %221, %6 : vector<128x128xi1>, vector<128x128xbf16>
    %c1_i32_105 = arith.constant 1 : i32
    %227 = vector.broadcast %c1_i32_105 : i32 to vector<128x1xi32>
    %228 = arith.cmpi eq, %218, %227 : vector<128x1xi32>
    %229 = vector.shape_cast %228 : vector<128x1xi1> to vector<128x1xi1>
    %230 = vector.broadcast %229 : vector<128x1xi1> to vector<128x128xi1>
    %231 = arith.select %230, %221, %6 : vector<128x128xi1>, vector<128x128xbf16>
    %232 = tpu.concatenate %226, %231 in 1 : vector<128x128xbf16>, vector<128x128xbf16> -> vector<128x256xbf16>
    %c0_106 = arith.constant 0 : index
    %c0_107 = arith.constant 0 : index
    %233 = vector.load %arg2[%c0_106, %c0_107] : memref<512x128xbf16, #tpu.memory_space<vmem>>, vector<256x128xbf16>
    %cst_108 = arith.constant dense<0.000000e+00> : vector<128x128xf32>
    %234 = tpu.matmul %232, %233, %cst_108 {dimension_numbers = #tpu.dot_dimension_numbers<[1], [0], [0], [1], [0, 0, 1, 1], [], []>} : vector<128x256xbf16>, vector<256x128xbf16>, vector<128x128xf32> -> vector<128x128xf32>
    %235 = arith.addf %217, %234 : vector<128x128xf32>
    %c2_i32_109 = arith.constant 2 : i32
    %236 = vector.broadcast %c2_i32_109 : i32 to vector<128x1xi32>
    %237 = arith.cmpi eq, %218, %236 : vector<128x1xi32>
    %238 = vector.shape_cast %237 : vector<128x1xi1> to vector<128x1xi1>
    %239 = vector.broadcast %238 : vector<128x1xi1> to vector<128x128xi1>
    %240 = arith.select %239, %221, %6 : vector<128x128xi1>, vector<128x128xbf16>
    %c3_i32_110 = arith.constant 3 : i32
    %241 = vector.broadcast %c3_i32_110 : i32 to vector<128x1xi32>
    %242 = arith.cmpi eq, %218, %241 : vector<128x1xi32>
    %243 = vector.shape_cast %242 : vector<128x1xi1> to vector<128x1xi1>
    %244 = vector.broadcast %243 : vector<128x1xi1> to vector<128x128xi1>
    %245 = arith.select %244, %221, %6 : vector<128x128xi1>, vector<128x128xbf16>
    %246 = tpu.concatenate %240, %245 in 1 : vector<128x128xbf16>, vector<128x128xbf16> -> vector<128x256xbf16>
    %c256_111 = arith.constant 256 : index
    %c0_112 = arith.constant 0 : index
    %247 = vector.load %arg2[%c256_111, %c0_112] : memref<512x128xbf16, #tpu.memory_space<vmem>>, vector<256x128xbf16>
    %cst_113 = arith.constant dense<0.000000e+00> : vector<128x128xf32>
    %248 = tpu.matmul %246, %247, %cst_113 {dimension_numbers = #tpu.dot_dimension_numbers<[1], [0], [0], [1], [0, 0, 1, 1], [], []>} : vector<128x256xbf16>, vector<256x128xbf16>, vector<128x128xf32> -> vector<128x128xf32>
    %249 = arith.addf %235, %248 : vector<128x128xf32>
    %c0_114 = arith.constant 0 : index
    %c7 = arith.constant 7 : index
    %250 = vector.load %arg1[%c0_114, %c7] : memref<128x10xi32, #tpu.memory_space<vmem>>, vector<128x1xi32>
    %c1_115 = arith.constant 1 : index
    %c0_116 = arith.constant 0 : index
    %c0_117 = arith.constant 0 : index
    %251 = vector.load %arg4[%c1_115, %c0_116, %c0_117] : memref<5x128x128xf32, #tpu.memory_space<vmem>>, vector<1x128x128xf32>
    %252 = vector.shape_cast %251 : vector<1x128x128xf32> to vector<128x128xf32>
    %253 = arith.truncf %252 : vector<128x128xf32> to vector<128x128xbf16>
    %c0_i32_118 = arith.constant 0 : i32
    %254 = vector.broadcast %c0_i32_118 : i32 to vector<128x1xi32>
    %255 = arith.cmpi eq, %250, %254 : vector<128x1xi32>
    %256 = vector.shape_cast %255 : vector<128x1xi1> to vector<128x1xi1>
    %257 = vector.broadcast %256 : vector<128x1xi1> to vector<128x128xi1>
    %258 = arith.select %257, %253, %6 : vector<128x128xi1>, vector<128x128xbf16>
    %c1_i32_119 = arith.constant 1 : i32
    %259 = vector.broadcast %c1_i32_119 : i32 to vector<128x1xi32>
    %260 = arith.cmpi eq, %250, %259 : vector<128x1xi32>
    %261 = vector.shape_cast %260 : vector<128x1xi1> to vector<128x1xi1>
    %262 = vector.broadcast %261 : vector<128x1xi1> to vector<128x128xi1>
    %263 = arith.select %262, %253, %6 : vector<128x128xi1>, vector<128x128xbf16>
    %264 = tpu.concatenate %258, %263 in 1 : vector<128x128xbf16>, vector<128x128xbf16> -> vector<128x256xbf16>
    %c0_120 = arith.constant 0 : index
    %c0_121 = arith.constant 0 : index
    %265 = vector.load %arg2[%c0_120, %c0_121] : memref<512x128xbf16, #tpu.memory_space<vmem>>, vector<256x128xbf16>
    %cst_122 = arith.constant dense<0.000000e+00> : vector<128x128xf32>
    %266 = tpu.matmul %264, %265, %cst_122 {dimension_numbers = #tpu.dot_dimension_numbers<[1], [0], [0], [1], [0, 0, 1, 1], [], []>} : vector<128x256xbf16>, vector<256x128xbf16>, vector<128x128xf32> -> vector<128x128xf32>
    %267 = arith.addf %249, %266 : vector<128x128xf32>
    %c2_i32_123 = arith.constant 2 : i32
    %268 = vector.broadcast %c2_i32_123 : i32 to vector<128x1xi32>
    %269 = arith.cmpi eq, %250, %268 : vector<128x1xi32>
    %270 = vector.shape_cast %269 : vector<128x1xi1> to vector<128x1xi1>
    %271 = vector.broadcast %270 : vector<128x1xi1> to vector<128x128xi1>
    %272 = arith.select %271, %253, %6 : vector<128x128xi1>, vector<128x128xbf16>
    %c3_i32_124 = arith.constant 3 : i32
    %273 = vector.broadcast %c3_i32_124 : i32 to vector<128x1xi32>
    %274 = arith.cmpi eq, %250, %273 : vector<128x1xi32>
    %275 = vector.shape_cast %274 : vector<128x1xi1> to vector<128x1xi1>
    %276 = vector.broadcast %275 : vector<128x1xi1> to vector<128x128xi1>
    %277 = arith.select %276, %253, %6 : vector<128x128xi1>, vector<128x128xbf16>
    %278 = tpu.concatenate %272, %277 in 1 : vector<128x128xbf16>, vector<128x128xbf16> -> vector<128x256xbf16>
    %c256_125 = arith.constant 256 : index
    %c0_126 = arith.constant 0 : index
    %279 = vector.load %arg2[%c256_125, %c0_126] : memref<512x128xbf16, #tpu.memory_space<vmem>>, vector<256x128xbf16>
    %cst_127 = arith.constant dense<0.000000e+00> : vector<128x128xf32>
    %280 = tpu.matmul %278, %279, %cst_127 {dimension_numbers = #tpu.dot_dimension_numbers<[1], [0], [0], [1], [0, 0, 1, 1], [], []>} : vector<128x256xbf16>, vector<256x128xbf16>, vector<128x128xf32> -> vector<128x128xf32>
    %281 = arith.addf %267, %280 : vector<128x128xf32>
    %c0_128 = arith.constant 0 : index
    %c8 = arith.constant 8 : index
    %282 = vector.load %arg1[%c0_128, %c8] : memref<128x10xi32, #tpu.memory_space<vmem>>, vector<128x1xi32>
    %c2_129 = arith.constant 2 : index
    %c0_130 = arith.constant 0 : index
    %c0_131 = arith.constant 0 : index
    %283 = vector.load %arg4[%c2_129, %c0_130, %c0_131] : memref<5x128x128xf32, #tpu.memory_space<vmem>>, vector<1x128x128xf32>
    %284 = vector.shape_cast %283 : vector<1x128x128xf32> to vector<128x128xf32>
    %285 = arith.truncf %284 : vector<128x128xf32> to vector<128x128xbf16>
    %c0_i32_132 = arith.constant 0 : i32
    %286 = vector.broadcast %c0_i32_132 : i32 to vector<128x1xi32>
    %287 = arith.cmpi eq, %282, %286 : vector<128x1xi32>
    %288 = vector.shape_cast %287 : vector<128x1xi1> to vector<128x1xi1>
    %289 = vector.broadcast %288 : vector<128x1xi1> to vector<128x128xi1>
    %290 = arith.select %289, %285, %6 : vector<128x128xi1>, vector<128x128xbf16>
    %c1_i32_133 = arith.constant 1 : i32
    %291 = vector.broadcast %c1_i32_133 : i32 to vector<128x1xi32>
    %292 = arith.cmpi eq, %282, %291 : vector<128x1xi32>
    %293 = vector.shape_cast %292 : vector<128x1xi1> to vector<128x1xi1>
    %294 = vector.broadcast %293 : vector<128x1xi1> to vector<128x128xi1>
    %295 = arith.select %294, %285, %6 : vector<128x128xi1>, vector<128x128xbf16>
    %296 = tpu.concatenate %290, %295 in 1 : vector<128x128xbf16>, vector<128x128xbf16> -> vector<128x256xbf16>
    %c0_134 = arith.constant 0 : index
    %c0_135 = arith.constant 0 : index
    %297 = vector.load %arg2[%c0_134, %c0_135] : memref<512x128xbf16, #tpu.memory_space<vmem>>, vector<256x128xbf16>
    %cst_136 = arith.constant dense<0.000000e+00> : vector<128x128xf32>
    %298 = tpu.matmul %296, %297, %cst_136 {dimension_numbers = #tpu.dot_dimension_numbers<[1], [0], [0], [1], [0, 0, 1, 1], [], []>} : vector<128x256xbf16>, vector<256x128xbf16>, vector<128x128xf32> -> vector<128x128xf32>
    %299 = arith.addf %281, %298 : vector<128x128xf32>
    %c2_i32_137 = arith.constant 2 : i32
    %300 = vector.broadcast %c2_i32_137 : i32 to vector<128x1xi32>
    %301 = arith.cmpi eq, %282, %300 : vector<128x1xi32>
    %302 = vector.shape_cast %301 : vector<128x1xi1> to vector<128x1xi1>
    %303 = vector.broadcast %302 : vector<128x1xi1> to vector<128x128xi1>
    %304 = arith.select %303, %285, %6 : vector<128x128xi1>, vector<128x128xbf16>
    %c3_i32_138 = arith.constant 3 : i32
    %305 = vector.broadcast %c3_i32_138 : i32 to vector<128x1xi32>
    %306 = arith.cmpi eq, %282, %305 : vector<128x1xi32>
    %307 = vector.shape_cast %306 : vector<128x1xi1> to vector<128x1xi1>
    %308 = vector.broadcast %307 : vector<128x1xi1> to vector<128x128xi1>
    %309 = arith.select %308, %285, %6 : vector<128x128xi1>, vector<128x128xbf16>
    %310 = tpu.concatenate %304, %309 in 1 : vector<128x128xbf16>, vector<128x128xbf16> -> vector<128x256xbf16>
    %c256_139 = arith.constant 256 : index
    %c0_140 = arith.constant 0 : index
    %311 = vector.load %arg2[%c256_139, %c0_140] : memref<512x128xbf16, #tpu.memory_space<vmem>>, vector<256x128xbf16>
    %cst_141 = arith.constant dense<0.000000e+00> : vector<128x128xf32>
    %312 = tpu.matmul %310, %311, %cst_141 {dimension_numbers = #tpu.dot_dimension_numbers<[1], [0], [0], [1], [0, 0, 1, 1], [], []>} : vector<128x256xbf16>, vector<256x128xbf16>, vector<128x128xf32> -> vector<128x128xf32>
    %313 = arith.addf %299, %312 : vector<128x128xf32>
    %c0_142 = arith.constant 0 : index
    %c9 = arith.constant 9 : index
    %314 = vector.load %arg1[%c0_142, %c9] : memref<128x10xi32, #tpu.memory_space<vmem>>, vector<128x1xi32>
    %c3_143 = arith.constant 3 : index
    %c0_144 = arith.constant 0 : index
    %c0_145 = arith.constant 0 : index
    %315 = vector.load %arg4[%c3_143, %c0_144, %c0_145] : memref<5x128x128xf32, #tpu.memory_space<vmem>>, vector<1x128x128xf32>
    %316 = vector.shape_cast %315 : vector<1x128x128xf32> to vector<128x128xf32>
    %317 = arith.truncf %316 : vector<128x128xf32> to vector<128x128xbf16>
    %c0_i32_146 = arith.constant 0 : i32
    %318 = vector.broadcast %c0_i32_146 : i32 to vector<128x1xi32>
    %319 = arith.cmpi eq, %314, %318 : vector<128x1xi32>
    %320 = vector.shape_cast %319 : vector<128x1xi1> to vector<128x1xi1>
    %321 = vector.broadcast %320 : vector<128x1xi1> to vector<128x128xi1>
    %322 = arith.select %321, %317, %6 : vector<128x128xi1>, vector<128x128xbf16>
    %c1_i32_147 = arith.constant 1 : i32
    %323 = vector.broadcast %c1_i32_147 : i32 to vector<128x1xi32>
    %324 = arith.cmpi eq, %314, %323 : vector<128x1xi32>
    %325 = vector.shape_cast %324 : vector<128x1xi1> to vector<128x1xi1>
    %326 = vector.broadcast %325 : vector<128x1xi1> to vector<128x128xi1>
    %327 = arith.select %326, %317, %6 : vector<128x128xi1>, vector<128x128xbf16>
    %328 = tpu.concatenate %322, %327 in 1 : vector<128x128xbf16>, vector<128x128xbf16> -> vector<128x256xbf16>
    %c0_148 = arith.constant 0 : index
    %c0_149 = arith.constant 0 : index
    %329 = vector.load %arg2[%c0_148, %c0_149] : memref<512x128xbf16, #tpu.memory_space<vmem>>, vector<256x128xbf16>
    %cst_150 = arith.constant dense<0.000000e+00> : vector<128x128xf32>
    %330 = tpu.matmul %328, %329, %cst_150 {dimension_numbers = #tpu.dot_dimension_numbers<[1], [0], [0], [1], [0, 0, 1, 1], [], []>} : vector<128x256xbf16>, vector<256x128xbf16>, vector<128x128xf32> -> vector<128x128xf32>
    %331 = arith.addf %313, %330 : vector<128x128xf32>
    %c2_i32_151 = arith.constant 2 : i32
    %332 = vector.broadcast %c2_i32_151 : i32 to vector<128x1xi32>
    %333 = arith.cmpi eq, %314, %332 : vector<128x1xi32>
    %334 = vector.shape_cast %333 : vector<128x1xi1> to vector<128x1xi1>
    %335 = vector.broadcast %334 : vector<128x1xi1> to vector<128x128xi1>
    %336 = arith.select %335, %317, %6 : vector<128x128xi1>, vector<128x128xbf16>
    %c3_i32_152 = arith.constant 3 : i32
    %337 = vector.broadcast %c3_i32_152 : i32 to vector<128x1xi32>
    %338 = arith.cmpi eq, %314, %337 : vector<128x1xi32>
    %339 = vector.shape_cast %338 : vector<128x1xi1> to vector<128x1xi1>
    %340 = vector.broadcast %339 : vector<128x1xi1> to vector<128x128xi1>
    %341 = arith.select %340, %317, %6 : vector<128x128xi1>, vector<128x128xbf16>
    %342 = tpu.concatenate %336, %341 in 1 : vector<128x128xbf16>, vector<128x128xbf16> -> vector<128x256xbf16>
    %c256_153 = arith.constant 256 : index
    %c0_154 = arith.constant 0 : index
    %343 = vector.load %arg2[%c256_153, %c0_154] : memref<512x128xbf16, #tpu.memory_space<vmem>>, vector<256x128xbf16>
    %cst_155 = arith.constant dense<0.000000e+00> : vector<128x128xf32>
    %344 = tpu.matmul %342, %343, %cst_155 {dimension_numbers = #tpu.dot_dimension_numbers<[1], [0], [0], [1], [0, 0, 1, 1], [], []>} : vector<128x256xbf16>, vector<256x128xbf16>, vector<128x128xf32> -> vector<128x128xf32>
    %345 = arith.addf %331, %344 : vector<128x128xf32>
    %cst_156 = arith.constant 2.500000e-01 : f32
    %346 = vector.broadcast %cst_156 : f32 to vector<128x128xf32>
    %347 = arith.mulf %345, %346 : vector<128x128xf32>
    %c4_157 = arith.constant 4 : index
    %c0_158 = arith.constant 0 : index
    %c0_159 = arith.constant 0 : index
    %348 = vector.load %arg4[%c4_157, %c0_158, %c0_159] : memref<5x128x128xf32, #tpu.memory_space<vmem>>, vector<1x128x128xf32>
    %349 = vector.shape_cast %348 : vector<1x128x128xf32> to vector<128x128xf32>
    %350 = vector.shape_cast %347 : vector<128x128xf32> to vector<1x128x128xf32>
    tpu.vector_store %arg4[%c4_157, %c0_158, %c0_159], %350 {strides = array<i32>} : memref<5x128x128xf32, #tpu.memory_space<vmem>>, vector<1x128x128xf32>,
    return
  }
  func.func @transform_0(%arg0: i32) -> (i32, i32) {
    %c0_i32 = arith.constant 0 : i32
    %c0_i32_0 = arith.constant 0 : i32
    return %arg0, %c0_i32 : i32, i32
  }
  func.func @transform_1(%arg0: i32) -> (i32, i32) {
    %c0_i32 = arith.constant 0 : i32
    %c0_i32_0 = arith.constant 0 : i32
    %c0_i32_1 = arith.constant 0 : i32
    return %c0_i32, %c0_i32_0 : i32, i32
  }
  func.func @transform_2(%arg0: i32) -> (i32, i32) {
    %c0_i32 = arith.constant 0 : i32
    %c0_i32_0 = arith.constant 0 : i32
    %c0_i32_1 = arith.constant 0 : i32
    return %c0_i32, %c0_i32_0 : i32, i32
  }
  func.func @transform_3(%arg0: i32) -> (i32, i32, i32) {
    %c0_i32 = arith.constant 0 : i32
    %c0_i32_0 = arith.constant 0 : i32
    %c0_i32_1 = arith.constant 0 : i32
    return %c0_i32, %arg0, %c0_i32_0 : i32, i32, i32
  }
}

</mosaic_0001>

<llo_original>
// kernel: tpu_custom_call.1
$region0: #{tpu_custom_call.1}
  #allocation0 [shape = 'u32[]', space=smem, size = 0x4, offset = 0x4, fixed_abs, tag = 'smem constant byte address 0x4 - core index']
  #allocation1 [shape = 'u32[72,128]{1,0:T(1,128)}', space=vmem, size = 0x9000, scoped, tag = 'internal scratch']
  #allocation4 [shape = 's32[]', space=sflag, size = 0x4, offset = 0, fixed_abs, tag = 'sflag constant byte address 0x0 - dummy sync flag']
  %s0 = inlined_call_operand.vmem [shape: s32[256,10], index: 0, kind: input, shape index: {}]
  %s1 = inlined_call_operand.vmem [shape: bf16[512,128], index: 1, kind: input, shape index: {}]
  %s2 = inlined_call_operand.vmem [shape: f32[1,128], index: 2, kind: input, shape index: {}]
  %s3 = inlined_call_operand.hbm [shape: f32[5,256,128], index: 3, kind: output, shape index: {}]
  %s4 = sld [smem:[#allocation0]]
  $region45: #{tpu_custom_call.1} parent=0
    _
  %s6 = ssub.s32 1, %s4
  %s7 = scalar_select 0, %s6, %s4
  $region1: #{tpu_custom_call.1} parent=0
    #allocation2 [shape = 'u8[655360]{0}', space=vmem, size = 0xa0000, scoped, tag = 'output window, operand 0']
    #allocation3 [shape = 's32[2]{0}', space=sflag, size = 0x8, scoped, tag = 'scoped memory for tpu_custom_call.1']
    %8 = vsyncpa [#allocation3], 0
    %s9 = scalar_lea.sflag [#allocation3], 1
    %10 = vsyncpa %s9, 0
    loop: start=0, step=1, limit=4
    $region2: #{tpu_custom_call.1} parent=1 // loop_pre_header
      _
    $region3: #{tpu_custom_call.1} parent=1 // loop_header
      %s12 = sphi 0, %s16
      %p13 = scmp.ge.s32.totalorder %s12, 4
      %s22 = sphi 0, %s24
      %s25 = sphi 0, %s22
      %s26 = sphi 0, %s25
      %s42 = sphi 0, %s26
      %s46 = sphi 0, %s46
      %s48 = sphi 0, %s46
      %s49 = sphi 0, %s48
      %s63 = sphi 0, %s49
      %s67 = sphi 0, %s67
      %s69 = sphi 0, %s67
      %s70 = sphi 0, %s69
      %s84 = sphi 0, %s70
      %s90 = sphi 0, %s92
      %s93 = sphi 0, %s90
      %s94 = sphi 0, %s93
      %s110 = sphi 0, %s94
    $region4: #{tpu_custom_call.1} parent=1 // loop_header_branch
      %15 = sbr.rel (%p13) target = $region8
    $region5: #{tpu_custom_call.1} parent=1 // loop_body
      %s17 = ssub.s32 %s12, 1
      %s18 = ssub.s32 %s12, 2
      %s19 = sadd.s32 %s12, 1
      %s20 = ssub.s32 %s12, %s19
      %p21 = scmp.eq.s32.totalorder %s20, 0
      %s23 = sadd.s32 %s22, 1
      %s24 = scalar_select %p21, %s22, %s23
      %p27 = pneg %p21
      %p28 = scmp.eq.s32.totalorder %s12, 1
      %p29 = por %p27, %p28
      %p30 = scmp.ne.s32.totalorder %s22, %s25
      %p31 = scmp.eq.s32.totalorder %s12, 0
      %p32 = por %p30, %p31
      %p33 = scmp.ne.s32.totalorder %s22, %s25
      %p34 = scmp.eq.s32.totalorder %s17, 1
      %p35 = por %p33, %p34
      %p36 = scmp.ne.s32.totalorder %s25, %s26
      %p37 = scmp.eq.s32.totalorder %s17, 0
      %p38 = por %p36, %p37
      %p39 = scmp.ne.s32.totalorder %s25, %s26
      %p40 = scmp.eq.s32.totalorder %s18, 1
      %p41 = por %p39, %p40
      %p43 = scmp.ne.s32.totalorder %s26, %s42
      %p44 = scmp.eq.s32.totalorder %s18, 0
      %p45 = por %p43, %p44
      %s47 = sadd.s32 %s46, 1
      %p50 = scmp.eq.s32.totalorder %s12, 1
      %p51 = scmp.ne.s32.totalorder %s46, %s48
      %p52 = scmp.eq.s32.totalorder %s12, 0
      %p53 = por %p51, %p52
      %p54 = scmp.ne.s32.totalorder %s46, %s48
      %p55 = scmp.eq.s32.totalorder %s17, 1
      %p56 = por %p54, %p55
      %p57 = scmp.ne.s32.totalorder %s48, %s49
      %p58 = scmp.eq.s32.totalorder %s17, 0
      %p59 = por %p57, %p58
      %p60 = scmp.ne.s32.totalorder %s48, %s49
      %p61 = scmp.eq.s32.totalorder %s18, 1
      %p62 = por %p60, %p61
      %p64 = scmp.ne.s32.totalorder %s49, %s63
      %p65 = scmp.eq.s32.totalorder %s18, 0
      %p66 = por %p64, %p65
      %s68 = sadd.s32 %s67, 1
      %p71 = scmp.eq.s32.totalorder %s12, 1
      %p72 = scmp.ne.s32.totalorder %s67, %s69
      %p73 = scmp.eq.s32.totalorder %s12, 0
      %p74 = por %p72, %p73
      %p75 = scmp.ne.s32.totalorder %s67, %s69
      %p76 = scmp.eq.s32.totalorder %s17, 1
      %p77 = por %p75, %p76
      %p78 = scmp.ne.s32.totalorder %s69, %s70
      %p79 = scmp.eq.s32.totalorder %s17, 0
      %p80 = por %p78, %p79
      %p81 = scmp.ne.s32.totalorder %s69, %s70
      %p82 = scmp.eq.s32.totalorder %s18, 1
      %p83 = por %p81, %p82
      %p85 = scmp.ne.s32.totalorder %s70, %s84
      %p86 = scmp.eq.s32.totalorder %s18, 0
      %p87 = por %p85, %p86
      %s88 = ssub.s32 %s12, %s19
      %p89 = scmp.eq.s32.totalorder %s88, 0
      %s91 = sadd.s32 %s90, 1
      %s92 = scalar_select %p89, %s90, %s91
      %p95 = pneg %p89
      %p96 = scmp.eq.s32.totalorder %s12, 1
      %p97 = por %p95, %p96
      %p98 = scmp.ne.s32.totalorder %s90, %s93
      %p99 = scmp.eq.s32.totalorder %s12, 0
      %p100 = por %p98, %p99
      %p101 = scmp.ne.s32.totalorder %s90, %s93
      %p102 = scmp.eq.s32.totalorder %s17, 1
      %p103 = por %p101, %p102
      %p104 = scmp.ne.s32.totalorder %s93, %s94
      %p105 = scmp.eq.s32.totalorder %s17, 0
      %p106 = por %p104, %p105
      %p107 = scmp.ne.s32.totalorder %s93, %s94
      %p108 = scmp.eq.s32.totalorder %s18, 1
      %p109 = por %p107, %p108
      %p111 = scmp.ne.s32.totalorder %s94, %s110
      %p112 = scmp.eq.s32.totalorder %s18, 0
      %p113 = por %p111, %p112
      %p114 = scmp.le.s32.totalorder 1, %s12
      %p115 = scmp.lt.s32.totalorder %s12, 3
      %p116 = pnand %p114, %p115
      %p117 = pneg %p116
      // Predicated region
      $region9: #{tpu_custom_call.1} parent=5 // pred_check
        _
      $region10: #{tpu_custom_call.1} parent=5 // pred_check_branch
        %119 = sbr.rel (%p116) target = $region12
      $region11: #{tpu_custom_call.1} parent=5 // pred_region
        %s120 = ssub.s32 %s12, 1
        // Predicated region
        $region13: #{tpu_custom_call.1} parent=11 // pred_check
          %p121 = pneg %p59
        $region14: #{tpu_custom_call.1} parent=11 // pred_check_branch
          %123 = sbr.rel (%p121) target = $region16
        $region15: #{tpu_custom_call.1} parent=11 // pred_region
          _
        $region16: #{tpu_custom_call.1} parent=11 // pred_fallthru
          _
        // Predicated region
        $region17: #{tpu_custom_call.1} parent=11 // pred_check
          %p124 = pneg %p80
        $region18: #{tpu_custom_call.1} parent=11 // pred_check_branch
          %126 = sbr.rel (%p124) target = $region20
        $region19: #{tpu_custom_call.1} parent=11 // pred_region
          _
        $region20: #{tpu_custom_call.1} parent=11 // pred_fallthru
          _
      $region12: #{tpu_custom_call.1} parent=5 // pred_fallthru
        _
      %p127 = scmp.lt.s32.totalorder %s12, 2
      // Predicated region
      $region21: #{tpu_custom_call.1} parent=5 // pred_check
        %p128 = pneg %p127
      $region22: #{tpu_custom_call.1} parent=5 // pred_check_branch
        %130 = sbr.rel (%p128) target = $region24
      $region23: #{tpu_custom_call.1} parent=5 // pred_region
        // Predicated region
        $region25: #{tpu_custom_call.1} parent=23 // pred_check
          %p131 = pneg %p32
        $region26: #{tpu_custom_call.1} parent=23 // pred_check_branch
          %133 = sbr.rel (%p131) target = $region28
        $region27: #{tpu_custom_call.1} parent=23 // pred_region
          %s134 = smul.u32 16, %s12
          %p135 = scmp.lt.s32.totalorder %s134, 31
          %s136 = scalar_select %p135, %s134, 31
          %s137 = smul.addr %s136, 8
          %s138 = scalar_lea.vmem %s0, %s137
          %s139 = smul.u32 16, %s12
        $region28: #{tpu_custom_call.1} parent=23 // pred_fallthru
          _
      $region24: #{tpu_custom_call.1} parent=5 // pred_fallthru
        _
      %p140 = scmp.le.s32.totalorder 1, %s12
      %p141 = scmp.lt.s32.totalorder %s12, 3
      %p142 = pnand %p140, %p141
      %p143 = pneg %p142
      // Predicated region
      $region29: #{tpu_custom_call.1} parent=5 // pred_check
        _
      $region30: #{tpu_custom_call.1} parent=5 // pred_check_branch
        %145 = sbr.rel (%p142) target = $region32
      $region31: #{tpu_custom_call.1} parent=5 // pred_region
        %s146 = ssub.s32 %s12, 1
        %s147 = smul.u32 16, %s17
        %p148 = scmp.lt.s32.totalorder %s147, 31
        %s149 = scalar_select %p148, %s147, 31
        %s150 = smul.addr %s149, 8
        %s151 = scalar_lea.vmem %s0, %s150
        %p152 = pneg %p38
        %p153 = pneg %p35
        %p154 = pneg %p59
        %p155 = pneg %p56
        %p156 = pneg %p80
        %p157 = pneg %p77
        %p158 = pneg %p106
        %p159 = pneg %p103
        %s160 = sand.u32 %s93, 1
        %s161 = scalar_lea.sflag [#allocation3], %s160
        %s162 = sand.u32 %s93, 1
        %s163 = smul.addr %s162, 640
        %s164 = scalar_lea.vmem [#allocation2], %s163
        %s165 = smul.u32 16, %s17
        %p166 = scmp.lt.s32.totalorder %s165, 31
        %s167 = scalar_select %p166, %s165, 31
        %s168 = smul.addr %s167, 8
        %s169 = scalar_lea.vmem %s0, %s168
        %s170 = smul.u32 16, %s17
        %s171 = smul.u32 16, %s17
        %v173 = vld [vmem:[%s2] sm:$0x1]
        %v175 = vperm.slane %v173, 0
        %177 = vst [vmem:[%s164] sm:$0xff] %v175
        %178 = vst [vmem:[%s164 + $0x8] sm:$0xff] %v175
        %179 = vst [vmem:[%s164 + $0x10] sm:$0xff] %v175
        %180 = vst [vmem:[%s164 + $0x18] sm:$0xff] %v175
        %181 = vst [vmem:[%s164 + $0x20] sm:$0xff] %v175
        %182 = vst [vmem:[%s164 + $0x28] sm:$0xff] %v175
        %183 = vst [vmem:[%s164 + $0x30] sm:$0xff] %v175
        %184 = vst [vmem:[%s164 + $0x38] sm:$0xff] %v175
        %185 = vst [vmem:[%s164 + $0x40] sm:$0xff] %v175
        %186 = vst [vmem:[%s164 + $0x48] sm:$0xff] %v175
        %187 = vst [vmem:[%s164 + $0x50] sm:$0xff] %v175
        %188 = vst [vmem:[%s164 + $0x58] sm:$0xff] %v175
        %189 = vst [vmem:[%s164 + $0x60] sm:$0xff] %v175
        %190 = vst [vmem:[%s164 + $0x68] sm:$0xff] %v175
        %191 = vst [vmem:[%s164 + $0x70] sm:$0xff] %v175
        %192 = vst [vmem:[%s164 + $0x78] sm:$0xff] %v175
        %v193 = vld [vmem:[%s169] sm:$0xff]
        %v194 = vld [vmem:[%s169 + $0x8] sm:$0xff]
        %v195 = vld [vmem:[%s169 + $0x10] sm:$0xff]
        %v196 = vld [vmem:[%s169 + $0x18] sm:$0xff]
        %v197 = vld [vmem:[%s169 + $0x20] sm:$0xff]
        %v198 = vld [vmem:[%s169 + $0x28] sm:$0xff]
        %v199 = vld [vmem:[%s169 + $0x30] sm:$0xff]
        %v200 = vld [vmem:[%s169 + $0x38] sm:$0xff]
        %v201 = vld [vmem:[%s169 + $0x40] sm:$0xff]
        %v202 = vld [vmem:[%s169 + $0x48] sm:$0xff]
        %v203 = vld [vmem:[%s169 + $0x50] sm:$0xff]
        %v204 = vld [vmem:[%s169 + $0x58] sm:$0xff]
        %v205 = vld [vmem:[%s169 + $0x60] sm:$0xff]
        %v206 = vld [vmem:[%s169 + $0x68] sm:$0xff]
        %v207 = vld [vmem:[%s169 + $0x70] sm:$0xff]
        %v208 = vld [vmem:[%s169 + $0x78] sm:$0xff]
        %v209 = vld [vmem:[%s164] sm:$0xff]
        %v210 = vld [vmem:[%s164 + $0x8] sm:$0xff]
        %v211 = vld [vmem:[%s164 + $0x10] sm:$0xff]
        %v212 = vld [vmem:[%s164 + $0x18] sm:$0xff]
        %v213 = vld [vmem:[%s164 + $0x20] sm:$0xff]
        %v214 = vld [vmem:[%s164 + $0x28] sm:$0xff]
        %v215 = vld [vmem:[%s164 + $0x30] sm:$0xff]
        %v216 = vld [vmem:[%s164 + $0x38] sm:$0xff]
        %v217 = vld [vmem:[%s164 + $0x40] sm:$0xff]
        %v218 = vld [vmem:[%s164 + $0x48] sm:$0xff]
        %v219 = vld [vmem:[%s164 + $0x50] sm:$0xff]
        %v220 = vld [vmem:[%s164 + $0x58] sm:$0xff]
        %v221 = vld [vmem:[%s164 + $0x60] sm:$0xff]
        %v222 = vld [vmem:[%s164 + $0x68] sm:$0xff]
        %v223 = vld [vmem:[%s164 + $0x70] sm:$0xff]
        %v224 = vld [vmem:[%s164 + $0x78] sm:$0xff]
        %v225 = vpack.c.bf16 %v209, %v209
        %v226 = vpack.c.bf16 %v210, %v210
        %v227 = vpack.c.bf16 %v211, %v211
        %v228 = vpack.c.bf16 %v212, %v212
        %v229 = vpack.c.bf16 %v213, %v213
        %v230 = vpack.c.bf16 %v214, %v214
        %v231 = vpack.c.bf16 %v215, %v215
        %v232 = vpack.c.bf16 %v216, %v216
        %v233 = vpack.c.bf16 %v217, %v217
        %v234 = vpack.c.bf16 %v218, %v218
        %v235 = vpack.c.bf16 %v219, %v219
        %v236 = vpack.c.bf16 %v220, %v220
        %v237 = vpack.c.bf16 %v221, %v221
        %v238 = vpack.c.bf16 %v222, %v222
        %v239 = vpack.c.bf16 %v223, %v223
        %v240 = vpack.c.bf16 %v224, %v224
        %vm241 = vcmp.eq.s32.totalorder %v193, 0
        %vm242 = vcmp.eq.s32.totalorder %v194, 0
        %vm243 = vcmp.eq.s32.totalorder %v195, 0
        %vm244 = vcmp.eq.s32.totalorder %v196, 0
        %vm245 = vcmp.eq.s32.totalorder %v197, 0
        %vm246 = vcmp.eq.s32.totalorder %v198, 0
        %vm247 = vcmp.eq.s32.totalorder %v199, 0
        %vm248 = vcmp.eq.s32.totalorder %v200, 0
        %vm249 = vcmp.eq.s32.totalorder %v201, 0
        %vm250 = vcmp.eq.s32.totalorder %v202, 0
        %vm251 = vcmp.eq.s32.totalorder %v203, 0
        %vm252 = vcmp.eq.s32.totalorder %v204, 0
        %vm253 = vcmp.eq.s32.totalorder %v205, 0
        %vm254 = vcmp.eq.s32.totalorder %v206, 0
        %vm255 = vcmp.eq.s32.totalorder %v207, 0
        %vm256 = vcmp.eq.s32.totalorder %v208, 0
        %v257 = vsel %vm241, 1, 0
        %v258 = vsel %vm242, 1, 0
        %v259 = vsel %vm243, 1, 0
        %v260 = vsel %vm244, 1, 0
        %v261 = vsel %vm245, 1, 0
        %v262 = vsel %vm246, 1, 0
        %v263 = vsel %vm247, 1, 0
        %v264 = vsel %vm248, 1, 0
        %v265 = vsel %vm249, 1, 0
        %v266 = vsel %vm250, 1, 0
        %v267 = vsel %vm251, 1, 0
        %v268 = vsel %vm252, 1, 0
        %v269 = vsel %vm253, 1, 0
        %v270 = vsel %vm254, 1, 0
        %v271 = vsel %vm255, 1, 0
        %v272 = vsel %vm256, 1, 0
        %273 = vset.pattern.permute.xlu0 0
        %274 = vperm.xlu0 %273, %v257
        %v275 = vpop.permute.xlu0 %274
        %276 = vset.pattern.permute.xlu0 0
        %277 = vperm.xlu0 %276, %v258
        %v278 = vpop.permute.xlu0 %277
        %279 = vset.pattern.permute.xlu0 0
        %280 = vperm.xlu0 %279, %v259
        %v281 = vpop.permute.xlu0 %280
        %282 = vset.pattern.permute.xlu0 0
        %283 = vperm.xlu0 %282, %v260
        %v284 = vpop.permute.xlu0 %283
        %285 = vset.pattern.permute.xlu0 0
        %286 = vperm.xlu0 %285, %v261
        %v287 = vpop.permute.xlu0 %286
        %288 = vset.pattern.permute.xlu0 0
        %289 = vperm.xlu0 %288, %v262
        %v290 = vpop.permute.xlu0 %289
        %291 = vset.pattern.permute.xlu0 0
        %292 = vperm.xlu0 %291, %v263
        %v293 = vpop.permute.xlu0 %292
        %294 = vset.pattern.permute.xlu0 0
        %295 = vperm.xlu0 %294, %v264
        %v296 = vpop.permute.xlu0 %295
        %297 = vset.pattern.permute.xlu0 0
        %298 = vperm.xlu0 %297, %v265
        %v299 = vpop.permute.xlu0 %298
        %300 = vset.pattern.permute.xlu0 0
        %301 = vperm.xlu0 %300, %v266
        %v302 = vpop.permute.xlu0 %301
        %303 = vset.pattern.permute.xlu0 0
        %304 = vperm.xlu0 %303, %v267
        %v305 = vpop.permute.xlu0 %304
        %306 = vset.pattern.permute.xlu0 0
        %307 = vperm.xlu0 %306, %v268
        %v308 = vpop.permute.xlu0 %307
        %309 = vset.pattern.permute.xlu0 0
        %310 = vperm.xlu0 %309, %v269
        %v311 = vpop.permute.xlu0 %310
        %312 = vset.pattern.permute.xlu0 0
        %313 = vperm.xlu0 %312, %v270
        %v314 = vpop.permute.xlu0 %313
        %315 = vset.pattern.permute.xlu0 0
        %316 = vperm.xlu0 %315, %v271
        %v317 = vpop.permute.xlu0 %316
        %318 = vset.pattern.permute.xlu0 0
        %319 = vperm.xlu0 %318, %v272
        %v320 = vpop.permute.xlu0 %319
        %vm321 = vcmp.eq.s32.totalorder %v275, 1
        %vm322 = vcmp.eq.s32.totalorder %v278, 1
        %vm323 = vcmp.eq.s32.totalorder %v281, 1
        %vm324 = vcmp.eq.s32.totalorder %v284, 1
        %vm325 = vcmp.eq.s32.totalorder %v287, 1
        %vm326 = vcmp.eq.s32.totalorder %v290, 1
        %vm327 = vcmp.eq.s32.totalorder %v293, 1
        %vm328 = vcmp.eq.s32.totalorder %v296, 1
        %vm329 = vcmp.eq.s32.totalorder %v299, 1
        %vm330 = vcmp.eq.s32.totalorder %v302, 1
        %vm331 = vcmp.eq.s32.totalorder %v305, 1
        %vm332 = vcmp.eq.s32.totalorder %v308, 1
        %vm333 = vcmp.eq.s32.totalorder %v311, 1
        %vm334 = vcmp.eq.s32.totalorder %v314, 1
        %vm335 = vcmp.eq.s32.totalorder %v317, 1
        %vm336 = vcmp.eq.s32.totalorder %v320, 1
        %vm337 = vmpackc.low %vm321, %vm321
        %vm338 = vmpackc.low %vm322, %vm322
        %vm339 = vmpackc.low %vm323, %vm323
        %vm340 = vmpackc.low %vm324, %vm324
        %vm341 = vmpackc.low %vm325, %vm325
        %vm342 = vmpackc.low %vm326, %vm326
        %vm343 = vmpackc.low %vm327, %vm327
        %vm344 = vmpackc.low %vm328, %vm328
        %vm345 = vmpackc.low %vm329, %vm329
        %vm346 = vmpackc.low %vm330, %vm330
        %vm347 = vmpackc.low %vm331, %vm331
        %vm348 = vmpackc.low %vm332, %vm332
        %vm349 = vmpackc.low %vm333, %vm333
        %vm350 = vmpackc.low %vm334, %vm334
        %vm351 = vmpackc.low %vm335, %vm335
        %vm352 = vmpackc.low %vm336, %vm336
        %v353 = vsel %vm337, %v225, 0
        %v354 = vsel %vm338, %v226, 0
        %v355 = vsel %vm339, %v227, 0
        %v356 = vsel %vm340, %v228, 0
        %v357 = vsel %vm341, %v229, 0
        %v358 = vsel %vm342, %v230, 0
        %v359 = vsel %vm343, %v231, 0
        %v360 = vsel %vm344, %v232, 0
        %v361 = vsel %vm345, %v233, 0
        %v362 = vsel %vm346, %v234, 0
        %v363 = vsel %vm347, %v235, 0
        %v364 = vsel %vm348, %v236, 0
        %v365 = vsel %vm349, %v237, 0
        %v366 = vsel %vm350, %v238, 0
        %v367 = vsel %vm351, %v239, 0
        %v368 = vsel %vm352, %v240, 0
        %vm369 = vcmp.eq.s32.totalorder %v193, 1
        %vm370 = vcmp.eq.s32.totalorder %v194, 1
        %vm371 = vcmp.eq.s32.totalorder %v195, 1
        %vm372 = vcmp.eq.s32.totalorder %v196, 1
        %vm373 = vcmp.eq.s32.totalorder %v197, 1
        %vm374 = vcmp.eq.s32.totalorder %v198, 1
        %vm375 = vcmp.eq.s32.totalorder %v199, 1
        %vm376 = vcmp.eq.s32.totalorder %v200, 1
        %vm377 = vcmp.eq.s32.totalorder %v201, 1
        %vm378 = vcmp.eq.s32.totalorder %v202, 1
        %vm379 = vcmp.eq.s32.totalorder %v203, 1
        %vm380 = vcmp.eq.s32.totalorder %v204, 1
        %vm381 = vcmp.eq.s32.totalorder %v205, 1
        %vm382 = vcmp.eq.s32.totalorder %v206, 1
        %vm383 = vcmp.eq.s32.totalorder %v207, 1
        %vm384 = vcmp.eq.s32.totalorder %v208, 1
        %v385 = vsel %vm369, 1, 0
        %v386 = vsel %vm370, 1, 0
        %v387 = vsel %vm371, 1, 0
        %v388 = vsel %vm372, 1, 0
        %v389 = vsel %vm373, 1, 0
        %v390 = vsel %vm374, 1, 0
        %v391 = vsel %vm375, 1, 0
        %v392 = vsel %vm376, 1, 0
        %v393 = vsel %vm377, 1, 0
        %v394 = vsel %vm378, 1, 0
        %v395 = vsel %vm379, 1, 0
        %v396 = vsel %vm380, 1, 0
        %v397 = vsel %vm381, 1, 0
        %v398 = vsel %vm382, 1, 0
        %v399 = vsel %vm383, 1, 0
        %v400 = vsel %vm384, 1, 0
        %401 = vset.pattern.permute.xlu0 0
        %402 = vperm.xlu0 %401, %v385
        %v403 = vpop.permute.xlu0 %402
        %404 = vset.pattern.permute.xlu0 0
        %405 = vperm.xlu0 %404, %v386
        %v406 = vpop.permute.xlu0 %405
        %407 = vset.pattern.permute.xlu0 0
        %408 = vperm.xlu0 %407, %v387
        %v409 = vpop.permute.xlu0 %408
        %410 = vset.pattern.permute.xlu0 0
        %411 = vperm.xlu0 %410, %v388
        %v412 = vpop.permute.xlu0 %411
        %413 = vset.pattern.permute.xlu0 0
        %414 = vperm.xlu0 %413, %v389
        %v415 = vpop.permute.xlu0 %414
        %416 = vset.pattern.permute.xlu0 0
        %417 = vperm.xlu0 %416, %v390
        %v418 = vpop.permute.xlu0 %417
        %419 = vset.pattern.permute.xlu0 0
        %420 = vperm.xlu0 %419, %v391
        %v421 = vpop.permute.xlu0 %420
        %422 = vset.pattern.permute.xlu0 0
        %423 = vperm.xlu0 %422, %v392
        %v424 = vpop.permute.xlu0 %423
        %425 = vset.pattern.permute.xlu0 0
        %426 = vperm.xlu0 %425, %v393
        %v427 = vpop.permute.xlu0 %426
        %428 = vset.pattern.permute.xlu0 0
        %429 = vperm.xlu0 %428, %v394
        %v430 = vpop.permute.xlu0 %429
        %431 = vset.pattern.permute.xlu0 0
        %432 = vperm.xlu0 %431, %v395
        %v433 = vpop.permute.xlu0 %432
        %434 = vset.pattern.permute.xlu0 0
        %435 = vperm.xlu0 %434, %v396
        %v436 = vpop.permute.xlu0 %435
        %437 = vset.pattern.permute.xlu0 0
        %438 = vperm.xlu0 %437, %v397
        %v439 = vpop.permute.xlu0 %438
        %440 = vset.pattern.permute.xlu0 0
        %441 = vperm.xlu0 %440, %v398
        %v442 = vpop.permute.xlu0 %441
        %443 = vset.pattern.permute.xlu0 0
        %444 = vperm.xlu0 %443, %v399
        %v445 = vpop.permute.xlu0 %444
        %446 = vset.pattern.permute.xlu0 0
        %447 = vperm.xlu0 %446, %v400
        %v448 = vpop.permute.xlu0 %447
        %vm449 = vcmp.eq.s32.totalorder %v403, 1
        %vm450 = vcmp.eq.s32.totalorder %v406, 1
        %vm451 = vcmp.eq.s32.totalorder %v409, 1
        %vm452 = vcmp.eq.s32.totalorder %v412, 1
        %vm453 = vcmp.eq.s32.totalorder %v415, 1
        %vm454 = vcmp.eq.s32.totalorder %v418, 1
        %vm455 = vcmp.eq.s32.totalorder %v421, 1
        %vm456 = vcmp.eq.s32.totalorder %v424, 1
        %vm457 = vcmp.eq.s32.totalorder %v427, 1
        %vm458 = vcmp.eq.s32.totalorder %v430, 1
        %vm459 = vcmp.eq.s32.totalorder %v433, 1
        %vm460 = vcmp.eq.s32.totalorder %v436, 1
        %vm461 = vcmp.eq.s32.totalorder %v439, 1
        %vm462 = vcmp.eq.s32.totalorder %v442, 1
        %vm463 = vcmp.eq.s32.totalorder %v445, 1
        %vm464 = vcmp.eq.s32.totalorder %v448, 1
        %vm465 = vmpackc.low %vm449, %vm449
        %vm466 = vmpackc.low %vm450, %vm450
        %vm467 = vmpackc.low %vm451, %vm451
        %vm468 = vmpackc.low %vm452, %vm452
        %vm469 = vmpackc.low %vm453, %vm453
        %vm470 = vmpackc.low %vm454, %vm454
        %vm471 = vmpackc.low %vm455, %vm455
        %vm472 = vmpackc.low %vm456, %vm456
        %vm473 = vmpackc.low %vm457, %vm457
        %vm474 = vmpackc.low %vm458, %vm458
        %vm475 = vmpackc.low %vm459, %vm459
        %vm476 = vmpackc.low %vm460, %vm460
        %vm477 = vmpackc.low %vm461, %vm461
        %vm478 = vmpackc.low %vm462, %vm462
        %vm479 = vmpackc.low %vm463, %vm463
        %vm480 = vmpackc.low %vm464, %vm464
        %v481 = vsel %vm465, %v225, 0
        %v482 = vsel %vm466, %v226, 0
        %v483 = vsel %vm467, %v227, 0
        %v484 = vsel %vm468, %v228, 0
        %v485 = vsel %vm469, %v229, 0
        %v486 = vsel %vm470, %v230, 0
        %v487 = vsel %vm471, %v231, 0
        %v488 = vsel %vm472, %v232, 0
        %v489 = vsel %vm473, %v233, 0
        %v490 = vsel %vm474, %v234, 0
        %v491 = vsel %vm475, %v235, 0
        %v492 = vsel %vm476, %v236, 0
        %v493 = vsel %vm477, %v237, 0
        %v494 = vsel %vm478, %v238, 0
        %v495 = vsel %vm479, %v239, 0
        %v496 = vsel %vm480, %v240, 0
        %v513 = vunpack.c.l.b16 %v353
        %v514 = vunpack.c.l.b16 %v354
        %v515 = vunpack.c.l.b16 %v355
        %v516 = vunpack.c.l.b16 %v356
        %v517 = vunpack.c.l.b16 %v357
        %v518 = vunpack.c.l.b16 %v358
        %v519 = vunpack.c.l.b16 %v359
        %v520 = vunpack.c.l.b16 %v360
        %v521 = vunpack.c.l.b16 %v361
        %v522 = vunpack.c.l.b16 %v362
        %v523 = vunpack.c.l.b16 %v363
        %v524 = vunpack.c.l.b16 %v364
        %v525 = vunpack.c.l.b16 %v365
        %v526 = vunpack.c.l.b16 %v366
        %v527 = vunpack.c.l.b16 %v367
        %v528 = vunpack.c.l.b16 %v368
        %v529 = vpack.c.b16 %v514, %v513
        %v530 = vpack.c.b16 %v516, %v515
        %v531 = vpack.c.b16 %v518, %v517
        %v532 = vpack.c.b16 %v520, %v519
        %v533 = vpack.c.b16 %v522, %v521
        %v534 = vpack.c.b16 %v524, %v523
        %v535 = vpack.c.b16 %v526, %v525
        %v536 = vpack.c.b16 %v528, %v527
        %v561 = vunpack.c.l.b16 %v481
        %v562 = vunpack.c.l.b16 %v482
        %v563 = vunpack.c.l.b16 %v483
        %v564 = vunpack.c.l.b16 %v484
        %v565 = vunpack.c.l.b16 %v485
        %v566 = vunpack.c.l.b16 %v486
        %v567 = vunpack.c.l.b16 %v487
        %v568 = vunpack.c.l.b16 %v488
        %v569 = vunpack.c.l.b16 %v489
        %v570 = vunpack.c.l.b16 %v490
        %v571 = vunpack.c.l.b16 %v491
        %v572 = vunpack.c.l.b16 %v492
        %v573 = vunpack.c.l.b16 %v493
        %v574 = vunpack.c.l.b16 %v494
        %v575 = vunpack.c.l.b16 %v495
        %v576 = vunpack.c.l.b16 %v496
        %v577 = vpack.c.b16 %v562, %v561
        %v578 = vpack.c.b16 %v564, %v563
        %v579 = vpack.c.b16 %v566, %v565
        %v580 = vpack.c.b16 %v568, %v567
        %v581 = vpack.c.b16 %v570, %v569
        %v582 = vpack.c.b16 %v572, %v571
        %v583 = vpack.c.b16 %v574, %v573
        %v584 = vpack.c.b16 %v576, %v575
        %v593 = vld [vmem:[%s1] sm:$0xf]
        %v594 = vld [vmem:[%s1 + $0x4] sm:$0xf]
        %v595 = vld [vmem:[%s1 + $0x8] sm:$0xf]
        %v596 = vld [vmem:[%s1 + $0xc] sm:$0xf]
        %v597 = vld [vmem:[%s1 + $0x10] sm:$0xf]
        %v598 = vld [vmem:[%s1 + $0x14] sm:$0xf]
        %v599 = vld [vmem:[%s1 + $0x18] sm:$0xf]
        %v600 = vld [vmem:[%s1 + $0x1c] sm:$0xf]
        %v601 = vld [vmem:[%s1 + $0x20] sm:$0xf]
        %v602 = vld [vmem:[%s1 + $0x24] sm:$0xf]
        %v603 = vld [vmem:[%s1 + $0x28] sm:$0xf]
        %v604 = vld [vmem:[%s1 + $0x2c] sm:$0xf]
        %v605 = vld [vmem:[%s1 + $0x30] sm:$0xf]
        %v606 = vld [vmem:[%s1 + $0x34] sm:$0xf]
        %v607 = vld [vmem:[%s1 + $0x38] sm:$0xf]
        %v608 = vld [vmem:[%s1 + $0x3c] sm:$0xf]
        %v609 = vld [vmem:[%s1 + $0x40] sm:$0xf]
        %v610 = vld [vmem:[%s1 + $0x44] sm:$0xf]
        %v611 = vld [vmem:[%s1 + $0x48] sm:$0xf]
        %v612 = vld [vmem:[%s1 + $0x4c] sm:$0xf]
        %v613 = vld [vmem:[%s1 + $0x50] sm:$0xf]
        %v614 = vld [vmem:[%s1 + $0x54] sm:$0xf]
        %v615 = vld [vmem:[%s1 + $0x58] sm:$0xf]
        %v616 = vld [vmem:[%s1 + $0x5c] sm:$0xf]
        %v617 = vld [vmem:[%s1 + $0x60] sm:$0xf]
        %v618 = vld [vmem:[%s1 + $0x64] sm:$0xf]
        %v619 = vld [vmem:[%s1 + $0x68] sm:$0xf]
        %v620 = vld [vmem:[%s1 + $0x6c] sm:$0xf]
        %v621 = vld [vmem:[%s1 + $0x70] sm:$0xf]
        %v622 = vld [vmem:[%s1 + $0x74] sm:$0xf]
        %v623 = vld [vmem:[%s1 + $0x78] sm:$0xf]
        %v624 = vld [vmem:[%s1 + $0x7c] sm:$0xf]
        %vm625 = vcmp.eq.s32.totalorder %v193, 2
        %vm626 = vcmp.eq.s32.totalorder %v194, 2
        %vm627 = vcmp.eq.s32.totalorder %v195, 2
        %vm628 = vcmp.eq.s32.totalorder %v196, 2
        %vm629 = vcmp.eq.s32.totalorder %v197, 2
        %vm630 = vcmp.eq.s32.totalorder %v198, 2
        %vm631 = vcmp.eq.s32.totalorder %v199, 2
        %vm632 = vcmp.eq.s32.totalorder %v200, 2
        %vm633 = vcmp.eq.s32.totalorder %v201, 2
        %vm634 = vcmp.eq.s32.totalorder %v202, 2
        %vm635 = vcmp.eq.s32.totalorder %v203, 2
        %vm636 = vcmp.eq.s32.totalorder %v204, 2
        %vm637 = vcmp.eq.s32.totalorder %v205, 2
        %vm638 = vcmp.eq.s32.totalorder %v206, 2
        %vm639 = vcmp.eq.s32.totalorder %v207, 2
        %vm640 = vcmp.eq.s32.totalorder %v208, 2
        %v641 = vsel %vm625, 1, 0
        %v642 = vsel %vm626, 1, 0
        %v643 = vsel %vm627, 1, 0
        %v644 = vsel %vm628, 1, 0
        %v645 = vsel %vm629, 1, 0
        %v646 = vsel %vm630, 1, 0
        %v647 = vsel %vm631, 1, 0
        %v648 = vsel %vm632, 1, 0
        %v649 = vsel %vm633, 1, 0
        %v650 = vsel %vm634, 1, 0
        %v651 = vsel %vm635, 1, 0
        %v652 = vsel %vm636, 1, 0
        %v653 = vsel %vm637, 1, 0
        %v654 = vsel %vm638, 1, 0
        %v655 = vsel %vm639, 1, 0
        %v656 = vsel %vm640, 1, 0
        %657 = vset.pattern.permute.xlu0 0
        %658 = vperm.xlu0 %657, %v641
        %v659 = vpop.permute.xlu0 %658
        %660 = vset.pattern.permute.xlu0 0
        %661 = vperm.xlu0 %660, %v642
        %v662 = vpop.permute.xlu0 %661
        %663 = vset.pattern.permute.xlu0 0
        %664 = vperm.xlu0 %663, %v643
        %v665 = vpop.permute.xlu0 %664
        %666 = vset.pattern.permute.xlu0 0
        %667 = vperm.xlu0 %666, %v644
        %v668 = vpop.permute.xlu0 %667
        %669 = vset.pattern.permute.xlu0 0
        %670 = vperm.xlu0 %669, %v645
        %v671 = vpop.permute.xlu0 %670
        %672 = vset.pattern.permute.xlu0 0
        %673 = vperm.xlu0 %672, %v646
        %v674 = vpop.permute.xlu0 %673
        %675 = vset.pattern.permute.xlu0 0
        %676 = vperm.xlu0 %675, %v647
        %v677 = vpop.permute.xlu0 %676
        %678 = vset.pattern.permute.xlu0 0
        %679 = vperm.xlu0 %678, %v648
        %v680 = vpop.permute.xlu0 %679
        %681 = vset.pattern.permute.xlu0 0
        %682 = vperm.xlu0 %681, %v649
        %v683 = vpop.permute.xlu0 %682
        %684 = vset.pattern.permute.xlu0 0
        %685 = vperm.xlu0 %684, %v650
        %v686 = vpop.permute.xlu0 %685
        %687 = vset.pattern.permute.xlu0 0
        %688 = vperm.xlu0 %687, %v651
        %v689 = vpop.permute.xlu0 %688
        %690 = vset.pattern.permute.xlu0 0
        %691 = vperm.xlu0 %690, %v652
        %v692 = vpop.permute.xlu0 %691
        %693 = vset.pattern.permute.xlu0 0
        %694 = vperm.xlu0 %693, %v653
        %v695 = vpop.permute.xlu0 %694
        %696 = vset.pattern.permute.xlu0 0
        %697 = vperm.xlu0 %696, %v654
        %v698 = vpop.permute.xlu0 %697
        %699 = vset.pattern.permute.xlu0 0
        %700 = vperm.xlu0 %699, %v655
        %v701 = vpop.permute.xlu0 %700
        %702 = vset.pattern.permute.xlu0 0
        %703 = vperm.xlu0 %702, %v656
        %v704 = vpop.permute.xlu0 %703
        %vm705 = vcmp.eq.s32.totalorder %v659, 1
        %vm706 = vcmp.eq.s32.totalorder %v662, 1
        %vm707 = vcmp.eq.s32.totalorder %v665, 1
        %vm708 = vcmp.eq.s32.totalorder %v668, 1
        %vm709 = vcmp.eq.s32.totalorder %v671, 1
        %vm710 = vcmp.eq.s32.totalorder %v674, 1
        %vm711 = vcmp.eq.s32.totalorder %v677, 1
        %vm712 = vcmp.eq.s32.totalorder %v680, 1
        %vm713 = vcmp.eq.s32.totalorder %v683, 1
        %vm714 = vcmp.eq.s32.totalorder %v686, 1
        %vm715 = vcmp.eq.s32.totalorder %v689, 1
        %vm716 = vcmp.eq.s32.totalorder %v692, 1
        %vm717 = vcmp.eq.s32.totalorder %v695, 1
        %vm718 = vcmp.eq.s32.totalorder %v698, 1
        %vm719 = vcmp.eq.s32.totalorder %v701, 1
        %vm720 = vcmp.eq.s32.totalorder %v704, 1
        %vm721 = vmpackc.low %vm705, %vm705
        %vm722 = vmpackc.low %vm706, %vm706
        %vm723 = vmpackc.low %vm707, %vm707
        %vm724 = vmpackc.low %vm708, %vm708
        %vm725 = vmpackc.low %vm709, %vm709
        %vm726 = vmpackc.low %vm710, %vm710
        %vm727 = vmpackc.low %vm711, %vm711
        %vm728 = vmpackc.low %vm712, %vm712
        %vm729 = vmpackc.low %vm713, %vm713
        %vm730 = vmpackc.low %vm714, %vm714
        %vm731 = vmpackc.low %vm715, %vm715
        %vm732 = vmpackc.low %vm716, %vm716
        %vm733 = vmpackc.low %vm717, %vm717
        %vm734 = vmpackc.low %vm718, %vm718
        %vm735 = vmpackc.low %vm719, %vm719
        %vm736 = vmpackc.low %vm720, %vm720
        %v737 = vsel %vm721, %v225, 0
        %v738 = vsel %vm722, %v226, 0
        %v739 = vsel %vm723, %v227, 0
        %v740 = vsel %vm724, %v228, 0
        %v741 = vsel %vm725, %v229, 0
        %v742 = vsel %vm726, %v230, 0
        %v743 = vsel %vm727, %v231, 0
        %v744 = vsel %vm728, %v232, 0
        %v745 = vsel %vm729, %v233, 0
        %v746 = vsel %vm730, %v234, 0
        %v747 = vsel %vm731, %v235, 0
        %v748 = vsel %vm732, %v236, 0
        %v749 = vsel %vm733, %v237, 0
        %v750 = vsel %vm734, %v238, 0
        %v751 = vsel %vm735, %v239, 0
        %v752 = vsel %vm736, %v240, 0
        %vm753 = vcmp.eq.s32.totalorder %v193, 3
        %vm754 = vcmp.eq.s32.totalorder %v194, 3
        %vm755 = vcmp.eq.s32.totalorder %v195, 3
        %vm756 = vcmp.eq.s32.totalorder %v196, 3
        %vm757 = vcmp.eq.s32.totalorder %v197, 3
        %vm758 = vcmp.eq.s32.totalorder %v198, 3
        %vm759 = vcmp.eq.s32.totalorder %v199, 3
        %vm760 = vcmp.eq.s32.totalorder %v200, 3
        %vm761 = vcmp.eq.s32.totalorder %v201, 3
        %vm762 = vcmp.eq.s32.totalorder %v202, 3
        %vm763 = vcmp.eq.s32.totalorder %v203, 3
        %vm764 = vcmp.eq.s32.totalorder %v204, 3
        %vm765 = vcmp.eq.s32.totalorder %v205, 3
        %vm766 = vcmp.eq.s32.totalorder %v206, 3
        %vm767 = vcmp.eq.s32.totalorder %v207, 3
        %vm768 = vcmp.eq.s32.totalorder %v208, 3
        %v769 = vsel %vm753, 1, 0
        %v770 = vsel %vm754, 1, 0
        %v771 = vsel %vm755, 1, 0
        %v772 = vsel %vm756, 1, 0
        %v773 = vsel %vm757, 1, 0
        %v774 = vsel %vm758, 1, 0
        %v775 = vsel %vm759, 1, 0
        %v776 = vsel %vm760, 1, 0
        %v777 = vsel %vm761, 1, 0
        %v778 = vsel %vm762, 1, 0
        %v779 = vsel %vm763, 1, 0
        %v780 = vsel %vm764, 1, 0
        %v781 = vsel %vm765, 1, 0
        %v782 = vsel %vm766, 1, 0
        %v783 = vsel %vm767, 1, 0
        %v784 = vsel %vm768, 1, 0
        %785 = vset.pattern.permute.xlu0 0
        %786 = vperm.xlu0 %785, %v769
        %v787 = vpop.permute.xlu0 %786
        %788 = vset.pattern.permute.xlu0 0
        %789 = vperm.xlu0 %788, %v770
        %v790 = vpop.permute.xlu0 %789
        %791 = vset.pattern.permute.xlu0 0
        %792 = vperm.xlu0 %791, %v771
        %v793 = vpop.permute.xlu0 %792
        %794 = vset.pattern.permute.xlu0 0
        %795 = vperm.xlu0 %794, %v772
        %v796 = vpop.permute.xlu0 %795
        %797 = vset.pattern.permute.xlu0 0
        %798 = vperm.xlu0 %797, %v773
        %v799 = vpop.permute.xlu0 %798
        %800 = vset.pattern.permute.xlu0 0
        %801 = vperm.xlu0 %800, %v774
        %v802 = vpop.permute.xlu0 %801
        %803 = vset.pattern.permute.xlu0 0
        %804 = vperm.xlu0 %803, %v775
        %v805 = vpop.permute.xlu0 %804
        %806 = vset.pattern.permute.xlu0 0
        %807 = vperm.xlu0 %806, %v776
        %v808 = vpop.permute.xlu0 %807
        %809 = vset.pattern.permute.xlu0 0
        %810 = vperm.xlu0 %809, %v777
        %v811 = vpop.permute.xlu0 %810
        %812 = vset.pattern.permute.xlu0 0
        %813 = vperm.xlu0 %812, %v778
        %v814 = vpop.permute.xlu0 %813
        %815 = vset.pattern.permute.xlu0 0
        %816 = vperm.xlu0 %815, %v779
        %v817 = vpop.permute.xlu0 %816
        %818 = vset.pattern.permute.xlu0 0
        %819 = vperm.xlu0 %818, %v780
        %v820 = vpop.permute.xlu0 %819
        %821 = vset.pattern.permute.xlu0 0
        %822 = vperm.xlu0 %821, %v781
        %v823 = vpop.permute.xlu0 %822
        %824 = vset.pattern.permute.xlu0 0
        %825 = vperm.xlu0 %824, %v782
        %v826 = vpop.permute.xlu0 %825
        %827 = vset.pattern.permute.xlu0 0
        %828 = vperm.xlu0 %827, %v783
        %v829 = vpop.permute.xlu0 %828
        %830 = vset.pattern.permute.xlu0 0
        %831 = vperm.xlu0 %830, %v784
        %v832 = vpop.permute.xlu0 %831
        %vm833 = vcmp.eq.s32.totalorder %v787, 1
        %vm834 = vcmp.eq.s32.totalorder %v790, 1
        %vm835 = vcmp.eq.s32.totalorder %v793, 1
        %vm836 = vcmp.eq.s32.totalorder %v796, 1
        %vm837 = vcmp.eq.s32.totalorder %v799, 1
        %vm838 = vcmp.eq.s32.totalorder %v802, 1
        %vm839 = vcmp.eq.s32.totalorder %v805, 1
        %vm840 = vcmp.eq.s32.totalorder %v808, 1
        %vm841 = vcmp.eq.s32.totalorder %v811, 1
        %vm842 = vcmp.eq.s32.totalorder %v814, 1
        %vm843 = vcmp.eq.s32.totalorder %v817, 1
        %vm844 = vcmp.eq.s32.totalorder %v820, 1
        %vm845 = vcmp.eq.s32.totalorder %v823, 1
        %vm846 = vcmp.eq.s32.totalorder %v826, 1
        %vm847 = vcmp.eq.s32.totalorder %v829, 1
        %vm848 = vcmp.eq.s32.totalorder %v832, 1
        %vm849 = vmpackc.low %vm833, %vm833
        %vm850 = vmpackc.low %vm834, %vm834
        %vm851 = vmpackc.low %vm835, %vm835
        %vm852 = vmpackc.low %vm836, %vm836
        %vm853 = vmpackc.low %vm837, %vm837
        %vm854 = vmpackc.low %vm838, %vm838
        %vm855 = vmpackc.low %vm839, %vm839
        %vm856 = vmpackc.low %vm840, %vm840
        %vm857 = vmpackc.low %vm841, %vm841
        %vm858 = vmpackc.low %vm842, %vm842
        %vm859 = vmpackc.low %vm843, %vm843
        %vm860 = vmpackc.low %vm844, %vm844
        %vm861 = vmpackc.low %vm845, %vm845
        %vm862 = vmpackc.low %vm846, %vm846
        %vm863 = vmpackc.low %vm847, %vm847
        %vm864 = vmpackc.low %vm848, %vm848
        %v865 = vsel %vm849, %v225, 0
        %v866 = vsel %vm850, %v226, 0
        %v867 = vsel %vm851, %v227, 0
        %v868 = vsel %vm852, %v228, 0
        %v869 = vsel %vm853, %v229, 0
        %v870 = vsel %vm854, %v230, 0
        %v871 = vsel %vm855, %v231, 0
        %v872 = vsel %vm856, %v232, 0
        %v873 = vsel %vm857, %v233, 0
        %v874 = vsel %vm858, %v234, 0
        %v875 = vsel %vm859, %v235, 0
        %v876 = vsel %vm860, %v236, 0
        %v877 = vsel %vm861, %v237, 0
        %v878 = vsel %vm862, %v238, 0
        %v879 = vsel %vm863, %v239, 0
        %v880 = vsel %vm864, %v240, 0
        %v897 = vunpack.c.l.b16 %v737
        %v898 = vunpack.c.l.b16 %v738
        %v899 = vunpack.c.l.b16 %v739
        %v900 = vunpack.c.l.b16 %v740
        %v901 = vunpack.c.l.b16 %v741
        %v902 = vunpack.c.l.b16 %v742
        %v903 = vunpack.c.l.b16 %v743
        %v904 = vunpack.c.l.b16 %v744
        %v905 = vunpack.c.l.b16 %v745
        %v906 = vunpack.c.l.b16 %v746
        %v907 = vunpack.c.l.b16 %v747
        %v908 = vunpack.c.l.b16 %v748
        %v909 = vunpack.c.l.b16 %v749
        %v910 = vunpack.c.l.b16 %v750
        %v911 = vunpack.c.l.b16 %v751
        %v912 = vunpack.c.l.b16 %v752
        %v913 = vpack.c.b16 %v898, %v897
        %v914 = vpack.c.b16 %v900, %v899
        %v915 = vpack.c.b16 %v902, %v901
        %v916 = vpack.c.b16 %v904, %v903
        %v917 = vpack.c.b16 %v906, %v905
        %v918 = vpack.c.b16 %v908, %v907
        %v919 = vpack.c.b16 %v910, %v909
        %v920 = vpack.c.b16 %v912, %v911
        %v945 = vunpack.c.l.b16 %v865
        %v946 = vunpack.c.l.b16 %v866
        %v947 = vunpack.c.l.b16 %v867
        %v948 = vunpack.c.l.b16 %v868
        %v949 = vunpack.c.l.b16 %v869
        %v950 = vunpack.c.l.b16 %v870
        %v951 = vunpack.c.l.b16 %v871
        %v952 = vunpack.c.l.b16 %v872
        %v953 = vunpack.c.l.b16 %v873
        %v954 = vunpack.c.l.b16 %v874
        %v955 = vunpack.c.l.b16 %v875
        %v956 = vunpack.c.l.b16 %v876
        %v957 = vunpack.c.l.b16 %v877
        %v958 = vunpack.c.l.b16 %v878
        %v959 = vunpack.c.l.b16 %v879
        %v960 = vunpack.c.l.b16 %v880
        %v961 = vpack.c.b16 %v946, %v945
        %v962 = vpack.c.b16 %v948, %v947
        %v963 = vpack.c.b16 %v950, %v949
        %v964 = vpack.c.b16 %v952, %v951
        %v965 = vpack.c.b16 %v954, %v953
        %v966 = vpack.c.b16 %v956, %v955
        %v967 = vpack.c.b16 %v958, %v957
        %v968 = vpack.c.b16 %v960, %v959
        %v977 = vld [vmem:[%s1 + $0x80] sm:$0xf]
        %v978 = vld [vmem:[%s1 + $0x84] sm:$0xf]
        %v979 = vld [vmem:[%s1 + $0x88] sm:$0xf]
        %v980 = vld [vmem:[%s1 + $0x8c] sm:$0xf]
        %v981 = vld [vmem:[%s1 + $0x90] sm:$0xf]
        %v982 = vld [vmem:[%s1 + $0x94] sm:$0xf]
        %v983 = vld [vmem:[%s1 + $0x98] sm:$0xf]
        %v984 = vld [vmem:[%s1 + $0x9c] sm:$0xf]
        %v985 = vld [vmem:[%s1 + $0xa0] sm:$0xf]
        %v986 = vld [vmem:[%s1 + $0xa4] sm:$0xf]
        %v987 = vld [vmem:[%s1 + $0xa8] sm:$0xf]
        %v988 = vld [vmem:[%s1 + $0xac] sm:$0xf]
        %v989 = vld [vmem:[%s1 + $0xb0] sm:$0xf]
        %v990 = vld [vmem:[%s1 + $0xb4] sm:$0xf]
        %v991 = vld [vmem:[%s1 + $0xb8] sm:$0xf]
        %v992 = vld [vmem:[%s1 + $0xbc] sm:$0xf]
        %v993 = vld [vmem:[%s1 + $0xc0] sm:$0xf]
        %v994 = vld [vmem:[%s1 + $0xc4] sm:$0xf]
        %v995 = vld [vmem:[%s1 + $0xc8] sm:$0xf]
        %v996 = vld [vmem:[%s1 + $0xcc] sm:$0xf]
        %v997 = vld [vmem:[%s1 + $0xd0] sm:$0xf]
        %v998 = vld [vmem:[%s1 + $0xd4] sm:$0xf]
        %v999 = vld [vmem:[%s1 + $0xd8] sm:$0xf]
        %v1000 = vld [vmem:[%s1 + $0xdc] sm:$0xf]
        %v1001 = vld [vmem:[%s1 + $0xe0] sm:$0xf]
        %v1002 = vld [vmem:[%s1 + $0xe4] sm:$0xf]
        %v1003 = vld [vmem:[%s1 + $0xe8] sm:$0xf]
        %v1004 = vld [vmem:[%s1 + $0xec] sm:$0xf]
        %v1005 = vld [vmem:[%s1 + $0xf0] sm:$0xf]
        %v1006 = vld [vmem:[%s1 + $0xf4] sm:$0xf]
        %v1007 = vld [vmem:[%s1 + $0xf8] sm:$0xf]
        %v1008 = vld [vmem:[%s1 + $0xfc] sm:$0xf]
        %v1041 = vunpack.c.l.b16 %v977
        %v1042 = vunpack.c.l.b16 %v978
        %v1043 = vunpack.c.l.b16 %v979
        %v1044 = vunpack.c.l.b16 %v980
        %v1045 = vunpack.c.l.b16 %v981
        %v1046 = vunpack.c.l.b16 %v982
        %v1047 = vunpack.c.l.b16 %v983
        %v1048 = vunpack.c.l.b16 %v984
        %v1049 = vunpack.c.l.b16 %v985
        %v1050 = vunpack.c.l.b16 %v986
        %v1051 = vunpack.c.l.b16 %v987
        %v1052 = vunpack.c.l.b16 %v988
        %v1053 = vunpack.c.l.b16 %v989
        %v1054 = vunpack.c.l.b16 %v990
        %v1055 = vunpack.c.l.b16 %v991
        %v1056 = vunpack.c.l.b16 %v992
        %v1057 = vunpack.c.l.b16 %v993
        %v1058 = vunpack.c.l.b16 %v994
        %v1059 = vunpack.c.l.b16 %v995
        %v1060 = vunpack.c.l.b16 %v996
        %v1061 = vunpack.c.l.b16 %v997
        %v1062 = vunpack.c.l.b16 %v998
        %v1063 = vunpack.c.l.b16 %v999
        %v1064 = vunpack.c.l.b16 %v1000
        %v1065 = vunpack.c.l.b16 %v1001
        %v1066 = vunpack.c.l.b16 %v1002
        %v1067 = vunpack.c.l.b16 %v1003
        %v1068 = vunpack.c.l.b16 %v1004
        %v1069 = vunpack.c.l.b16 %v1005
        %v1070 = vunpack.c.l.b16 %v1006
        %v1071 = vunpack.c.l.b16 %v1007
        %v1072 = vunpack.c.l.b16 %v1008
        %v1073 = vpack.c.b16 %v1042, %v1041
        %v1074 = vpack.c.b16 %v1044, %v1043
        %v1075 = vpack.c.b16 %v1046, %v1045
        %v1076 = vpack.c.b16 %v1048, %v1047
        %v1077 = vpack.c.b16 %v1050, %v1049
        %v1078 = vpack.c.b16 %v1052, %v1051
        %v1079 = vpack.c.b16 %v1054, %v1053
        %v1080 = vpack.c.b16 %v1056, %v1055
        %v1081 = vpack.c.b16 %v1058, %v1057
        %v1082 = vpack.c.b16 %v1060, %v1059
        %v1083 = vpack.c.b16 %v1062, %v1061
        %v1084 = vpack.c.b16 %v1064, %v1063
        %v1085 = vpack.c.b16 %v1066, %v1065
        %v1086 = vpack.c.b16 %v1068, %v1067
        %v1087 = vpack.c.b16 %v1070, %v1069
        %v1088 = vpack.c.b16 %v1072, %v1071
        %1105 = vmatpush.bf16.msra.mxu0 %v1080
        %1106 = vmatpush.bf16.msra.mxu0 %v1079
        %1107 = vmatpush.bf16.msra.mxu0 %v1078
        %1108 = vmatpush.bf16.msra.mxu0 %v1077
        %1109 = vmatpush.bf16.msra.mxu0 %v1076
        %1110 = vmatpush.bf16.msra.mxu0 %v1075
        %1111 = vmatpush.bf16.msra.mxu0 %v1074
        %1112 = vmatpush.bf16.msra.mxu0 %v1073
        %1113 = vmatmul.bf16.gmra.mxu0 %v913
        %v1114 = vpop.f32.mrf.mxu0
        %v1115 = vadd.f32 0.0, %v1114
        %v1116 = vpop.f32.mrf.mxu0
        %v1117 = vadd.f32 0.0, %v1116
        %1118 = vmatmul.bf16.gmra.mxu0 %v914
        %v1119 = vpop.f32.mrf.mxu0
        %v1120 = vadd.f32 0.0, %v1119
        %v1121 = vpop.f32.mrf.mxu0
        %v1122 = vadd.f32 0.0, %v1121
        %1123 = vmatmul.bf16.gmra.mxu0 %v915
        %v1124 = vpop.f32.mrf.mxu0
        %v1125 = vadd.f32 0.0, %v1124
        %v1126 = vpop.f32.mrf.mxu0
        %v1127 = vadd.f32 0.0, %v1126
        %1128 = vmatmul.bf16.gmra.mxu0 %v916
        %v1129 = vpop.f32.mrf.mxu0
        %v1130 = vadd.f32 0.0, %v1129
        %v1131 = vpop.f32.mrf.mxu0
        %v1132 = vadd.f32 0.0, %v1131
        %1133 = vmatmul.bf16.gmra.mxu0 %v917
        %v1134 = vpop.f32.mrf.mxu0
        %v1135 = vadd.f32 0.0, %v1134
        %v1136 = vpop.f32.mrf.mxu0
        %v1137 = vadd.f32 0.0, %v1136
        %1138 = vmatmul.bf16.gmra.mxu0 %v918
        %v1139 = vpop.f32.mrf.mxu0
        %v1140 = vadd.f32 0.0, %v1139
        %v1141 = vpop.f32.mrf.mxu0
        %v1142 = vadd.f32 0.0, %v1141
        %1143 = vmatmul.bf16.gmra.mxu0 %v919
        %v1144 = vpop.f32.mrf.mxu0
        %v1145 = vadd.f32 0.0, %v1144
        %v1146 = vpop.f32.mrf.mxu0
        %v1147 = vadd.f32 0.0, %v1146
        %1148 = vmatmul.bf16.gmra.mxu0 %v920
        %v1149 = vpop.f32.mrf.mxu0
        %v1150 = vadd.f32 0.0, %v1149
        %v1151 = vpop.f32.mrf.mxu0
        %v1152 = vadd.f32 0.0, %v1151
        %1153 = vdwg.mxu0
        %1154 = vmatpush.bf16.msra.mxu0 %v1088
        %1155 = vmatpush.bf16.msra.mxu0 %v1087
        %1156 = vmatpush.bf16.msra.mxu0 %v1086
        %1157 = vmatpush.bf16.msra.mxu0 %v1085
        %1158 = vmatpush.bf16.msra.mxu0 %v1084
        %1159 = vmatpush.bf16.msra.mxu0 %v1083
        %1160 = vmatpush.bf16.msra.mxu0 %v1082
        %1161 = vmatpush.bf16.msra.mxu0 %v1081
        %1162 = vmatmul.bf16.gmra.mxu0 %v961
        %v1163 = vpop.f32.mrf.mxu0
        %v1164 = vadd.f32 %v1115, %v1163
        %v1165 = vpop.f32.mrf.mxu0
        %v1166 = vadd.f32 %v1117, %v1165
        %1167 = vmatmul.bf16.gmra.mxu0 %v962
        %v1168 = vpop.f32.mrf.mxu0
        %v1169 = vadd.f32 %v1120, %v1168
        %v1170 = vpop.f32.mrf.mxu0
        %v1171 = vadd.f32 %v1122, %v1170
        %1172 = vmatmul.bf16.gmra.mxu0 %v963
        %v1173 = vpop.f32.mrf.mxu0
        %v1174 = vadd.f32 %v1125, %v1173
        %v1175 = vpop.f32.mrf.mxu0
        %v1176 = vadd.f32 %v1127, %v1175
        %1177 = vmatmul.bf16.gmra.mxu0 %v964
        %v1178 = vpop.f32.mrf.mxu0
        %v1179 = vadd.f32 %v1130, %v1178
        %v1180 = vpop.f32.mrf.mxu0
        %v1181 = vadd.f32 %v1132, %v1180
        %1182 = vmatmul.bf16.gmra.mxu0 %v965
        %v1183 = vpop.f32.mrf.mxu0
        %v1184 = vadd.f32 %v1135, %v1183
        %v1185 = vpop.f32.mrf.mxu0
        %v1186 = vadd.f32 %v1137, %v1185
        %1187 = vmatmul.bf16.gmra.mxu0 %v966
        %v1188 = vpop.f32.mrf.mxu0
        %v1189 = vadd.f32 %v1140, %v1188
        %v1190 = vpop.f32.mrf.mxu0
        %v1191 = vadd.f32 %v1142, %v1190
        %1192 = vmatmul.bf16.gmra.mxu0 %v967
        %v1193 = vpop.f32.mrf.mxu0
        %v1194 = vadd.f32 %v1145, %v1193
        %v1195 = vpop.f32.mrf.mxu0
        %v1196 = vadd.f32 %v1147, %v1195
        %1197 = vmatmul.bf16.gmra.mxu0 %v968
        %v1198 = vpop.f32.mrf.mxu0
        %v1199 = vadd.f32 %v1150, %v1198
        %v1200 = vpop.f32.mrf.mxu0
        %v1201 = vadd.f32 %v1152, %v1200
        %1202 = vdwg.mxu0
        %v1235 = vunpack.c.l.b16 %v593
        %v1236 = vunpack.c.l.b16 %v594
        %v1237 = vunpack.c.l.b16 %v595
        %v1238 = vunpack.c.l.b16 %v596
        %v1239 = vunpack.c.l.b16 %v597
        %v1240 = vunpack.c.l.b16 %v598
        %v1241 = vunpack.c.l.b16 %v599
        %v1242 = vunpack.c.l.b16 %v600
        %v1243 = vunpack.c.l.b16 %v601
        %v1244 = vunpack.c.l.b16 %v602
        %v1245 = vunpack.c.l.b16 %v603
        %v1246 = vunpack.c.l.b16 %v604
        %v1247 = vunpack.c.l.b16 %v605
        %v1248 = vunpack.c.l.b16 %v606
        %v1249 = vunpack.c.l.b16 %v607
        %v1250 = vunpack.c.l.b16 %v608
        %v1251 = vunpack.c.l.b16 %v609
        %v1252 = vunpack.c.l.b16 %v610
        %v1253 = vunpack.c.l.b16 %v611
        %v1254 = vunpack.c.l.b16 %v612
        %v1255 = vunpack.c.l.b16 %v613
        %v1256 = vunpack.c.l.b16 %v614
        %v1257 = vunpack.c.l.b16 %v615
        %v1258 = vunpack.c.l.b16 %v616
        %v1259 = vunpack.c.l.b16 %v617
        %v1260 = vunpack.c.l.b16 %v618
        %v1261 = vunpack.c.l.b16 %v619
        %v1262 = vunpack.c.l.b16 %v620
        %v1263 = vunpack.c.l.b16 %v621
        %v1264 = vunpack.c.l.b16 %v622
        %v1265 = vunpack.c.l.b16 %v623
        %v1266 = vunpack.c.l.b16 %v624
        %v1267 = vpack.c.b16 %v1236, %v1235
        %v1268 = vpack.c.b16 %v1238, %v1237
        %v1269 = vpack.c.b16 %v1240, %v1239
        %v1270 = vpack.c.b16 %v1242, %v1241
        %v1271 = vpack.c.b16 %v1244, %v1243
        %v1272 = vpack.c.b16 %v1246, %v1245
        %v1273 = vpack.c.b16 %v1248, %v1247
        %v1274 = vpack.c.b16 %v1250, %v1249
        %v1275 = vpack.c.b16 %v1252, %v1251
        %v1276 = vpack.c.b16 %v1254, %v1253
        %v1277 = vpack.c.b16 %v1256, %v1255
        %v1278 = vpack.c.b16 %v1258, %v1257
        %v1279 = vpack.c.b16 %v1260, %v1259
        %v1280 = vpack.c.b16 %v1262, %v1261
        %v1281 = vpack.c.b16 %v1264, %v1263
        %v1282 = vpack.c.b16 %v1266, %v1265
        %1299 = vmatpush.bf16.msra.mxu0 %v1274
        %1300 = vmatpush.bf16.msra.mxu0 %v1273
        %1301 = vmatpush.bf16.msra.mxu0 %v1272
        %1302 = vmatpush.bf16.msra.mxu0 %v1271
        %1303 = vmatpush.bf16.msra.mxu0 %v1270
        %1304 = vmatpush.bf16.msra.mxu0 %v1269
        %1305 = vmatpush.bf16.msra.mxu0 %v1268
        %1306 = vmatpush.bf16.msra.mxu0 %v1267
        %1307 = vmatmul.bf16.gmra.mxu0 %v529
        %v1308 = vpop.f32.mrf.mxu0
        %v1309 = vadd.f32 %v1164, %v1308
        %v1310 = vpop.f32.mrf.mxu0
        %v1311 = vadd.f32 %v1166, %v1310
        %1312 = vmatmul.bf16.gmra.mxu0 %v530
        %v1313 = vpop.f32.mrf.mxu0
        %v1314 = vadd.f32 %v1169, %v1313
        %v1315 = vpop.f32.mrf.mxu0
        %v1316 = vadd.f32 %v1171, %v1315
        %1317 = vmatmul.bf16.gmra.mxu0 %v531
        %v1318 = vpop.f32.mrf.mxu0
        %v1319 = vadd.f32 %v1174, %v1318
        %v1320 = vpop.f32.mrf.mxu0
        %v1321 = vadd.f32 %v1176, %v1320
        %1322 = vmatmul.bf16.gmra.mxu0 %v532
        %v1323 = vpop.f32.mrf.mxu0
        %v1324 = vadd.f32 %v1179, %v1323
        %v1325 = vpop.f32.mrf.mxu0
        %v1326 = vadd.f32 %v1181, %v1325
        %1327 = vmatmul.bf16.gmra.mxu0 %v533
        %v1328 = vpop.f32.mrf.mxu0
        %v1329 = vadd.f32 %v1184, %v1328
        %v1330 = vpop.f32.mrf.mxu0
        %v1331 = vadd.f32 %v1186, %v1330
        %1332 = vmatmul.bf16.gmra.mxu0 %v534
        %v1333 = vpop.f32.mrf.mxu0
        %v1334 = vadd.f32 %v1189, %v1333
        %v1335 = vpop.f32.mrf.mxu0
        %v1336 = vadd.f32 %v1191, %v1335
        %1337 = vmatmul.bf16.gmra.mxu0 %v535
        %v1338 = vpop.f32.mrf.mxu0
        %v1339 = vadd.f32 %v1194, %v1338
        %v1340 = vpop.f32.mrf.mxu0
        %v1341 = vadd.f32 %v1196, %v1340
        %1342 = vmatmul.bf16.gmra.mxu0 %v536
        %v1343 = vpop.f32.mrf.mxu0
        %v1344 = vadd.f32 %v1199, %v1343
        %v1345 = vpop.f32.mrf.mxu0
        %v1346 = vadd.f32 %v1201, %v1345
        %1347 = vdwg.mxu0
        %1348 = vmatpush.bf16.msra.mxu0 %v1282
        %1349 = vmatpush.bf16.msra.mxu0 %v1281
        %1350 = vmatpush.bf16.msra.mxu0 %v1280
        %1351 = vmatpush.bf16.msra.mxu0 %v1279
        %1352 = vmatpush.bf16.msra.mxu0 %v1278
        %1353 = vmatpush.bf16.msra.mxu0 %v1277
        %1354 = vmatpush.bf16.msra.mxu0 %v1276
        %1355 = vmatpush.bf16.msra.mxu0 %v1275
        %1356 = vmatmul.bf16.gmra.mxu0 %v577
        %v1357 = vpop.f32.mrf.mxu0
        %v1358 = vadd.f32 %v1309, %v1357
        %v1359 = vpop.f32.mrf.mxu0
        %v1360 = vadd.f32 %v1311, %v1359
        %1361 = vmatmul.bf16.gmra.mxu0 %v578
        %v1362 = vpop.f32.mrf.mxu0
        %v1363 = vadd.f32 %v1314, %v1362
        %v1364 = vpop.f32.mrf.mxu0
        %v1365 = vadd.f32 %v1316, %v1364
        %1366 = vmatmul.bf16.gmra.mxu0 %v579
        %v1367 = vpop.f32.mrf.mxu0
        %v1368 = vadd.f32 %v1319, %v1367
        %v1369 = vpop.f32.mrf.mxu0
        %v1370 = vadd.f32 %v1321, %v1369
        %1371 = vmatmul.bf16.gmra.mxu0 %v580
        %v1372 = vpop.f32.mrf.mxu0
        %v1373 = vadd.f32 %v1324, %v1372
        %v1374 = vpop.f32.mrf.mxu0
        %v1375 = vadd.f32 %v1326, %v1374
        %1376 = vmatmul.bf16.gmra.mxu0 %v581
        %v1377 = vpop.f32.mrf.mxu0
        %v1378 = vadd.f32 %v1329, %v1377
        %v1379 = vpop.f32.mrf.mxu0
        %v1380 = vadd.f32 %v1331, %v1379
        %1381 = vmatmul.bf16.gmra.mxu0 %v582
        %v1382 = vpop.f32.mrf.mxu0
        %v1383 = vadd.f32 %v1334, %v1382
        %v1384 = vpop.f32.mrf.mxu0
        %v1385 = vadd.f32 %v1336, %v1384
        %1386 = vmatmul.bf16.gmra.mxu0 %v583
        %v1387 = vpop.f32.mrf.mxu0
        %v1388 = vadd.f32 %v1339, %v1387
        %v1389 = vpop.f32.mrf.mxu0
        %v1390 = vadd.f32 %v1341, %v1389
        %1391 = vmatmul.bf16.gmra.mxu0 %v584
        %v1392 = vpop.f32.mrf.mxu0
        %v1393 = vadd.f32 %v1344, %v1392
        %v1394 = vpop.f32.mrf.mxu0
        %v1395 = vadd.f32 %v1346, %v1394
        %1396 = vdwg.mxu0
        %s1397 = scalar_lea.vmem %s164, 128 [#allocation2]
        %1398 = vst [vmem:[%s1397] sm:$0xff] %v1358
        %1399 = vst [vmem:[%s1397 + $0x8] sm:$0xff] %v1360
        %1400 = vst [vmem:[%s1397 + $0x10] sm:$0xff] %v1363
        %1401 = vst [vmem:[%s1397 + $0x18] sm:$0xff] %v1365
        %1402 = vst [vmem:[%s1397 + $0x20] sm:$0xff] %v1368
        %1403 = vst [vmem:[%s1397 + $0x28] sm:$0xff] %v1370
        %1404 = vst [vmem:[%s1397 + $0x30] sm:$0xff] %v1373
        %1405 = vst [vmem:[%s1397 + $0x38] sm:$0xff] %v1375
        %1406 = vst [vmem:[%s1397 + $0x40] sm:$0xff] %v1378
        %1407 = vst [vmem:[%s1397 + $0x48] sm:$0xff] %v1380
        %1408 = vst [vmem:[%s1397 + $0x50] sm:$0xff] %v1383
        %1409 = vst [vmem:[%s1397 + $0x58] sm:$0xff] %v1385
        %1410 = vst [vmem:[%s1397 + $0x60] sm:$0xff] %v1388
        %1411 = vst [vmem:[%s1397 + $0x68] sm:$0xff] %v1390
        %1412 = vst [vmem:[%s1397 + $0x70] sm:$0xff] %v1393
        %1413 = vst [vmem:[%s1397 + $0x78] sm:$0xff] %v1395
        %v1414 = vld [vmem:[%s169] sm:$0xff]
        %v1415 = vld [vmem:[%s169 + $0x8] sm:$0xff]
        %v1416 = vld [vmem:[%s169 + $0x10] sm:$0xff]
        %v1417 = vld [vmem:[%s169 + $0x18] sm:$0xff]
        %v1418 = vld [vmem:[%s169 + $0x20] sm:$0xff]
        %v1419 = vld [vmem:[%s169 + $0x28] sm:$0xff]
        %v1420 = vld [vmem:[%s169 + $0x30] sm:$0xff]
        %v1421 = vld [vmem:[%s169 + $0x38] sm:$0xff]
        %v1422 = vld [vmem:[%s169 + $0x40] sm:$0xff]
        %v1423 = vld [vmem:[%s169 + $0x48] sm:$0xff]
        %v1424 = vld [vmem:[%s169 + $0x50] sm:$0xff]
        %v1425 = vld [vmem:[%s169 + $0x58] sm:$0xff]
        %v1426 = vld [vmem:[%s169 + $0x60] sm:$0xff]
        %v1427 = vld [vmem:[%s169 + $0x68] sm:$0xff]
        %v1428 = vld [vmem:[%s169 + $0x70] sm:$0xff]
        %v1429 = vld [vmem:[%s169 + $0x78] sm:$0xff]
        %v1430 = vld [vmem:[%s164] sm:$0xff]
        %v1431 = vld [vmem:[%s164 + $0x8] sm:$0xff]
        %v1432 = vld [vmem:[%s164 + $0x10] sm:$0xff]
        %v1433 = vld [vmem:[%s164 + $0x18] sm:$0xff]
        %v1434 = vld [vmem:[%s164 + $0x20] sm:$0xff]
        %v1435 = vld [vmem:[%s164 + $0x28] sm:$0xff]
        %v1436 = vld [vmem:[%s164 + $0x30] sm:$0xff]
        %v1437 = vld [vmem:[%s164 + $0x38] sm:$0xff]
        %v1438 = vld [vmem:[%s164 + $0x40] sm:$0xff]
        %v1439 = vld [vmem:[%s164 + $0x48] sm:$0xff]
        %v1440 = vld [vmem:[%s164 + $0x50] sm:$0xff]
        %v1441 = vld [vmem:[%s164 + $0x58] sm:$0xff]
        %v1442 = vld [vmem:[%s164 + $0x60] sm:$0xff]
        %v1443 = vld [vmem:[%s164 + $0x68] sm:$0xff]
        %v1444 = vld [vmem:[%s164 + $0x70] sm:$0xff]
        %v1445 = vld [vmem:[%s164 + $0x78] sm:$0xff]
        %v1446 = vpack.c.bf16 %v1430, %v1430
        %v1447 = vpack.c.bf16 %v1431, %v1431
        %v1448 = vpack.c.bf16 %v1432, %v1432
        %v1449 = vpack.c.bf16 %v1433, %v1433
        %v1450 = vpack.c.bf16 %v1434, %v1434
        %v1451 = vpack.c.bf16 %v1435, %v1435
        %v1452 = vpack.c.bf16 %v1436, %v1436
        %v1453 = vpack.c.bf16 %v1437, %v1437
        %v1454 = vpack.c.bf16 %v1438, %v1438
        %v1455 = vpack.c.bf16 %v1439, %v1439
        %v1456 = vpack.c.bf16 %v1440, %v1440
        %v1457 = vpack.c.bf16 %v1441, %v1441
        %v1458 = vpack.c.bf16 %v1442, %v1442
        %v1459 = vpack.c.bf16 %v1443, %v1443
        %v1460 = vpack.c.bf16 %v1444, %v1444
        %v1461 = vpack.c.bf16 %v1445, %v1445
        %vm1462 = vcmp.eq.s32.totalorder %v1414, 0
        %vm1463 = vcmp.eq.s32.totalorder %v1415, 0
        %vm1464 = vcmp.eq.s32.totalorder %v1416, 0
        %vm1465 = vcmp.eq.s32.totalorder %v1417, 0
        %vm1466 = vcmp.eq.s32.totalorder %v1418, 0
        %vm1467 = vcmp.eq.s32.totalorder %v1419, 0
        %vm1468 = vcmp.eq.s32.totalorder %v1420, 0
        %vm1469 = vcmp.eq.s32.totalorder %v1421, 0
        %vm1470 = vcmp.eq.s32.totalorder %v1422, 0
        %vm1471 = vcmp.eq.s32.totalorder %v1423, 0
        %vm1472 = vcmp.eq.s32.totalorder %v1424, 0
        %vm1473 = vcmp.eq.s32.totalorder %v1425, 0
        %vm1474 = vcmp.eq.s32.totalorder %v1426, 0
        %vm1475 = vcmp.eq.s32.totalorder %v1427, 0
        %vm1476 = vcmp.eq.s32.totalorder %v1428, 0
        %vm1477 = vcmp.eq.s32.totalorder %v1429, 0
        %v1478 = vsel %vm1462, 1, 0
        %v1479 = vsel %vm1463, 1, 0
        %v1480 = vsel %vm1464, 1, 0
        %v1481 = vsel %vm1465, 1, 0
        %v1482 = vsel %vm1466, 1, 0
        %v1483 = vsel %vm1467, 1, 0
        %v1484 = vsel %vm1468, 1, 0
        %v1485 = vsel %vm1469, 1, 0
        %v1486 = vsel %vm1470, 1, 0
        %v1487 = vsel %vm1471, 1, 0
        %v1488 = vsel %vm1472, 1, 0
        %v1489 = vsel %vm1473, 1, 0
        %v1490 = vsel %vm1474, 1, 0
        %v1491 = vsel %vm1475, 1, 0
        %v1492 = vsel %vm1476, 1, 0
        %v1493 = vsel %vm1477, 1, 0
        %1494 = vset.pattern.permute.xlu0 1
        %1495 = vperm.xlu0 %1494, %v1478
        %v1496 = vpop.permute.xlu0 %1495
        %1497 = vset.pattern.permute.xlu0 1
        %1498 = vperm.xlu0 %1497, %v1479
        %v1499 = vpop.permute.xlu0 %1498
        %1500 = vset.pattern.permute.xlu0 1
        %1501 = vperm.xlu0 %1500, %v1480
        %v1502 = vpop.permute.xlu0 %1501
        %1503 = vset.pattern.permute.xlu0 1
        %1504 = vperm.xlu0 %1503, %v1481
        %v1505 = vpop.permute.xlu0 %1504
        %1506 = vset.pattern.permute.xlu0 1
        %1507 = vperm.xlu0 %1506, %v1482
        %v1508 = vpop.permute.xlu0 %1507
        %1509 = vset.pattern.permute.xlu0 1
        %1510 = vperm.xlu0 %1509, %v1483
        %v1511 = vpop.permute.xlu0 %1510
        %1512 = vset.pattern.permute.xlu0 1
        %1513 = vperm.xlu0 %1512, %v1484
        %v1514 = vpop.permute.xlu0 %1513
        %1515 = vset.pattern.permute.xlu0 1
        %1516 = vperm.xlu0 %1515, %v1485
        %v1517 = vpop.permute.xlu0 %1516
        %1518 = vset.pattern.permute.xlu0 1
        %1519 = vperm.xlu0 %1518, %v1486
        %v1520 = vpop.permute.xlu0 %1519
        %1521 = vset.pattern.permute.xlu0 1
        %1522 = vperm.xlu0 %1521, %v1487
        %v1523 = vpop.permute.xlu0 %1522
        %1524 = vset.pattern.permute.xlu0 1
        %1525 = vperm.xlu0 %1524, %v1488
        %v1526 = vpop.permute.xlu0 %1525
        %1527 = vset.pattern.permute.xlu0 1
        %1528 = vperm.xlu0 %1527, %v1489
        %v1529 = vpop.permute.xlu0 %1528
        %1530 = vset.pattern.permute.xlu0 1
        %1531 = vperm.xlu0 %1530, %v1490
        %v1532 = vpop.permute.xlu0 %1531
        %1533 = vset.pattern.permute.xlu0 1
        %1534 = vperm.xlu0 %1533, %v1491
        %v1535 = vpop.permute.xlu0 %1534
        %1536 = vset.pattern.permute.xlu0 1
        %1537 = vperm.xlu0 %1536, %v1492
        %v1538 = vpop.permute.xlu0 %1537
        %1539 = vset.pattern.permute.xlu0 1
        %1540 = vperm.xlu0 %1539, %v1493
        %v1541 = vpop.permute.xlu0 %1540
        %vm1542 = vcmp.eq.s32.totalorder %v1496, 1
        %vm1543 = vcmp.eq.s32.totalorder %v1499, 1
        %vm1544 = vcmp.eq.s32.totalorder %v1502, 1
        %vm1545 = vcmp.eq.s32.totalorder %v1505, 1
        %vm1546 = vcmp.eq.s32.totalorder %v1508, 1
        %vm1547 = vcmp.eq.s32.totalorder %v1511, 1
        %vm1548 = vcmp.eq.s32.totalorder %v1514, 1
        %vm1549 = vcmp.eq.s32.totalorder %v1517, 1
        %vm1550 = vcmp.eq.s32.totalorder %v1520, 1
        %vm1551 = vcmp.eq.s32.totalorder %v1523, 1
        %vm1552 = vcmp.eq.s32.totalorder %v1526, 1
        %vm1553 = vcmp.eq.s32.totalorder %v1529, 1
        %vm1554 = vcmp.eq.s32.totalorder %v1532, 1
        %vm1555 = vcmp.eq.s32.totalorder %v1535, 1
        %vm1556 = vcmp.eq.s32.totalorder %v1538, 1
        %vm1557 = vcmp.eq.s32.totalorder %v1541, 1
        %vm1558 = vmpackc.low %vm1542, %vm1542
        %vm1559 = vmpackc.low %vm1543, %vm1543
        %vm1560 = vmpackc.low %vm1544, %vm1544
        %vm1561 = vmpackc.low %vm1545, %vm1545
        %vm1562 = vmpackc.low %vm1546, %vm1546
        %vm1563 = vmpackc.low %vm1547, %vm1547
        %vm1564 = vmpackc.low %vm1548, %vm1548
        %vm1565 = vmpackc.low %vm1549, %vm1549
        %vm1566 = vmpackc.low %vm1550, %vm1550
        %vm1567 = vmpackc.low %vm1551, %vm1551
        %vm1568 = vmpackc.low %vm1552, %vm1552
        %vm1569 = vmpackc.low %vm1553, %vm1553
        %vm1570 = vmpackc.low %vm1554, %vm1554
        %vm1571 = vmpackc.low %vm1555, %vm1555
        %vm1572 = vmpackc.low %vm1556, %vm1556
        %vm1573 = vmpackc.low %vm1557, %vm1557
        %v1574 = vsel %vm1558, %v1446, 0
        %v1575 = vsel %vm1559, %v1447, 0
        %v1576 = vsel %vm1560, %v1448, 0
        %v1577 = vsel %vm1561, %v1449, 0
        %v1578 = vsel %vm1562, %v1450, 0
        %v1579 = vsel %vm1563, %v1451, 0
        %v1580 = vsel %vm1564, %v1452, 0
        %v1581 = vsel %vm1565, %v1453, 0
        %v1582 = vsel %vm1566, %v1454, 0
        %v1583 = vsel %vm1567, %v1455, 0
        %v1584 = vsel %vm1568, %v1456, 0
        %v1585 = vsel %vm1569, %v1457, 0
        %v1586 = vsel %vm1570, %v1458, 0
        %v1587 = vsel %vm1571, %v1459, 0
        %v1588 = vsel %vm1572, %v1460, 0
        %v1589 = vsel %vm1573, %v1461, 0
        %vm1590 = vcmp.eq.s32.totalorder %v1414, 1
        %vm1591 = vcmp.eq.s32.totalorder %v1415, 1
        %vm1592 = vcmp.eq.s32.totalorder %v1416, 1
        %vm1593 = vcmp.eq.s32.totalorder %v1417, 1
        %vm1594 = vcmp.eq.s32.totalorder %v1418, 1
        %vm1595 = vcmp.eq.s32.totalorder %v1419, 1
        %vm1596 = vcmp.eq.s32.totalorder %v1420, 1
        %vm1597 = vcmp.eq.s32.totalorder %v1421, 1
        %vm1598 = vcmp.eq.s32.totalorder %v1422, 1
        %vm1599 = vcmp.eq.s32.totalorder %v1423, 1
        %vm1600 = vcmp.eq.s32.totalorder %v1424, 1
        %vm1601 = vcmp.eq.s32.totalorder %v1425, 1
        %vm1602 = vcmp.eq.s32.totalorder %v1426, 1
        %vm1603 = vcmp.eq.s32.totalorder %v1427, 1
        %vm1604 = vcmp.eq.s32.totalorder %v1428, 1
        %vm1605 = vcmp.eq.s32.totalorder %v1429, 1
        %v1606 = vsel %vm1590, 1, 0
        %v1607 = vsel %vm1591, 1, 0
        %v1608 = vsel %vm1592, 1, 0
        %v1609 = vsel %vm1593, 1, 0
        %v1610 = vsel %vm1594, 1, 0
        %v1611 = vsel %vm1595, 1, 0
        %v1612 = vsel %vm1596, 1, 0
        %v1613 = vsel %vm1597, 1, 0
        %v1614 = vsel %vm1598, 1, 0
        %v1615 = vsel %vm1599, 1, 0
        %v1616 = vsel %vm1600, 1, 0
        %v1617 = vsel %vm1601, 1, 0
        %v1618 = vsel %vm1602, 1, 0
        %v1619 = vsel %vm1603, 1, 0
        %v1620 = vsel %vm1604, 1, 0
        %v1621 = vsel %vm1605, 1, 0
        %1622 = vset.pattern.permute.xlu0 1
        %1623 = vperm.xlu0 %1622, %v1606
        %v1624 = vpop.permute.xlu0 %1623
        %1625 = vset.pattern.permute.xlu0 1
        %1626 = vperm.xlu0 %1625, %v1607
        %v1627 = vpop.permute.xlu0 %1626
        %1628 = vset.pattern.permute.xlu0 1
        %1629 = vperm.xlu0 %1628, %v1608
        %v1630 = vpop.permute.xlu0 %1629
        %1631 = vset.pattern.permute.xlu0 1
        %1632 = vperm.xlu0 %1631, %v1609
        %v1633 = vpop.permute.xlu0 %1632
        %1634 = vset.pattern.permute.xlu0 1
        %1635 = vperm.xlu0 %1634, %v1610
        %v1636 = vpop.permute.xlu0 %1635
        %1637 = vset.pattern.permute.xlu0 1
        %1638 = vperm.xlu0 %1637, %v1611
        %v1639 = vpop.permute.xlu0 %1638
        %1640 = vset.pattern.permute.xlu0 1
        %1641 = vperm.xlu0 %1640, %v1612
        %v1642 = vpop.permute.xlu0 %1641
        %1643 = vset.pattern.permute.xlu0 1
        %1644 = vperm.xlu0 %1643, %v1613
        %v1645 = vpop.permute.xlu0 %1644
        %1646 = vset.pattern.permute.xlu0 1
        %1647 = vperm.xlu0 %1646, %v1614
        %v1648 = vpop.permute.xlu0 %1647
        %1649 = vset.pattern.permute.xlu0 1
        %1650 = vperm.xlu0 %1649, %v1615
        %v1651 = vpop.permute.xlu0 %1650
        %1652 = vset.pattern.permute.xlu0 1
        %1653 = vperm.xlu0 %1652, %v1616
        %v1654 = vpop.permute.xlu0 %1653
        %1655 = vset.pattern.permute.xlu0 1
        %1656 = vperm.xlu0 %1655, %v1617
        %v1657 = vpop.permute.xlu0 %1656
        %1658 = vset.pattern.permute.xlu0 1
        %1659 = vperm.xlu0 %1658, %v1618
        %v1660 = vpop.permute.xlu0 %1659
        %1661 = vset.pattern.permute.xlu0 1
        %1662 = vperm.xlu0 %1661, %v1619
        %v1663 = vpop.permute.xlu0 %1662
        %1664 = vset.pattern.permute.xlu0 1
        %1665 = vperm.xlu0 %1664, %v1620
        %v1666 = vpop.permute.xlu0 %1665
        %1667 = vset.pattern.permute.xlu0 1
        %1668 = vperm.xlu0 %1667, %v1621
        %v1669 = vpop.permute.xlu0 %1668
        %vm1670 = vcmp.eq.s32.totalorder %v1624, 1
        %vm1671 = vcmp.eq.s32.totalorder %v1627, 1
        %vm1672 = vcmp.eq.s32.totalorder %v1630, 1
        %vm1673 = vcmp.eq.s32.totalorder %v1633, 1
        %vm1674 = vcmp.eq.s32.totalorder %v1636, 1
        %vm1675 = vcmp.eq.s32.totalorder %v1639, 1
        %vm1676 = vcmp.eq.s32.totalorder %v1642, 1
        %vm1677 = vcmp.eq.s32.totalorder %v1645, 1
        %vm1678 = vcmp.eq.s32.totalorder %v1648, 1
        %vm1679 = vcmp.eq.s32.totalorder %v1651, 1
        %vm1680 = vcmp.eq.s32.totalorder %v1654, 1
        %vm1681 = vcmp.eq.s32.totalorder %v1657, 1
        %vm1682 = vcmp.eq.s32.totalorder %v1660, 1
        %vm1683 = vcmp.eq.s32.totalorder %v1663, 1
        %vm1684 = vcmp.eq.s32.totalorder %v1666, 1
        %vm1685 = vcmp.eq.s32.totalorder %v1669, 1
        %vm1686 = vmpackc.low %vm1670, %vm1670
        %vm1687 = vmpackc.low %vm1671, %vm1671
        %vm1688 = vmpackc.low %vm1672, %vm1672
        %vm1689 = vmpackc.low %vm1673, %vm1673
        %vm1690 = vmpackc.low %vm1674, %vm1674
        %vm1691 = vmpackc.low %vm1675, %vm1675
        %vm1692 = vmpackc.low %vm1676, %vm1676
        %vm1693 = vmpackc.low %vm1677, %vm1677
        %vm1694 = vmpackc.low %vm1678, %vm1678
        %vm1695 = vmpackc.low %vm1679, %vm1679
        %vm1696 = vmpackc.low %vm1680, %vm1680
        %vm1697 = vmpackc.low %vm1681, %vm1681
        %vm1698 = vmpackc.low %vm1682, %vm1682
        %vm1699 = vmpackc.low %vm1683, %vm1683
        %vm1700 = vmpackc.low %vm1684, %vm1684
        %vm1701 = vmpackc.low %vm1685, %vm1685
        %v1702 = vsel %vm1686, %v1446, 0
        %v1703 = vsel %vm1687, %v1447, 0
        %v1704 = vsel %vm1688, %v1448, 0
        %v1705 = vsel %vm1689, %v1449, 0
        %v1706 = vsel %vm1690, %v1450, 0
        %v1707 = vsel %vm1691, %v1451, 0
        %v1708 = vsel %vm1692, %v1452, 0
        %v1709 = vsel %vm1693, %v1453, 0
        %v1710 = vsel %vm1694, %v1454, 0
        %v1711 = vsel %vm1695, %v1455, 0
        %v1712 = vsel %vm1696, %v1456, 0
        %v1713 = vsel %vm1697, %v1457, 0
        %v1714 = vsel %vm1698, %v1458, 0
        %v1715 = vsel %vm1699, %v1459, 0
        %v1716 = vsel %vm1700, %v1460, 0
        %v1717 = vsel %vm1701, %v1461, 0
        %v1734 = vunpack.c.l.b16 %v1574
        %v1735 = vunpack.c.l.b16 %v1575
        %v1736 = vunpack.c.l.b16 %v1576
        %v1737 = vunpack.c.l.b16 %v1577
        %v1738 = vunpack.c.l.b16 %v1578
        %v1739 = vunpack.c.l.b16 %v1579
        %v1740 = vunpack.c.l.b16 %v1580
        %v1741 = vunpack.c.l.b16 %v1581
        %v1742 = vunpack.c.l.b16 %v1582
        %v1743 = vunpack.c.l.b16 %v1583
        %v1744 = vunpack.c.l.b16 %v1584
        %v1745 = vunpack.c.l.b16 %v1585
        %v1746 = vunpack.c.l.b16 %v1586
        %v1747 = vunpack.c.l.b16 %v1587
        %v1748 = vunpack.c.l.b16 %v1588
        %v1749 = vunpack.c.l.b16 %v1589
        %v1750 = vpack.c.b16 %v1735, %v1734
        %v1751 = vpack.c.b16 %v1737, %v1736
        %v1752 = vpack.c.b16 %v1739, %v1738
        %v1753 = vpack.c.b16 %v1741, %v1740
        %v1754 = vpack.c.b16 %v1743, %v1742
        %v1755 = vpack.c.b16 %v1745, %v1744
        %v1756 = vpack.c.b16 %v1747, %v1746
        %v1757 = vpack.c.b16 %v1749, %v1748
        %v1782 = vunpack.c.l.b16 %v1702
        %v1783 = vunpack.c.l.b16 %v1703
        %v1784 = vunpack.c.l.b16 %v1704
        %v1785 = vunpack.c.l.b16 %v1705
        %v1786 = vunpack.c.l.b16 %v1706
        %v1787 = vunpack.c.l.b16 %v1707
        %v1788 = vunpack.c.l.b16 %v1708
        %v1789 = vunpack.c.l.b16 %v1709
        %v1790 = vunpack.c.l.b16 %v1710
        %v1791 = vunpack.c.l.b16 %v1711
        %v1792 = vunpack.c.l.b16 %v1712
        %v1793 = vunpack.c.l.b16 %v1713
        %v1794 = vunpack.c.l.b16 %v1714
        %v1795 = vunpack.c.l.b16 %v1715
        %v1796 = vunpack.c.l.b16 %v1716
        %v1797 = vunpack.c.l.b16 %v1717
        %v1798 = vpack.c.b16 %v1783, %v1782
        %v1799 = vpack.c.b16 %v1785, %v1784
        %v1800 = vpack.c.b16 %v1787, %v1786
        %v1801 = vpack.c.b16 %v1789, %v1788
        %v1802 = vpack.c.b16 %v1791, %v1790
        %v1803 = vpack.c.b16 %v1793, %v1792
        %v1804 = vpack.c.b16 %v1795, %v1794
        %v1805 = vpack.c.b16 %v1797, %v1796
        %v1814 = vld [vmem:[%s1] sm:$0xf]
        %v1815 = vld [vmem:[%s1 + $0x4] sm:$0xf]
        %v1816 = vld [vmem:[%s1 + $0x8] sm:$0xf]
        %v1817 = vld [vmem:[%s1 + $0xc] sm:$0xf]
        %v1818 = vld [vmem:[%s1 + $0x10] sm:$0xf]
        %v1819 = vld [vmem:[%s1 + $0x14] sm:$0xf]
        %v1820 = vld [vmem:[%s1 + $0x18] sm:$0xf]
        %v1821 = vld [vmem:[%s1 + $0x1c] sm:$0xf]
        %v1822 = vld [vmem:[%s1 + $0x20] sm:$0xf]
        %v1823 = vld [vmem:[%s1 + $0x24] sm:$0xf]
        %v1824 = vld [vmem:[%s1 + $0x28] sm:$0xf]
        %v1825 = vld [vmem:[%s1 + $0x2c] sm:$0xf]
        %v1826 = vld [vmem:[%s1 + $0x30] sm:$0xf]
        %v1827 = vld [vmem:[%s1 + $0x34] sm:$0xf]
        %v1828 = vld [vmem:[%s1 + $0x38] sm:$0xf]
        %v1829 = vld [vmem:[%s1 + $0x3c] sm:$0xf]
        %v1830 = vld [vmem:[%s1 + $0x40] sm:$0xf]
        %v1831 = vld [vmem:[%s1 + $0x44] sm:$0xf]
        %v1832 = vld [vmem:[%s1 + $0x48] sm:$0xf]
        %v1833 = vld [vmem:[%s1 + $0x4c] sm:$0xf]
        %v1834 = vld [vmem:[%s1 + $0x50] sm:$0xf]
        %v1835 = vld [vmem:[%s1 + $0x54] sm:$0xf]
        %v1836 = vld [vmem:[%s1 + $0x58] sm:$0xf]
        %v1837 = vld [vmem:[%s1 + $0x5c] sm:$0xf]
        %v1838 = vld [vmem:[%s1 + $0x60] sm:$0xf]
        %v1839 = vld [vmem:[%s1 + $0x64] sm:$0xf]
        %v1840 = vld [vmem:[%s1 + $0x68] sm:$0xf]
        %v1841 = vld [vmem:[%s1 + $0x6c] sm:$0xf]
        %v1842 = vld [vmem:[%s1 + $0x70] sm:$0xf]
        %v1843 = vld [vmem:[%s1 + $0x74] sm:$0xf]
        %v1844 = vld [vmem:[%s1 + $0x78] sm:$0xf]
        %v1845 = vld [vmem:[%s1 + $0x7c] sm:$0xf]
        %vm1846 = vcmp.eq.s32.totalorder %v1414, 2
        %vm1847 = vcmp.eq.s32.totalorder %v1415, 2
        %vm1848 = vcmp.eq.s32.totalorder %v1416, 2
        %vm1849 = vcmp.eq.s32.totalorder %v1417, 2
        %vm1850 = vcmp.eq.s32.totalorder %v1418, 2
        %vm1851 = vcmp.eq.s32.totalorder %v1419, 2
        %vm1852 = vcmp.eq.s32.totalorder %v1420, 2
        %vm1853 = vcmp.eq.s32.totalorder %v1421, 2
        %vm1854 = vcmp.eq.s32.totalorder %v1422, 2
        %vm1855 = vcmp.eq.s32.totalorder %v1423, 2
        %vm1856 = vcmp.eq.s32.totalorder %v1424, 2
        %vm1857 = vcmp.eq.s32.totalorder %v1425, 2
        %vm1858 = vcmp.eq.s32.totalorder %v1426, 2
        %vm1859 = vcmp.eq.s32.totalorder %v1427, 2
        %vm1860 = vcmp.eq.s32.totalorder %v1428, 2
        %vm1861 = vcmp.eq.s32.totalorder %v1429, 2
        %v1862 = vsel %vm1846, 1, 0
        %v1863 = vsel %vm1847, 1, 0
        %v1864 = vsel %vm1848, 1, 0
        %v1865 = vsel %vm1849, 1, 0
        %v1866 = vsel %vm1850, 1, 0
        %v1867 = vsel %vm1851, 1, 0
        %v1868 = vsel %vm1852, 1, 0
        %v1869 = vsel %vm1853, 1, 0
        %v1870 = vsel %vm1854, 1, 0
        %v1871 = vsel %vm1855, 1, 0
        %v1872 = vsel %vm1856, 1, 0
        %v1873 = vsel %vm1857, 1, 0
        %v1874 = vsel %vm1858, 1, 0
        %v1875 = vsel %vm1859, 1, 0
        %v1876 = vsel %vm1860, 1, 0
        %v1877 = vsel %vm1861, 1, 0
        %1878 = vset.pattern.permute.xlu0 1
        %1879 = vperm.xlu0 %1878, %v1862
        %v1880 = vpop.permute.xlu0 %1879
        %1881 = vset.pattern.permute.xlu0 1
        %1882 = vperm.xlu0 %1881, %v1863
        %v1883 = vpop.permute.xlu0 %1882
        %1884 = vset.pattern.permute.xlu0 1
        %1885 = vperm.xlu0 %1884, %v1864
        %v1886 = vpop.permute.xlu0 %1885
        %1887 = vset.pattern.permute.xlu0 1
        %1888 = vperm.xlu0 %1887, %v1865
        %v1889 = vpop.permute.xlu0 %1888
        %1890 = vset.pattern.permute.xlu0 1
        %1891 = vperm.xlu0 %1890, %v1866
        %v1892 = vpop.permute.xlu0 %1891
        %1893 = vset.pattern.permute.xlu0 1
        %1894 = vperm.xlu0 %1893, %v1867
        %v1895 = vpop.permute.xlu0 %1894
        %1896 = vset.pattern.permute.xlu0 1
        %1897 = vperm.xlu0 %1896, %v1868
        %v1898 = vpop.permute.xlu0 %1897
        %1899 = vset.pattern.permute.xlu0 1
        %1900 = vperm.xlu0 %1899, %v1869
        %v1901 = vpop.permute.xlu0 %1900
        %1902 = vset.pattern.permute.xlu0 1
        %1903 = vperm.xlu0 %1902, %v1870
        %v1904 = vpop.permute.xlu0 %1903
        %1905 = vset.pattern.permute.xlu0 1
        %1906 = vperm.xlu0 %1905, %v1871
        %v1907 = vpop.permute.xlu0 %1906
        %1908 = vset.pattern.permute.xlu0 1
        %1909 = vperm.xlu0 %1908, %v1872
        %v1910 = vpop.permute.xlu0 %1909
        %1911 = vset.pattern.permute.xlu0 1
        %1912 = vperm.xlu0 %1911, %v1873
        %v1913 = vpop.permute.xlu0 %1912
        %1914 = vset.pattern.permute.xlu0 1
        %1915 = vperm.xlu0 %1914, %v1874
        %v1916 = vpop.permute.xlu0 %1915
        %1917 = vset.pattern.permute.xlu0 1
        %1918 = vperm.xlu0 %1917, %v1875
        %v1919 = vpop.permute.xlu0 %1918
        %1920 = vset.pattern.permute.xlu0 1
        %1921 = vperm.xlu0 %1920, %v1876
        %v1922 = vpop.permute.xlu0 %1921
        %1923 = vset.pattern.permute.xlu0 1
        %1924 = vperm.xlu0 %1923, %v1877
        %v1925 = vpop.permute.xlu0 %1924
        %vm1926 = vcmp.eq.s32.totalorder %v1880, 1
        %vm1927 = vcmp.eq.s32.totalorder %v1883, 1
        %vm1928 = vcmp.eq.s32.totalorder %v1886, 1
        %vm1929 = vcmp.eq.s32.totalorder %v1889, 1
        %vm1930 = vcmp.eq.s32.totalorder %v1892, 1
        %vm1931 = vcmp.eq.s32.totalorder %v1895, 1
        %vm1932 = vcmp.eq.s32.totalorder %v1898, 1
        %vm1933 = vcmp.eq.s32.totalorder %v1901, 1
        %vm1934 = vcmp.eq.s32.totalorder %v1904, 1
        %vm1935 = vcmp.eq.s32.totalorder %v1907, 1
        %vm1936 = vcmp.eq.s32.totalorder %v1910, 1
        %vm1937 = vcmp.eq.s32.totalorder %v1913, 1
        %vm1938 = vcmp.eq.s32.totalorder %v1916, 1
        %vm1939 = vcmp.eq.s32.totalorder %v1919, 1
        %vm1940 = vcmp.eq.s32.totalorder %v1922, 1
        %vm1941 = vcmp.eq.s32.totalorder %v1925, 1
        %vm1942 = vmpackc.low %vm1926, %vm1926
        %vm1943 = vmpackc.low %vm1927, %vm1927
        %vm1944 = vmpackc.low %vm1928, %vm1928
        %vm1945 = vmpackc.low %vm1929, %vm1929
        %vm1946 = vmpackc.low %vm1930, %vm1930
        %vm1947 = vmpackc.low %vm1931, %vm1931
        %vm1948 = vmpackc.low %vm1932, %vm1932
        %vm1949 = vmpackc.low %vm1933, %vm1933
        %vm1950 = vmpackc.low %vm1934, %vm1934
        %vm1951 = vmpackc.low %vm1935, %vm1935
        %vm1952 = vmpackc.low %vm1936, %vm1936
        %vm1953 = vmpackc.low %vm1937, %vm1937
        %vm1954 = vmpackc.low %vm1938, %vm1938
        %vm1955 = vmpackc.low %vm1939, %vm1939
        %vm1956 = vmpackc.low %vm1940, %vm1940
        %vm1957 = vmpackc.low %vm1941, %vm1941
        %v1958 = vsel %vm1942, %v1446, 0
        %v1959 = vsel %vm1943, %v1447, 0
        %v1960 = vsel %vm1944, %v1448, 0
        %v1961 = vsel %vm1945, %v1449, 0
        %v1962 = vsel %vm1946, %v1450, 0
        %v1963 = vsel %vm1947, %v1451, 0
        %v1964 = vsel %vm1948, %v1452, 0
        %v1965 = vsel %vm1949, %v1453, 0
        %v1966 = vsel %vm1950, %v1454, 0
        %v1967 = vsel %vm1951, %v1455, 0
        %v1968 = vsel %vm1952, %v1456, 0
        %v1969 = vsel %vm1953, %v1457, 0
        %v1970 = vsel %vm1954, %v1458, 0
        %v1971 = vsel %vm1955, %v1459, 0
        %v1972 = vsel %vm1956, %v1460, 0
        %v1973 = vsel %vm1957, %v1461, 0
        %vm1974 = vcmp.eq.s32.totalorder %v1414, 3
        %vm1975 = vcmp.eq.s32.totalorder %v1415, 3
        %vm1976 = vcmp.eq.s32.totalorder %v1416, 3
        %vm1977 = vcmp.eq.s32.totalorder %v1417, 3
        %vm1978 = vcmp.eq.s32.totalorder %v1418, 3
        %vm1979 = vcmp.eq.s32.totalorder %v1419, 3
        %vm1980 = vcmp.eq.s32.totalorder %v1420, 3
        %vm1981 = vcmp.eq.s32.totalorder %v1421, 3
        %vm1982 = vcmp.eq.s32.totalorder %v1422, 3
        %vm1983 = vcmp.eq.s32.totalorder %v1423, 3
        %vm1984 = vcmp.eq.s32.totalorder %v1424, 3
        %vm1985 = vcmp.eq.s32.totalorder %v1425, 3
        %vm1986 = vcmp.eq.s32.totalorder %v1426, 3
        %vm1987 = vcmp.eq.s32.totalorder %v1427, 3
        %vm1988 = vcmp.eq.s32.totalorder %v1428, 3
        %vm1989 = vcmp.eq.s32.totalorder %v1429, 3
        %v1990 = vsel %vm1974, 1, 0
        %v1991 = vsel %vm1975, 1, 0
        %v1992 = vsel %vm1976, 1, 0
        %v1993 = vsel %vm1977, 1, 0
        %v1994 = vsel %vm1978, 1, 0
        %v1995 = vsel %vm1979, 1, 0
        %v1996 = vsel %vm1980, 1, 0
        %v1997 = vsel %vm1981, 1, 0
        %v1998 = vsel %vm1982, 1, 0
        %v1999 = vsel %vm1983, 1, 0
        %v2000 = vsel %vm1984, 1, 0
        %v2001 = vsel %vm1985, 1, 0
        %v2002 = vsel %vm1986, 1, 0
        %v2003 = vsel %vm1987, 1, 0
        %v2004 = vsel %vm1988, 1, 0
        %v2005 = vsel %vm1989, 1, 0
        %2006 = vset.pattern.permute.xlu0 1
        %2007 = vperm.xlu0 %2006, %v1990
        %v2008 = vpop.permute.xlu0 %2007
        %2009 = vset.pattern.permute.xlu0 1
        %2010 = vperm.xlu0 %2009, %v1991
        %v2011 = vpop.permute.xlu0 %2010
        %2012 = vset.pattern.permute.xlu0 1
        %2013 = vperm.xlu0 %2012, %v1992
        %v2014 = vpop.permute.xlu0 %2013
        %2015 = vset.pattern.permute.xlu0 1
        %2016 = vperm.xlu0 %2015, %v1993
        %v2017 = vpop.permute.xlu0 %2016
        %2018 = vset.pattern.permute.xlu0 1
        %2019 = vperm.xlu0 %2018, %v1994
        %v2020 = vpop.permute.xlu0 %2019
        %2021 = vset.pattern.permute.xlu0 1
        %2022 = vperm.xlu0 %2021, %v1995
        %v2023 = vpop.permute.xlu0 %2022
        %2024 = vset.pattern.permute.xlu0 1
        %2025 = vperm.xlu0 %2024, %v1996
        %v2026 = vpop.permute.xlu0 %2025
        %2027 = vset.pattern.permute.xlu0 1
        %2028 = vperm.xlu0 %2027, %v1997
        %v2029 = vpop.permute.xlu0 %2028
        %2030 = vset.pattern.permute.xlu0 1
        %2031 = vperm.xlu0 %2030, %v1998
        %v2032 = vpop.permute.xlu0 %2031
        %2033 = vset.pattern.permute.xlu0 1
        %2034 = vperm.xlu0 %2033, %v1999
        %v2035 = vpop.permute.xlu0 %2034
        %2036 = vset.pattern.permute.xlu0 1
        %2037 = vperm.xlu0 %2036, %v2000
        %v2038 = vpop.permute.xlu0 %2037
        %2039 = vset.pattern.permute.xlu0 1
        %2040 = vperm.xlu0 %2039, %v2001
        %v2041 = vpop.permute.xlu0 %2040
        %2042 = vset.pattern.permute.xlu0 1
        %2043 = vperm.xlu0 %2042, %v2002
        %v2044 = vpop.permute.xlu0 %2043
        %2045 = vset.pattern.permute.xlu0 1
        %2046 = vperm.xlu0 %2045, %v2003
        %v2047 = vpop.permute.xlu0 %2046
        %2048 = vset.pattern.permute.xlu0 1
        %2049 = vperm.xlu0 %2048, %v2004
        %v2050 = vpop.permute.xlu0 %2049
        %2051 = vset.pattern.permute.xlu0 1
        %2052 = vperm.xlu0 %2051, %v2005
        %v2053 = vpop.permute.xlu0 %2052
        %vm2054 = vcmp.eq.s32.totalorder %v2008, 1
        %vm2055 = vcmp.eq.s32.totalorder %v2011, 1
        %vm2056 = vcmp.eq.s32.totalorder %v2014, 1
        %vm2057 = vcmp.eq.s32.totalorder %v2017, 1
        %vm2058 = vcmp.eq.s32.totalorder %v2020, 1
        %vm2059 = vcmp.eq.s32.totalorder %v2023, 1
        %vm2060 = vcmp.eq.s32.totalorder %v2026, 1
        %vm2061 = vcmp.eq.s32.totalorder %v2029, 1
        %vm2062 = vcmp.eq.s32.totalorder %v2032, 1
        %vm2063 = vcmp.eq.s32.totalorder %v2035, 1
        %vm2064 = vcmp.eq.s32.totalorder %v2038, 1
        %vm2065 = vcmp.eq.s32.totalorder %v2041, 1
        %vm2066 = vcmp.eq.s32.totalorder %v2044, 1
        %vm2067 = vcmp.eq.s32.totalorder %v2047, 1
        %vm2068 = vcmp.eq.s32.totalorder %v2050, 1
        %vm2069 = vcmp.eq.s32.totalorder %v2053, 1
        %vm2070 = vmpackc.low %vm2054, %vm2054
        %vm2071 = vmpackc.low %vm2055, %vm2055
        %vm2072 = vmpackc.low %vm2056, %vm2056
        %vm2073 = vmpackc.low %vm2057, %vm2057
        %vm2074 = vmpackc.low %vm2058, %vm2058
        %vm2075 = vmpackc.low %vm2059, %vm2059
        %vm2076 = vmpackc.low %vm2060, %vm2060
        %vm2077 = vmpackc.low %vm2061, %vm2061
        %vm2078 = vmpackc.low %vm2062, %vm2062
        %vm2079 = vmpackc.low %vm2063, %vm2063
        %vm2080 = vmpackc.low %vm2064, %vm2064
        %vm2081 = vmpackc.low %vm2065, %vm2065
        %vm2082 = vmpackc.low %vm2066, %vm2066
        %vm2083 = vmpackc.low %vm2067, %vm2067
        %vm2084 = vmpackc.low %vm2068, %vm2068
        %vm2085 = vmpackc.low %vm2069, %vm2069
        %v2086 = vsel %vm2070, %v1446, 0
        %v2087 = vsel %vm2071, %v1447, 0
        %v2088 = vsel %vm2072, %v1448, 0
        %v2089 = vsel %vm2073, %v1449, 0
        %v2090 = vsel %vm2074, %v1450, 0
        %v2091 = vsel %vm2075, %v1451, 0
        %v2092 = vsel %vm2076, %v1452, 0
        %v2093 = vsel %vm2077, %v1453, 0
        %v2094 = vsel %vm2078, %v1454, 0
        %v2095 = vsel %vm2079, %v1455, 0
        %v2096 = vsel %vm2080, %v1456, 0
        %v2097 = vsel %vm2081, %v1457, 0
        %v2098 = vsel %vm2082, %v1458, 0
        %v2099 = vsel %vm2083, %v1459, 0
        %v2100 = vsel %vm2084, %v1460, 0
        %v2101 = vsel %vm2085, %v1461, 0
        %v2118 = vunpack.c.l.b16 %v1958
        %v2119 = vunpack.c.l.b16 %v1959
        %v2120 = vunpack.c.l.b16 %v1960
        %v2121 = vunpack.c.l.b16 %v1961
        %v2122 = vunpack.c.l.b16 %v1962
        %v2123 = vunpack.c.l.b16 %v1963
        %v2124 = vunpack.c.l.b16 %v1964
        %v2125 = vunpack.c.l.b16 %v1965
        %v2126 = vunpack.c.l.b16 %v1966
        %v2127 = vunpack.c.l.b16 %v1967
        %v2128 = vunpack.c.l.b16 %v1968
        %v2129 = vunpack.c.l.b16 %v1969
        %v2130 = vunpack.c.l.b16 %v1970
        %v2131 = vunpack.c.l.b16 %v1971
        %v2132 = vunpack.c.l.b16 %v1972
        %v2133 = vunpack.c.l.b16 %v1973
        %v2134 = vpack.c.b16 %v2119, %v2118
        %v2135 = vpack.c.b16 %v2121, %v2120
        %v2136 = vpack.c.b16 %v2123, %v2122
        %v2137 = vpack.c.b16 %v2125, %v2124
        %v2138 = vpack.c.b16 %v2127, %v2126
        %v2139 = vpack.c.b16 %v2129, %v2128
        %v2140 = vpack.c.b16 %v2131, %v2130
        %v2141 = vpack.c.b16 %v2133, %v2132
        %v2166 = vunpack.c.l.b16 %v2086
        %v2167 = vunpack.c.l.b16 %v2087
        %v2168 = vunpack.c.l.b16 %v2088
        %v2169 = vunpack.c.l.b16 %v2089
        %v2170 = vunpack.c.l.b16 %v2090
        %v2171 = vunpack.c.l.b16 %v2091
        %v2172 = vunpack.c.l.b16 %v2092
        %v2173 = vunpack.c.l.b16 %v2093
        %v2174 = vunpack.c.l.b16 %v2094
        %v2175 = vunpack.c.l.b16 %v2095
        %v2176 = vunpack.c.l.b16 %v2096
        %v2177 = vunpack.c.l.b16 %v2097
        %v2178 = vunpack.c.l.b16 %v2098
        %v2179 = vunpack.c.l.b16 %v2099
        %v2180 = vunpack.c.l.b16 %v2100
        %v2181 = vunpack.c.l.b16 %v2101
        %v2182 = vpack.c.b16 %v2167, %v2166
        %v2183 = vpack.c.b16 %v2169, %v2168
        %v2184 = vpack.c.b16 %v2171, %v2170
        %v2185 = vpack.c.b16 %v2173, %v2172
        %v2186 = vpack.c.b16 %v2175, %v2174
        %v2187 = vpack.c.b16 %v2177, %v2176
        %v2188 = vpack.c.b16 %v2179, %v2178
        %v2189 = vpack.c.b16 %v2181, %v2180
        %v2198 = vld [vmem:[%s1 + $0x80] sm:$0xf]
        %v2199 = vld [vmem:[%s1 + $0x84] sm:$0xf]
        %v2200 = vld [vmem:[%s1 + $0x88] sm:$0xf]
        %v2201 = vld [vmem:[%s1 + $0x8c] sm:$0xf]
        %v2202 = vld [vmem:[%s1 + $0x90] sm:$0xf]
        %v2203 = vld [vmem:[%s1 + $0x94] sm:$0xf]
        %v2204 = vld [vmem:[%s1 + $0x98] sm:$0xf]
        %v2205 = vld [vmem:[%s1 + $0x9c] sm:$0xf]
        %v2206 = vld [vmem:[%s1 + $0xa0] sm:$0xf]
        %v2207 = vld [vmem:[%s1 + $0xa4] sm:$0xf]
        %v2208 = vld [vmem:[%s1 + $0xa8] sm:$0xf]
        %v2209 = vld [vmem:[%s1 + $0xac] sm:$0xf]
        %v2210 = vld [vmem:[%s1 + $0xb0] sm:$0xf]
        %v2211 = vld [vmem:[%s1 + $0xb4] sm:$0xf]
        %v2212 = vld [vmem:[%s1 + $0xb8] sm:$0xf]
        %v2213 = vld [vmem:[%s1 + $0xbc] sm:$0xf]
        %v2214 = vld [vmem:[%s1 + $0xc0] sm:$0xf]
        %v2215 = vld [vmem:[%s1 + $0xc4] sm:$0xf]
        %v2216 = vld [vmem:[%s1 + $0xc8] sm:$0xf]
        %v2217 = vld [vmem:[%s1 + $0xcc] sm:$0xf]
        %v2218 = vld [vmem:[%s1 + $0xd0] sm:$0xf]
        %v2219 = vld [vmem:[%s1 + $0xd4] sm:$0xf]
        %v2220 = vld [vmem:[%s1 + $0xd8] sm:$0xf]
        %v2221 = vld [vmem:[%s1 + $0xdc] sm:$0xf]
        %v2222 = vld [vmem:[%s1 + $0xe0] sm:$0xf]
        %v2223 = vld [vmem:[%s1 + $0xe4] sm:$0xf]
        %v2224 = vld [vmem:[%s1 + $0xe8] sm:$0xf]
        %v2225 = vld [vmem:[%s1 + $0xec] sm:$0xf]
        %v2226 = vld [vmem:[%s1 + $0xf0] sm:$0xf]
        %v2227 = vld [vmem:[%s1 + $0xf4] sm:$0xf]
        %v2228 = vld [vmem:[%s1 + $0xf8] sm:$0xf]
        %v2229 = vld [vmem:[%s1 + $0xfc] sm:$0xf]
        %v2262 = vunpack.c.l.b16 %v2198
        %v2263 = vunpack.c.l.b16 %v2199
        %v2264 = vunpack.c.l.b16 %v2200
        %v2265 = vunpack.c.l.b16 %v2201
        %v2266 = vunpack.c.l.b16 %v2202
        %v2267 = vunpack.c.l.b16 %v2203
        %v2268 = vunpack.c.l.b16 %v2204
        %v2269 = vunpack.c.l.b16 %v2205
        %v2270 = vunpack.c.l.b16 %v2206
        %v2271 = vunpack.c.l.b16 %v2207
        %v2272 = vunpack.c.l.b16 %v2208
        %v2273 = vunpack.c.l.b16 %v2209
        %v2274 = vunpack.c.l.b16 %v2210
        %v2275 = vunpack.c.l.b16 %v2211
        %v2276 = vunpack.c.l.b16 %v2212
        %v2277 = vunpack.c.l.b16 %v2213
        %v2278 = vunpack.c.l.b16 %v2214
        %v2279 = vunpack.c.l.b16 %v2215
        %v2280 = vunpack.c.l.b16 %v2216
        %v2281 = vunpack.c.l.b16 %v2217
        %v2282 = vunpack.c.l.b16 %v2218
        %v2283 = vunpack.c.l.b16 %v2219
        %v2284 = vunpack.c.l.b16 %v2220
        %v2285 = vunpack.c.l.b16 %v2221
        %v2286 = vunpack.c.l.b16 %v2222
        %v2287 = vunpack.c.l.b16 %v2223
        %v2288 = vunpack.c.l.b16 %v2224
        %v2289 = vunpack.c.l.b16 %v2225
        %v2290 = vunpack.c.l.b16 %v2226
        %v2291 = vunpack.c.l.b16 %v2227
        %v2292 = vunpack.c.l.b16 %v2228
        %v2293 = vunpack.c.l.b16 %v2229
        %v2294 = vpack.c.b16 %v2263, %v2262
        %v2295 = vpack.c.b16 %v2265, %v2264
        %v2296 = vpack.c.b16 %v2267, %v2266
        %v2297 = vpack.c.b16 %v2269, %v2268
        %v2298 = vpack.c.b16 %v2271, %v2270
        %v2299 = vpack.c.b16 %v2273, %v2272
        %v2300 = vpack.c.b16 %v2275, %v2274
        %v2301 = vpack.c.b16 %v2277, %v2276
        %v2302 = vpack.c.b16 %v2279, %v2278
        %v2303 = vpack.c.b16 %v2281, %v2280
        %v2304 = vpack.c.b16 %v2283, %v2282
        %v2305 = vpack.c.b16 %v2285, %v2284
        %v2306 = vpack.c.b16 %v2287, %v2286
        %v2307 = vpack.c.b16 %v2289, %v2288
        %v2308 = vpack.c.b16 %v2291, %v2290
        %v2309 = vpack.c.b16 %v2293, %v2292
        %2326 = vmatpush.bf16.msra.mxu0 %v2301
        %2327 = vmatpush.bf16.msra.mxu0 %v2300
        %2328 = vmatpush.bf16.msra.mxu0 %v2299
        %2329 = vmatpush.bf16.msra.mxu0 %v2298
        %2330 = vmatpush.bf16.msra.mxu0 %v2297
        %2331 = vmatpush.bf16.msra.mxu0 %v2296
        %2332 = vmatpush.bf16.msra.mxu0 %v2295
        %2333 = vmatpush.bf16.msra.mxu0 %v2294
        %2334 = vmatmul.bf16.gmra.mxu0 %v2134
        %v2335 = vpop.f32.mrf.mxu0
        %v2336 = vadd.f32 0.0, %v2335
        %v2337 = vpop.f32.mrf.mxu0
        %v2338 = vadd.f32 0.0, %v2337
        %2339 = vmatmul.bf16.gmra.mxu0 %v2135
        %v2340 = vpop.f32.mrf.mxu0
        %v2341 = vadd.f32 0.0, %v2340
        %v2342 = vpop.f32.mrf.mxu0
        %v2343 = vadd.f32 0.0, %v2342
        %2344 = vmatmul.bf16.gmra.mxu0 %v2136
        %v2345 = vpop.f32.mrf.mxu0
        %v2346 = vadd.f32 0.0, %v2345
        %v2347 = vpop.f32.mrf.mxu0
        %v2348 = vadd.f32 0.0, %v2347
        %2349 = vmatmul.bf16.gmra.mxu0 %v2137
        %v2350 = vpop.f32.mrf.mxu0
        %v2351 = vadd.f32 0.0, %v2350
        %v2352 = vpop.f32.mrf.mxu0
        %v2353 = vadd.f32 0.0, %v2352
        %2354 = vmatmul.bf16.gmra.mxu0 %v2138
        %v2355 = vpop.f32.mrf.mxu0
        %v2356 = vadd.f32 0.0, %v2355
        %v2357 = vpop.f32.mrf.mxu0
        %v2358 = vadd.f32 0.0, %v2357
        %2359 = vmatmul.bf16.gmra.mxu0 %v2139
        %v2360 = vpop.f32.mrf.mxu0
        %v2361 = vadd.f32 0.0, %v2360
        %v2362 = vpop.f32.mrf.mxu0
        %v2363 = vadd.f32 0.0, %v2362
        %2364 = vmatmul.bf16.gmra.mxu0 %v2140
        %v2365 = vpop.f32.mrf.mxu0
        %v2366 = vadd.f32 0.0, %v2365
        %v2367 = vpop.f32.mrf.mxu0
        %v2368 = vadd.f32 0.0, %v2367
        %2369 = vmatmul.bf16.gmra.mxu0 %v2141
        %v2370 = vpop.f32.mrf.mxu0
        %v2371 = vadd.f32 0.0, %v2370
        %v2372 = vpop.f32.mrf.mxu0
        %v2373 = vadd.f32 0.0, %v2372
        %2374 = vdwg.mxu0
        %2375 = vmatpush.bf16.msra.mxu0 %v2309
        %2376 = vmatpush.bf16.msra.mxu0 %v2308
        %2377 = vmatpush.bf16.msra.mxu0 %v2307
        %2378 = vmatpush.bf16.msra.mxu0 %v2306
        %2379 = vmatpush.bf16.msra.mxu0 %v2305
        %2380 = vmatpush.bf16.msra.mxu0 %v2304
        %2381 = vmatpush.bf16.msra.mxu0 %v2303
        %2382 = vmatpush.bf16.msra.mxu0 %v2302
        %2383 = vmatmul.bf16.gmra.mxu0 %v2182
        %v2384 = vpop.f32.mrf.mxu0
        %v2385 = vadd.f32 %v2336, %v2384
        %v2386 = vpop.f32.mrf.mxu0
        %v2387 = vadd.f32 %v2338, %v2386
        %2388 = vmatmul.bf16.gmra.mxu0 %v2183
        %v2389 = vpop.f32.mrf.mxu0
        %v2390 = vadd.f32 %v2341, %v2389
        %v2391 = vpop.f32.mrf.mxu0
        %v2392 = vadd.f32 %v2343, %v2391
        %2393 = vmatmul.bf16.gmra.mxu0 %v2184
        %v2394 = vpop.f32.mrf.mxu0
        %v2395 = vadd.f32 %v2346, %v2394
        %v2396 = vpop.f32.mrf.mxu0
        %v2397 = vadd.f32 %v2348, %v2396
        %2398 = vmatmul.bf16.gmra.mxu0 %v2185
        %v2399 = vpop.f32.mrf.mxu0
        %v2400 = vadd.f32 %v2351, %v2399
        %v2401 = vpop.f32.mrf.mxu0
        %v2402 = vadd.f32 %v2353, %v2401
        %2403 = vmatmul.bf16.gmra.mxu0 %v2186
        %v2404 = vpop.f32.mrf.mxu0
        %v2405 = vadd.f32 %v2356, %v2404
        %v2406 = vpop.f32.mrf.mxu0
        %v2407 = vadd.f32 %v2358, %v2406
        %2408 = vmatmul.bf16.gmra.mxu0 %v2187
        %v2409 = vpop.f32.mrf.mxu0
        %v2410 = vadd.f32 %v2361, %v2409
        %v2411 = vpop.f32.mrf.mxu0
        %v2412 = vadd.f32 %v2363, %v2411
        %2413 = vmatmul.bf16.gmra.mxu0 %v2188
        %v2414 = vpop.f32.mrf.mxu0
        %v2415 = vadd.f32 %v2366, %v2414
        %v2416 = vpop.f32.mrf.mxu0
        %v2417 = vadd.f32 %v2368, %v2416
        %2418 = vmatmul.bf16.gmra.mxu0 %v2189
        %v2419 = vpop.f32.mrf.mxu0
        %v2420 = vadd.f32 %v2371, %v2419
        %v2421 = vpop.f32.mrf.mxu0
        %v2422 = vadd.f32 %v2373, %v2421
        %2423 = vdwg.mxu0
        %v2456 = vunpack.c.l.b16 %v1814
        %v2457 = vunpack.c.l.b16 %v1815
        %v2458 = vunpack.c.l.b16 %v1816
        %v2459 = vunpack.c.l.b16 %v1817
        %v2460 = vunpack.c.l.b16 %v1818
        %v2461 = vunpack.c.l.b16 %v1819
        %v2462 = vunpack.c.l.b16 %v1820
        %v2463 = vunpack.c.l.b16 %v1821
        %v2464 = vunpack.c.l.b16 %v1822
        %v2465 = vunpack.c.l.b16 %v1823
        %v2466 = vunpack.c.l.b16 %v1824
        %v2467 = vunpack.c.l.b16 %v1825
        %v2468 = vunpack.c.l.b16 %v1826
        %v2469 = vunpack.c.l.b16 %v1827
        %v2470 = vunpack.c.l.b16 %v1828
        %v2471 = vunpack.c.l.b16 %v1829
        %v2472 = vunpack.c.l.b16 %v1830
        %v2473 = vunpack.c.l.b16 %v1831
        %v2474 = vunpack.c.l.b16 %v1832
        %v2475 = vunpack.c.l.b16 %v1833
        %v2476 = vunpack.c.l.b16 %v1834
        %v2477 = vunpack.c.l.b16 %v1835
        %v2478 = vunpack.c.l.b16 %v1836
        %v2479 = vunpack.c.l.b16 %v1837
        %v2480 = vunpack.c.l.b16 %v1838
        %v2481 = vunpack.c.l.b16 %v1839
        %v2482 = vunpack.c.l.b16 %v1840
        %v2483 = vunpack.c.l.b16 %v1841
        %v2484 = vunpack.c.l.b16 %v1842
        %v2485 = vunpack.c.l.b16 %v1843
        %v2486 = vunpack.c.l.b16 %v1844
        %v2487 = vunpack.c.l.b16 %v1845
        %v2488 = vpack.c.b16 %v2457, %v2456
        %v2489 = vpack.c.b16 %v2459, %v2458
        %v2490 = vpack.c.b16 %v2461, %v2460
        %v2491 = vpack.c.b16 %v2463, %v2462
        %v2492 = vpack.c.b16 %v2465, %v2464
        %v2493 = vpack.c.b16 %v2467, %v2466
        %v2494 = vpack.c.b16 %v2469, %v2468
        %v2495 = vpack.c.b16 %v2471, %v2470
        %v2496 = vpack.c.b16 %v2473, %v2472
        %v2497 = vpack.c.b16 %v2475, %v2474
        %v2498 = vpack.c.b16 %v2477, %v2476
        %v2499 = vpack.c.b16 %v2479, %v2478
        %v2500 = vpack.c.b16 %v2481, %v2480
        %v2501 = vpack.c.b16 %v2483, %v2482
        %v2502 = vpack.c.b16 %v2485, %v2484
        %v2503 = vpack.c.b16 %v2487, %v2486
        %2520 = vmatpush.bf16.msra.mxu0 %v2495
        %2521 = vmatpush.bf16.msra.mxu0 %v2494
        %2522 = vmatpush.bf16.msra.mxu0 %v2493
        %2523 = vmatpush.bf16.msra.mxu0 %v2492
        %2524 = vmatpush.bf16.msra.mxu0 %v2491
        %2525 = vmatpush.bf16.msra.mxu0 %v2490
        %2526 = vmatpush.bf16.msra.mxu0 %v2489
        %2527 = vmatpush.bf16.msra.mxu0 %v2488
        %2528 = vmatmul.bf16.gmra.mxu0 %v1750
        %v2529 = vpop.f32.mrf.mxu0
        %v2530 = vadd.f32 %v2385, %v2529
        %v2531 = vpop.f32.mrf.mxu0
        %v2532 = vadd.f32 %v2387, %v2531
        %2533 = vmatmul.bf16.gmra.mxu0 %v1751
        %v2534 = vpop.f32.mrf.mxu0
        %v2535 = vadd.f32 %v2390, %v2534
        %v2536 = vpop.f32.mrf.mxu0
        %v2537 = vadd.f32 %v2392, %v2536
        %2538 = vmatmul.bf16.gmra.mxu0 %v1752
        %v2539 = vpop.f32.mrf.mxu0
        %v2540 = vadd.f32 %v2395, %v2539
        %v2541 = vpop.f32.mrf.mxu0
        %v2542 = vadd.f32 %v2397, %v2541
        %2543 = vmatmul.bf16.gmra.mxu0 %v1753
        %v2544 = vpop.f32.mrf.mxu0
        %v2545 = vadd.f32 %v2400, %v2544
        %v2546 = vpop.f32.mrf.mxu0
        %v2547 = vadd.f32 %v2402, %v2546
        %2548 = vmatmul.bf16.gmra.mxu0 %v1754
        %v2549 = vpop.f32.mrf.mxu0
        %v2550 = vadd.f32 %v2405, %v2549
        %v2551 = vpop.f32.mrf.mxu0
        %v2552 = vadd.f32 %v2407, %v2551
        %2553 = vmatmul.bf16.gmra.mxu0 %v1755
        %v2554 = vpop.f32.mrf.mxu0
        %v2555 = vadd.f32 %v2410, %v2554
        %v2556 = vpop.f32.mrf.mxu0
        %v2557 = vadd.f32 %v2412, %v2556
        %2558 = vmatmul.bf16.gmra.mxu0 %v1756
        %v2559 = vpop.f32.mrf.mxu0
        %v2560 = vadd.f32 %v2415, %v2559
        %v2561 = vpop.f32.mrf.mxu0
        %v2562 = vadd.f32 %v2417, %v2561
        %2563 = vmatmul.bf16.gmra.mxu0 %v1757
        %v2564 = vpop.f32.mrf.mxu0
        %v2565 = vadd.f32 %v2420, %v2564
        %v2566 = vpop.f32.mrf.mxu0
        %v2567 = vadd.f32 %v2422, %v2566
        %2568 = vdwg.mxu0
        %2569 = vmatpush.bf16.msra.mxu0 %v2503
        %2570 = vmatpush.bf16.msra.mxu0 %v2502
        %2571 = vmatpush.bf16.msra.mxu0 %v2501
        %2572 = vmatpush.bf16.msra.mxu0 %v2500
        %2573 = vmatpush.bf16.msra.mxu0 %v2499
        %2574 = vmatpush.bf16.msra.mxu0 %v2498
        %2575 = vmatpush.bf16.msra.mxu0 %v2497
        %2576 = vmatpush.bf16.msra.mxu0 %v2496
        %2577 = vmatmul.bf16.gmra.mxu0 %v1798
        %v2578 = vpop.f32.mrf.mxu0
        %v2579 = vadd.f32 %v2530, %v2578
        %v2580 = vpop.f32.mrf.mxu0
        %v2581 = vadd.f32 %v2532, %v2580
        %2582 = vmatmul.bf16.gmra.mxu0 %v1799
        %v2583 = vpop.f32.mrf.mxu0
        %v2584 = vadd.f32 %v2535, %v2583
        %v2585 = vpop.f32.mrf.mxu0
        %v2586 = vadd.f32 %v2537, %v2585
        %2587 = vmatmul.bf16.gmra.mxu0 %v1800
        %v2588 = vpop.f32.mrf.mxu0
        %v2589 = vadd.f32 %v2540, %v2588
        %v2590 = vpop.f32.mrf.mxu0
        %v2591 = vadd.f32 %v2542, %v2590
        %2592 = vmatmul.bf16.gmra.mxu0 %v1801
        %v2593 = vpop.f32.mrf.mxu0
        %v2594 = vadd.f32 %v2545, %v2593
        %v2595 = vpop.f32.mrf.mxu0
        %v2596 = vadd.f32 %v2547, %v2595
        %2597 = vmatmul.bf16.gmra.mxu0 %v1802
        %v2598 = vpop.f32.mrf.mxu0
        %v2599 = vadd.f32 %v2550, %v2598
        %v2600 = vpop.f32.mrf.mxu0
        %v2601 = vadd.f32 %v2552, %v2600
        %2602 = vmatmul.bf16.gmra.mxu0 %v1803
        %v2603 = vpop.f32.mrf.mxu0
        %v2604 = vadd.f32 %v2555, %v2603
        %v2605 = vpop.f32.mrf.mxu0
        %v2606 = vadd.f32 %v2557, %v2605
        %2607 = vmatmul.bf16.gmra.mxu0 %v1804
        %v2608 = vpop.f32.mrf.mxu0
        %v2609 = vadd.f32 %v2560, %v2608
        %v2610 = vpop.f32.mrf.mxu0
        %v2611 = vadd.f32 %v2562, %v2610
        %2612 = vmatmul.bf16.gmra.mxu0 %v1805
        %v2613 = vpop.f32.mrf.mxu0
        %v2614 = vadd.f32 %v2565, %v2613
        %v2615 = vpop.f32.mrf.mxu0
        %v2616 = vadd.f32 %v2567, %v2615
        %2617 = vdwg.mxu0
        %v2618 = vld [vmem:[%s1397] sm:$0xff]
        %v2619 = vld [vmem:[%s1397 + $0x8] sm:$0xff]
        %v2620 = vld [vmem:[%s1397 + $0x10] sm:$0xff]
        %v2621 = vld [vmem:[%s1397 + $0x18] sm:$0xff]
        %v2622 = vld [vmem:[%s1397 + $0x20] sm:$0xff]
        %v2623 = vld [vmem:[%s1397 + $0x28] sm:$0xff]
        %v2624 = vld [vmem:[%s1397 + $0x30] sm:$0xff]
        %v2625 = vld [vmem:[%s1397 + $0x38] sm:$0xff]
        %v2626 = vld [vmem:[%s1397 + $0x40] sm:$0xff]
        %v2627 = vld [vmem:[%s1397 + $0x48] sm:$0xff]
        %v2628 = vld [vmem:[%s1397 + $0x50] sm:$0xff]
        %v2629 = vld [vmem:[%s1397 + $0x58] sm:$0xff]
        %v2630 = vld [vmem:[%s1397 + $0x60] sm:$0xff]
        %v2631 = vld [vmem:[%s1397 + $0x68] sm:$0xff]
        %v2632 = vld [vmem:[%s1397 + $0x70] sm:$0xff]
        %v2633 = vld [vmem:[%s1397 + $0x78] sm:$0xff]
        %v2634 = vpack.c.bf16 %v2618, %v2618
        %v2635 = vpack.c.bf16 %v2619, %v2619
        %v2636 = vpack.c.bf16 %v2620, %v2620
        %v2637 = vpack.c.bf16 %v2621, %v2621
        %v2638 = vpack.c.bf16 %v2622, %v2622
        %v2639 = vpack.c.bf16 %v2623, %v2623
        %v2640 = vpack.c.bf16 %v2624, %v2624
        %v2641 = vpack.c.bf16 %v2625, %v2625
        %v2642 = vpack.c.bf16 %v2626, %v2626
        %v2643 = vpack.c.bf16 %v2627, %v2627
        %v2644 = vpack.c.bf16 %v2628, %v2628
        %v2645 = vpack.c.bf16 %v2629, %v2629
        %v2646 = vpack.c.bf16 %v2630, %v2630
        %v2647 = vpack.c.bf16 %v2631, %v2631
        %v2648 = vpack.c.bf16 %v2632, %v2632
        %v2649 = vpack.c.bf16 %v2633, %v2633
        %2650 = vset.pattern.permute.xlu0 2
        %2651 = vperm.xlu0 %2650, %v1478
        %v2652 = vpop.permute.xlu0 %2651
        %2653 = vset.pattern.permute.xlu0 2
        %2654 = vperm.xlu0 %2653, %v1479
        %v2655 = vpop.permute.xlu0 %2654
        %2656 = vset.pattern.permute.xlu0 2
        %2657 = vperm.xlu0 %2656, %v1480
        %v2658 = vpop.permute.xlu0 %2657
        %2659 = vset.pattern.permute.xlu0 2
        %2660 = vperm.xlu0 %2659, %v1481
        %v2661 = vpop.permute.xlu0 %2660
        %2662 = vset.pattern.permute.xlu0 2
        %2663 = vperm.xlu0 %2662, %v1482
        %v2664 = vpop.permute.xlu0 %2663
        %2665 = vset.pattern.permute.xlu0 2
        %2666 = vperm.xlu0 %2665, %v1483
        %v2667 = vpop.permute.xlu0 %2666
        %2668 = vset.pattern.permute.xlu0 2
        %2669 = vperm.xlu0 %2668, %v1484
        %v2670 = vpop.permute.xlu0 %2669
        %2671 = vset.pattern.permute.xlu0 2
        %2672 = vperm.xlu0 %2671, %v1485
        %v2673 = vpop.permute.xlu0 %2672
        %2674 = vset.pattern.permute.xlu0 2
        %2675 = vperm.xlu0 %2674, %v1486
        %v2676 = vpop.permute.xlu0 %2675
        %2677 = vset.pattern.permute.xlu0 2
        %2678 = vperm.xlu0 %2677, %v1487
        %v2679 = vpop.permute.xlu0 %2678
        %2680 = vset.pattern.permute.xlu0 2
        %2681 = vperm.xlu0 %2680, %v1488
        %v2682 = vpop.permute.xlu0 %2681
        %2683 = vset.pattern.permute.xlu0 2
        %2684 = vperm.xlu0 %2683, %v1489
        %v2685 = vpop.permute.xlu0 %2684
        %2686 = vset.pattern.permute.xlu0 2
        %2687 = vperm.xlu0 %2686, %v1490
        %v2688 = vpop.permute.xlu0 %2687
        %2689 = vset.pattern.permute.xlu0 2
        %2690 = vperm.xlu0 %2689, %v1491
        %v2691 = vpop.permute.xlu0 %2690
        %2692 = vset.pattern.permute.xlu0 2
        %2693 = vperm.xlu0 %2692, %v1492
        %v2694 = vpop.permute.xlu0 %2693
        %2695 = vset.pattern.permute.xlu0 2
        %2696 = vperm.xlu0 %2695, %v1493
        %v2697 = vpop.permute.xlu0 %2696
        %vm2698 = vcmp.eq.s32.totalorder %v2652, 1
        %vm2699 = vcmp.eq.s32.totalorder %v2655, 1
        %vm2700 = vcmp.eq.s32.totalorder %v2658, 1
        %vm2701 = vcmp.eq.s32.totalorder %v2661, 1
        %vm2702 = vcmp.eq.s32.totalorder %v2664, 1
        %vm2703 = vcmp.eq.s32.totalorder %v2667, 1
        %vm2704 = vcmp.eq.s32.totalorder %v2670, 1
        %vm2705 = vcmp.eq.s32.totalorder %v2673, 1
        %vm2706 = vcmp.eq.s32.totalorder %v2676, 1
        %vm2707 = vcmp.eq.s32.totalorder %v2679, 1
        %vm2708 = vcmp.eq.s32.totalorder %v2682, 1
        %vm2709 = vcmp.eq.s32.totalorder %v2685, 1
        %vm2710 = vcmp.eq.s32.totalorder %v2688, 1
        %vm2711 = vcmp.eq.s32.totalorder %v2691, 1
        %vm2712 = vcmp.eq.s32.totalorder %v2694, 1
        %vm2713 = vcmp.eq.s32.totalorder %v2697, 1
        %vm2714 = vmpackc.low %vm2698, %vm2698
        %vm2715 = vmpackc.low %vm2699, %vm2699
        %vm2716 = vmpackc.low %vm2700, %vm2700
        %vm2717 = vmpackc.low %vm2701, %vm2701
        %vm2718 = vmpackc.low %vm2702, %vm2702
        %vm2719 = vmpackc.low %vm2703, %vm2703
        %vm2720 = vmpackc.low %vm2704, %vm2704
        %vm2721 = vmpackc.low %vm2705, %vm2705
        %vm2722 = vmpackc.low %vm2706, %vm2706
        %vm2723 = vmpackc.low %vm2707, %vm2707
        %vm2724 = vmpackc.low %vm2708, %vm2708
        %vm2725 = vmpackc.low %vm2709, %vm2709
        %vm2726 = vmpackc.low %vm2710, %vm2710
        %vm2727 = vmpackc.low %vm2711, %vm2711
        %vm2728 = vmpackc.low %vm2712, %vm2712
        %vm2729 = vmpackc.low %vm2713, %vm2713
        %v2730 = vsel %vm2714, %v2634, 0
        %v2731 = vsel %vm2715, %v2635, 0
        %v2732 = vsel %vm2716, %v2636, 0
        %v2733 = vsel %vm2717, %v2637, 0
        %v2734 = vsel %vm2718, %v2638, 0
        %v2735 = vsel %vm2719, %v2639, 0
        %v2736 = vsel %vm2720, %v2640, 0
        %v2737 = vsel %vm2721, %v2641, 0
        %v2738 = vsel %vm2722, %v2642, 0
        %v2739 = vsel %vm2723, %v2643, 0
        %v2740 = vsel %vm2724, %v2644, 0
        %v2741 = vsel %vm2725, %v2645, 0
        %v2742 = vsel %vm2726, %v2646, 0
        %v2743 = vsel %vm2727, %v2647, 0
        %v2744 = vsel %vm2728, %v2648, 0
        %v2745 = vsel %vm2729, %v2649, 0
        %2746 = vset.pattern.permute.xlu0 2
        %2747 = vperm.xlu0 %2746, %v1606
        %v2748 = vpop.permute.xlu0 %2747
        %2749 = vset.pattern.permute.xlu0 2
        %2750 = vperm.xlu0 %2749, %v1607
        %v2751 = vpop.permute.xlu0 %2750
        %2752 = vset.pattern.permute.xlu0 2
        %2753 = vperm.xlu0 %2752, %v1608
        %v2754 = vpop.permute.xlu0 %2753
        %2755 = vset.pattern.permute.xlu0 2
        %2756 = vperm.xlu0 %2755, %v1609
        %v2757 = vpop.permute.xlu0 %2756
        %2758 = vset.pattern.permute.xlu0 2
        %2759 = vperm.xlu0 %2758, %v1610
        %v2760 = vpop.permute.xlu0 %2759
        %2761 = vset.pattern.permute.xlu0 2
        %2762 = vperm.xlu0 %2761, %v1611
        %v2763 = vpop.permute.xlu0 %2762
        %2764 = vset.pattern.permute.xlu0 2
        %2765 = vperm.xlu0 %2764, %v1612
        %v2766 = vpop.permute.xlu0 %2765
        %2767 = vset.pattern.permute.xlu0 2
        %2768 = vperm.xlu0 %2767, %v1613
        %v2769 = vpop.permute.xlu0 %2768
        %2770 = vset.pattern.permute.xlu0 2
        %2771 = vperm.xlu0 %2770, %v1614
        %v2772 = vpop.permute.xlu0 %2771
        %2773 = vset.pattern.permute.xlu0 2
        %2774 = vperm.xlu0 %2773, %v1615
        %v2775 = vpop.permute.xlu0 %2774
        %2776 = vset.pattern.permute.xlu0 2
        %2777 = vperm.xlu0 %2776, %v1616
        %v2778 = vpop.permute.xlu0 %2777
        %2779 = vset.pattern.permute.xlu0 2
        %2780 = vperm.xlu0 %2779, %v1617
        %v2781 = vpop.permute.xlu0 %2780
        %2782 = vset.pattern.permute.xlu0 2
        %2783 = vperm.xlu0 %2782, %v1618
        %v2784 = vpop.permute.xlu0 %2783
        %2785 = vset.pattern.permute.xlu0 2
        %2786 = vperm.xlu0 %2785, %v1619
        %v2787 = vpop.permute.xlu0 %2786
        %2788 = vset.pattern.permute.xlu0 2
        %2789 = vperm.xlu0 %2788, %v1620
        %v2790 = vpop.permute.xlu0 %2789
        %2791 = vset.pattern.permute.xlu0 2
        %2792 = vperm.xlu0 %2791, %v1621
        %v2793 = vpop.permute.xlu0 %2792
        %vm2794 = vcmp.eq.s32.totalorder %v2748, 1
        %vm2795 = vcmp.eq.s32.totalorder %v2751, 1
        %vm2796 = vcmp.eq.s32.totalorder %v2754, 1
        %vm2797 = vcmp.eq.s32.totalorder %v2757, 1
        %vm2798 = vcmp.eq.s32.totalorder %v2760, 1
        %vm2799 = vcmp.eq.s32.totalorder %v2763, 1
        %vm2800 = vcmp.eq.s32.totalorder %v2766, 1
        %vm2801 = vcmp.eq.s32.totalorder %v2769, 1
        %vm2802 = vcmp.eq.s32.totalorder %v2772, 1
        %vm2803 = vcmp.eq.s32.totalorder %v2775, 1
        %vm2804 = vcmp.eq.s32.totalorder %v2778, 1
        %vm2805 = vcmp.eq.s32.totalorder %v2781, 1
        %vm2806 = vcmp.eq.s32.totalorder %v2784, 1
        %vm2807 = vcmp.eq.s32.totalorder %v2787, 1
        %vm2808 = vcmp.eq.s32.totalorder %v2790, 1
        %vm2809 = vcmp.eq.s32.totalorder %v2793, 1
        %vm2810 = vmpackc.low %vm2794, %vm2794
        %vm2811 = vmpackc.low %vm2795, %vm2795
        %vm2812 = vmpackc.low %vm2796, %vm2796
        %vm2813 = vmpackc.low %vm2797, %vm2797
        %vm2814 = vmpackc.low %vm2798, %vm2798
        %vm2815 = vmpackc.low %vm2799, %vm2799
        %vm2816 = vmpackc.low %vm2800, %vm2800
        %vm2817 = vmpackc.low %vm2801, %vm2801
        %vm2818 = vmpackc.low %vm2802, %vm2802
        %vm2819 = vmpackc.low %vm2803, %vm2803
        %vm2820 = vmpackc.low %vm2804, %vm2804
        %vm2821 = vmpackc.low %vm2805, %vm2805
        %vm2822 = vmpackc.low %vm2806, %vm2806
        %vm2823 = vmpackc.low %vm2807, %vm2807
        %vm2824 = vmpackc.low %vm2808, %vm2808
        %vm2825 = vmpackc.low %vm2809, %vm2809
        %v2826 = vsel %vm2810, %v2634, 0
        %v2827 = vsel %vm2811, %v2635, 0
        %v2828 = vsel %vm2812, %v2636, 0
        %v2829 = vsel %vm2813, %v2637, 0
        %v2830 = vsel %vm2814, %v2638, 0
        %v2831 = vsel %vm2815, %v2639, 0
        %v2832 = vsel %vm2816, %v2640, 0
        %v2833 = vsel %vm2817, %v2641, 0
        %v2834 = vsel %vm2818, %v2642, 0
        %v2835 = vsel %vm2819, %v2643, 0
        %v2836 = vsel %vm2820, %v2644, 0
        %v2837 = vsel %vm2821, %v2645, 0
        %v2838 = vsel %vm2822, %v2646, 0
        %v2839 = vsel %vm2823, %v2647, 0
        %v2840 = vsel %vm2824, %v2648, 0
        %v2841 = vsel %vm2825, %v2649, 0
        %v2858 = vunpack.c.l.b16 %v2730
        %v2859 = vunpack.c.l.b16 %v2731
        %v2860 = vunpack.c.l.b16 %v2732
        %v2861 = vunpack.c.l.b16 %v2733
        %v2862 = vunpack.c.l.b16 %v2734
        %v2863 = vunpack.c.l.b16 %v2735
        %v2864 = vunpack.c.l.b16 %v2736
        %v2865 = vunpack.c.l.b16 %v2737
        %v2866 = vunpack.c.l.b16 %v2738
        %v2867 = vunpack.c.l.b16 %v2739
        %v2868 = vunpack.c.l.b16 %v2740
        %v2869 = vunpack.c.l.b16 %v2741
        %v2870 = vunpack.c.l.b16 %v2742
        %v2871 = vunpack.c.l.b16 %v2743
        %v2872 = vunpack.c.l.b16 %v2744
        %v2873 = vunpack.c.l.b16 %v2745
        %v2874 = vpack.c.b16 %v2859, %v2858
        %v2875 = vpack.c.b16 %v2861, %v2860
        %v2876 = vpack.c.b16 %v2863, %v2862
        %v2877 = vpack.c.b16 %v2865, %v2864
        %v2878 = vpack.c.b16 %v2867, %v2866
        %v2879 = vpack.c.b16 %v2869, %v2868
        %v2880 = vpack.c.b16 %v2871, %v2870
        %v2881 = vpack.c.b16 %v2873, %v2872
        %v2906 = vunpack.c.l.b16 %v2826
        %v2907 = vunpack.c.l.b16 %v2827
        %v2908 = vunpack.c.l.b16 %v2828
        %v2909 = vunpack.c.l.b16 %v2829
        %v2910 = vunpack.c.l.b16 %v2830
        %v2911 = vunpack.c.l.b16 %v2831
        %v2912 = vunpack.c.l.b16 %v2832
        %v2913 = vunpack.c.l.b16 %v2833
        %v2914 = vunpack.c.l.b16 %v2834
        %v2915 = vunpack.c.l.b16 %v2835
        %v2916 = vunpack.c.l.b16 %v2836
        %v2917 = vunpack.c.l.b16 %v2837
        %v2918 = vunpack.c.l.b16 %v2838
        %v2919 = vunpack.c.l.b16 %v2839
        %v2920 = vunpack.c.l.b16 %v2840
        %v2921 = vunpack.c.l.b16 %v2841
        %v2922 = vpack.c.b16 %v2907, %v2906
        %v2923 = vpack.c.b16 %v2909, %v2908
        %v2924 = vpack.c.b16 %v2911, %v2910
        %v2925 = vpack.c.b16 %v2913, %v2912
        %v2926 = vpack.c.b16 %v2915, %v2914
        %v2927 = vpack.c.b16 %v2917, %v2916
        %v2928 = vpack.c.b16 %v2919, %v2918
        %v2929 = vpack.c.b16 %v2921, %v2920
        %2938 = vmatpush.bf16.msra.mxu0 %v2495
        %2939 = vmatpush.bf16.msra.mxu0 %v2494
        %2940 = vmatpush.bf16.msra.mxu0 %v2493
        %2941 = vmatpush.bf16.msra.mxu0 %v2492
        %2942 = vmatpush.bf16.msra.mxu0 %v2491
        %2943 = vmatpush.bf16.msra.mxu0 %v2490
        %2944 = vmatpush.bf16.msra.mxu0 %v2489
        %2945 = vmatpush.bf16.msra.mxu0 %v2488
        %2946 = vmatmul.bf16.gmra.mxu0 %v2874
        %v2947 = vpop.f32.mrf.mxu0
        %v2948 = vadd.f32 0.0, %v2947
        %v2949 = vpop.f32.mrf.mxu0
        %v2950 = vadd.f32 0.0, %v2949
        %2951 = vmatmul.bf16.gmra.mxu0 %v2875
        %v2952 = vpop.f32.mrf.mxu0
        %v2953 = vadd.f32 0.0, %v2952
        %v2954 = vpop.f32.mrf.mxu0
        %v2955 = vadd.f32 0.0, %v2954
        %2956 = vmatmul.bf16.gmra.mxu0 %v2876
        %v2957 = vpop.f32.mrf.mxu0
        %v2958 = vadd.f32 0.0, %v2957
        %v2959 = vpop.f32.mrf.mxu0
        %v2960 = vadd.f32 0.0, %v2959
        %2961 = vmatmul.bf16.gmra.mxu0 %v2877
        %v2962 = vpop.f32.mrf.mxu0
        %v2963 = vadd.f32 0.0, %v2962
        %v2964 = vpop.f32.mrf.mxu0
        %v2965 = vadd.f32 0.0, %v2964
        %2966 = vmatmul.bf16.gmra.mxu0 %v2878
        %v2967 = vpop.f32.mrf.mxu0
        %v2968 = vadd.f32 0.0, %v2967
        %v2969 = vpop.f32.mrf.mxu0
        %v2970 = vadd.f32 0.0, %v2969
        %2971 = vmatmul.bf16.gmra.mxu0 %v2879
        %v2972 = vpop.f32.mrf.mxu0
        %v2973 = vadd.f32 0.0, %v2972
        %v2974 = vpop.f32.mrf.mxu0
        %v2975 = vadd.f32 0.0, %v2974
        %2976 = vmatmul.bf16.gmra.mxu0 %v2880
        %v2977 = vpop.f32.mrf.mxu0
        %v2978 = vadd.f32 0.0, %v2977
        %v2979 = vpop.f32.mrf.mxu0
        %v2980 = vadd.f32 0.0, %v2979
        %2981 = vmatmul.bf16.gmra.mxu0 %v2881
        %v2982 = vpop.f32.mrf.mxu0
        %v2983 = vadd.f32 0.0, %v2982
        %v2984 = vpop.f32.mrf.mxu0
        %v2985 = vadd.f32 0.0, %v2984
        %2986 = vdwg.mxu0
        %2987 = vmatpush.bf16.msra.mxu0 %v2503
        %2988 = vmatpush.bf16.msra.mxu0 %v2502
        %2989 = vmatpush.bf16.msra.mxu0 %v2501
        %2990 = vmatpush.bf16.msra.mxu0 %v2500
        %2991 = vmatpush.bf16.msra.mxu0 %v2499
        %2992 = vmatpush.bf16.msra.mxu0 %v2498
        %2993 = vmatpush.bf16.msra.mxu0 %v2497
        %2994 = vmatpush.bf16.msra.mxu0 %v2496
        %2995 = vmatmul.bf16.gmra.mxu0 %v2922
        %v2996 = vpop.f32.mrf.mxu0
        %v2997 = vadd.f32 %v2948, %v2996
        %v2998 = vpop.f32.mrf.mxu0
        %v2999 = vadd.f32 %v2950, %v2998
        %3000 = vmatmul.bf16.gmra.mxu0 %v2923
        %v3001 = vpop.f32.mrf.mxu0
        %v3002 = vadd.f32 %v2953, %v3001
        %v3003 = vpop.f32.mrf.mxu0
        %v3004 = vadd.f32 %v2955, %v3003
        %3005 = vmatmul.bf16.gmra.mxu0 %v2924
        %v3006 = vpop.f32.mrf.mxu0
        %v3007 = vadd.f32 %v2958, %v3006
        %v3008 = vpop.f32.mrf.mxu0
        %v3009 = vadd.f32 %v2960, %v3008
        %3010 = vmatmul.bf16.gmra.mxu0 %v2925
        %v3011 = vpop.f32.mrf.mxu0
        %v3012 = vadd.f32 %v2963, %v3011
        %v3013 = vpop.f32.mrf.mxu0
        %v3014 = vadd.f32 %v2965, %v3013
        %3015 = vmatmul.bf16.gmra.mxu0 %v2926
        %v3016 = vpop.f32.mrf.mxu0
        %v3017 = vadd.f32 %v2968, %v3016
        %v3018 = vpop.f32.mrf.mxu0
        %v3019 = vadd.f32 %v2970, %v3018
        %3020 = vmatmul.bf16.gmra.mxu0 %v2927
        %v3021 = vpop.f32.mrf.mxu0
        %v3022 = vadd.f32 %v2973, %v3021
        %v3023 = vpop.f32.mrf.mxu0
        %v3024 = vadd.f32 %v2975, %v3023
        %3025 = vmatmul.bf16.gmra.mxu0 %v2928
        %v3026 = vpop.f32.mrf.mxu0
        %v3027 = vadd.f32 %v2978, %v3026
        %v3028 = vpop.f32.mrf.mxu0
        %v3029 = vadd.f32 %v2980, %v3028
        %3030 = vmatmul.bf16.gmra.mxu0 %v2929
        %v3031 = vpop.f32.mrf.mxu0
        %v3032 = vadd.f32 %v2983, %v3031
        %v3033 = vpop.f32.mrf.mxu0
        %v3034 = vadd.f32 %v2985, %v3033
        %3035 = vdwg.mxu0
        %v3036 = vadd.f32 %v2579, %v2997
        %v3037 = vadd.f32 %v2581, %v2999
        %v3038 = vadd.f32 %v2584, %v3002
        %v3039 = vadd.f32 %v2586, %v3004
        %v3040 = vadd.f32 %v2589, %v3007
        %v3041 = vadd.f32 %v2591, %v3009
        %v3042 = vadd.f32 %v2594, %v3012
        %v3043 = vadd.f32 %v2596, %v3014
        %v3044 = vadd.f32 %v2599, %v3017
        %v3045 = vadd.f32 %v2601, %v3019
        %v3046 = vadd.f32 %v2604, %v3022
        %v3047 = vadd.f32 %v2606, %v3024
        %v3048 = vadd.f32 %v2609, %v3027
        %v3049 = vadd.f32 %v2611, %v3029
        %v3050 = vadd.f32 %v2614, %v3032
        %v3051 = vadd.f32 %v2616, %v3034
        %3052 = vset.pattern.permute.xlu0 2
        %3053 = vperm.xlu0 %3052, %v1862
        %v3054 = vpop.permute.xlu0 %3053
        %3055 = vset.pattern.permute.xlu0 2
        %3056 = vperm.xlu0 %3055, %v1863
        %v3057 = vpop.permute.xlu0 %3056
        %3058 = vset.pattern.permute.xlu0 2
        %3059 = vperm.xlu0 %3058, %v1864
        %v3060 = vpop.permute.xlu0 %3059
        %3061 = vset.pattern.permute.xlu0 2
        %3062 = vperm.xlu0 %3061, %v1865
        %v3063 = vpop.permute.xlu0 %3062
        %3064 = vset.pattern.permute.xlu0 2
        %3065 = vperm.xlu0 %3064, %v1866
        %v3066 = vpop.permute.xlu0 %3065
        %3067 = vset.pattern.permute.xlu0 2
        %3068 = vperm.xlu0 %3067, %v1867
        %v3069 = vpop.permute.xlu0 %3068
        %3070 = vset.pattern.permute.xlu0 2
        %3071 = vperm.xlu0 %3070, %v1868
        %v3072 = vpop.permute.xlu0 %3071
        %3073 = vset.pattern.permute.xlu0 2
        %3074 = vperm.xlu0 %3073, %v1869
        %v3075 = vpop.permute.xlu0 %3074
        %3076 = vset.pattern.permute.xlu0 2
        %3077 = vperm.xlu0 %3076, %v1870
        %v3078 = vpop.permute.xlu0 %3077
        %3079 = vset.pattern.permute.xlu0 2
        %3080 = vperm.xlu0 %3079, %v1871
        %v3081 = vpop.permute.xlu0 %3080
        %3082 = vset.pattern.permute.xlu0 2
        %3083 = vperm.xlu0 %3082, %v1872
        %v3084 = vpop.permute.xlu0 %3083
        %3085 = vset.pattern.permute.xlu0 2
        %3086 = vperm.xlu0 %3085, %v1873
        %v3087 = vpop.permute.xlu0 %3086
        %3088 = vset.pattern.permute.xlu0 2
        %3089 = vperm.xlu0 %3088, %v1874
        %v3090 = vpop.permute.xlu0 %3089
        %3091 = vset.pattern.permute.xlu0 2
        %3092 = vperm.xlu0 %3091, %v1875
        %v3093 = vpop.permute.xlu0 %3092
        %3094 = vset.pattern.permute.xlu0 2
        %3095 = vperm.xlu0 %3094, %v1876
        %v3096 = vpop.permute.xlu0 %3095
        %3097 = vset.pattern.permute.xlu0 2
        %3098 = vperm.xlu0 %3097, %v1877
        %v3099 = vpop.permute.xlu0 %3098
        %vm3100 = vcmp.eq.s32.totalorder %v3054, 1
        %vm3101 = vcmp.eq.s32.totalorder %v3057, 1
        %vm3102 = vcmp.eq.s32.totalorder %v3060, 1
        %vm3103 = vcmp.eq.s32.totalorder %v3063, 1
        %vm3104 = vcmp.eq.s32.totalorder %v3066, 1
        %vm3105 = vcmp.eq.s32.totalorder %v3069, 1
        %vm3106 = vcmp.eq.s32.totalorder %v3072, 1
        %vm3107 = vcmp.eq.s32.totalorder %v3075, 1
        %vm3108 = vcmp.eq.s32.totalorder %v3078, 1
        %vm3109 = vcmp.eq.s32.totalorder %v3081, 1
        %vm3110 = vcmp.eq.s32.totalorder %v3084, 1
        %vm3111 = vcmp.eq.s32.totalorder %v3087, 1
        %vm3112 = vcmp.eq.s32.totalorder %v3090, 1
        %vm3113 = vcmp.eq.s32.totalorder %v3093, 1
        %vm3114 = vcmp.eq.s32.totalorder %v3096, 1
        %vm3115 = vcmp.eq.s32.totalorder %v3099, 1
        %vm3116 = vmpackc.low %vm3100, %vm3100
        %vm3117 = vmpackc.low %vm3101, %vm3101
        %vm3118 = vmpackc.low %vm3102, %vm3102
        %vm3119 = vmpackc.low %vm3103, %vm3103
        %vm3120 = vmpackc.low %vm3104, %vm3104
        %vm3121 = vmpackc.low %vm3105, %vm3105
        %vm3122 = vmpackc.low %vm3106, %vm3106
        %vm3123 = vmpackc.low %vm3107, %vm3107
        %vm3124 = vmpackc.low %vm3108, %vm3108
        %vm3125 = vmpackc.low %vm3109, %vm3109
        %vm3126 = vmpackc.low %vm3110, %vm3110
        %vm3127 = vmpackc.low %vm3111, %vm3111
        %vm3128 = vmpackc.low %vm3112, %vm3112
        %vm3129 = vmpackc.low %vm3113, %vm3113
        %vm3130 = vmpackc.low %vm3114, %vm3114
        %vm3131 = vmpackc.low %vm3115, %vm3115
        %v3132 = vsel %vm3116, %v2634, 0
        %v3133 = vsel %vm3117, %v2635, 0
        %v3134 = vsel %vm3118, %v2636, 0
        %v3135 = vsel %vm3119, %v2637, 0
        %v3136 = vsel %vm3120, %v2638, 0
        %v3137 = vsel %vm3121, %v2639, 0
        %v3138 = vsel %vm3122, %v2640, 0
        %v3139 = vsel %vm3123, %v2641, 0
        %v3140 = vsel %vm3124, %v2642, 0
        %v3141 = vsel %vm3125, %v2643, 0
        %v3142 = vsel %vm3126, %v2644, 0
        %v3143 = vsel %vm3127, %v2645, 0
        %v3144 = vsel %vm3128, %v2646, 0
        %v3145 = vsel %vm3129, %v2647, 0
        %v3146 = vsel %vm3130, %v2648, 0
        %v3147 = vsel %vm3131, %v2649, 0
        %3148 = vset.pattern.permute.xlu0 2
        %3149 = vperm.xlu0 %3148, %v1990
        %v3150 = vpop.permute.xlu0 %3149
        %3151 = vset.pattern.permute.xlu0 2
        %3152 = vperm.xlu0 %3151, %v1991
        %v3153 = vpop.permute.xlu0 %3152
        %3154 = vset.pattern.permute.xlu0 2
        %3155 = vperm.xlu0 %3154, %v1992
        %v3156 = vpop.permute.xlu0 %3155
        %3157 = vset.pattern.permute.xlu0 2
        %3158 = vperm.xlu0 %3157, %v1993
        %v3159 = vpop.permute.xlu0 %3158
        %3160 = vset.pattern.permute.xlu0 2
        %3161 = vperm.xlu0 %3160, %v1994
        %v3162 = vpop.permute.xlu0 %3161
        %3163 = vset.pattern.permute.xlu0 2
        %3164 = vperm.xlu0 %3163, %v1995
        %v3165 = vpop.permute.xlu0 %3164
        %3166 = vset.pattern.permute.xlu0 2
        %3167 = vperm.xlu0 %3166, %v1996
        %v3168 = vpop.permute.xlu0 %3167
        %3169 = vset.pattern.permute.xlu0 2
        %3170 = vperm.xlu0 %3169, %v1997
        %v3171 = vpop.permute.xlu0 %3170
        %3172 = vset.pattern.permute.xlu0 2
        %3173 = vperm.xlu0 %3172, %v1998
        %v3174 = vpop.permute.xlu0 %3173
        %3175 = vset.pattern.permute.xlu0 2
        %3176 = vperm.xlu0 %3175, %v1999
        %v3177 = vpop.permute.xlu0 %3176
        %3178 = vset.pattern.permute.xlu0 2
        %3179 = vperm.xlu0 %3178, %v2000
        %v3180 = vpop.permute.xlu0 %3179
        %3181 = vset.pattern.permute.xlu0 2
        %3182 = vperm.xlu0 %3181, %v2001
        %v3183 = vpop.permute.xlu0 %3182
        %3184 = vset.pattern.permute.xlu0 2
        %3185 = vperm.xlu0 %3184, %v2002
        %v3186 = vpop.permute.xlu0 %3185
        %3187 = vset.pattern.permute.xlu0 2
        %3188 = vperm.xlu0 %3187, %v2003
        %v3189 = vpop.permute.xlu0 %3188
        %3190 = vset.pattern.permute.xlu0 2
        %3191 = vperm.xlu0 %3190, %v2004
        %v3192 = vpop.permute.xlu0 %3191
        %3193 = vset.pattern.permute.xlu0 2
        %3194 = vperm.xlu0 %3193, %v2005
        %v3195 = vpop.permute.xlu0 %3194
        %vm3196 = vcmp.eq.s32.totalorder %v3150, 1
        %vm3197 = vcmp.eq.s32.totalorder %v3153, 1
        %vm3198 = vcmp.eq.s32.totalorder %v3156, 1
        %vm3199 = vcmp.eq.s32.totalorder %v3159, 1
        %vm3200 = vcmp.eq.s32.totalorder %v3162, 1
        %vm3201 = vcmp.eq.s32.totalorder %v3165, 1
        %vm3202 = vcmp.eq.s32.totalorder %v3168, 1
        %vm3203 = vcmp.eq.s32.totalorder %v3171, 1
        %vm3204 = vcmp.eq.s32.totalorder %v3174, 1
        %vm3205 = vcmp.eq.s32.totalorder %v3177, 1
        %vm3206 = vcmp.eq.s32.totalorder %v3180, 1
        %vm3207 = vcmp.eq.s32.totalorder %v3183, 1
        %vm3208 = vcmp.eq.s32.totalorder %v3186, 1
        %vm3209 = vcmp.eq.s32.totalorder %v3189, 1
        %vm3210 = vcmp.eq.s32.totalorder %v3192, 1
        %vm3211 = vcmp.eq.s32.totalorder %v3195, 1
        %vm3212 = vmpackc.low %vm3196, %vm3196
        %vm3213 = vmpackc.low %vm3197, %vm3197
        %vm3214 = vmpackc.low %vm3198, %vm3198
        %vm3215 = vmpackc.low %vm3199, %vm3199
        %vm3216 = vmpackc.low %vm3200, %vm3200
        %vm3217 = vmpackc.low %vm3201, %vm3201
        %vm3218 = vmpackc.low %vm3202, %vm3202
        %vm3219 = vmpackc.low %vm3203, %vm3203
        %vm3220 = vmpackc.low %vm3204, %vm3204
        %vm3221 = vmpackc.low %vm3205, %vm3205
        %vm3222 = vmpackc.low %vm3206, %vm3206
        %vm3223 = vmpackc.low %vm3207, %vm3207
        %vm3224 = vmpackc.low %vm3208, %vm3208
        %vm3225 = vmpackc.low %vm3209, %vm3209
        %vm3226 = vmpackc.low %vm3210, %vm3210
        %vm3227 = vmpackc.low %vm3211, %vm3211
        %v3228 = vsel %vm3212, %v2634, 0
        %v3229 = vsel %vm3213, %v2635, 0
        %v3230 = vsel %vm3214, %v2636, 0
        %v3231 = vsel %vm3215, %v2637, 0
        %v3232 = vsel %vm3216, %v2638, 0
        %v3233 = vsel %vm3217, %v2639, 0
        %v3234 = vsel %vm3218, %v2640, 0
        %v3235 = vsel %vm3219, %v2641, 0
        %v3236 = vsel %vm3220, %v2642, 0
        %v3237 = vsel %vm3221, %v2643, 0
        %v3238 = vsel %vm3222, %v2644, 0
        %v3239 = vsel %vm3223, %v2645, 0
        %v3240 = vsel %vm3224, %v2646, 0
        %v3241 = vsel %vm3225, %v2647, 0
        %v3242 = vsel %vm3226, %v2648, 0
        %v3243 = vsel %vm3227, %v2649, 0
        %v3260 = vunpack.c.l.b16 %v3132
        %v3261 = vunpack.c.l.b16 %v3133
        %v3262 = vunpack.c.l.b16 %v3134
        %v3263 = vunpack.c.l.b16 %v3135
        %v3264 = vunpack.c.l.b16 %v3136
        %v3265 = vunpack.c.l.b16 %v3137
        %v3266 = vunpack.c.l.b16 %v3138
        %v3267 = vunpack.c.l.b16 %v3139
        %v3268 = vunpack.c.l.b16 %v3140
        %v3269 = vunpack.c.l.b16 %v3141
        %v3270 = vunpack.c.l.b16 %v3142
        %v3271 = vunpack.c.l.b16 %v3143
        %v3272 = vunpack.c.l.b16 %v3144
        %v3273 = vunpack.c.l.b16 %v3145
        %v3274 = vunpack.c.l.b16 %v3146
        %v3275 = vunpack.c.l.b16 %v3147
        %v3276 = vpack.c.b16 %v3261, %v3260
        %v3277 = vpack.c.b16 %v3263, %v3262
        %v3278 = vpack.c.b16 %v3265, %v3264
        %v3279 = vpack.c.b16 %v3267, %v3266
        %v3280 = vpack.c.b16 %v3269, %v3268
        %v3281 = vpack.c.b16 %v3271, %v3270
        %v3282 = vpack.c.b16 %v3273, %v3272
        %v3283 = vpack.c.b16 %v3275, %v3274
        %v3308 = vunpack.c.l.b16 %v3228
        %v3309 = vunpack.c.l.b16 %v3229
        %v3310 = vunpack.c.l.b16 %v3230
        %v3311 = vunpack.c.l.b16 %v3231
        %v3312 = vunpack.c.l.b16 %v3232
        %v3313 = vunpack.c.l.b16 %v3233
        %v3314 = vunpack.c.l.b16 %v3234
        %v3315 = vunpack.c.l.b16 %v3235
        %v3316 = vunpack.c.l.b16 %v3236
        %v3317 = vunpack.c.l.b16 %v3237
        %v3318 = vunpack.c.l.b16 %v3238
        %v3319 = vunpack.c.l.b16 %v3239
        %v3320 = vunpack.c.l.b16 %v3240
        %v3321 = vunpack.c.l.b16 %v3241
        %v3322 = vunpack.c.l.b16 %v3242
        %v3323 = vunpack.c.l.b16 %v3243
        %v3324 = vpack.c.b16 %v3309, %v3308
        %v3325 = vpack.c.b16 %v3311, %v3310
        %v3326 = vpack.c.b16 %v3313, %v3312
        %v3327 = vpack.c.b16 %v3315, %v3314
        %v3328 = vpack.c.b16 %v3317, %v3316
        %v3329 = vpack.c.b16 %v3319, %v3318
        %v3330 = vpack.c.b16 %v3321, %v3320
        %v3331 = vpack.c.b16 %v3323, %v3322
        %3340 = vmatpush.bf16.msra.mxu0 %v2301
        %3341 = vmatpush.bf16.msra.mxu0 %v2300
        %3342 = vmatpush.bf16.msra.mxu0 %v2299
        %3343 = vmatpush.bf16.msra.mxu0 %v2298
        %3344 = vmatpush.bf16.msra.mxu0 %v2297
        %3345 = vmatpush.bf16.msra.mxu0 %v2296
        %3346 = vmatpush.bf16.msra.mxu0 %v2295
        %3347 = vmatpush.bf16.msra.mxu0 %v2294
        %3348 = vmatmul.bf16.gmra.mxu0 %v3276
        %v3349 = vpop.f32.mrf.mxu0
        %v3350 = vadd.f32 0.0, %v3349
        %v3351 = vpop.f32.mrf.mxu0
        %v3352 = vadd.f32 0.0, %v3351
        %3353 = vmatmul.bf16.gmra.mxu0 %v3277
        %v3354 = vpop.f32.mrf.mxu0
        %v3355 = vadd.f32 0.0, %v3354
        %v3356 = vpop.f32.mrf.mxu0
        %v3357 = vadd.f32 0.0, %v3356
        %3358 = vmatmul.bf16.gmra.mxu0 %v3278
        %v3359 = vpop.f32.mrf.mxu0
        %v3360 = vadd.f32 0.0, %v3359
        %v3361 = vpop.f32.mrf.mxu0
        %v3362 = vadd.f32 0.0, %v3361
        %3363 = vmatmul.bf16.gmra.mxu0 %v3279
        %v3364 = vpop.f32.mrf.mxu0
        %v3365 = vadd.f32 0.0, %v3364
        %v3366 = vpop.f32.mrf.mxu0
        %v3367 = vadd.f32 0.0, %v3366
        %3368 = vmatmul.bf16.gmra.mxu0 %v3280
        %v3369 = vpop.f32.mrf.mxu0
        %v3370 = vadd.f32 0.0, %v3369
        %v3371 = vpop.f32.mrf.mxu0
        %v3372 = vadd.f32 0.0, %v3371
        %3373 = vmatmul.bf16.gmra.mxu0 %v3281
        %v3374 = vpop.f32.mrf.mxu0
        %v3375 = vadd.f32 0.0, %v3374
        %v3376 = vpop.f32.mrf.mxu0
        %v3377 = vadd.f32 0.0, %v3376
        %3378 = vmatmul.bf16.gmra.mxu0 %v3282
        %v3379 = vpop.f32.mrf.mxu0
        %v3380 = vadd.f32 0.0, %v3379
        %v3381 = vpop.f32.mrf.mxu0
        %v3382 = vadd.f32 0.0, %v3381
        %3383 = vmatmul.bf16.gmra.mxu0 %v3283
        %v3384 = vpop.f32.mrf.mxu0
        %v3385 = vadd.f32 0.0, %v3384
        %v3386 = vpop.f32.mrf.mxu0
        %v3387 = vadd.f32 0.0, %v3386
        %3388 = vdwg.mxu0
        %3389 = vmatpush.bf16.msra.mxu0 %v2309
        %3390 = vmatpush.bf16.msra.mxu0 %v2308
        %3391 = vmatpush.bf16.msra.mxu0 %v2307
        %3392 = vmatpush.bf16.msra.mxu0 %v2306
        %3393 = vmatpush.bf16.msra.mxu0 %v2305
        %3394 = vmatpush.bf16.msra.mxu0 %v2304
        %3395 = vmatpush.bf16.msra.mxu0 %v2303
        %3396 = vmatpush.bf16.msra.mxu0 %v2302
        %3397 = vmatmul.bf16.gmra.mxu0 %v3324
        %v3398 = vpop.f32.mrf.mxu0
        %v3399 = vadd.f32 %v3350, %v3398
        %v3400 = vpop.f32.mrf.mxu0
        %v3401 = vadd.f32 %v3352, %v3400
        %3402 = vmatmul.bf16.gmra.mxu0 %v3325
        %v3403 = vpop.f32.mrf.mxu0
        %v3404 = vadd.f32 %v3355, %v3403
        %v3405 = vpop.f32.mrf.mxu0
        %v3406 = vadd.f32 %v3357, %v3405
        %3407 = vmatmul.bf16.gmra.mxu0 %v3326
        %v3408 = vpop.f32.mrf.mxu0
        %v3409 = vadd.f32 %v3360, %v3408
        %v3410 = vpop.f32.mrf.mxu0
        %v3411 = vadd.f32 %v3362, %v3410
        %3412 = vmatmul.bf16.gmra.mxu0 %v3327
        %v3413 = vpop.f32.mrf.mxu0
        %v3414 = vadd.f32 %v3365, %v3413
        %v3415 = vpop.f32.mrf.mxu0
        %v3416 = vadd.f32 %v3367, %v3415
        %3417 = vmatmul.bf16.gmra.mxu0 %v3328
        %v3418 = vpop.f32.mrf.mxu0
        %v3419 = vadd.f32 %v3370, %v3418
        %v3420 = vpop.f32.mrf.mxu0
        %v3421 = vadd.f32 %v3372, %v3420
        %3422 = vmatmul.bf16.gmra.mxu0 %v3329
        %v3423 = vpop.f32.mrf.mxu0
        %v3424 = vadd.f32 %v3375, %v3423
        %v3425 = vpop.f32.mrf.mxu0
        %v3426 = vadd.f32 %v3377, %v3425
        %3427 = vmatmul.bf16.gmra.mxu0 %v3330
        %v3428 = vpop.f32.mrf.mxu0
        %v3429 = vadd.f32 %v3380, %v3428
        %v3430 = vpop.f32.mrf.mxu0
        %v3431 = vadd.f32 %v3382, %v3430
        %3432 = vmatmul.bf16.gmra.mxu0 %v3331
        %v3433 = vpop.f32.mrf.mxu0
        %v3434 = vadd.f32 %v3385, %v3433
        %v3435 = vpop.f32.mrf.mxu0
        %v3436 = vadd.f32 %v3387, %v3435
        %3437 = vdwg.mxu0
        %v3438 = vadd.f32 %v3036, %v3399
        %v3439 = vadd.f32 %v3037, %v3401
        %v3440 = vadd.f32 %v3038, %v3404
        %v3441 = vadd.f32 %v3039, %v3406
        %v3442 = vadd.f32 %v3040, %v3409
        %v3443 = vadd.f32 %v3041, %v3411
        %v3444 = vadd.f32 %v3042, %v3414
        %v3445 = vadd.f32 %v3043, %v3416
        %v3446 = vadd.f32 %v3044, %v3419
        %v3447 = vadd.f32 %v3045, %v3421
        %v3448 = vadd.f32 %v3046, %v3424
        %v3449 = vadd.f32 %v3047, %v3426
        %v3450 = vadd.f32 %v3048, %v3429
        %v3451 = vadd.f32 %v3049, %v3431
        %v3452 = vadd.f32 %v3050, %v3434
        %v3453 = vadd.f32 %v3051, %v3436
        %v3454 = vmul.f32 %v3438, 0.5
        %v3455 = vmul.f32 %v3439, 0.5
        %v3456 = vmul.f32 %v3440, 0.5
        %v3457 = vmul.f32 %v3441, 0.5
        %v3458 = vmul.f32 %v3442, 0.5
        %v3459 = vmul.f32 %v3443, 0.5
        %v3460 = vmul.f32 %v3444, 0.5
        %v3461 = vmul.f32 %v3445, 0.5
        %v3462 = vmul.f32 %v3446, 0.5
        %v3463 = vmul.f32 %v3447, 0.5
        %v3464 = vmul.f32 %v3448, 0.5
        %v3465 = vmul.f32 %v3449, 0.5
        %v3466 = vmul.f32 %v3450, 0.5
        %v3467 = vmul.f32 %v3451, 0.5
        %v3468 = vmul.f32 %v3452, 0.5
        %v3469 = vmul.f32 %v3453, 0.5
        %s3470 = scalar_lea.vmem %s164, 256 [#allocation2]
        %3471 = vst [vmem:[%s3470] sm:$0xff] %v3454
        %3472 = vst [vmem:[%s3470 + $0x8] sm:$0xff] %v3455
        %3473 = vst [vmem:[%s3470 + $0x10] sm:$0xff] %v3456
        %3474 = vst [vmem:[%s3470 + $0x18] sm:$0xff] %v3457
        %3475 = vst [vmem:[%s3470 + $0x20] sm:$0xff] %v3458
        %3476 = vst [vmem:[%s3470 + $0x28] sm:$0xff] %v3459
        %3477 = vst [vmem:[%s3470 + $0x30] sm:$0xff] %v3460
        %3478 = vst [vmem:[%s3470 + $0x38] sm:$0xff] %v3461
        %3479 = vst [vmem:[%s3470 + $0x40] sm:$0xff] %v3462
        %3480 = vst [vmem:[%s3470 + $0x48] sm:$0xff] %v3463
        %3481 = vst [vmem:[%s3470 + $0x50] sm:$0xff] %v3464
        %3482 = vst [vmem:[%s3470 + $0x58] sm:$0xff] %v3465
        %3483 = vst [vmem:[%s3470 + $0x60] sm:$0xff] %v3466
        %3484 = vst [vmem:[%s3470 + $0x68] sm:$0xff] %v3467
        %3485 = vst [vmem:[%s3470 + $0x70] sm:$0xff] %v3468
        %3486 = vst [vmem:[%s3470 + $0x78] sm:$0xff] %v3469
        %v3487 = vld [vmem:[%s169] sm:$0xff]
        %v3488 = vld [vmem:[%s169 + $0x8] sm:$0xff]
        %v3489 = vld [vmem:[%s169 + $0x10] sm:$0xff]
        %v3490 = vld [vmem:[%s169 + $0x18] sm:$0xff]
        %v3491 = vld [vmem:[%s169 + $0x20] sm:$0xff]
        %v3492 = vld [vmem:[%s169 + $0x28] sm:$0xff]
        %v3493 = vld [vmem:[%s169 + $0x30] sm:$0xff]
        %v3494 = vld [vmem:[%s169 + $0x38] sm:$0xff]
        %v3495 = vld [vmem:[%s169 + $0x40] sm:$0xff]
        %v3496 = vld [vmem:[%s169 + $0x48] sm:$0xff]
        %v3497 = vld [vmem:[%s169 + $0x50] sm:$0xff]
        %v3498 = vld [vmem:[%s169 + $0x58] sm:$0xff]
        %v3499 = vld [vmem:[%s169 + $0x60] sm:$0xff]
        %v3500 = vld [vmem:[%s169 + $0x68] sm:$0xff]
        %v3501 = vld [vmem:[%s169 + $0x70] sm:$0xff]
        %v3502 = vld [vmem:[%s169 + $0x78] sm:$0xff]
        %v3503 = vld [vmem:[%s164] sm:$0xff]
        %v3504 = vld [vmem:[%s164 + $0x8] sm:$0xff]
        %v3505 = vld [vmem:[%s164 + $0x10] sm:$0xff]
        %v3506 = vld [vmem:[%s164 + $0x18] sm:$0xff]
        %v3507 = vld [vmem:[%s164 + $0x20] sm:$0xff]
        %v3508 = vld [vmem:[%s164 + $0x28] sm:$0xff]
        %v3509 = vld [vmem:[%s164 + $0x30] sm:$0xff]
        %v3510 = vld [vmem:[%s164 + $0x38] sm:$0xff]
        %v3511 = vld [vmem:[%s164 + $0x40] sm:$0xff]
        %v3512 = vld [vmem:[%s164 + $0x48] sm:$0xff]
        %v3513 = vld [vmem:[%s164 + $0x50] sm:$0xff]
        %v3514 = vld [vmem:[%s164 + $0x58] sm:$0xff]
        %v3515 = vld [vmem:[%s164 + $0x60] sm:$0xff]
        %v3516 = vld [vmem:[%s164 + $0x68] sm:$0xff]
        %v3517 = vld [vmem:[%s164 + $0x70] sm:$0xff]
        %v3518 = vld [vmem:[%s164 + $0x78] sm:$0xff]
        %v3519 = vpack.c.bf16 %v3503, %v3503
        %v3520 = vpack.c.bf16 %v3504, %v3504
        %v3521 = vpack.c.bf16 %v3505, %v3505
        %v3522 = vpack.c.bf16 %v3506, %v3506
        %v3523 = vpack.c.bf16 %v3507, %v3507
        %v3524 = vpack.c.bf16 %v3508, %v3508
        %v3525 = vpack.c.bf16 %v3509, %v3509
        %v3526 = vpack.c.bf16 %v3510, %v3510
        %v3527 = vpack.c.bf16 %v3511, %v3511
        %v3528 = vpack.c.bf16 %v3512, %v3512
        %v3529 = vpack.c.bf16 %v3513, %v3513
        %v3530 = vpack.c.bf16 %v3514, %v3514
        %v3531 = vpack.c.bf16 %v3515, %v3515
        %v3532 = vpack.c.bf16 %v3516, %v3516
        %v3533 = vpack.c.bf16 %v3517, %v3517
        %v3534 = vpack.c.bf16 %v3518, %v3518
        %vm3535 = vcmp.eq.s32.totalorder %v3487, 0
        %vm3536 = vcmp.eq.s32.totalorder %v3488, 0
        %vm3537 = vcmp.eq.s32.totalorder %v3489, 0
        %vm3538 = vcmp.eq.s32.totalorder %v3490, 0
        %vm3539 = vcmp.eq.s32.totalorder %v3491, 0
        %vm3540 = vcmp.eq.s32.totalorder %v3492, 0
        %vm3541 = vcmp.eq.s32.totalorder %v3493, 0
        %vm3542 = vcmp.eq.s32.totalorder %v3494, 0
        %vm3543 = vcmp.eq.s32.totalorder %v3495, 0
        %vm3544 = vcmp.eq.s32.totalorder %v3496, 0
        %vm3545 = vcmp.eq.s32.totalorder %v3497, 0
        %vm3546 = vcmp.eq.s32.totalorder %v3498, 0
        %vm3547 = vcmp.eq.s32.totalorder %v3499, 0
        %vm3548 = vcmp.eq.s32.totalorder %v3500, 0
        %vm3549 = vcmp.eq.s32.totalorder %v3501, 0
        %vm3550 = vcmp.eq.s32.totalorder %v3502, 0
        %v3551 = vsel %vm3535, 1, 0
        %v3552 = vsel %vm3536, 1, 0
        %v3553 = vsel %vm3537, 1, 0
        %v3554 = vsel %vm3538, 1, 0
        %v3555 = vsel %vm3539, 1, 0
        %v3556 = vsel %vm3540, 1, 0
        %v3557 = vsel %vm3541, 1, 0
        %v3558 = vsel %vm3542, 1, 0
        %v3559 = vsel %vm3543, 1, 0
        %v3560 = vsel %vm3544, 1, 0
        %v3561 = vsel %vm3545, 1, 0
        %v3562 = vsel %vm3546, 1, 0
        %v3563 = vsel %vm3547, 1, 0
        %v3564 = vsel %vm3548, 1, 0
        %v3565 = vsel %vm3549, 1, 0
        %v3566 = vsel %vm3550, 1, 0
        %3567 = vset.pattern.permute.xlu0 3
        %3568 = vperm.xlu0 %3567, %v3551
        %v3569 = vpop.permute.xlu0 %3568
        %3570 = vset.pattern.permute.xlu0 3
        %3571 = vperm.xlu0 %3570, %v3552
        %v3572 = vpop.permute.xlu0 %3571
        %3573 = vset.pattern.permute.xlu0 3
        %3574 = vperm.xlu0 %3573, %v3553
        %v3575 = vpop.permute.xlu0 %3574
        %3576 = vset.pattern.permute.xlu0 3
        %3577 = vperm.xlu0 %3576, %v3554
        %v3578 = vpop.permute.xlu0 %3577
        %3579 = vset.pattern.permute.xlu0 3
        %3580 = vperm.xlu0 %3579, %v3555
        %v3581 = vpop.permute.xlu0 %3580
        %3582 = vset.pattern.permute.xlu0 3
        %3583 = vperm.xlu0 %3582, %v3556
        %v3584 = vpop.permute.xlu0 %3583
        %3585 = vset.pattern.permute.xlu0 3
        %3586 = vperm.xlu0 %3585, %v3557
        %v3587 = vpop.permute.xlu0 %3586
        %3588 = vset.pattern.permute.xlu0 3
        %3589 = vperm.xlu0 %3588, %v3558
        %v3590 = vpop.permute.xlu0 %3589
        %3591 = vset.pattern.permute.xlu0 3
        %3592 = vperm.xlu0 %3591, %v3559
        %v3593 = vpop.permute.xlu0 %3592
        %3594 = vset.pattern.permute.xlu0 3
        %3595 = vperm.xlu0 %3594, %v3560
        %v3596 = vpop.permute.xlu0 %3595
        %3597 = vset.pattern.permute.xlu0 3
        %3598 = vperm.xlu0 %3597, %v3561
        %v3599 = vpop.permute.xlu0 %3598
        %3600 = vset.pattern.permute.xlu0 3
        %3601 = vperm.xlu0 %3600, %v3562
        %v3602 = vpop.permute.xlu0 %3601
        %3603 = vset.pattern.permute.xlu0 3
        %3604 = vperm.xlu0 %3603, %v3563
        %v3605 = vpop.permute.xlu0 %3604
        %3606 = vset.pattern.permute.xlu0 3
        %3607 = vperm.xlu0 %3606, %v3564
        %v3608 = vpop.permute.xlu0 %3607
        %3609 = vset.pattern.permute.xlu0 3
        %3610 = vperm.xlu0 %3609, %v3565
        %v3611 = vpop.permute.xlu0 %3610
        %3612 = vset.pattern.permute.xlu0 3
        %3613 = vperm.xlu0 %3612, %v3566
        %v3614 = vpop.permute.xlu0 %3613
        %vm3615 = vcmp.eq.s32.totalorder %v3569, 1
        %vm3616 = vcmp.eq.s32.totalorder %v3572, 1
        %vm3617 = vcmp.eq.s32.totalorder %v3575, 1
        %vm3618 = vcmp.eq.s32.totalorder %v3578, 1
        %vm3619 = vcmp.eq.s32.totalorder %v3581, 1
        %vm3620 = vcmp.eq.s32.totalorder %v3584, 1
        %vm3621 = vcmp.eq.s32.totalorder %v3587, 1
        %vm3622 = vcmp.eq.s32.totalorder %v3590, 1
        %vm3623 = vcmp.eq.s32.totalorder %v3593, 1
        %vm3624 = vcmp.eq.s32.totalorder %v3596, 1
        %vm3625 = vcmp.eq.s32.totalorder %v3599, 1
        %vm3626 = vcmp.eq.s32.totalorder %v3602, 1
        %vm3627 = vcmp.eq.s32.totalorder %v3605, 1
        %vm3628 = vcmp.eq.s32.totalorder %v3608, 1
        %vm3629 = vcmp.eq.s32.totalorder %v3611, 1
        %vm3630 = vcmp.eq.s32.totalorder %v3614, 1
        %vm3631 = vmpackc.low %vm3615, %vm3615
        %vm3632 = vmpackc.low %vm3616, %vm3616
        %vm3633 = vmpackc.low %vm3617, %vm3617
        %vm3634 = vmpackc.low %vm3618, %vm3618
        %vm3635 = vmpackc.low %vm3619, %vm3619
        %vm3636 = vmpackc.low %vm3620, %vm3620
        %vm3637 = vmpackc.low %vm3621, %vm3621
        %vm3638 = vmpackc.low %vm3622, %vm3622
        %vm3639 = vmpackc.low %vm3623, %vm3623
        %vm3640 = vmpackc.low %vm3624, %vm3624
        %vm3641 = vmpackc.low %vm3625, %vm3625
        %vm3642 = vmpackc.low %vm3626, %vm3626
        %vm3643 = vmpackc.low %vm3627, %vm3627
        %vm3644 = vmpackc.low %vm3628, %vm3628
        %vm3645 = vmpackc.low %vm3629, %vm3629
        %vm3646 = vmpackc.low %vm3630, %vm3630
        %v3647 = vsel %vm3631, %v3519, 0
        %v3648 = vsel %vm3632, %v3520, 0
        %v3649 = vsel %vm3633, %v3521, 0
        %v3650 = vsel %vm3634, %v3522, 0
        %v3651 = vsel %vm3635, %v3523, 0
        %v3652 = vsel %vm3636, %v3524, 0
        %v3653 = vsel %vm3637, %v3525, 0
        %v3654 = vsel %vm3638, %v3526, 0
        %v3655 = vsel %vm3639, %v3527, 0
        %v3656 = vsel %vm3640, %v3528, 0
        %v3657 = vsel %vm3641, %v3529, 0
        %v3658 = vsel %vm3642, %v3530, 0
        %v3659 = vsel %vm3643, %v3531, 0
        %v3660 = vsel %vm3644, %v3532, 0
        %v3661 = vsel %vm3645, %v3533, 0
        %v3662 = vsel %vm3646, %v3534, 0
        %vm3663 = vcmp.eq.s32.totalorder %v3487, 1
        %vm3664 = vcmp.eq.s32.totalorder %v3488, 1
        %vm3665 = vcmp.eq.s32.totalorder %v3489, 1
        %vm3666 = vcmp.eq.s32.totalorder %v3490, 1
        %vm3667 = vcmp.eq.s32.totalorder %v3491, 1
        %vm3668 = vcmp.eq.s32.totalorder %v3492, 1
        %vm3669 = vcmp.eq.s32.totalorder %v3493, 1
        %vm3670 = vcmp.eq.s32.totalorder %v3494, 1
        %vm3671 = vcmp.eq.s32.totalorder %v3495, 1
        %vm3672 = vcmp.eq.s32.totalorder %v3496, 1
        %vm3673 = vcmp.eq.s32.totalorder %v3497, 1
        %vm3674 = vcmp.eq.s32.totalorder %v3498, 1
        %vm3675 = vcmp.eq.s32.totalorder %v3499, 1
        %vm3676 = vcmp.eq.s32.totalorder %v3500, 1
        %vm3677 = vcmp.eq.s32.totalorder %v3501, 1
        %vm3678 = vcmp.eq.s32.totalorder %v3502, 1
        %v3679 = vsel %vm3663, 1, 0
        %v3680 = vsel %vm3664, 1, 0
        %v3681 = vsel %vm3665, 1, 0
        %v3682 = vsel %vm3666, 1, 0
        %v3683 = vsel %vm3667, 1, 0
        %v3684 = vsel %vm3668, 1, 0
        %v3685 = vsel %vm3669, 1, 0
        %v3686 = vsel %vm3670, 1, 0
        %v3687 = vsel %vm3671, 1, 0
        %v3688 = vsel %vm3672, 1, 0
        %v3689 = vsel %vm3673, 1, 0
        %v3690 = vsel %vm3674, 1, 0
        %v3691 = vsel %vm3675, 1, 0
        %v3692 = vsel %vm3676, 1, 0
        %v3693 = vsel %vm3677, 1, 0
        %v3694 = vsel %vm3678, 1, 0
        %3695 = vset.pattern.permute.xlu0 3
        %3696 = vperm.xlu0 %3695, %v3679
        %v3697 = vpop.permute.xlu0 %3696
        %3698 = vset.pattern.permute.xlu0 3
        %3699 = vperm.xlu0 %3698, %v3680
        %v3700 = vpop.permute.xlu0 %3699
        %3701 = vset.pattern.permute.xlu0 3
        %3702 = vperm.xlu0 %3701, %v3681
        %v3703 = vpop.permute.xlu0 %3702
        %3704 = vset.pattern.permute.xlu0 3
        %3705 = vperm.xlu0 %3704, %v3682
        %v3706 = vpop.permute.xlu0 %3705
        %3707 = vset.pattern.permute.xlu0 3
        %3708 = vperm.xlu0 %3707, %v3683
        %v3709 = vpop.permute.xlu0 %3708
        %3710 = vset.pattern.permute.xlu0 3
        %3711 = vperm.xlu0 %3710, %v3684
        %v3712 = vpop.permute.xlu0 %3711
        %3713 = vset.pattern.permute.xlu0 3
        %3714 = vperm.xlu0 %3713, %v3685
        %v3715 = vpop.permute.xlu0 %3714
        %3716 = vset.pattern.permute.xlu0 3
        %3717 = vperm.xlu0 %3716, %v3686
        %v3718 = vpop.permute.xlu0 %3717
        %3719 = vset.pattern.permute.xlu0 3
        %3720 = vperm.xlu0 %3719, %v3687
        %v3721 = vpop.permute.xlu0 %3720
        %3722 = vset.pattern.permute.xlu0 3
        %3723 = vperm.xlu0 %3722, %v3688
        %v3724 = vpop.permute.xlu0 %3723
        %3725 = vset.pattern.permute.xlu0 3
        %3726 = vperm.xlu0 %3725, %v3689
        %v3727 = vpop.permute.xlu0 %3726
        %3728 = vset.pattern.permute.xlu0 3
        %3729 = vperm.xlu0 %3728, %v3690
        %v3730 = vpop.permute.xlu0 %3729
        %3731 = vset.pattern.permute.xlu0 3
        %3732 = vperm.xlu0 %3731, %v3691
        %v3733 = vpop.permute.xlu0 %3732
        %3734 = vset.pattern.permute.xlu0 3
        %3735 = vperm.xlu0 %3734, %v3692
        %v3736 = vpop.permute.xlu0 %3735
        %3737 = vset.pattern.permute.xlu0 3
        %3738 = vperm.xlu0 %3737, %v3693
        %v3739 = vpop.permute.xlu0 %3738
        %3740 = vset.pattern.permute.xlu0 3
        %3741 = vperm.xlu0 %3740, %v3694
        %v3742 = vpop.permute.xlu0 %3741
        %vm3743 = vcmp.eq.s32.totalorder %v3697, 1
        %vm3744 = vcmp.eq.s32.totalorder %v3700, 1
        %vm3745 = vcmp.eq.s32.totalorder %v3703, 1
        %vm3746 = vcmp.eq.s32.totalorder %v3706, 1
        %vm3747 = vcmp.eq.s32.totalorder %v3709, 1
        %vm3748 = vcmp.eq.s32.totalorder %v3712, 1
        %vm3749 = vcmp.eq.s32.totalorder %v3715, 1
        %vm3750 = vcmp.eq.s32.totalorder %v3718, 1
        %vm3751 = vcmp.eq.s32.totalorder %v3721, 1
        %vm3752 = vcmp.eq.s32.totalorder %v3724, 1
        %vm3753 = vcmp.eq.s32.totalorder %v3727, 1
        %vm3754 = vcmp.eq.s32.totalorder %v3730, 1
        %vm3755 = vcmp.eq.s32.totalorder %v3733, 1
        %vm3756 = vcmp.eq.s32.totalorder %v3736, 1
        %vm3757 = vcmp.eq.s32.totalorder %v3739, 1
        %vm3758 = vcmp.eq.s32.totalorder %v3742, 1
        %vm3759 = vmpackc.low %vm3743, %vm3743
        %vm3760 = vmpackc.low %vm3744, %vm3744
        %vm3761 = vmpackc.low %vm3745, %vm3745
        %vm3762 = vmpackc.low %vm3746, %vm3746
        %vm3763 = vmpackc.low %vm3747, %vm3747
        %vm3764 = vmpackc.low %vm3748, %vm3748
        %vm3765 = vmpackc.low %vm3749, %vm3749
        %vm3766 = vmpackc.low %vm3750, %vm3750
        %vm3767 = vmpackc.low %vm3751, %vm3751
        %vm3768 = vmpackc.low %vm3752, %vm3752
        %vm3769 = vmpackc.low %vm3753, %vm3753
        %vm3770 = vmpackc.low %vm3754, %vm3754
        %vm3771 = vmpackc.low %vm3755, %vm3755
        %vm3772 = vmpackc.low %vm3756, %vm3756
        %vm3773 = vmpackc.low %vm3757, %vm3757
        %vm3774 = vmpackc.low %vm3758, %vm3758
        %v3775 = vsel %vm3759, %v3519, 0
        %v3776 = vsel %vm3760, %v3520, 0
        %v3777 = vsel %vm3761, %v3521, 0
        %v3778 = vsel %vm3762, %v3522, 0
        %v3779 = vsel %vm3763, %v3523, 0
        %v3780 = vsel %vm3764, %v3524, 0
        %v3781 = vsel %vm3765, %v3525, 0
        %v3782 = vsel %vm3766, %v3526, 0
        %v3783 = vsel %vm3767, %v3527, 0
        %v3784 = vsel %vm3768, %v3528, 0
        %v3785 = vsel %vm3769, %v3529, 0
        %v3786 = vsel %vm3770, %v3530, 0
        %v3787 = vsel %vm3771, %v3531, 0
        %v3788 = vsel %vm3772, %v3532, 0
        %v3789 = vsel %vm3773, %v3533, 0
        %v3790 = vsel %vm3774, %v3534, 0
        %v3807 = vunpack.c.l.b16 %v3647
        %v3808 = vunpack.c.l.b16 %v3648
        %v3809 = vunpack.c.l.b16 %v3649
        %v3810 = vunpack.c.l.b16 %v3650
        %v3811 = vunpack.c.l.b16 %v3651
        %v3812 = vunpack.c.l.b16 %v3652
        %v3813 = vunpack.c.l.b16 %v3653
        %v3814 = vunpack.c.l.b16 %v3654
        %v3815 = vunpack.c.l.b16 %v3655
        %v3816 = vunpack.c.l.b16 %v3656
        %v3817 = vunpack.c.l.b16 %v3657
        %v3818 = vunpack.c.l.b16 %v3658
        %v3819 = vunpack.c.l.b16 %v3659
        %v3820 = vunpack.c.l.b16 %v3660
        %v3821 = vunpack.c.l.b16 %v3661
        %v3822 = vunpack.c.l.b16 %v3662
        %v3823 = vpack.c.b16 %v3808, %v3807
        %v3824 = vpack.c.b16 %v3810, %v3809
        %v3825 = vpack.c.b16 %v3812, %v3811
        %v3826 = vpack.c.b16 %v3814, %v3813
        %v3827 = vpack.c.b16 %v3816, %v3815
        %v3828 = vpack.c.b16 %v3818, %v3817
        %v3829 = vpack.c.b16 %v3820, %v3819
        %v3830 = vpack.c.b16 %v3822, %v3821
        %v3855 = vunpack.c.l.b16 %v3775
        %v3856 = vunpack.c.l.b16 %v3776
        %v3857 = vunpack.c.l.b16 %v3777
        %v3858 = vunpack.c.l.b16 %v3778
        %v3859 = vunpack.c.l.b16 %v3779
        %v3860 = vunpack.c.l.b16 %v3780
        %v3861 = vunpack.c.l.b16 %v3781
        %v3862 = vunpack.c.l.b16 %v3782
        %v3863 = vunpack.c.l.b16 %v3783
        %v3864 = vunpack.c.l.b16 %v3784
        %v3865 = vunpack.c.l.b16 %v3785
        %v3866 = vunpack.c.l.b16 %v3786
        %v3867 = vunpack.c.l.b16 %v3787
        %v3868 = vunpack.c.l.b16 %v3788
        %v3869 = vunpack.c.l.b16 %v3789
        %v3870 = vunpack.c.l.b16 %v3790
        %v3871 = vpack.c.b16 %v3856, %v3855
        %v3872 = vpack.c.b16 %v3858, %v3857
        %v3873 = vpack.c.b16 %v3860, %v3859
        %v3874 = vpack.c.b16 %v3862, %v3861
        %v3875 = vpack.c.b16 %v3864, %v3863
        %v3876 = vpack.c.b16 %v3866, %v3865
        %v3877 = vpack.c.b16 %v3868, %v3867
        %v3878 = vpack.c.b16 %v3870, %v3869
        %v3887 = vld [vmem:[%s1] sm:$0xf]
        %v3888 = vld [vmem:[%s1 + $0x4] sm:$0xf]
        %v3889 = vld [vmem:[%s1 + $0x8] sm:$0xf]
        %v3890 = vld [vmem:[%s1 + $0xc] sm:$0xf]
        %v3891 = vld [vmem:[%s1 + $0x10] sm:$0xf]
        %v3892 = vld [vmem:[%s1 + $0x14] sm:$0xf]
        %v3893 = vld [vmem:[%s1 + $0x18] sm:$0xf]
        %v3894 = vld [vmem:[%s1 + $0x1c] sm:$0xf]
        %v3895 = vld [vmem:[%s1 + $0x20] sm:$0xf]
        %v3896 = vld [vmem:[%s1 + $0x24] sm:$0xf]
        %v3897 = vld [vmem:[%s1 + $0x28] sm:$0xf]
        %v3898 = vld [vmem:[%s1 + $0x2c] sm:$0xf]
        %v3899 = vld [vmem:[%s1 + $0x30] sm:$0xf]
        %v3900 = vld [vmem:[%s1 + $0x34] sm:$0xf]
        %v3901 = vld [vmem:[%s1 + $0x38] sm:$0xf]
        %v3902 = vld [vmem:[%s1 + $0x3c] sm:$0xf]
        %v3903 = vld [vmem:[%s1 + $0x40] sm:$0xf]
        %v3904 = vld [vmem:[%s1 + $0x44] sm:$0xf]
        %v3905 = vld [vmem:[%s1 + $0x48] sm:$0xf]
        %v3906 = vld [vmem:[%s1 + $0x4c] sm:$0xf]
        %v3907 = vld [vmem:[%s1 + $0x50] sm:$0xf]
        %v3908 = vld [vmem:[%s1 + $0x54] sm:$0xf]
        %v3909 = vld [vmem:[%s1 + $0x58] sm:$0xf]
        %v3910 = vld [vmem:[%s1 + $0x5c] sm:$0xf]
        %v3911 = vld [vmem:[%s1 + $0x60] sm:$0xf]
        %v3912 = vld [vmem:[%s1 + $0x64] sm:$0xf]
        %v3913 = vld [vmem:[%s1 + $0x68] sm:$0xf]
        %v3914 = vld [vmem:[%s1 + $0x6c] sm:$0xf]
        %v3915 = vld [vmem:[%s1 + $0x70] sm:$0xf]
        %v3916 = vld [vmem:[%s1 + $0x74] sm:$0xf]
        %v3917 = vld [vmem:[%s1 + $0x78] sm:$0xf]
        %v3918 = vld [vmem:[%s1 + $0x7c] sm:$0xf]
        %vm3919 = vcmp.eq.s32.totalorder %v3487, 2
        %vm3920 = vcmp.eq.s32.totalorder %v3488, 2
        %vm3921 = vcmp.eq.s32.totalorder %v3489, 2
        %vm3922 = vcmp.eq.s32.totalorder %v3490, 2
        %vm3923 = vcmp.eq.s32.totalorder %v3491, 2
        %vm3924 = vcmp.eq.s32.totalorder %v3492, 2
        %vm3925 = vcmp.eq.s32.totalorder %v3493, 2
        %vm3926 = vcmp.eq.s32.totalorder %v3494, 2
        %vm3927 = vcmp.eq.s32.totalorder %v3495, 2
        %vm3928 = vcmp.eq.s32.totalorder %v3496, 2
        %vm3929 = vcmp.eq.s32.totalorder %v3497, 2
        %vm3930 = vcmp.eq.s32.totalorder %v3498, 2
        %vm3931 = vcmp.eq.s32.totalorder %v3499, 2
        %vm3932 = vcmp.eq.s32.totalorder %v3500, 2
        %vm3933 = vcmp.eq.s32.totalorder %v3501, 2
        %vm3934 = vcmp.eq.s32.totalorder %v3502, 2
        %v3935 = vsel %vm3919, 1, 0
        %v3936 = vsel %vm3920, 1, 0
        %v3937 = vsel %vm3921, 1, 0
        %v3938 = vsel %vm3922, 1, 0
        %v3939 = vsel %vm3923, 1, 0
        %v3940 = vsel %vm3924, 1, 0
        %v3941 = vsel %vm3925, 1, 0
        %v3942 = vsel %vm3926, 1, 0
        %v3943 = vsel %vm3927, 1, 0
        %v3944 = vsel %vm3928, 1, 0
        %v3945 = vsel %vm3929, 1, 0
        %v3946 = vsel %vm3930, 1, 0
        %v3947 = vsel %vm3931, 1, 0
        %v3948 = vsel %vm3932, 1, 0
        %v3949 = vsel %vm3933, 1, 0
        %v3950 = vsel %vm3934, 1, 0
        %3951 = vset.pattern.permute.xlu0 3
        %3952 = vperm.xlu0 %3951, %v3935
        %v3953 = vpop.permute.xlu0 %3952
        %3954 = vset.pattern.permute.xlu0 3
        %3955 = vperm.xlu0 %3954, %v3936
        %v3956 = vpop.permute.xlu0 %3955
        %3957 = vset.pattern.permute.xlu0 3
        %3958 = vperm.xlu0 %3957, %v3937
        %v3959 = vpop.permute.xlu0 %3958
        %3960 = vset.pattern.permute.xlu0 3
        %3961 = vperm.xlu0 %3960, %v3938
        %v3962 = vpop.permute.xlu0 %3961
        %3963 = vset.pattern.permute.xlu0 3
        %3964 = vperm.xlu0 %3963, %v3939
        %v3965 = vpop.permute.xlu0 %3964
        %3966 = vset.pattern.permute.xlu0 3
        %3967 = vperm.xlu0 %3966, %v3940
        %v3968 = vpop.permute.xlu0 %3967
        %3969 = vset.pattern.permute.xlu0 3
        %3970 = vperm.xlu0 %3969, %v3941
        %v3971 = vpop.permute.xlu0 %3970
        %3972 = vset.pattern.permute.xlu0 3
        %3973 = vperm.xlu0 %3972, %v3942
        %v3974 = vpop.permute.xlu0 %3973
        %3975 = vset.pattern.permute.xlu0 3
        %3976 = vperm.xlu0 %3975, %v3943
        %v3977 = vpop.permute.xlu0 %3976
        %3978 = vset.pattern.permute.xlu0 3
        %3979 = vperm.xlu0 %3978, %v3944
        %v3980 = vpop.permute.xlu0 %3979
        %3981 = vset.pattern.permute.xlu0 3
        %3982 = vperm.xlu0 %3981, %v3945
        %v3983 = vpop.permute.xlu0 %3982
        %3984 = vset.pattern.permute.xlu0 3
        %3985 = vperm.xlu0 %3984, %v3946
        %v3986 = vpop.permute.xlu0 %3985
        %3987 = vset.pattern.permute.xlu0 3
        %3988 = vperm.xlu0 %3987, %v3947
        %v3989 = vpop.permute.xlu0 %3988
        %3990 = vset.pattern.permute.xlu0 3
        %3991 = vperm.xlu0 %3990, %v3948
        %v3992 = vpop.permute.xlu0 %3991
        %3993 = vset.pattern.permute.xlu0 3
        %3994 = vperm.xlu0 %3993, %v3949
        %v3995 = vpop.permute.xlu0 %3994
        %3996 = vset.pattern.permute.xlu0 3
        %3997 = vperm.xlu0 %3996, %v3950
        %v3998 = vpop.permute.xlu0 %3997
        %vm3999 = vcmp.eq.s32.totalorder %v3953, 1
        %vm4000 = vcmp.eq.s32.totalorder %v3956, 1
        %vm4001 = vcmp.eq.s32.totalorder %v3959, 1
        %vm4002 = vcmp.eq.s32.totalorder %v3962, 1
        %vm4003 = vcmp.eq.s32.totalorder %v3965, 1
        %vm4004 = vcmp.eq.s32.totalorder %v3968, 1
        %vm4005 = vcmp.eq.s32.totalorder %v3971, 1
        %vm4006 = vcmp.eq.s32.totalorder %v3974, 1
        %vm4007 = vcmp.eq.s32.totalorder %v3977, 1
        %vm4008 = vcmp.eq.s32.totalorder %v3980, 1
        %vm4009 = vcmp.eq.s32.totalorder %v3983, 1
        %vm4010 = vcmp.eq.s32.totalorder %v3986, 1
        %vm4011 = vcmp.eq.s32.totalorder %v3989, 1
        %vm4012 = vcmp.eq.s32.totalorder %v3992, 1
        %vm4013 = vcmp.eq.s32.totalorder %v3995, 1
        %vm4014 = vcmp.eq.s32.totalorder %v3998, 1
        %vm4015 = vmpackc.low %vm3999, %vm3999
        %vm4016 = vmpackc.low %vm4000, %vm4000
        %vm4017 = vmpackc.low %vm4001, %vm4001
        %vm4018 = vmpackc.low %vm4002, %vm4002
        %vm4019 = vmpackc.low %vm4003, %vm4003
        %vm4020 = vmpackc.low %vm4004, %vm4004
        %vm4021 = vmpackc.low %vm4005, %vm4005
        %vm4022 = vmpackc.low %vm4006, %vm4006
        %vm4023 = vmpackc.low %vm4007, %vm4007
        %vm4024 = vmpackc.low %vm4008, %vm4008
        %vm4025 = vmpackc.low %vm4009, %vm4009
        %vm4026 = vmpackc.low %vm4010, %vm4010
        %vm4027 = vmpackc.low %vm4011, %vm4011
        %vm4028 = vmpackc.low %vm4012, %vm4012
        %vm4029 = vmpackc.low %vm4013, %vm4013
        %vm4030 = vmpackc.low %vm4014, %vm4014
        %v4031 = vsel %vm4015, %v3519, 0
        %v4032 = vsel %vm4016, %v3520, 0
        %v4033 = vsel %vm4017, %v3521, 0
        %v4034 = vsel %vm4018, %v3522, 0
        %v4035 = vsel %vm4019, %v3523, 0
        %v4036 = vsel %vm4020, %v3524, 0
        %v4037 = vsel %vm4021, %v3525, 0
        %v4038 = vsel %vm4022, %v3526, 0
        %v4039 = vsel %vm4023, %v3527, 0
        %v4040 = vsel %vm4024, %v3528, 0
        %v4041 = vsel %vm4025, %v3529, 0
        %v4042 = vsel %vm4026, %v3530, 0
        %v4043 = vsel %vm4027, %v3531, 0
        %v4044 = vsel %vm4028, %v3532, 0
        %v4045 = vsel %vm4029, %v3533, 0
        %v4046 = vsel %vm4030, %v3534, 0
        %vm4047 = vcmp.eq.s32.totalorder %v3487, 3
        %vm4048 = vcmp.eq.s32.totalorder %v3488, 3
        %vm4049 = vcmp.eq.s32.totalorder %v3489, 3
        %vm4050 = vcmp.eq.s32.totalorder %v3490, 3
        %vm4051 = vcmp.eq.s32.totalorder %v3491, 3
        %vm4052 = vcmp.eq.s32.totalorder %v3492, 3
        %vm4053 = vcmp.eq.s32.totalorder %v3493, 3
        %vm4054 = vcmp.eq.s32.totalorder %v3494, 3
        %vm4055 = vcmp.eq.s32.totalorder %v3495, 3
        %vm4056 = vcmp.eq.s32.totalorder %v3496, 3
        %vm4057 = vcmp.eq.s32.totalorder %v3497, 3
        %vm4058 = vcmp.eq.s32.totalorder %v3498, 3
        %vm4059 = vcmp.eq.s32.totalorder %v3499, 3
        %vm4060 = vcmp.eq.s32.totalorder %v3500, 3
        %vm4061 = vcmp.eq.s32.totalorder %v3501, 3
        %vm4062 = vcmp.eq.s32.totalorder %v3502, 3
        %v4063 = vsel %vm4047, 1, 0
        %v4064 = vsel %vm4048, 1, 0
        %v4065 = vsel %vm4049, 1, 0
        %v4066 = vsel %vm4050, 1, 0
        %v4067 = vsel %vm4051, 1, 0
        %v4068 = vsel %vm4052, 1, 0
        %v4069 = vsel %vm4053, 1, 0
        %v4070 = vsel %vm4054, 1, 0
        %v4071 = vsel %vm4055, 1, 0
        %v4072 = vsel %vm4056, 1, 0
        %v4073 = vsel %vm4057, 1, 0
        %v4074 = vsel %vm4058, 1, 0
        %v4075 = vsel %vm4059, 1, 0
        %v4076 = vsel %vm4060, 1, 0
        %v4077 = vsel %vm4061, 1, 0
        %v4078 = vsel %vm4062, 1, 0
        %4079 = vset.pattern.permute.xlu0 3
        %4080 = vperm.xlu0 %4079, %v4063
        %v4081 = vpop.permute.xlu0 %4080
        %4082 = vset.pattern.permute.xlu0 3
        %4083 = vperm.xlu0 %4082, %v4064
        %v4084 = vpop.permute.xlu0 %4083
        %4085 = vset.pattern.permute.xlu0 3
        %4086 = vperm.xlu0 %4085, %v4065
        %v4087 = vpop.permute.xlu0 %4086
        %4088 = vset.pattern.permute.xlu0 3
        %4089 = vperm.xlu0 %4088, %v4066
        %v4090 = vpop.permute.xlu0 %4089
        %4091 = vset.pattern.permute.xlu0 3
        %4092 = vperm.xlu0 %4091, %v4067
        %v4093 = vpop.permute.xlu0 %4092
        %4094 = vset.pattern.permute.xlu0 3
        %4095 = vperm.xlu0 %4094, %v4068
        %v4096 = vpop.permute.xlu0 %4095
        %4097 = vset.pattern.permute.xlu0 3
        %4098 = vperm.xlu0 %4097, %v4069
        %v4099 = vpop.permute.xlu0 %4098
        %4100 = vset.pattern.permute.xlu0 3
        %4101 = vperm.xlu0 %4100, %v4070
        %v4102 = vpop.permute.xlu0 %4101
        %4103 = vset.pattern.permute.xlu0 3
        %4104 = vperm.xlu0 %4103, %v4071
        %v4105 = vpop.permute.xlu0 %4104
        %4106 = vset.pattern.permute.xlu0 3
        %4107 = vperm.xlu0 %4106, %v4072
        %v4108 = vpop.permute.xlu0 %4107
        %4109 = vset.pattern.permute.xlu0 3
        %4110 = vperm.xlu0 %4109, %v4073
        %v4111 = vpop.permute.xlu0 %4110
        %4112 = vset.pattern.permute.xlu0 3
        %4113 = vperm.xlu0 %4112, %v4074
        %v4114 = vpop.permute.xlu0 %4113
        %4115 = vset.pattern.permute.xlu0 3
        %4116 = vperm.xlu0 %4115, %v4075
        %v4117 = vpop.permute.xlu0 %4116
        %4118 = vset.pattern.permute.xlu0 3
        %4119 = vperm.xlu0 %4118, %v4076
        %v4120 = vpop.permute.xlu0 %4119
        %4121 = vset.pattern.permute.xlu0 3
        %4122 = vperm.xlu0 %4121, %v4077
        %v4123 = vpop.permute.xlu0 %4122
        %4124 = vset.pattern.permute.xlu0 3
        %4125 = vperm.xlu0 %4124, %v4078
        %v4126 = vpop.permute.xlu0 %4125
        %vm4127 = vcmp.eq.s32.totalorder %v4081, 1
        %vm4128 = vcmp.eq.s32.totalorder %v4084, 1
        %vm4129 = vcmp.eq.s32.totalorder %v4087, 1
        %vm4130 = vcmp.eq.s32.totalorder %v4090, 1
        %vm4131 = vcmp.eq.s32.totalorder %v4093, 1
        %vm4132 = vcmp.eq.s32.totalorder %v4096, 1
        %vm4133 = vcmp.eq.s32.totalorder %v4099, 1
        %vm4134 = vcmp.eq.s32.totalorder %v4102, 1
        %vm4135 = vcmp.eq.s32.totalorder %v4105, 1
        %vm4136 = vcmp.eq.s32.totalorder %v4108, 1
        %vm4137 = vcmp.eq.s32.totalorder %v4111, 1
        %vm4138 = vcmp.eq.s32.totalorder %v4114, 1
        %vm4139 = vcmp.eq.s32.totalorder %v4117, 1
        %vm4140 = vcmp.eq.s32.totalorder %v4120, 1
        %vm4141 = vcmp.eq.s32.totalorder %v4123, 1
        %vm4142 = vcmp.eq.s32.totalorder %v4126, 1
        %vm4143 = vmpackc.low %vm4127, %vm4127
        %vm4144 = vmpackc.low %vm4128, %vm4128
        %vm4145 = vmpackc.low %vm4129, %vm4129
        %vm4146 = vmpackc.low %vm4130, %vm4130
        %vm4147 = vmpackc.low %vm4131, %vm4131
        %vm4148 = vmpackc.low %vm4132, %vm4132
        %vm4149 = vmpackc.low %vm4133, %vm4133
        %vm4150 = vmpackc.low %vm4134, %vm4134
        %vm4151 = vmpackc.low %vm4135, %vm4135
        %vm4152 = vmpackc.low %vm4136, %vm4136
        %vm4153 = vmpackc.low %vm4137, %vm4137
        %vm4154 = vmpackc.low %vm4138, %vm4138
        %vm4155 = vmpackc.low %vm4139, %vm4139
        %vm4156 = vmpackc.low %vm4140, %vm4140
        %vm4157 = vmpackc.low %vm4141, %vm4141
        %vm4158 = vmpackc.low %vm4142, %vm4142
        %v4159 = vsel %vm4143, %v3519, 0
        %v4160 = vsel %vm4144, %v3520, 0
        %v4161 = vsel %vm4145, %v3521, 0
        %v4162 = vsel %vm4146, %v3522, 0
        %v4163 = vsel %vm4147, %v3523, 0
        %v4164 = vsel %vm4148, %v3524, 0
        %v4165 = vsel %vm4149, %v3525, 0
        %v4166 = vsel %vm4150, %v3526, 0
        %v4167 = vsel %vm4151, %v3527, 0
        %v4168 = vsel %vm4152, %v3528, 0
        %v4169 = vsel %vm4153, %v3529, 0
        %v4170 = vsel %vm4154, %v3530, 0
        %v4171 = vsel %vm4155, %v3531, 0
        %v4172 = vsel %vm4156, %v3532, 0
        %v4173 = vsel %vm4157, %v3533, 0
        %v4174 = vsel %vm4158, %v3534, 0
        %v4191 = vunpack.c.l.b16 %v4031
        %v4192 = vunpack.c.l.b16 %v4032
        %v4193 = vunpack.c.l.b16 %v4033
        %v4194 = vunpack.c.l.b16 %v4034
        %v4195 = vunpack.c.l.b16 %v4035
        %v4196 = vunpack.c.l.b16 %v4036
        %v4197 = vunpack.c.l.b16 %v4037
        %v4198 = vunpack.c.l.b16 %v4038
        %v4199 = vunpack.c.l.b16 %v4039
        %v4200 = vunpack.c.l.b16 %v4040
        %v4201 = vunpack.c.l.b16 %v4041
        %v4202 = vunpack.c.l.b16 %v4042
        %v4203 = vunpack.c.l.b16 %v4043
        %v4204 = vunpack.c.l.b16 %v4044
        %v4205 = vunpack.c.l.b16 %v4045
        %v4206 = vunpack.c.l.b16 %v4046
        %v4207 = vpack.c.b16 %v4192, %v4191
        %v4208 = vpack.c.b16 %v4194, %v4193
        %v4209 = vpack.c.b16 %v4196, %v4195
        %v4210 = vpack.c.b16 %v4198, %v4197
        %v4211 = vpack.c.b16 %v4200, %v4199
        %v4212 = vpack.c.b16 %v4202, %v4201
        %v4213 = vpack.c.b16 %v4204, %v4203
        %v4214 = vpack.c.b16 %v4206, %v4205
        %v4239 = vunpack.c.l.b16 %v4159
        %v4240 = vunpack.c.l.b16 %v4160
        %v4241 = vunpack.c.l.b16 %v4161
        %v4242 = vunpack.c.l.b16 %v4162
        %v4243 = vunpack.c.l.b16 %v4163
        %v4244 = vunpack.c.l.b16 %v4164
        %v4245 = vunpack.c.l.b16 %v4165
        %v4246 = vunpack.c.l.b16 %v4166
        %v4247 = vunpack.c.l.b16 %v4167
        %v4248 = vunpack.c.l.b16 %v4168
        %v4249 = vunpack.c.l.b16 %v4169
        %v4250 = vunpack.c.l.b16 %v4170
        %v4251 = vunpack.c.l.b16 %v4171
        %v4252 = vunpack.c.l.b16 %v4172
        %v4253 = vunpack.c.l.b16 %v4173
        %v4254 = vunpack.c.l.b16 %v4174
        %v4255 = vpack.c.b16 %v4240, %v4239
        %v4256 = vpack.c.b16 %v4242, %v4241
        %v4257 = vpack.c.b16 %v4244, %v4243
        %v4258 = vpack.c.b16 %v4246, %v4245
        %v4259 = vpack.c.b16 %v4248, %v4247
        %v4260 = vpack.c.b16 %v4250, %v4249
        %v4261 = vpack.c.b16 %v4252, %v4251
        %v4262 = vpack.c.b16 %v4254, %v4253
        %v4271 = vld [vmem:[%s1 + $0x80] sm:$0xf]
        %v4272 = vld [vmem:[%s1 + $0x84] sm:$0xf]
        %v4273 = vld [vmem:[%s1 + $0x88] sm:$0xf]
        %v4274 = vld [vmem:[%s1 + $0x8c] sm:$0xf]
        %v4275 = vld [vmem:[%s1 + $0x90] sm:$0xf]
        %v4276 = vld [vmem:[%s1 + $0x94] sm:$0xf]
        %v4277 = vld [vmem:[%s1 + $0x98] sm:$0xf]
        %v4278 = vld [vmem:[%s1 + $0x9c] sm:$0xf]
        %v4279 = vld [vmem:[%s1 + $0xa0] sm:$0xf]
        %v4280 = vld [vmem:[%s1 + $0xa4] sm:$0xf]
        %v4281 = vld [vmem:[%s1 + $0xa8] sm:$0xf]
        %v4282 = vld [vmem:[%s1 + $0xac] sm:$0xf]
        %v4283 = vld [vmem:[%s1 + $0xb0] sm:$0xf]
        %v4284 = vld [vmem:[%s1 + $0xb4] sm:$0xf]
        %v4285 = vld [vmem:[%s1 + $0xb8] sm:$0xf]
        %v4286 = vld [vmem:[%s1 + $0xbc] sm:$0xf]
        %v4287 = vld [vmem:[%s1 + $0xc0] sm:$0xf]
        %v4288 = vld [vmem:[%s1 + $0xc4] sm:$0xf]
        %v4289 = vld [vmem:[%s1 + $0xc8] sm:$0xf]
        %v4290 = vld [vmem:[%s1 + $0xcc] sm:$0xf]
        %v4291 = vld [vmem:[%s1 + $0xd0] sm:$0xf]
        %v4292 = vld [vmem:[%s1 + $0xd4] sm:$0xf]
        %v4293 = vld [vmem:[%s1 + $0xd8] sm:$0xf]
        %v4294 = vld [vmem:[%s1 + $0xdc] sm:$0xf]
        %v4295 = vld [vmem:[%s1 + $0xe0] sm:$0xf]
        %v4296 = vld [vmem:[%s1 + $0xe4] sm:$0xf]
        %v4297 = vld [vmem:[%s1 + $0xe8] sm:$0xf]
        %v4298 = vld [vmem:[%s1 + $0xec] sm:$0xf]
        %v4299 = vld [vmem:[%s1 + $0xf0] sm:$0xf]
        %v4300 = vld [vmem:[%s1 + $0xf4] sm:$0xf]
        %v4301 = vld [vmem:[%s1 + $0xf8] sm:$0xf]
        %v4302 = vld [vmem:[%s1 + $0xfc] sm:$0xf]
        %v4335 = vunpack.c.l.b16 %v4271
        %v4336 = vunpack.c.l.b16 %v4272
        %v4337 = vunpack.c.l.b16 %v4273
        %v4338 = vunpack.c.l.b16 %v4274
        %v4339 = vunpack.c.l.b16 %v4275
        %v4340 = vunpack.c.l.b16 %v4276
        %v4341 = vunpack.c.l.b16 %v4277
        %v4342 = vunpack.c.l.b16 %v4278
        %v4343 = vunpack.c.l.b16 %v4279
        %v4344 = vunpack.c.l.b16 %v4280
        %v4345 = vunpack.c.l.b16 %v4281
        %v4346 = vunpack.c.l.b16 %v4282
        %v4347 = vunpack.c.l.b16 %v4283
        %v4348 = vunpack.c.l.b16 %v4284
        %v4349 = vunpack.c.l.b16 %v4285
        %v4350 = vunpack.c.l.b16 %v4286
        %v4351 = vunpack.c.l.b16 %v4287
        %v4352 = vunpack.c.l.b16 %v4288
        %v4353 = vunpack.c.l.b16 %v4289
        %v4354 = vunpack.c.l.b16 %v4290
        %v4355 = vunpack.c.l.b16 %v4291
        %v4356 = vunpack.c.l.b16 %v4292
        %v4357 = vunpack.c.l.b16 %v4293
        %v4358 = vunpack.c.l.b16 %v4294
        %v4359 = vunpack.c.l.b16 %v4295
        %v4360 = vunpack.c.l.b16 %v4296
        %v4361 = vunpack.c.l.b16 %v4297
        %v4362 = vunpack.c.l.b16 %v4298
        %v4363 = vunpack.c.l.b16 %v4299
        %v4364 = vunpack.c.l.b16 %v4300
        %v4365 = vunpack.c.l.b16 %v4301
        %v4366 = vunpack.c.l.b16 %v4302
        %v4367 = vpack.c.b16 %v4336, %v4335
        %v4368 = vpack.c.b16 %v4338, %v4337
        %v4369 = vpack.c.b16 %v4340, %v4339
        %v4370 = vpack.c.b16 %v4342, %v4341
        %v4371 = vpack.c.b16 %v4344, %v4343
        %v4372 = vpack.c.b16 %v4346, %v4345
        %v4373 = vpack.c.b16 %v4348, %v4347
        %v4374 = vpack.c.b16 %v4350, %v4349
        %v4375 = vpack.c.b16 %v4352, %v4351
        %v4376 = vpack.c.b16 %v4354, %v4353
        %v4377 = vpack.c.b16 %v4356, %v4355
        %v4378 = vpack.c.b16 %v4358, %v4357
        %v4379 = vpack.c.b16 %v4360, %v4359
        %v4380 = vpack.c.b16 %v4362, %v4361
        %v4381 = vpack.c.b16 %v4364, %v4363
        %v4382 = vpack.c.b16 %v4366, %v4365
        %4399 = vmatpush.bf16.msra.mxu0 %v4374
        %4400 = vmatpush.bf16.msra.mxu0 %v4373
        %4401 = vmatpush.bf16.msra.mxu0 %v4372
        %4402 = vmatpush.bf16.msra.mxu0 %v4371
        %4403 = vmatpush.bf16.msra.mxu0 %v4370
        %4404 = vmatpush.bf16.msra.mxu0 %v4369
        %4405 = vmatpush.bf16.msra.mxu0 %v4368
        %4406 = vmatpush.bf16.msra.mxu0 %v4367
        %4407 = vmatmul.bf16.gmra.mxu0 %v4207
        %v4408 = vpop.f32.mrf.mxu0
        %v4409 = vadd.f32 0.0, %v4408
        %v4410 = vpop.f32.mrf.mxu0
        %v4411 = vadd.f32 0.0, %v4410
        %4412 = vmatmul.bf16.gmra.mxu0 %v4208
        %v4413 = vpop.f32.mrf.mxu0
        %v4414 = vadd.f32 0.0, %v4413
        %v4415 = vpop.f32.mrf.mxu0
        %v4416 = vadd.f32 0.0, %v4415
        %4417 = vmatmul.bf16.gmra.mxu0 %v4209
        %v4418 = vpop.f32.mrf.mxu0
        %v4419 = vadd.f32 0.0, %v4418
        %v4420 = vpop.f32.mrf.mxu0
        %v4421 = vadd.f32 0.0, %v4420
        %4422 = vmatmul.bf16.gmra.mxu0 %v4210
        %v4423 = vpop.f32.mrf.mxu0
        %v4424 = vadd.f32 0.0, %v4423
        %v4425 = vpop.f32.mrf.mxu0
        %v4426 = vadd.f32 0.0, %v4425
        %4427 = vmatmul.bf16.gmra.mxu0 %v4211
        %v4428 = vpop.f32.mrf.mxu0
        %v4429 = vadd.f32 0.0, %v4428
        %v4430 = vpop.f32.mrf.mxu0
        %v4431 = vadd.f32 0.0, %v4430
        %4432 = vmatmul.bf16.gmra.mxu0 %v4212
        %v4433 = vpop.f32.mrf.mxu0
        %v4434 = vadd.f32 0.0, %v4433
        %v4435 = vpop.f32.mrf.mxu0
        %v4436 = vadd.f32 0.0, %v4435
        %4437 = vmatmul.bf16.gmra.mxu0 %v4213
        %v4438 = vpop.f32.mrf.mxu0
        %v4439 = vadd.f32 0.0, %v4438
        %v4440 = vpop.f32.mrf.mxu0
        %v4441 = vadd.f32 0.0, %v4440
        %4442 = vmatmul.bf16.gmra.mxu0 %v4214
        %v4443 = vpop.f32.mrf.mxu0
        %v4444 = vadd.f32 0.0, %v4443
        %v4445 = vpop.f32.mrf.mxu0
        %v4446 = vadd.f32 0.0, %v4445
        %4447 = vdwg.mxu0
        %4448 = vmatpush.bf16.msra.mxu0 %v4382
        %4449 = vmatpush.bf16.msra.mxu0 %v4381
        %4450 = vmatpush.bf16.msra.mxu0 %v4380
        %4451 = vmatpush.bf16.msra.mxu0 %v4379
        %4452 = vmatpush.bf16.msra.mxu0 %v4378
        %4453 = vmatpush.bf16.msra.mxu0 %v4377
        %4454 = vmatpush.bf16.msra.mxu0 %v4376
        %4455 = vmatpush.bf16.msra.mxu0 %v4375
        %4456 = vmatmul.bf16.gmra.mxu0 %v4255
        %v4457 = vpop.f32.mrf.mxu0
        %v4458 = vadd.f32 %v4409, %v4457
        %v4459 = vpop.f32.mrf.mxu0
        %v4460 = vadd.f32 %v4411, %v4459
        %4461 = vmatmul.bf16.gmra.mxu0 %v4256
        %v4462 = vpop.f32.mrf.mxu0
        %v4463 = vadd.f32 %v4414, %v4462
        %v4464 = vpop.f32.mrf.mxu0
        %v4465 = vadd.f32 %v4416, %v4464
        %4466 = vmatmul.bf16.gmra.mxu0 %v4257
        %v4467 = vpop.f32.mrf.mxu0
        %v4468 = vadd.f32 %v4419, %v4467
        %v4469 = vpop.f32.mrf.mxu0
        %v4470 = vadd.f32 %v4421, %v4469
        %4471 = vmatmul.bf16.gmra.mxu0 %v4258
        %v4472 = vpop.f32.mrf.mxu0
        %v4473 = vadd.f32 %v4424, %v4472
        %v4474 = vpop.f32.mrf.mxu0
        %v4475 = vadd.f32 %v4426, %v4474
        %4476 = vmatmul.bf16.gmra.mxu0 %v4259
        %v4477 = vpop.f32.mrf.mxu0
        %v4478 = vadd.f32 %v4429, %v4477
        %v4479 = vpop.f32.mrf.mxu0
        %v4480 = vadd.f32 %v4431, %v4479
        %4481 = vmatmul.bf16.gmra.mxu0 %v4260
        %v4482 = vpop.f32.mrf.mxu0
        %v4483 = vadd.f32 %v4434, %v4482
        %v4484 = vpop.f32.mrf.mxu0
        %v4485 = vadd.f32 %v4436, %v4484
        %4486 = vmatmul.bf16.gmra.mxu0 %v4261
        %v4487 = vpop.f32.mrf.mxu0
        %v4488 = vadd.f32 %v4439, %v4487
        %v4489 = vpop.f32.mrf.mxu0
        %v4490 = vadd.f32 %v4441, %v4489
        %4491 = vmatmul.bf16.gmra.mxu0 %v4262
        %v4492 = vpop.f32.mrf.mxu0
        %v4493 = vadd.f32 %v4444, %v4492
        %v4494 = vpop.f32.mrf.mxu0
        %v4495 = vadd.f32 %v4446, %v4494
        %4496 = vdwg.mxu0
        %v4529 = vunpack.c.l.b16 %v3887
        %v4530 = vunpack.c.l.b16 %v3888
        %v4531 = vunpack.c.l.b16 %v3889
        %v4532 = vunpack.c.l.b16 %v3890
        %v4533 = vunpack.c.l.b16 %v3891
        %v4534 = vunpack.c.l.b16 %v3892
        %v4535 = vunpack.c.l.b16 %v3893
        %v4536 = vunpack.c.l.b16 %v3894
        %v4537 = vunpack.c.l.b16 %v3895
        %v4538 = vunpack.c.l.b16 %v3896
        %v4539 = vunpack.c.l.b16 %v3897
        %v4540 = vunpack.c.l.b16 %v3898
        %v4541 = vunpack.c.l.b16 %v3899
        %v4542 = vunpack.c.l.b16 %v3900
        %v4543 = vunpack.c.l.b16 %v3901
        %v4544 = vunpack.c.l.b16 %v3902
        %v4545 = vunpack.c.l.b16 %v3903
        %v4546 = vunpack.c.l.b16 %v3904
        %v4547 = vunpack.c.l.b16 %v3905
        %v4548 = vunpack.c.l.b16 %v3906
        %v4549 = vunpack.c.l.b16 %v3907
        %v4550 = vunpack.c.l.b16 %v3908
        %v4551 = vunpack.c.l.b16 %v3909
        %v4552 = vunpack.c.l.b16 %v3910
        %v4553 = vunpack.c.l.b16 %v3911
        %v4554 = vunpack.c.l.b16 %v3912
        %v4555 = vunpack.c.l.b16 %v3913
        %v4556 = vunpack.c.l.b16 %v3914
        %v4557 = vunpack.c.l.b16 %v3915
        %v4558 = vunpack.c.l.b16 %v3916
        %v4559 = vunpack.c.l.b16 %v3917
        %v4560 = vunpack.c.l.b16 %v3918
        %v4561 = vpack.c.b16 %v4530, %v4529
        %v4562 = vpack.c.b16 %v4532, %v4531
        %v4563 = vpack.c.b16 %v4534, %v4533
        %v4564 = vpack.c.b16 %v4536, %v4535
        %v4565 = vpack.c.b16 %v4538, %v4537
        %v4566 = vpack.c.b16 %v4540, %v4539
        %v4567 = vpack.c.b16 %v4542, %v4541
        %v4568 = vpack.c.b16 %v4544, %v4543
        %v4569 = vpack.c.b16 %v4546, %v4545
        %v4570 = vpack.c.b16 %v4548, %v4547
        %v4571 = vpack.c.b16 %v4550, %v4549
        %v4572 = vpack.c.b16 %v4552, %v4551
        %v4573 = vpack.c.b16 %v4554, %v4553
        %v4574 = vpack.c.b16 %v4556, %v4555
        %v4575 = vpack.c.b16 %v4558, %v4557
        %v4576 = vpack.c.b16 %v4560, %v4559
        %4593 = vmatpush.bf16.msra.mxu0 %v4568
        %4594 = vmatpush.bf16.msra.mxu0 %v4567
        %4595 = vmatpush.bf16.msra.mxu0 %v4566
        %4596 = vmatpush.bf16.msra.mxu0 %v4565
        %4597 = vmatpush.bf16.msra.mxu0 %v4564
        %4598 = vmatpush.bf16.msra.mxu0 %v4563
        %4599 = vmatpush.bf16.msra.mxu0 %v4562
        %4600 = vmatpush.bf16.msra.mxu0 %v4561
        %4601 = vmatmul.bf16.gmra.mxu0 %v3823
        %v4602 = vpop.f32.mrf.mxu0
        %v4603 = vadd.f32 %v4458, %v4602
        %v4604 = vpop.f32.mrf.mxu0
        %v4605 = vadd.f32 %v4460, %v4604
        %4606 = vmatmul.bf16.gmra.mxu0 %v3824
        %v4607 = vpop.f32.mrf.mxu0
        %v4608 = vadd.f32 %v4463, %v4607
        %v4609 = vpop.f32.mrf.mxu0
        %v4610 = vadd.f32 %v4465, %v4609
        %4611 = vmatmul.bf16.gmra.mxu0 %v3825
        %v4612 = vpop.f32.mrf.mxu0
        %v4613 = vadd.f32 %v4468, %v4612
        %v4614 = vpop.f32.mrf.mxu0
        %v4615 = vadd.f32 %v4470, %v4614
        %4616 = vmatmul.bf16.gmra.mxu0 %v3826
        %v4617 = vpop.f32.mrf.mxu0
        %v4618 = vadd.f32 %v4473, %v4617
        %v4619 = vpop.f32.mrf.mxu0
        %v4620 = vadd.f32 %v4475, %v4619
        %4621 = vmatmul.bf16.gmra.mxu0 %v3827
        %v4622 = vpop.f32.mrf.mxu0
        %v4623 = vadd.f32 %v4478, %v4622
        %v4624 = vpop.f32.mrf.mxu0
        %v4625 = vadd.f32 %v4480, %v4624
        %4626 = vmatmul.bf16.gmra.mxu0 %v3828
        %v4627 = vpop.f32.mrf.mxu0
        %v4628 = vadd.f32 %v4483, %v4627
        %v4629 = vpop.f32.mrf.mxu0
        %v4630 = vadd.f32 %v4485, %v4629
        %4631 = vmatmul.bf16.gmra.mxu0 %v3829
        %v4632 = vpop.f32.mrf.mxu0
        %v4633 = vadd.f32 %v4488, %v4632
        %v4634 = vpop.f32.mrf.mxu0
        %v4635 = vadd.f32 %v4490, %v4634
        %4636 = vmatmul.bf16.gmra.mxu0 %v3830
        %v4637 = vpop.f32.mrf.mxu0
        %v4638 = vadd.f32 %v4493, %v4637
        %v4639 = vpop.f32.mrf.mxu0
        %v4640 = vadd.f32 %v4495, %v4639
        %4641 = vdwg.mxu0
        %4642 = vmatpush.bf16.msra.mxu0 %v4576
        %4643 = vmatpush.bf16.msra.mxu0 %v4575
        %4644 = vmatpush.bf16.msra.mxu0 %v4574
        %4645 = vmatpush.bf16.msra.mxu0 %v4573
        %4646 = vmatpush.bf16.msra.mxu0 %v4572
        %4647 = vmatpush.bf16.msra.mxu0 %v4571
        %4648 = vmatpush.bf16.msra.mxu0 %v4570
        %4649 = vmatpush.bf16.msra.mxu0 %v4569
        %4650 = vmatmul.bf16.gmra.mxu0 %v3871
        %v4651 = vpop.f32.mrf.mxu0
        %v4652 = vadd.f32 %v4603, %v4651
        %v4653 = vpop.f32.mrf.mxu0
        %v4654 = vadd.f32 %v4605, %v4653
        %4655 = vmatmul.bf16.gmra.mxu0 %v3872
        %v4656 = vpop.f32.mrf.mxu0
        %v4657 = vadd.f32 %v4608, %v4656
        %v4658 = vpop.f32.mrf.mxu0
        %v4659 = vadd.f32 %v4610, %v4658
        %4660 = vmatmul.bf16.gmra.mxu0 %v3873
        %v4661 = vpop.f32.mrf.mxu0
        %v4662 = vadd.f32 %v4613, %v4661
        %v4663 = vpop.f32.mrf.mxu0
        %v4664 = vadd.f32 %v4615, %v4663
        %4665 = vmatmul.bf16.gmra.mxu0 %v3874
        %v4666 = vpop.f32.mrf.mxu0
        %v4667 = vadd.f32 %v4618, %v4666
        %v4668 = vpop.f32.mrf.mxu0
        %v4669 = vadd.f32 %v4620, %v4668
        %4670 = vmatmul.bf16.gmra.mxu0 %v3875
        %v4671 = vpop.f32.mrf.mxu0
        %v4672 = vadd.f32 %v4623, %v4671
        %v4673 = vpop.f32.mrf.mxu0
        %v4674 = vadd.f32 %v4625, %v4673
        %4675 = vmatmul.bf16.gmra.mxu0 %v3876
        %v4676 = vpop.f32.mrf.mxu0
        %v4677 = vadd.f32 %v4628, %v4676
        %v4678 = vpop.f32.mrf.mxu0
        %v4679 = vadd.f32 %v4630, %v4678
        %4680 = vmatmul.bf16.gmra.mxu0 %v3877
        %v4681 = vpop.f32.mrf.mxu0
        %v4682 = vadd.f32 %v4633, %v4681
        %v4683 = vpop.f32.mrf.mxu0
        %v4684 = vadd.f32 %v4635, %v4683
        %4685 = vmatmul.bf16.gmra.mxu0 %v3878
        %v4686 = vpop.f32.mrf.mxu0
        %v4687 = vadd.f32 %v4638, %v4686
        %v4688 = vpop.f32.mrf.mxu0
        %v4689 = vadd.f32 %v4640, %v4688
        %4690 = vdwg.mxu0
        %v4691 = vld [vmem:[%s1397] sm:$0xff]
        %v4692 = vld [vmem:[%s1397 + $0x8] sm:$0xff]
        %v4693 = vld [vmem:[%s1397 + $0x10] sm:$0xff]
        %v4694 = vld [vmem:[%s1397 + $0x18] sm:$0xff]
        %v4695 = vld [vmem:[%s1397 + $0x20] sm:$0xff]
        %v4696 = vld [vmem:[%s1397 + $0x28] sm:$0xff]
        %v4697 = vld [vmem:[%s1397 + $0x30] sm:$0xff]
        %v4698 = vld [vmem:[%s1397 + $0x38] sm:$0xff]
        %v4699 = vld [vmem:[%s1397 + $0x40] sm:$0xff]
        %v4700 = vld [vmem:[%s1397 + $0x48] sm:$0xff]
        %v4701 = vld [vmem:[%s1397 + $0x50] sm:$0xff]
        %v4702 = vld [vmem:[%s1397 + $0x58] sm:$0xff]
        %v4703 = vld [vmem:[%s1397 + $0x60] sm:$0xff]
        %v4704 = vld [vmem:[%s1397 + $0x68] sm:$0xff]
        %v4705 = vld [vmem:[%s1397 + $0x70] sm:$0xff]
        %v4706 = vld [vmem:[%s1397 + $0x78] sm:$0xff]
        %v4707 = vpack.c.bf16 %v4691, %v4691
        %v4708 = vpack.c.bf16 %v4692, %v4692
        %v4709 = vpack.c.bf16 %v4693, %v4693
        %v4710 = vpack.c.bf16 %v4694, %v4694
        %v4711 = vpack.c.bf16 %v4695, %v4695
        %v4712 = vpack.c.bf16 %v4696, %v4696
        %v4713 = vpack.c.bf16 %v4697, %v4697
        %v4714 = vpack.c.bf16 %v4698, %v4698
        %v4715 = vpack.c.bf16 %v4699, %v4699
        %v4716 = vpack.c.bf16 %v4700, %v4700
        %v4717 = vpack.c.bf16 %v4701, %v4701
        %v4718 = vpack.c.bf16 %v4702, %v4702
        %v4719 = vpack.c.bf16 %v4703, %v4703
        %v4720 = vpack.c.bf16 %v4704, %v4704
        %v4721 = vpack.c.bf16 %v4705, %v4705
        %v4722 = vpack.c.bf16 %v4706, %v4706
        %4723 = vset.pattern.permute.xlu0 4
        %4724 = vperm.xlu0 %4723, %v3551
        %v4725 = vpop.permute.xlu0 %4724
        %4726 = vset.pattern.permute.xlu0 4
        %4727 = vperm.xlu0 %4726, %v3552
        %v4728 = vpop.permute.xlu0 %4727
        %4729 = vset.pattern.permute.xlu0 4
        %4730 = vperm.xlu0 %4729, %v3553
        %v4731 = vpop.permute.xlu0 %4730
        %4732 = vset.pattern.permute.xlu0 4
        %4733 = vperm.xlu0 %4732, %v3554
        %v4734 = vpop.permute.xlu0 %4733
        %4735 = vset.pattern.permute.xlu0 4
        %4736 = vperm.xlu0 %4735, %v3555
        %v4737 = vpop.permute.xlu0 %4736
        %4738 = vset.pattern.permute.xlu0 4
        %4739 = vperm.xlu0 %4738, %v3556
        %v4740 = vpop.permute.xlu0 %4739
        %4741 = vset.pattern.permute.xlu0 4
        %4742 = vperm.xlu0 %4741, %v3557
        %v4743 = vpop.permute.xlu0 %4742
        %4744 = vset.pattern.permute.xlu0 4
        %4745 = vperm.xlu0 %4744, %v3558
        %v4746 = vpop.permute.xlu0 %4745
        %4747 = vset.pattern.permute.xlu0 4
        %4748 = vperm.xlu0 %4747, %v3559
        %v4749 = vpop.permute.xlu0 %4748
        %4750 = vset.pattern.permute.xlu0 4
        %4751 = vperm.xlu0 %4750, %v3560
        %v4752 = vpop.permute.xlu0 %4751
        %4753 = vset.pattern.permute.xlu0 4
        %4754 = vperm.xlu0 %4753, %v3561
        %v4755 = vpop.permute.xlu0 %4754
        %4756 = vset.pattern.permute.xlu0 4
        %4757 = vperm.xlu0 %4756, %v3562
        %v4758 = vpop.permute.xlu0 %4757
        %4759 = vset.pattern.permute.xlu0 4
        %4760 = vperm.xlu0 %4759, %v3563
        %v4761 = vpop.permute.xlu0 %4760
        %4762 = vset.pattern.permute.xlu0 4
        %4763 = vperm.xlu0 %4762, %v3564
        %v4764 = vpop.permute.xlu0 %4763
        %4765 = vset.pattern.permute.xlu0 4
        %4766 = vperm.xlu0 %4765, %v3565
        %v4767 = vpop.permute.xlu0 %4766
        %4768 = vset.pattern.permute.xlu0 4
        %4769 = vperm.xlu0 %4768, %v3566
        %v4770 = vpop.permute.xlu0 %4769
        %vm4771 = vcmp.eq.s32.totalorder %v4725, 1
        %vm4772 = vcmp.eq.s32.totalorder %v4728, 1
        %vm4773 = vcmp.eq.s32.totalorder %v4731, 1
        %vm4774 = vcmp.eq.s32.totalorder %v4734, 1
        %vm4775 = vcmp.eq.s32.totalorder %v4737, 1
        %vm4776 = vcmp.eq.s32.totalorder %v4740, 1
        %vm4777 = vcmp.eq.s32.totalorder %v4743, 1
        %vm4778 = vcmp.eq.s32.totalorder %v4746, 1
        %vm4779 = vcmp.eq.s32.totalorder %v4749, 1
        %vm4780 = vcmp.eq.s32.totalorder %v4752, 1
        %vm4781 = vcmp.eq.s32.totalorder %v4755, 1
        %vm4782 = vcmp.eq.s32.totalorder %v4758, 1
        %vm4783 = vcmp.eq.s32.totalorder %v4761, 1
        %vm4784 = vcmp.eq.s32.totalorder %v4764, 1
        %vm4785 = vcmp.eq.s32.totalorder %v4767, 1
        %vm4786 = vcmp.eq.s32.totalorder %v4770, 1
        %vm4787 = vmpackc.low %vm4771, %vm4771
        %vm4788 = vmpackc.low %vm4772, %vm4772
        %vm4789 = vmpackc.low %vm4773, %vm4773
        %vm4790 = vmpackc.low %vm4774, %vm4774
        %vm4791 = vmpackc.low %vm4775, %vm4775
        %vm4792 = vmpackc.low %vm4776, %vm4776
        %vm4793 = vmpackc.low %vm4777, %vm4777
        %vm4794 = vmpackc.low %vm4778, %vm4778
        %vm4795 = vmpackc.low %vm4779, %vm4779
        %vm4796 = vmpackc.low %vm4780, %vm4780
        %vm4797 = vmpackc.low %vm4781, %vm4781
        %vm4798 = vmpackc.low %vm4782, %vm4782
        %vm4799 = vmpackc.low %vm4783, %vm4783
        %vm4800 = vmpackc.low %vm4784, %vm4784
        %vm4801 = vmpackc.low %vm4785, %vm4785
        %vm4802 = vmpackc.low %vm4786, %vm4786
        %v4803 = vsel %vm4787, %v4707, 0
        %v4804 = vsel %vm4788, %v4708, 0
        %v4805 = vsel %vm4789, %v4709, 0
        %v4806 = vsel %vm4790, %v4710, 0
        %v4807 = vsel %vm4791, %v4711, 0
        %v4808 = vsel %vm4792, %v4712, 0
        %v4809 = vsel %vm4793, %v4713, 0
        %v4810 = vsel %vm4794, %v4714, 0
        %v4811 = vsel %vm4795, %v4715, 0
        %v4812 = vsel %vm4796, %v4716, 0
        %v4813 = vsel %vm4797, %v4717, 0
        %v4814 = vsel %vm4798, %v4718, 0
        %v4815 = vsel %vm4799, %v4719, 0
        %v4816 = vsel %vm4800, %v4720, 0
        %v4817 = vsel %vm4801, %v4721, 0
        %v4818 = vsel %vm4802, %v4722, 0
        %4819 = vset.pattern.permute.xlu0 4
        %4820 = vperm.xlu0 %4819, %v3679
        %v4821 = vpop.permute.xlu0 %4820
        %4822 = vset.pattern.permute.xlu0 4
        %4823 = vperm.xlu0 %4822, %v3680
        %v4824 = vpop.permute.xlu0 %4823
        %4825 = vset.pattern.permute.xlu0 4
        %4826 = vperm.xlu0 %4825, %v3681
        %v4827 = vpop.permute.xlu0 %4826
        %4828 = vset.pattern.permute.xlu0 4
        %4829 = vperm.xlu0 %4828, %v3682
        %v4830 = vpop.permute.xlu0 %4829
        %4831 = vset.pattern.permute.xlu0 4
        %4832 = vperm.xlu0 %4831, %v3683
        %v4833 = vpop.permute.xlu0 %4832
        %4834 = vset.pattern.permute.xlu0 4
        %4835 = vperm.xlu0 %4834, %v3684
        %v4836 = vpop.permute.xlu0 %4835
        %4837 = vset.pattern.permute.xlu0 4
        %4838 = vperm.xlu0 %4837, %v3685
        %v4839 = vpop.permute.xlu0 %4838
        %4840 = vset.pattern.permute.xlu0 4
        %4841 = vperm.xlu0 %4840, %v3686
        %v4842 = vpop.permute.xlu0 %4841
        %4843 = vset.pattern.permute.xlu0 4
        %4844 = vperm.xlu0 %4843, %v3687
        %v4845 = vpop.permute.xlu0 %4844
        %4846 = vset.pattern.permute.xlu0 4
        %4847 = vperm.xlu0 %4846, %v3688
        %v4848 = vpop.permute.xlu0 %4847
        %4849 = vset.pattern.permute.xlu0 4
        %4850 = vperm.xlu0 %4849, %v3689
        %v4851 = vpop.permute.xlu0 %4850
        %4852 = vset.pattern.permute.xlu0 4
        %4853 = vperm.xlu0 %4852, %v3690
        %v4854 = vpop.permute.xlu0 %4853
        %4855 = vset.pattern.permute.xlu0 4
        %4856 = vperm.xlu0 %4855, %v3691
        %v4857 = vpop.permute.xlu0 %4856
        %4858 = vset.pattern.permute.xlu0 4
        %4859 = vperm.xlu0 %4858, %v3692
        %v4860 = vpop.permute.xlu0 %4859
        %4861 = vset.pattern.permute.xlu0 4
        %4862 = vperm.xlu0 %4861, %v3693
        %v4863 = vpop.permute.xlu0 %4862
        %4864 = vset.pattern.permute.xlu0 4
        %4865 = vperm.xlu0 %4864, %v3694
        %v4866 = vpop.permute.xlu0 %4865
        %vm4867 = vcmp.eq.s32.totalorder %v4821, 1
        %vm4868 = vcmp.eq.s32.totalorder %v4824, 1
        %vm4869 = vcmp.eq.s32.totalorder %v4827, 1
        %vm4870 = vcmp.eq.s32.totalorder %v4830, 1
        %vm4871 = vcmp.eq.s32.totalorder %v4833, 1
        %vm4872 = vcmp.eq.s32.totalorder %v4836, 1
        %vm4873 = vcmp.eq.s32.totalorder %v4839, 1
        %vm4874 = vcmp.eq.s32.totalorder %v4842, 1
        %vm4875 = vcmp.eq.s32.totalorder %v4845, 1
        %vm4876 = vcmp.eq.s32.totalorder %v4848, 1
        %vm4877 = vcmp.eq.s32.totalorder %v4851, 1
        %vm4878 = vcmp.eq.s32.totalorder %v4854, 1
        %vm4879 = vcmp.eq.s32.totalorder %v4857, 1
        %vm4880 = vcmp.eq.s32.totalorder %v4860, 1
        %vm4881 = vcmp.eq.s32.totalorder %v4863, 1
        %vm4882 = vcmp.eq.s32.totalorder %v4866, 1
        %vm4883 = vmpackc.low %vm4867, %vm4867
        %vm4884 = vmpackc.low %vm4868, %vm4868
        %vm4885 = vmpackc.low %vm4869, %vm4869
        %vm4886 = vmpackc.low %vm4870, %vm4870
        %vm4887 = vmpackc.low %vm4871, %vm4871
        %vm4888 = vmpackc.low %vm4872, %vm4872
        %vm4889 = vmpackc.low %vm4873, %vm4873
        %vm4890 = vmpackc.low %vm4874, %vm4874
        %vm4891 = vmpackc.low %vm4875, %vm4875
        %vm4892 = vmpackc.low %vm4876, %vm4876
        %vm4893 = vmpackc.low %vm4877, %vm4877
        %vm4894 = vmpackc.low %vm4878, %vm4878
        %vm4895 = vmpackc.low %vm4879, %vm4879
        %vm4896 = vmpackc.low %vm4880, %vm4880
        %vm4897 = vmpackc.low %vm4881, %vm4881
        %vm4898 = vmpackc.low %vm4882, %vm4882
        %v4899 = vsel %vm4883, %v4707, 0
        %v4900 = vsel %vm4884, %v4708, 0
        %v4901 = vsel %vm4885, %v4709, 0
        %v4902 = vsel %vm4886, %v4710, 0
        %v4903 = vsel %vm4887, %v4711, 0
        %v4904 = vsel %vm4888, %v4712, 0
        %v4905 = vsel %vm4889, %v4713, 0
        %v4906 = vsel %vm4890, %v4714, 0
        %v4907 = vsel %vm4891, %v4715, 0
        %v4908 = vsel %vm4892, %v4716, 0
        %v4909 = vsel %vm4893, %v4717, 0
        %v4910 = vsel %vm4894, %v4718, 0
        %v4911 = vsel %vm4895, %v4719, 0
        %v4912 = vsel %vm4896, %v4720, 0
        %v4913 = vsel %vm4897, %v4721, 0
        %v4914 = vsel %vm4898, %v4722, 0
        %v4931 = vunpack.c.l.b16 %v4803
        %v4932 = vunpack.c.l.b16 %v4804
        %v4933 = vunpack.c.l.b16 %v4805
        %v4934 = vunpack.c.l.b16 %v4806
        %v4935 = vunpack.c.l.b16 %v4807
        %v4936 = vunpack.c.l.b16 %v4808
        %v4937 = vunpack.c.l.b16 %v4809
        %v4938 = vunpack.c.l.b16 %v4810
        %v4939 = vunpack.c.l.b16 %v4811
        %v4940 = vunpack.c.l.b16 %v4812
        %v4941 = vunpack.c.l.b16 %v4813
        %v4942 = vunpack.c.l.b16 %v4814
        %v4943 = vunpack.c.l.b16 %v4815
        %v4944 = vunpack.c.l.b16 %v4816
        %v4945 = vunpack.c.l.b16 %v4817
        %v4946 = vunpack.c.l.b16 %v4818
        %v4947 = vpack.c.b16 %v4932, %v4931
        %v4948 = vpack.c.b16 %v4934, %v4933
        %v4949 = vpack.c.b16 %v4936, %v4935
        %v4950 = vpack.c.b16 %v4938, %v4937
        %v4951 = vpack.c.b16 %v4940, %v4939
        %v4952 = vpack.c.b16 %v4942, %v4941
        %v4953 = vpack.c.b16 %v4944, %v4943
        %v4954 = vpack.c.b16 %v4946, %v4945
        %v4979 = vunpack.c.l.b16 %v4899
        %v4980 = vunpack.c.l.b16 %v4900
        %v4981 = vunpack.c.l.b16 %v4901
        %v4982 = vunpack.c.l.b16 %v4902
        %v4983 = vunpack.c.l.b16 %v4903
        %v4984 = vunpack.c.l.b16 %v4904
        %v4985 = vunpack.c.l.b16 %v4905
        %v4986 = vunpack.c.l.b16 %v4906
        %v4987 = vunpack.c.l.b16 %v4907
        %v4988 = vunpack.c.l.b16 %v4908
        %v4989 = vunpack.c.l.b16 %v4909
        %v4990 = vunpack.c.l.b16 %v4910
        %v4991 = vunpack.c.l.b16 %v4911
        %v4992 = vunpack.c.l.b16 %v4912
        %v4993 = vunpack.c.l.b16 %v4913
        %v4994 = vunpack.c.l.b16 %v4914
        %v4995 = vpack.c.b16 %v4980, %v4979
        %v4996 = vpack.c.b16 %v4982, %v4981
        %v4997 = vpack.c.b16 %v4984, %v4983
        %v4998 = vpack.c.b16 %v4986, %v4985
        %v4999 = vpack.c.b16 %v4988, %v4987
        %v5000 = vpack.c.b16 %v4990, %v4989
        %v5001 = vpack.c.b16 %v4992, %v4991
        %v5002 = vpack.c.b16 %v4994, %v4993
        %5011 = vmatpush.bf16.msra.mxu0 %v4568
        %5012 = vmatpush.bf16.msra.mxu0 %v4567
        %5013 = vmatpush.bf16.msra.mxu0 %v4566
        %5014 = vmatpush.bf16.msra.mxu0 %v4565
        %5015 = vmatpush.bf16.msra.mxu0 %v4564
        %5016 = vmatpush.bf16.msra.mxu0 %v4563
        %5017 = vmatpush.bf16.msra.mxu0 %v4562
        %5018 = vmatpush.bf16.msra.mxu0 %v4561
        %5019 = vmatmul.bf16.gmra.mxu0 %v4947
        %v5020 = vpop.f32.mrf.mxu0
        %v5021 = vadd.f32 0.0, %v5020
        %v5022 = vpop.f32.mrf.mxu0
        %v5023 = vadd.f32 0.0, %v5022
        %5024 = vmatmul.bf16.gmra.mxu0 %v4948
        %v5025 = vpop.f32.mrf.mxu0
        %v5026 = vadd.f32 0.0, %v5025
        %v5027 = vpop.f32.mrf.mxu0
        %v5028 = vadd.f32 0.0, %v5027
        %5029 = vmatmul.bf16.gmra.mxu0 %v4949
        %v5030 = vpop.f32.mrf.mxu0
        %v5031 = vadd.f32 0.0, %v5030
        %v5032 = vpop.f32.mrf.mxu0
        %v5033 = vadd.f32 0.0, %v5032
        %5034 = vmatmul.bf16.gmra.mxu0 %v4950
        %v5035 = vpop.f32.mrf.mxu0
        %v5036 = vadd.f32 0.0, %v5035
        %v5037 = vpop.f32.mrf.mxu0
        %v5038 = vadd.f32 0.0, %v5037
        %5039 = vmatmul.bf16.gmra.mxu0 %v4951
        %v5040 = vpop.f32.mrf.mxu0
        %v5041 = vadd.f32 0.0, %v5040
        %v5042 = vpop.f32.mrf.mxu0
        %v5043 = vadd.f32 0.0, %v5042
        %5044 = vmatmul.bf16.gmra.mxu0 %v4952
        %v5045 = vpop.f32.mrf.mxu0
        %v5046 = vadd.f32 0.0, %v5045
        %v5047 = vpop.f32.mrf.mxu0
        %v5048 = vadd.f32 0.0, %v5047
        %5049 = vmatmul.bf16.gmra.mxu0 %v4953
        %v5050 = vpop.f32.mrf.mxu0
        %v5051 = vadd.f32 0.0, %v5050
        %v5052 = vpop.f32.mrf.mxu0
        %v5053 = vadd.f32 0.0, %v5052
        %5054 = vmatmul.bf16.gmra.mxu0 %v4954
        %v5055 = vpop.f32.mrf.mxu0
        %v5056 = vadd.f32 0.0, %v5055
        %v5057 = vpop.f32.mrf.mxu0
        %v5058 = vadd.f32 0.0, %v5057
        %5059 = vdwg.mxu0
        %5060 = vmatpush.bf16.msra.mxu0 %v4576
        %5061 = vmatpush.bf16.msra.mxu0 %v4575
        %5062 = vmatpush.bf16.msra.mxu0 %v4574
        %5063 = vmatpush.bf16.msra.mxu0 %v4573
        %5064 = vmatpush.bf16.msra.mxu0 %v4572
        %5065 = vmatpush.bf16.msra.mxu0 %v4571
        %5066 = vmatpush.bf16.msra.mxu0 %v4570
        %5067 = vmatpush.bf16.msra.mxu0 %v4569
        %5068 = vmatmul.bf16.gmra.mxu0 %v4995
        %v5069 = vpop.f32.mrf.mxu0
        %v5070 = vadd.f32 %v5021, %v5069
        %v5071 = vpop.f32.mrf.mxu0
        %v5072 = vadd.f32 %v5023, %v5071
        %5073 = vmatmul.bf16.gmra.mxu0 %v4996
        %v5074 = vpop.f32.mrf.mxu0
        %v5075 = vadd.f32 %v5026, %v5074
        %v5076 = vpop.f32.mrf.mxu0
        %v5077 = vadd.f32 %v5028, %v5076
        %5078 = vmatmul.bf16.gmra.mxu0 %v4997
        %v5079 = vpop.f32.mrf.mxu0
        %v5080 = vadd.f32 %v5031, %v5079
        %v5081 = vpop.f32.mrf.mxu0
        %v5082 = vadd.f32 %v5033, %v5081
        %5083 = vmatmul.bf16.gmra.mxu0 %v4998
        %v5084 = vpop.f32.mrf.mxu0
        %v5085 = vadd.f32 %v5036, %v5084
        %v5086 = vpop.f32.mrf.mxu0
        %v5087 = vadd.f32 %v5038, %v5086
        %5088 = vmatmul.bf16.gmra.mxu0 %v4999
        %v5089 = vpop.f32.mrf.mxu0
        %v5090 = vadd.f32 %v5041, %v5089
        %v5091 = vpop.f32.mrf.mxu0
        %v5092 = vadd.f32 %v5043, %v5091
        %5093 = vmatmul.bf16.gmra.mxu0 %v5000
        %v5094 = vpop.f32.mrf.mxu0
        %v5095 = vadd.f32 %v5046, %v5094
        %v5096 = vpop.f32.mrf.mxu0
        %v5097 = vadd.f32 %v5048, %v5096
        %5098 = vmatmul.bf16.gmra.mxu0 %v5001
        %v5099 = vpop.f32.mrf.mxu0
        %v5100 = vadd.f32 %v5051, %v5099
        %v5101 = vpop.f32.mrf.mxu0
        %v5102 = vadd.f32 %v5053, %v5101
        %5103 = vmatmul.bf16.gmra.mxu0 %v5002
        %v5104 = vpop.f32.mrf.mxu0
        %v5105 = vadd.f32 %v5056, %v5104
        %v5106 = vpop.f32.mrf.mxu0
        %v5107 = vadd.f32 %v5058, %v5106
        %5108 = vdwg.mxu0
        %v5109 = vadd.f32 %v4652, %v5070
        %v5110 = vadd.f32 %v4654, %v5072
        %v5111 = vadd.f32 %v4657, %v5075
        %v5112 = vadd.f32 %v4659, %v5077
        %v5113 = vadd.f32 %v4662, %v5080
        %v5114 = vadd.f32 %v4664, %v5082
        %v5115 = vadd.f32 %v4667, %v5085
        %v5116 = vadd.f32 %v4669, %v5087
        %v5117 = vadd.f32 %v4672, %v5090
        %v5118 = vadd.f32 %v4674, %v5092
        %v5119 = vadd.f32 %v4677, %v5095
        %v5120 = vadd.f32 %v4679, %v5097
        %v5121 = vadd.f32 %v4682, %v5100
        %v5122 = vadd.f32 %v4684, %v5102
        %v5123 = vadd.f32 %v4687, %v5105
        %v5124 = vadd.f32 %v4689, %v5107
        %5125 = vset.pattern.permute.xlu0 4
        %5126 = vperm.xlu0 %5125, %v3935
        %v5127 = vpop.permute.xlu0 %5126
        %5128 = vset.pattern.permute.xlu0 4
        %5129 = vperm.xlu0 %5128, %v3936
        %v5130 = vpop.permute.xlu0 %5129
        %5131 = vset.pattern.permute.xlu0 4
        %5132 = vperm.xlu0 %5131, %v3937
        %v5133 = vpop.permute.xlu0 %5132
        %5134 = vset.pattern.permute.xlu0 4
        %5135 = vperm.xlu0 %5134, %v3938
        %v5136 = vpop.permute.xlu0 %5135
        %5137 = vset.pattern.permute.xlu0 4
        %5138 = vperm.xlu0 %5137, %v3939
        %v5139 = vpop.permute.xlu0 %5138
        %5140 = vset.pattern.permute.xlu0 4
        %5141 = vperm.xlu0 %5140, %v3940
        %v5142 = vpop.permute.xlu0 %5141
        %5143 = vset.pattern.permute.xlu0 4
        %5144 = vperm.xlu0 %5143, %v3941
        %v5145 = vpop.permute.xlu0 %5144
        %5146 = vset.pattern.permute.xlu0 4
        %5147 = vperm.xlu0 %5146, %v3942
        %v5148 = vpop.permute.xlu0 %5147
        %5149 = vset.pattern.permute.xlu0 4
        %5150 = vperm.xlu0 %5149, %v3943
        %v5151 = vpop.permute.xlu0 %5150
        %5152 = vset.pattern.permute.xlu0 4
        %5153 = vperm.xlu0 %5152, %v3944
        %v5154 = vpop.permute.xlu0 %5153
        %5155 = vset.pattern.permute.xlu0 4
        %5156 = vperm.xlu0 %5155, %v3945
        %v5157 = vpop.permute.xlu0 %5156
        %5158 = vset.pattern.permute.xlu0 4
        %5159 = vperm.xlu0 %5158, %v3946
        %v5160 = vpop.permute.xlu0 %5159
        %5161 = vset.pattern.permute.xlu0 4
        %5162 = vperm.xlu0 %5161, %v3947
        %v5163 = vpop.permute.xlu0 %5162
        %5164 = vset.pattern.permute.xlu0 4
        %5165 = vperm.xlu0 %5164, %v3948
        %v5166 = vpop.permute.xlu0 %5165
        %5167 = vset.pattern.permute.xlu0 4
        %5168 = vperm.xlu0 %5167, %v3949
        %v5169 = vpop.permute.xlu0 %5168
        %5170 = vset.pattern.permute.xlu0 4
        %5171 = vperm.xlu0 %5170, %v3950
        %v5172 = vpop.permute.xlu0 %5171
        %vm5173 = vcmp.eq.s32.totalorder %v5127, 1
        %vm5174 = vcmp.eq.s32.totalorder %v5130, 1
        %vm5175 = vcmp.eq.s32.totalorder %v5133, 1
        %vm5176 = vcmp.eq.s32.totalorder %v5136, 1
        %vm5177 = vcmp.eq.s32.totalorder %v5139, 1
        %vm5178 = vcmp.eq.s32.totalorder %v5142, 1
        %vm5179 = vcmp.eq.s32.totalorder %v5145, 1
        %vm5180 = vcmp.eq.s32.totalorder %v5148, 1
        %vm5181 = vcmp.eq.s32.totalorder %v5151, 1
        %vm5182 = vcmp.eq.s32.totalorder %v5154, 1
        %vm5183 = vcmp.eq.s32.totalorder %v5157, 1
        %vm5184 = vcmp.eq.s32.totalorder %v5160, 1
        %vm5185 = vcmp.eq.s32.totalorder %v5163, 1
        %vm5186 = vcmp.eq.s32.totalorder %v5166, 1
        %vm5187 = vcmp.eq.s32.totalorder %v5169, 1
        %vm5188 = vcmp.eq.s32.totalorder %v5172, 1
        %vm5189 = vmpackc.low %vm5173, %vm5173
        %vm5190 = vmpackc.low %vm5174, %vm5174
        %vm5191 = vmpackc.low %vm5175, %vm5175
        %vm5192 = vmpackc.low %vm5176, %vm5176
        %vm5193 = vmpackc.low %vm5177, %vm5177
        %vm5194 = vmpackc.low %vm5178, %vm5178
        %vm5195 = vmpackc.low %vm5179, %vm5179
        %vm5196 = vmpackc.low %vm5180, %vm5180
        %vm5197 = vmpackc.low %vm5181, %vm5181
        %vm5198 = vmpackc.low %vm5182, %vm5182
        %vm5199 = vmpackc.low %vm5183, %vm5183
        %vm5200 = vmpackc.low %vm5184, %vm5184
        %vm5201 = vmpackc.low %vm5185, %vm5185
        %vm5202 = vmpackc.low %vm5186, %vm5186
        %vm5203 = vmpackc.low %vm5187, %vm5187
        %vm5204 = vmpackc.low %vm5188, %vm5188
        %v5205 = vsel %vm5189, %v4707, 0
        %v5206 = vsel %vm5190, %v4708, 0
        %v5207 = vsel %vm5191, %v4709, 0
        %v5208 = vsel %vm5192, %v4710, 0
        %v5209 = vsel %vm5193, %v4711, 0
        %v5210 = vsel %vm5194, %v4712, 0
        %v5211 = vsel %vm5195, %v4713, 0
        %v5212 = vsel %vm5196, %v4714, 0
        %v5213 = vsel %vm5197, %v4715, 0
        %v5214 = vsel %vm5198, %v4716, 0
        %v5215 = vsel %vm5199, %v4717, 0
        %v5216 = vsel %vm5200, %v4718, 0
        %v5217 = vsel %vm5201, %v4719, 0
        %v5218 = vsel %vm5202, %v4720, 0
        %v5219 = vsel %vm5203, %v4721, 0
        %v5220 = vsel %vm5204, %v4722, 0
        %5221 = vset.pattern.permute.xlu0 4
        %5222 = vperm.xlu0 %5221, %v4063
        %v5223 = vpop.permute.xlu0 %5222
        %5224 = vset.pattern.permute.xlu0 4
        %5225 = vperm.xlu0 %5224, %v4064
        %v5226 = vpop.permute.xlu0 %5225
        %5227 = vset.pattern.permute.xlu0 4
        %5228 = vperm.xlu0 %5227, %v4065
        %v5229 = vpop.permute.xlu0 %5228
        %5230 = vset.pattern.permute.xlu0 4
        %5231 = vperm.xlu0 %5230, %v4066
        %v5232 = vpop.permute.xlu0 %5231
        %5233 = vset.pattern.permute.xlu0 4
        %5234 = vperm.xlu0 %5233, %v4067
        %v5235 = vpop.permute.xlu0 %5234
        %5236 = vset.pattern.permute.xlu0 4
        %5237 = vperm.xlu0 %5236, %v4068
        %v5238 = vpop.permute.xlu0 %5237
        %5239 = vset.pattern.permute.xlu0 4
        %5240 = vperm.xlu0 %5239, %v4069
        %v5241 = vpop.permute.xlu0 %5240
        %5242 = vset.pattern.permute.xlu0 4
        %5243 = vperm.xlu0 %5242, %v4070
        %v5244 = vpop.permute.xlu0 %5243
        %5245 = vset.pattern.permute.xlu0 4
        %5246 = vperm.xlu0 %5245, %v4071
        %v5247 = vpop.permute.xlu0 %5246
        %5248 = vset.pattern.permute.xlu0 4
        %5249 = vperm.xlu0 %5248, %v4072
        %v5250 = vpop.permute.xlu0 %5249
        %5251 = vset.pattern.permute.xlu0 4
        %5252 = vperm.xlu0 %5251, %v4073
        %v5253 = vpop.permute.xlu0 %5252
        %5254 = vset.pattern.permute.xlu0 4
        %5255 = vperm.xlu0 %5254, %v4074
        %v5256 = vpop.permute.xlu0 %5255
        %5257 = vset.pattern.permute.xlu0 4
        %5258 = vperm.xlu0 %5257, %v4075
        %v5259 = vpop.permute.xlu0 %5258
        %5260 = vset.pattern.permute.xlu0 4
        %5261 = vperm.xlu0 %5260, %v4076
        %v5262 = vpop.permute.xlu0 %5261
        %5263 = vset.pattern.permute.xlu0 4
        %5264 = vperm.xlu0 %5263, %v4077
        %v5265 = vpop.permute.xlu0 %5264
        %5266 = vset.pattern.permute.xlu0 4
        %5267 = vperm.xlu0 %5266, %v4078
        %v5268 = vpop.permute.xlu0 %5267
        %vm5269 = vcmp.eq.s32.totalorder %v5223, 1
        %vm5270 = vcmp.eq.s32.totalorder %v5226, 1
        %vm5271 = vcmp.eq.s32.totalorder %v5229, 1
        %vm5272 = vcmp.eq.s32.totalorder %v5232, 1
        %vm5273 = vcmp.eq.s32.totalorder %v5235, 1
        %vm5274 = vcmp.eq.s32.totalorder %v5238, 1
        %vm5275 = vcmp.eq.s32.totalorder %v5241, 1
        %vm5276 = vcmp.eq.s32.totalorder %v5244, 1
        %vm5277 = vcmp.eq.s32.totalorder %v5247, 1
        %vm5278 = vcmp.eq.s32.totalorder %v5250, 1
        %vm5279 = vcmp.eq.s32.totalorder %v5253, 1
        %vm5280 = vcmp.eq.s32.totalorder %v5256, 1
        %vm5281 = vcmp.eq.s32.totalorder %v5259, 1
        %vm5282 = vcmp.eq.s32.totalorder %v5262, 1
        %vm5283 = vcmp.eq.s32.totalorder %v5265, 1
        %vm5284 = vcmp.eq.s32.totalorder %v5268, 1
        %vm5285 = vmpackc.low %vm5269, %vm5269
        %vm5286 = vmpackc.low %vm5270, %vm5270
        %vm5287 = vmpackc.low %vm5271, %vm5271
        %vm5288 = vmpackc.low %vm5272, %vm5272
        %vm5289 = vmpackc.low %vm5273, %vm5273
        %vm5290 = vmpackc.low %vm5274, %vm5274
        %vm5291 = vmpackc.low %vm5275, %vm5275
        %vm5292 = vmpackc.low %vm5276, %vm5276
        %vm5293 = vmpackc.low %vm5277, %vm5277
        %vm5294 = vmpackc.low %vm5278, %vm5278
        %vm5295 = vmpackc.low %vm5279, %vm5279
        %vm5296 = vmpackc.low %vm5280, %vm5280
        %vm5297 = vmpackc.low %vm5281, %vm5281
        %vm5298 = vmpackc.low %vm5282, %vm5282
        %vm5299 = vmpackc.low %vm5283, %vm5283
        %vm5300 = vmpackc.low %vm5284, %vm5284
        %v5301 = vsel %vm5285, %v4707, 0
        %v5302 = vsel %vm5286, %v4708, 0
        %v5303 = vsel %vm5287, %v4709, 0
        %v5304 = vsel %vm5288, %v4710, 0
        %v5305 = vsel %vm5289, %v4711, 0
        %v5306 = vsel %vm5290, %v4712, 0
        %v5307 = vsel %vm5291, %v4713, 0
        %v5308 = vsel %vm5292, %v4714, 0
        %v5309 = vsel %vm5293, %v4715, 0
        %v5310 = vsel %vm5294, %v4716, 0
        %v5311 = vsel %vm5295, %v4717, 0
        %v5312 = vsel %vm5296, %v4718, 0
        %v5313 = vsel %vm5297, %v4719, 0
        %v5314 = vsel %vm5298, %v4720, 0
        %v5315 = vsel %vm5299, %v4721, 0
        %v5316 = vsel %vm5300, %v4722, 0
        %v5333 = vunpack.c.l.b16 %v5205
        %v5334 = vunpack.c.l.b16 %v5206
        %v5335 = vunpack.c.l.b16 %v5207
        %v5336 = vunpack.c.l.b16 %v5208
        %v5337 = vunpack.c.l.b16 %v5209
        %v5338 = vunpack.c.l.b16 %v5210
        %v5339 = vunpack.c.l.b16 %v5211
        %v5340 = vunpack.c.l.b16 %v5212
        %v5341 = vunpack.c.l.b16 %v5213
        %v5342 = vunpack.c.l.b16 %v5214
        %v5343 = vunpack.c.l.b16 %v5215
        %v5344 = vunpack.c.l.b16 %v5216
        %v5345 = vunpack.c.l.b16 %v5217
        %v5346 = vunpack.c.l.b16 %v5218
        %v5347 = vunpack.c.l.b16 %v5219
        %v5348 = vunpack.c.l.b16 %v5220
        %v5349 = vpack.c.b16 %v5334, %v5333
        %v5350 = vpack.c.b16 %v5336, %v5335
        %v5351 = vpack.c.b16 %v5338, %v5337
        %v5352 = vpack.c.b16 %v5340, %v5339
        %v5353 = vpack.c.b16 %v5342, %v5341
        %v5354 = vpack.c.b16 %v5344, %v5343
        %v5355 = vpack.c.b16 %v5346, %v5345
        %v5356 = vpack.c.b16 %v5348, %v5347
        %v5381 = vunpack.c.l.b16 %v5301
        %v5382 = vunpack.c.l.b16 %v5302
        %v5383 = vunpack.c.l.b16 %v5303
        %v5384 = vunpack.c.l.b16 %v5304
        %v5385 = vunpack.c.l.b16 %v5305
        %v5386 = vunpack.c.l.b16 %v5306
        %v5387 = vunpack.c.l.b16 %v5307
        %v5388 = vunpack.c.l.b16 %v5308
        %v5389 = vunpack.c.l.b16 %v5309
        %v5390 = vunpack.c.l.b16 %v5310
        %v5391 = vunpack.c.l.b16 %v5311
        %v5392 = vunpack.c.l.b16 %v5312
        %v5393 = vunpack.c.l.b16 %v5313
        %v5394 = vunpack.c.l.b16 %v5314
        %v5395 = vunpack.c.l.b16 %v5315
        %v5396 = vunpack.c.l.b16 %v5316
        %v5397 = vpack.c.b16 %v5382, %v5381
        %v5398 = vpack.c.b16 %v5384, %v5383
        %v5399 = vpack.c.b16 %v5386, %v5385
        %v5400 = vpack.c.b16 %v5388, %v5387
        %v5401 = vpack.c.b16 %v5390, %v5389
        %v5402 = vpack.c.b16 %v5392, %v5391
        %v5403 = vpack.c.b16 %v5394, %v5393
        %v5404 = vpack.c.b16 %v5396, %v5395
        %5413 = vmatpush.bf16.msra.mxu0 %v4374
        %5414 = vmatpush.bf16.msra.mxu0 %v4373
        %5415 = vmatpush.bf16.msra.mxu0 %v4372
        %5416 = vmatpush.bf16.msra.mxu0 %v4371
        %5417 = vmatpush.bf16.msra.mxu0 %v4370
        %5418 = vmatpush.bf16.msra.mxu0 %v4369
        %5419 = vmatpush.bf16.msra.mxu0 %v4368
        %5420 = vmatpush.bf16.msra.mxu0 %v4367
        %5421 = vmatmul.bf16.gmra.mxu0 %v5349
        %v5422 = vpop.f32.mrf.mxu0
        %v5423 = vadd.f32 0.0, %v5422
        %v5424 = vpop.f32.mrf.mxu0
        %v5425 = vadd.f32 0.0, %v5424
        %5426 = vmatmul.bf16.gmra.mxu0 %v5350
        %v5427 = vpop.f32.mrf.mxu0
        %v5428 = vadd.f32 0.0, %v5427
        %v5429 = vpop.f32.mrf.mxu0
        %v5430 = vadd.f32 0.0, %v5429
        %5431 = vmatmul.bf16.gmra.mxu0 %v5351
        %v5432 = vpop.f32.mrf.mxu0
        %v5433 = vadd.f32 0.0, %v5432
        %v5434 = vpop.f32.mrf.mxu0
        %v5435 = vadd.f32 0.0, %v5434
        %5436 = vmatmul.bf16.gmra.mxu0 %v5352
        %v5437 = vpop.f32.mrf.mxu0
        %v5438 = vadd.f32 0.0, %v5437
        %v5439 = vpop.f32.mrf.mxu0
        %v5440 = vadd.f32 0.0, %v5439
        %5441 = vmatmul.bf16.gmra.mxu0 %v5353
        %v5442 = vpop.f32.mrf.mxu0
        %v5443 = vadd.f32 0.0, %v5442
        %v5444 = vpop.f32.mrf.mxu0
        %v5445 = vadd.f32 0.0, %v5444
        %5446 = vmatmul.bf16.gmra.mxu0 %v5354
        %v5447 = vpop.f32.mrf.mxu0
        %v5448 = vadd.f32 0.0, %v5447
        %v5449 = vpop.f32.mrf.mxu0
        %v5450 = vadd.f32 0.0, %v5449
        %5451 = vmatmul.bf16.gmra.mxu0 %v5355
        %v5452 = vpop.f32.mrf.mxu0
        %v5453 = vadd.f32 0.0, %v5452
        %v5454 = vpop.f32.mrf.mxu0
        %v5455 = vadd.f32 0.0, %v5454
        %5456 = vmatmul.bf16.gmra.mxu0 %v5356
        %v5457 = vpop.f32.mrf.mxu0
        %v5458 = vadd.f32 0.0, %v5457
        %v5459 = vpop.f32.mrf.mxu0
        %v5460 = vadd.f32 0.0, %v5459
        %5461 = vdwg.mxu0
        %5462 = vmatpush.bf16.msra.mxu0 %v4382
        %5463 = vmatpush.bf16.msra.mxu0 %v4381
        %5464 = vmatpush.bf16.msra.mxu0 %v4380
        %5465 = vmatpush.bf16.msra.mxu0 %v4379
        %5466 = vmatpush.bf16.msra.mxu0 %v4378
        %5467 = vmatpush.bf16.msra.mxu0 %v4377
        %5468 = vmatpush.bf16.msra.mxu0 %v4376
        %5469 = vmatpush.bf16.msra.mxu0 %v4375
        %5470 = vmatmul.bf16.gmra.mxu0 %v5397
        %v5471 = vpop.f32.mrf.mxu0
        %v5472 = vadd.f32 %v5423, %v5471
        %v5473 = vpop.f32.mrf.mxu0
        %v5474 = vadd.f32 %v5425, %v5473
        %5475 = vmatmul.bf16.gmra.mxu0 %v5398
        %v5476 = vpop.f32.mrf.mxu0
        %v5477 = vadd.f32 %v5428, %v5476
        %v5478 = vpop.f32.mrf.mxu0
        %v5479 = vadd.f32 %v5430, %v5478
        %5480 = vmatmul.bf16.gmra.mxu0 %v5399
        %v5481 = vpop.f32.mrf.mxu0
        %v5482 = vadd.f32 %v5433, %v5481
        %v5483 = vpop.f32.mrf.mxu0
        %v5484 = vadd.f32 %v5435, %v5483
        %5485 = vmatmul.bf16.gmra.mxu0 %v5400
        %v5486 = vpop.f32.mrf.mxu0
        %v5487 = vadd.f32 %v5438, %v5486
        %v5488 = vpop.f32.mrf.mxu0
        %v5489 = vadd.f32 %v5440, %v5488
        %5490 = vmatmul.bf16.gmra.mxu0 %v5401
        %v5491 = vpop.f32.mrf.mxu0
        %v5492 = vadd.f32 %v5443, %v5491
        %v5493 = vpop.f32.mrf.mxu0
        %v5494 = vadd.f32 %v5445, %v5493
        %5495 = vmatmul.bf16.gmra.mxu0 %v5402
        %v5496 = vpop.f32.mrf.mxu0
        %v5497 = vadd.f32 %v5448, %v5496
        %v5498 = vpop.f32.mrf.mxu0
        %v5499 = vadd.f32 %v5450, %v5498
        %5500 = vmatmul.bf16.gmra.mxu0 %v5403
        %v5501 = vpop.f32.mrf.mxu0
        %v5502 = vadd.f32 %v5453, %v5501
        %v5503 = vpop.f32.mrf.mxu0
        %v5504 = vadd.f32 %v5455, %v5503
        %5505 = vmatmul.bf16.gmra.mxu0 %v5404
        %v5506 = vpop.f32.mrf.mxu0
        %v5507 = vadd.f32 %v5458, %v5506
        %v5508 = vpop.f32.mrf.mxu0
        %v5509 = vadd.f32 %v5460, %v5508
        %5510 = vdwg.mxu0
        %v5511 = vadd.f32 %v5109, %v5472
        %v5512 = vadd.f32 %v5110, %v5474
        %v5513 = vadd.f32 %v5111, %v5477
        %v5514 = vadd.f32 %v5112, %v5479
        %v5515 = vadd.f32 %v5113, %v5482
        %v5516 = vadd.f32 %v5114, %v5484
        %v5517 = vadd.f32 %v5115, %v5487
        %v5518 = vadd.f32 %v5116, %v5489
        %v5519 = vadd.f32 %v5117, %v5492
        %v5520 = vadd.f32 %v5118, %v5494
        %v5521 = vadd.f32 %v5119, %v5497
        %v5522 = vadd.f32 %v5120, %v5499
        %v5523 = vadd.f32 %v5121, %v5502
        %v5524 = vadd.f32 %v5122, %v5504
        %v5525 = vadd.f32 %v5123, %v5507
        %v5526 = vadd.f32 %v5124, %v5509
        %v5527 = vld [vmem:[%s3470] sm:$0xff]
        %v5528 = vld [vmem:[%s3470 + $0x8] sm:$0xff]
        %v5529 = vld [vmem:[%s3470 + $0x10] sm:$0xff]
        %v5530 = vld [vmem:[%s3470 + $0x18] sm:$0xff]
        %v5531 = vld [vmem:[%s3470 + $0x20] sm:$0xff]
        %v5532 = vld [vmem:[%s3470 + $0x28] sm:$0xff]
        %v5533 = vld [vmem:[%s3470 + $0x30] sm:$0xff]
        %v5534 = vld [vmem:[%s3470 + $0x38] sm:$0xff]
        %v5535 = vld [vmem:[%s3470 + $0x40] sm:$0xff]
        %v5536 = vld [vmem:[%s3470 + $0x48] sm:$0xff]
        %v5537 = vld [vmem:[%s3470 + $0x50] sm:$0xff]
        %v5538 = vld [vmem:[%s3470 + $0x58] sm:$0xff]
        %v5539 = vld [vmem:[%s3470 + $0x60] sm:$0xff]
        %v5540 = vld [vmem:[%s3470 + $0x68] sm:$0xff]
        %v5541 = vld [vmem:[%s3470 + $0x70] sm:$0xff]
        %v5542 = vld [vmem:[%s3470 + $0x78] sm:$0xff]
        %v5543 = vpack.c.bf16 %v5527, %v5527
        %v5544 = vpack.c.bf16 %v5528, %v5528
        %v5545 = vpack.c.bf16 %v5529, %v5529
        %v5546 = vpack.c.bf16 %v5530, %v5530
        %v5547 = vpack.c.bf16 %v5531, %v5531
        %v5548 = vpack.c.bf16 %v5532, %v5532
        %v5549 = vpack.c.bf16 %v5533, %v5533
        %v5550 = vpack.c.bf16 %v5534, %v5534
        %v5551 = vpack.c.bf16 %v5535, %v5535
        %v5552 = vpack.c.bf16 %v5536, %v5536
        %v5553 = vpack.c.bf16 %v5537, %v5537
        %v5554 = vpack.c.bf16 %v5538, %v5538
        %v5555 = vpack.c.bf16 %v5539, %v5539
        %v5556 = vpack.c.bf16 %v5540, %v5540
        %v5557 = vpack.c.bf16 %v5541, %v5541
        %v5558 = vpack.c.bf16 %v5542, %v5542
        %5559 = vset.pattern.permute.xlu0 5
        %5560 = vperm.xlu0 %5559, %v3551
        %v5561 = vpop.permute.xlu0 %5560
        %5562 = vset.pattern.permute.xlu0 5
        %5563 = vperm.xlu0 %5562, %v3552
        %v5564 = vpop.permute.xlu0 %5563
        %5565 = vset.pattern.permute.xlu0 5
        %5566 = vperm.xlu0 %5565, %v3553
        %v5567 = vpop.permute.xlu0 %5566
        %5568 = vset.pattern.permute.xlu0 5
        %5569 = vperm.xlu0 %5568, %v3554
        %v5570 = vpop.permute.xlu0 %5569
        %5571 = vset.pattern.permute.xlu0 5
        %5572 = vperm.xlu0 %5571, %v3555
        %v5573 = vpop.permute.xlu0 %5572
        %5574 = vset.pattern.permute.xlu0 5
        %5575 = vperm.xlu0 %5574, %v3556
        %v5576 = vpop.permute.xlu0 %5575
        %5577 = vset.pattern.permute.xlu0 5
        %5578 = vperm.xlu0 %5577, %v3557
        %v5579 = vpop.permute.xlu0 %5578
        %5580 = vset.pattern.permute.xlu0 5
        %5581 = vperm.xlu0 %5580, %v3558
        %v5582 = vpop.permute.xlu0 %5581
        %5583 = vset.pattern.permute.xlu0 5
        %5584 = vperm.xlu0 %5583, %v3559
        %v5585 = vpop.permute.xlu0 %5584
        %5586 = vset.pattern.permute.xlu0 5
        %5587 = vperm.xlu0 %5586, %v3560
        %v5588 = vpop.permute.xlu0 %5587
        %5589 = vset.pattern.permute.xlu0 5
        %5590 = vperm.xlu0 %5589, %v3561
        %v5591 = vpop.permute.xlu0 %5590
        %5592 = vset.pattern.permute.xlu0 5
        %5593 = vperm.xlu0 %5592, %v3562
        %v5594 = vpop.permute.xlu0 %5593
        %5595 = vset.pattern.permute.xlu0 5
        %5596 = vperm.xlu0 %5595, %v3563
        %v5597 = vpop.permute.xlu0 %5596
        %5598 = vset.pattern.permute.xlu0 5
        %5599 = vperm.xlu0 %5598, %v3564
        %v5600 = vpop.permute.xlu0 %5599
        %5601 = vset.pattern.permute.xlu0 5
        %5602 = vperm.xlu0 %5601, %v3565
        %v5603 = vpop.permute.xlu0 %5602
        %5604 = vset.pattern.permute.xlu0 5
        %5605 = vperm.xlu0 %5604, %v3566
        %v5606 = vpop.permute.xlu0 %5605
        %vm5607 = vcmp.eq.s32.totalorder %v5561, 1
        %vm5608 = vcmp.eq.s32.totalorder %v5564, 1
        %vm5609 = vcmp.eq.s32.totalorder %v5567, 1
        %vm5610 = vcmp.eq.s32.totalorder %v5570, 1
        %vm5611 = vcmp.eq.s32.totalorder %v5573, 1
        %vm5612 = vcmp.eq.s32.totalorder %v5576, 1
        %vm5613 = vcmp.eq.s32.totalorder %v5579, 1
        %vm5614 = vcmp.eq.s32.totalorder %v5582, 1
        %vm5615 = vcmp.eq.s32.totalorder %v5585, 1
        %vm5616 = vcmp.eq.s32.totalorder %v5588, 1
        %vm5617 = vcmp.eq.s32.totalorder %v5591, 1
        %vm5618 = vcmp.eq.s32.totalorder %v5594, 1
        %vm5619 = vcmp.eq.s32.totalorder %v5597, 1
        %vm5620 = vcmp.eq.s32.totalorder %v5600, 1
        %vm5621 = vcmp.eq.s32.totalorder %v5603, 1
        %vm5622 = vcmp.eq.s32.totalorder %v5606, 1
        %vm5623 = vmpackc.low %vm5607, %vm5607
        %vm5624 = vmpackc.low %vm5608, %vm5608
        %vm5625 = vmpackc.low %vm5609, %vm5609
        %vm5626 = vmpackc.low %vm5610, %vm5610
        %vm5627 = vmpackc.low %vm5611, %vm5611
        %vm5628 = vmpackc.low %vm5612, %vm5612
        %vm5629 = vmpackc.low %vm5613, %vm5613
        %vm5630 = vmpackc.low %vm5614, %vm5614
        %vm5631 = vmpackc.low %vm5615, %vm5615
        %vm5632 = vmpackc.low %vm5616, %vm5616
        %vm5633 = vmpackc.low %vm5617, %vm5617
        %vm5634 = vmpackc.low %vm5618, %vm5618
        %vm5635 = vmpackc.low %vm5619, %vm5619
        %vm5636 = vmpackc.low %vm5620, %vm5620
        %vm5637 = vmpackc.low %vm5621, %vm5621
        %vm5638 = vmpackc.low %vm5622, %vm5622
        %v5639 = vsel %vm5623, %v5543, 0
        %v5640 = vsel %vm5624, %v5544, 0
        %v5641 = vsel %vm5625, %v5545, 0
        %v5642 = vsel %vm5626, %v5546, 0
        %v5643 = vsel %vm5627, %v5547, 0
        %v5644 = vsel %vm5628, %v5548, 0
        %v5645 = vsel %vm5629, %v5549, 0
        %v5646 = vsel %vm5630, %v5550, 0
        %v5647 = vsel %vm5631, %v5551, 0
        %v5648 = vsel %vm5632, %v5552, 0
        %v5649 = vsel %vm5633, %v5553, 0
        %v5650 = vsel %vm5634, %v5554, 0
        %v5651 = vsel %vm5635, %v5555, 0
        %v5652 = vsel %vm5636, %v5556, 0
        %v5653 = vsel %vm5637, %v5557, 0
        %v5654 = vsel %vm5638, %v5558, 0
        %5655 = vset.pattern.permute.xlu0 5
        %5656 = vperm.xlu0 %5655, %v3679
        %v5657 = vpop.permute.xlu0 %5656
        %5658 = vset.pattern.permute.xlu0 5
        %5659 = vperm.xlu0 %5658, %v3680
        %v5660 = vpop.permute.xlu0 %5659
        %5661 = vset.pattern.permute.xlu0 5
        %5662 = vperm.xlu0 %5661, %v3681
        %v5663 = vpop.permute.xlu0 %5662
        %5664 = vset.pattern.permute.xlu0 5
        %5665 = vperm.xlu0 %5664, %v3682
        %v5666 = vpop.permute.xlu0 %5665
        %5667 = vset.pattern.permute.xlu0 5
        %5668 = vperm.xlu0 %5667, %v3683
        %v5669 = vpop.permute.xlu0 %5668
        %5670 = vset.pattern.permute.xlu0 5
        %5671 = vperm.xlu0 %5670, %v3684
        %v5672 = vpop.permute.xlu0 %5671
        %5673 = vset.pattern.permute.xlu0 5
        %5674 = vperm.xlu0 %5673, %v3685
        %v5675 = vpop.permute.xlu0 %5674
        %5676 = vset.pattern.permute.xlu0 5
        %5677 = vperm.xlu0 %5676, %v3686
        %v5678 = vpop.permute.xlu0 %5677
        %5679 = vset.pattern.permute.xlu0 5
        %5680 = vperm.xlu0 %5679, %v3687
        %v5681 = vpop.permute.xlu0 %5680
        %5682 = vset.pattern.permute.xlu0 5
        %5683 = vperm.xlu0 %5682, %v3688
        %v5684 = vpop.permute.xlu0 %5683
        %5685 = vset.pattern.permute.xlu0 5
        %5686 = vperm.xlu0 %5685, %v3689
        %v5687 = vpop.permute.xlu0 %5686
        %5688 = vset.pattern.permute.xlu0 5
        %5689 = vperm.xlu0 %5688, %v3690
        %v5690 = vpop.permute.xlu0 %5689
        %5691 = vset.pattern.permute.xlu0 5
        %5692 = vperm.xlu0 %5691, %v3691
        %v5693 = vpop.permute.xlu0 %5692
        %5694 = vset.pattern.permute.xlu0 5
        %5695 = vperm.xlu0 %5694, %v3692
        %v5696 = vpop.permute.xlu0 %5695
        %5697 = vset.pattern.permute.xlu0 5
        %5698 = vperm.xlu0 %5697, %v3693
        %v5699 = vpop.permute.xlu0 %5698
        %5700 = vset.pattern.permute.xlu0 5
        %5701 = vperm.xlu0 %5700, %v3694
        %v5702 = vpop.permute.xlu0 %5701
        %vm5703 = vcmp.eq.s32.totalorder %v5657, 1
        %vm5704 = vcmp.eq.s32.totalorder %v5660, 1
        %vm5705 = vcmp.eq.s32.totalorder %v5663, 1
        %vm5706 = vcmp.eq.s32.totalorder %v5666, 1
        %vm5707 = vcmp.eq.s32.totalorder %v5669, 1
        %vm5708 = vcmp.eq.s32.totalorder %v5672, 1
        %vm5709 = vcmp.eq.s32.totalorder %v5675, 1
        %vm5710 = vcmp.eq.s32.totalorder %v5678, 1
        %vm5711 = vcmp.eq.s32.totalorder %v5681, 1
        %vm5712 = vcmp.eq.s32.totalorder %v5684, 1
        %vm5713 = vcmp.eq.s32.totalorder %v5687, 1
        %vm5714 = vcmp.eq.s32.totalorder %v5690, 1
        %vm5715 = vcmp.eq.s32.totalorder %v5693, 1
        %vm5716 = vcmp.eq.s32.totalorder %v5696, 1
        %vm5717 = vcmp.eq.s32.totalorder %v5699, 1
        %vm5718 = vcmp.eq.s32.totalorder %v5702, 1
        %vm5719 = vmpackc.low %vm5703, %vm5703
        %vm5720 = vmpackc.low %vm5704, %vm5704
        %vm5721 = vmpackc.low %vm5705, %vm5705
        %vm5722 = vmpackc.low %vm5706, %vm5706
        %vm5723 = vmpackc.low %vm5707, %vm5707
        %vm5724 = vmpackc.low %vm5708, %vm5708
        %vm5725 = vmpackc.low %vm5709, %vm5709
        %vm5726 = vmpackc.low %vm5710, %vm5710
        %vm5727 = vmpackc.low %vm5711, %vm5711
        %vm5728 = vmpackc.low %vm5712, %vm5712
        %vm5729 = vmpackc.low %vm5713, %vm5713
        %vm5730 = vmpackc.low %vm5714, %vm5714
        %vm5731 = vmpackc.low %vm5715, %vm5715
        %vm5732 = vmpackc.low %vm5716, %vm5716
        %vm5733 = vmpackc.low %vm5717, %vm5717
        %vm5734 = vmpackc.low %vm5718, %vm5718
        %v5735 = vsel %vm5719, %v5543, 0
        %v5736 = vsel %vm5720, %v5544, 0
        %v5737 = vsel %vm5721, %v5545, 0
        %v5738 = vsel %vm5722, %v5546, 0
        %v5739 = vsel %vm5723, %v5547, 0
        %v5740 = vsel %vm5724, %v5548, 0
        %v5741 = vsel %vm5725, %v5549, 0
        %v5742 = vsel %vm5726, %v5550, 0
        %v5743 = vsel %vm5727, %v5551, 0
        %v5744 = vsel %vm5728, %v5552, 0
        %v5745 = vsel %vm5729, %v5553, 0
        %v5746 = vsel %vm5730, %v5554, 0
        %v5747 = vsel %vm5731, %v5555, 0
        %v5748 = vsel %vm5732, %v5556, 0
        %v5749 = vsel %vm5733, %v5557, 0
        %v5750 = vsel %vm5734, %v5558, 0
        %v5767 = vunpack.c.l.b16 %v5639
        %v5768 = vunpack.c.l.b16 %v5640
        %v5769 = vunpack.c.l.b16 %v5641
        %v5770 = vunpack.c.l.b16 %v5642
        %v5771 = vunpack.c.l.b16 %v5643
        %v5772 = vunpack.c.l.b16 %v5644
        %v5773 = vunpack.c.l.b16 %v5645
        %v5774 = vunpack.c.l.b16 %v5646
        %v5775 = vunpack.c.l.b16 %v5647
        %v5776 = vunpack.c.l.b16 %v5648
        %v5777 = vunpack.c.l.b16 %v5649
        %v5778 = vunpack.c.l.b16 %v5650
        %v5779 = vunpack.c.l.b16 %v5651
        %v5780 = vunpack.c.l.b16 %v5652
        %v5781 = vunpack.c.l.b16 %v5653
        %v5782 = vunpack.c.l.b16 %v5654
        %v5783 = vpack.c.b16 %v5768, %v5767
        %v5784 = vpack.c.b16 %v5770, %v5769
        %v5785 = vpack.c.b16 %v5772, %v5771
        %v5786 = vpack.c.b16 %v5774, %v5773
        %v5787 = vpack.c.b16 %v5776, %v5775
        %v5788 = vpack.c.b16 %v5778, %v5777
        %v5789 = vpack.c.b16 %v5780, %v5779
        %v5790 = vpack.c.b16 %v5782, %v5781
        %v5815 = vunpack.c.l.b16 %v5735
        %v5816 = vunpack.c.l.b16 %v5736
        %v5817 = vunpack.c.l.b16 %v5737
        %v5818 = vunpack.c.l.b16 %v5738
        %v5819 = vunpack.c.l.b16 %v5739
        %v5820 = vunpack.c.l.b16 %v5740
        %v5821 = vunpack.c.l.b16 %v5741
        %v5822 = vunpack.c.l.b16 %v5742
        %v5823 = vunpack.c.l.b16 %v5743
        %v5824 = vunpack.c.l.b16 %v5744
        %v5825 = vunpack.c.l.b16 %v5745
        %v5826 = vunpack.c.l.b16 %v5746
        %v5827 = vunpack.c.l.b16 %v5747
        %v5828 = vunpack.c.l.b16 %v5748
        %v5829 = vunpack.c.l.b16 %v5749
        %v5830 = vunpack.c.l.b16 %v5750
        %v5831 = vpack.c.b16 %v5816, %v5815
        %v5832 = vpack.c.b16 %v5818, %v5817
        %v5833 = vpack.c.b16 %v5820, %v5819
        %v5834 = vpack.c.b16 %v5822, %v5821
        %v5835 = vpack.c.b16 %v5824, %v5823
        %v5836 = vpack.c.b16 %v5826, %v5825
        %v5837 = vpack.c.b16 %v5828, %v5827
        %v5838 = vpack.c.b16 %v5830, %v5829
        %5847 = vmatpush.bf16.msra.mxu0 %v4568
        %5848 = vmatpush.bf16.msra.mxu0 %v4567
        %5849 = vmatpush.bf16.msra.mxu0 %v4566
        %5850 = vmatpush.bf16.msra.mxu0 %v4565
        %5851 = vmatpush.bf16.msra.mxu0 %v4564
        %5852 = vmatpush.bf16.msra.mxu0 %v4563
        %5853 = vmatpush.bf16.msra.mxu0 %v4562
        %5854 = vmatpush.bf16.msra.mxu0 %v4561
        %5855 = vmatmul.bf16.gmra.mxu0 %v5783
        %v5856 = vpop.f32.mrf.mxu0
        %v5857 = vadd.f32 0.0, %v5856
        %v5858 = vpop.f32.mrf.mxu0
        %v5859 = vadd.f32 0.0, %v5858
        %5860 = vmatmul.bf16.gmra.mxu0 %v5784
        %v5861 = vpop.f32.mrf.mxu0
        %v5862 = vadd.f32 0.0, %v5861
        %v5863 = vpop.f32.mrf.mxu0
        %v5864 = vadd.f32 0.0, %v5863
        %5865 = vmatmul.bf16.gmra.mxu0 %v5785
        %v5866 = vpop.f32.mrf.mxu0
        %v5867 = vadd.f32 0.0, %v5866
        %v5868 = vpop.f32.mrf.mxu0
        %v5869 = vadd.f32 0.0, %v5868
        %5870 = vmatmul.bf16.gmra.mxu0 %v5786
        %v5871 = vpop.f32.mrf.mxu0
        %v5872 = vadd.f32 0.0, %v5871
        %v5873 = vpop.f32.mrf.mxu0
        %v5874 = vadd.f32 0.0, %v5873
        %5875 = vmatmul.bf16.gmra.mxu0 %v5787
        %v5876 = vpop.f32.mrf.mxu0
        %v5877 = vadd.f32 0.0, %v5876
        %v5878 = vpop.f32.mrf.mxu0
        %v5879 = vadd.f32 0.0, %v5878
        %5880 = vmatmul.bf16.gmra.mxu0 %v5788
        %v5881 = vpop.f32.mrf.mxu0
        %v5882 = vadd.f32 0.0, %v5881
        %v5883 = vpop.f32.mrf.mxu0
        %v5884 = vadd.f32 0.0, %v5883
        %5885 = vmatmul.bf16.gmra.mxu0 %v5789
        %v5886 = vpop.f32.mrf.mxu0
        %v5887 = vadd.f32 0.0, %v5886
        %v5888 = vpop.f32.mrf.mxu0
        %v5889 = vadd.f32 0.0, %v5888
        %5890 = vmatmul.bf16.gmra.mxu0 %v5790
        %v5891 = vpop.f32.mrf.mxu0
        %v5892 = vadd.f32 0.0, %v5891
        %v5893 = vpop.f32.mrf.mxu0
        %v5894 = vadd.f32 0.0, %v5893
        %5895 = vdwg.mxu0
        %5896 = vmatpush.bf16.msra.mxu0 %v4576
        %5897 = vmatpush.bf16.msra.mxu0 %v4575
        %5898 = vmatpush.bf16.msra.mxu0 %v4574
        %5899 = vmatpush.bf16.msra.mxu0 %v4573
        %5900 = vmatpush.bf16.msra.mxu0 %v4572
        %5901 = vmatpush.bf16.msra.mxu0 %v4571
        %5902 = vmatpush.bf16.msra.mxu0 %v4570
        %5903 = vmatpush.bf16.msra.mxu0 %v4569
        %5904 = vmatmul.bf16.gmra.mxu0 %v5831
        %v5905 = vpop.f32.mrf.mxu0
        %v5906 = vadd.f32 %v5857, %v5905
        %v5907 = vpop.f32.mrf.mxu0
        %v5908 = vadd.f32 %v5859, %v5907
        %5909 = vmatmul.bf16.gmra.mxu0 %v5832
        %v5910 = vpop.f32.mrf.mxu0
        %v5911 = vadd.f32 %v5862, %v5910
        %v5912 = vpop.f32.mrf.mxu0
        %v5913 = vadd.f32 %v5864, %v5912
        %5914 = vmatmul.bf16.gmra.mxu0 %v5833
        %v5915 = vpop.f32.mrf.mxu0
        %v5916 = vadd.f32 %v5867, %v5915
        %v5917 = vpop.f32.mrf.mxu0
        %v5918 = vadd.f32 %v5869, %v5917
        %5919 = vmatmul.bf16.gmra.mxu0 %v5834
        %v5920 = vpop.f32.mrf.mxu0
        %v5921 = vadd.f32 %v5872, %v5920
        %v5922 = vpop.f32.mrf.mxu0
        %v5923 = vadd.f32 %v5874, %v5922
        %5924 = vmatmul.bf16.gmra.mxu0 %v5835
        %v5925 = vpop.f32.mrf.mxu0
        %v5926 = vadd.f32 %v5877, %v5925
        %v5927 = vpop.f32.mrf.mxu0
        %v5928 = vadd.f32 %v5879, %v5927
        %5929 = vmatmul.bf16.gmra.mxu0 %v5836
        %v5930 = vpop.f32.mrf.mxu0
        %v5931 = vadd.f32 %v5882, %v5930
        %v5932 = vpop.f32.mrf.mxu0
        %v5933 = vadd.f32 %v5884, %v5932
        %5934 = vmatmul.bf16.gmra.mxu0 %v5837
        %v5935 = vpop.f32.mrf.mxu0
        %v5936 = vadd.f32 %v5887, %v5935
        %v5937 = vpop.f32.mrf.mxu0
        %v5938 = vadd.f32 %v5889, %v5937
        %5939 = vmatmul.bf16.gmra.mxu0 %v5838
        %v5940 = vpop.f32.mrf.mxu0
        %v5941 = vadd.f32 %v5892, %v5940
        %v5942 = vpop.f32.mrf.mxu0
        %v5943 = vadd.f32 %v5894, %v5942
        %5944 = vdwg.mxu0
        %v5945 = vadd.f32 %v5511, %v5906
        %v5946 = vadd.f32 %v5512, %v5908
        %v5947 = vadd.f32 %v5513, %v5911
        %v5948 = vadd.f32 %v5514, %v5913
        %v5949 = vadd.f32 %v5515, %v5916
        %v5950 = vadd.f32 %v5516, %v5918
        %v5951 = vadd.f32 %v5517, %v5921
        %v5952 = vadd.f32 %v5518, %v5923
        %v5953 = vadd.f32 %v5519, %v5926
        %v5954 = vadd.f32 %v5520, %v5928
        %v5955 = vadd.f32 %v5521, %v5931
        %v5956 = vadd.f32 %v5522, %v5933
        %v5957 = vadd.f32 %v5523, %v5936
        %v5958 = vadd.f32 %v5524, %v5938
        %v5959 = vadd.f32 %v5525, %v5941
        %v5960 = vadd.f32 %v5526, %v5943
        %5961 = vset.pattern.permute.xlu0 5
        %5962 = vperm.xlu0 %5961, %v3935
        %v5963 = vpop.permute.xlu0 %5962
        %5964 = vset.pattern.permute.xlu0 5
        %5965 = vperm.xlu0 %5964, %v3936
        %v5966 = vpop.permute.xlu0 %5965
        %5967 = vset.pattern.permute.xlu0 5
        %5968 = vperm.xlu0 %5967, %v3937
        %v5969 = vpop.permute.xlu0 %5968
        %5970 = vset.pattern.permute.xlu0 5
        %5971 = vperm.xlu0 %5970, %v3938
        %v5972 = vpop.permute.xlu0 %5971
        %5973 = vset.pattern.permute.xlu0 5
        %5974 = vperm.xlu0 %5973, %v3939
        %v5975 = vpop.permute.xlu0 %5974
        %5976 = vset.pattern.permute.xlu0 5
        %5977 = vperm.xlu0 %5976, %v3940
        %v5978 = vpop.permute.xlu0 %5977
        %5979 = vset.pattern.permute.xlu0 5
        %5980 = vperm.xlu0 %5979, %v3941
        %v5981 = vpop.permute.xlu0 %5980
        %5982 = vset.pattern.permute.xlu0 5
        %5983 = vperm.xlu0 %5982, %v3942
        %v5984 = vpop.permute.xlu0 %5983
        %5985 = vset.pattern.permute.xlu0 5
        %5986 = vperm.xlu0 %5985, %v3943
        %v5987 = vpop.permute.xlu0 %5986
        %5988 = vset.pattern.permute.xlu0 5
        %5989 = vperm.xlu0 %5988, %v3944
        %v5990 = vpop.permute.xlu0 %5989
        %5991 = vset.pattern.permute.xlu0 5
        %5992 = vperm.xlu0 %5991, %v3945
        %v5993 = vpop.permute.xlu0 %5992
        %5994 = vset.pattern.permute.xlu0 5
        %5995 = vperm.xlu0 %5994, %v3946
        %v5996 = vpop.permute.xlu0 %5995
        %5997 = vset.pattern.permute.xlu0 5
        %5998 = vperm.xlu0 %5997, %v3947
        %v5999 = vpop.permute.xlu0 %5998
        %6000 = vset.pattern.permute.xlu0 5
        %6001 = vperm.xlu0 %6000, %v3948
        %v6002 = vpop.permute.xlu0 %6001
        %6003 = vset.pattern.permute.xlu0 5
        %6004 = vperm.xlu0 %6003, %v3949
        %v6005 = vpop.permute.xlu0 %6004
        %6006 = vset.pattern.permute.xlu0 5
        %6007 = vperm.xlu0 %6006, %v3950
        %v6008 = vpop.permute.xlu0 %6007
        %vm6009 = vcmp.eq.s32.totalorder %v5963, 1
        %vm6010 = vcmp.eq.s32.totalorder %v5966, 1
        %vm6011 = vcmp.eq.s32.totalorder %v5969, 1
        %vm6012 = vcmp.eq.s32.totalorder %v5972, 1
        %vm6013 = vcmp.eq.s32.totalorder %v5975, 1
        %vm6014 = vcmp.eq.s32.totalorder %v5978, 1
        %vm6015 = vcmp.eq.s32.totalorder %v5981, 1
        %vm6016 = vcmp.eq.s32.totalorder %v5984, 1
        %vm6017 = vcmp.eq.s32.totalorder %v5987, 1
        %vm6018 = vcmp.eq.s32.totalorder %v5990, 1
        %vm6019 = vcmp.eq.s32.totalorder %v5993, 1
        %vm6020 = vcmp.eq.s32.totalorder %v5996, 1
        %vm6021 = vcmp.eq.s32.totalorder %v5999, 1
        %vm6022 = vcmp.eq.s32.totalorder %v6002, 1
        %vm6023 = vcmp.eq.s32.totalorder %v6005, 1
        %vm6024 = vcmp.eq.s32.totalorder %v6008, 1
        %vm6025 = vmpackc.low %vm6009, %vm6009
        %vm6026 = vmpackc.low %vm6010, %vm6010
        %vm6027 = vmpackc.low %vm6011, %vm6011
        %vm6028 = vmpackc.low %vm6012, %vm6012
        %vm6029 = vmpackc.low %vm6013, %vm6013
        %vm6030 = vmpackc.low %vm6014, %vm6014
        %vm6031 = vmpackc.low %vm6015, %vm6015
        %vm6032 = vmpackc.low %vm6016, %vm6016
        %vm6033 = vmpackc.low %vm6017, %vm6017
        %vm6034 = vmpackc.low %vm6018, %vm6018
        %vm6035 = vmpackc.low %vm6019, %vm6019
        %vm6036 = vmpackc.low %vm6020, %vm6020
        %vm6037 = vmpackc.low %vm6021, %vm6021
        %vm6038 = vmpackc.low %vm6022, %vm6022
        %vm6039 = vmpackc.low %vm6023, %vm6023
        %vm6040 = vmpackc.low %vm6024, %vm6024
        %v6041 = vsel %vm6025, %v5543, 0
        %v6042 = vsel %vm6026, %v5544, 0
        %v6043 = vsel %vm6027, %v5545, 0
        %v6044 = vsel %vm6028, %v5546, 0
        %v6045 = vsel %vm6029, %v5547, 0
        %v6046 = vsel %vm6030, %v5548, 0
        %v6047 = vsel %vm6031, %v5549, 0
        %v6048 = vsel %vm6032, %v5550, 0
        %v6049 = vsel %vm6033, %v5551, 0
        %v6050 = vsel %vm6034, %v5552, 0
        %v6051 = vsel %vm6035, %v5553, 0
        %v6052 = vsel %vm6036, %v5554, 0
        %v6053 = vsel %vm6037, %v5555, 0
        %v6054 = vsel %vm6038, %v5556, 0
        %v6055 = vsel %vm6039, %v5557, 0
        %v6056 = vsel %vm6040, %v5558, 0
        %6057 = vset.pattern.permute.xlu0 5
        %6058 = vperm.xlu0 %6057, %v4063
        %v6059 = vpop.permute.xlu0 %6058
        %6060 = vset.pattern.permute.xlu0 5
        %6061 = vperm.xlu0 %6060, %v4064
        %v6062 = vpop.permute.xlu0 %6061
        %6063 = vset.pattern.permute.xlu0 5
        %6064 = vperm.xlu0 %6063, %v4065
        %v6065 = vpop.permute.xlu0 %6064
        %6066 = vset.pattern.permute.xlu0 5
        %6067 = vperm.xlu0 %6066, %v4066
        %v6068 = vpop.permute.xlu0 %6067
        %6069 = vset.pattern.permute.xlu0 5
        %6070 = vperm.xlu0 %6069, %v4067
        %v6071 = vpop.permute.xlu0 %6070
        %6072 = vset.pattern.permute.xlu0 5
        %6073 = vperm.xlu0 %6072, %v4068
        %v6074 = vpop.permute.xlu0 %6073
        %6075 = vset.pattern.permute.xlu0 5
        %6076 = vperm.xlu0 %6075, %v4069
        %v6077 = vpop.permute.xlu0 %6076
        %6078 = vset.pattern.permute.xlu0 5
        %6079 = vperm.xlu0 %6078, %v4070
        %v6080 = vpop.permute.xlu0 %6079
        %6081 = vset.pattern.permute.xlu0 5
        %6082 = vperm.xlu0 %6081, %v4071
        %v6083 = vpop.permute.xlu0 %6082
        %6084 = vset.pattern.permute.xlu0 5
        %6085 = vperm.xlu0 %6084, %v4072
        %v6086 = vpop.permute.xlu0 %6085
        %6087 = vset.pattern.permute.xlu0 5
        %6088 = vperm.xlu0 %6087, %v4073
        %v6089 = vpop.permute.xlu0 %6088
        %6090 = vset.pattern.permute.xlu0 5
        %6091 = vperm.xlu0 %6090, %v4074
        %v6092 = vpop.permute.xlu0 %6091
        %6093 = vset.pattern.permute.xlu0 5
        %6094 = vperm.xlu0 %6093, %v4075
        %v6095 = vpop.permute.xlu0 %6094
        %6096 = vset.pattern.permute.xlu0 5
        %6097 = vperm.xlu0 %6096, %v4076
        %v6098 = vpop.permute.xlu0 %6097
        %6099 = vset.pattern.permute.xlu0 5
        %6100 = vperm.xlu0 %6099, %v4077
        %v6101 = vpop.permute.xlu0 %6100
        %6102 = vset.pattern.permute.xlu0 5
        %6103 = vperm.xlu0 %6102, %v4078
        %v6104 = vpop.permute.xlu0 %6103
        %vm6105 = vcmp.eq.s32.totalorder %v6059, 1
        %vm6106 = vcmp.eq.s32.totalorder %v6062, 1
        %vm6107 = vcmp.eq.s32.totalorder %v6065, 1
        %vm6108 = vcmp.eq.s32.totalorder %v6068, 1
        %vm6109 = vcmp.eq.s32.totalorder %v6071, 1
        %vm6110 = vcmp.eq.s32.totalorder %v6074, 1
        %vm6111 = vcmp.eq.s32.totalorder %v6077, 1
        %vm6112 = vcmp.eq.s32.totalorder %v6080, 1
        %vm6113 = vcmp.eq.s32.totalorder %v6083, 1
        %vm6114 = vcmp.eq.s32.totalorder %v6086, 1
        %vm6115 = vcmp.eq.s32.totalorder %v6089, 1
        %vm6116 = vcmp.eq.s32.totalorder %v6092, 1
        %vm6117 = vcmp.eq.s32.totalorder %v6095, 1
        %vm6118 = vcmp.eq.s32.totalorder %v6098, 1
        %vm6119 = vcmp.eq.s32.totalorder %v6101, 1
        %vm6120 = vcmp.eq.s32.totalorder %v6104, 1
        %vm6121 = vmpackc.low %vm6105, %vm6105
        %vm6122 = vmpackc.low %vm6106, %vm6106
        %vm6123 = vmpackc.low %vm6107, %vm6107
        %vm6124 = vmpackc.low %vm6108, %vm6108
        %vm6125 = vmpackc.low %vm6109, %vm6109
        %vm6126 = vmpackc.low %vm6110, %vm6110
        %vm6127 = vmpackc.low %vm6111, %vm6111
        %vm6128 = vmpackc.low %vm6112, %vm6112
        %vm6129 = vmpackc.low %vm6113, %vm6113
        %vm6130 = vmpackc.low %vm6114, %vm6114
        %vm6131 = vmpackc.low %vm6115, %vm6115
        %vm6132 = vmpackc.low %vm6116, %vm6116
        %vm6133 = vmpackc.low %vm6117, %vm6117
        %vm6134 = vmpackc.low %vm6118, %vm6118
        %vm6135 = vmpackc.low %vm6119, %vm6119
        %vm6136 = vmpackc.low %vm6120, %vm6120
        %v6137 = vsel %vm6121, %v5543, 0
        %v6138 = vsel %vm6122, %v5544, 0
        %v6139 = vsel %vm6123, %v5545, 0
        %v6140 = vsel %vm6124, %v5546, 0
        %v6141 = vsel %vm6125, %v5547, 0
        %v6142 = vsel %vm6126, %v5548, 0
        %v6143 = vsel %vm6127, %v5549, 0
        %v6144 = vsel %vm6128, %v5550, 0
        %v6145 = vsel %vm6129, %v5551, 0
        %v6146 = vsel %vm6130, %v5552, 0
        %v6147 = vsel %vm6131, %v5553, 0
        %v6148 = vsel %vm6132, %v5554, 0
        %v6149 = vsel %vm6133, %v5555, 0
        %v6150 = vsel %vm6134, %v5556, 0
        %v6151 = vsel %vm6135, %v5557, 0
        %v6152 = vsel %vm6136, %v5558, 0
        %v6169 = vunpack.c.l.b16 %v6041
        %v6170 = vunpack.c.l.b16 %v6042
        %v6171 = vunpack.c.l.b16 %v6043
        %v6172 = vunpack.c.l.b16 %v6044
        %v6173 = vunpack.c.l.b16 %v6045
        %v6174 = vunpack.c.l.b16 %v6046
        %v6175 = vunpack.c.l.b16 %v6047
        %v6176 = vunpack.c.l.b16 %v6048
        %v6177 = vunpack.c.l.b16 %v6049
        %v6178 = vunpack.c.l.b16 %v6050
        %v6179 = vunpack.c.l.b16 %v6051
        %v6180 = vunpack.c.l.b16 %v6052
        %v6181 = vunpack.c.l.b16 %v6053
        %v6182 = vunpack.c.l.b16 %v6054
        %v6183 = vunpack.c.l.b16 %v6055
        %v6184 = vunpack.c.l.b16 %v6056
        %v6185 = vpack.c.b16 %v6170, %v6169
        %v6186 = vpack.c.b16 %v6172, %v6171
        %v6187 = vpack.c.b16 %v6174, %v6173
        %v6188 = vpack.c.b16 %v6176, %v6175
        %v6189 = vpack.c.b16 %v6178, %v6177
        %v6190 = vpack.c.b16 %v6180, %v6179
        %v6191 = vpack.c.b16 %v6182, %v6181
        %v6192 = vpack.c.b16 %v6184, %v6183
        %v6217 = vunpack.c.l.b16 %v6137
        %v6218 = vunpack.c.l.b16 %v6138
        %v6219 = vunpack.c.l.b16 %v6139
        %v6220 = vunpack.c.l.b16 %v6140
        %v6221 = vunpack.c.l.b16 %v6141
        %v6222 = vunpack.c.l.b16 %v6142
        %v6223 = vunpack.c.l.b16 %v6143
        %v6224 = vunpack.c.l.b16 %v6144
        %v6225 = vunpack.c.l.b16 %v6145
        %v6226 = vunpack.c.l.b16 %v6146
        %v6227 = vunpack.c.l.b16 %v6147
        %v6228 = vunpack.c.l.b16 %v6148
        %v6229 = vunpack.c.l.b16 %v6149
        %v6230 = vunpack.c.l.b16 %v6150
        %v6231 = vunpack.c.l.b16 %v6151
        %v6232 = vunpack.c.l.b16 %v6152
        %v6233 = vpack.c.b16 %v6218, %v6217
        %v6234 = vpack.c.b16 %v6220, %v6219
        %v6235 = vpack.c.b16 %v6222, %v6221
        %v6236 = vpack.c.b16 %v6224, %v6223
        %v6237 = vpack.c.b16 %v6226, %v6225
        %v6238 = vpack.c.b16 %v6228, %v6227
        %v6239 = vpack.c.b16 %v6230, %v6229
        %v6240 = vpack.c.b16 %v6232, %v6231
        %6249 = vmatpush.bf16.msra.mxu0 %v4374
        %6250 = vmatpush.bf16.msra.mxu0 %v4373
        %6251 = vmatpush.bf16.msra.mxu0 %v4372
        %6252 = vmatpush.bf16.msra.mxu0 %v4371
        %6253 = vmatpush.bf16.msra.mxu0 %v4370
        %6254 = vmatpush.bf16.msra.mxu0 %v4369
        %6255 = vmatpush.bf16.msra.mxu0 %v4368
        %6256 = vmatpush.bf16.msra.mxu0 %v4367
        %6257 = vmatmul.bf16.gmra.mxu0 %v6185
        %v6258 = vpop.f32.mrf.mxu0
        %v6259 = vadd.f32 0.0, %v6258
        %v6260 = vpop.f32.mrf.mxu0
        %v6261 = vadd.f32 0.0, %v6260
        %6262 = vmatmul.bf16.gmra.mxu0 %v6186
        %v6263 = vpop.f32.mrf.mxu0
        %v6264 = vadd.f32 0.0, %v6263
        %v6265 = vpop.f32.mrf.mxu0
        %v6266 = vadd.f32 0.0, %v6265
        %6267 = vmatmul.bf16.gmra.mxu0 %v6187
        %v6268 = vpop.f32.mrf.mxu0
        %v6269 = vadd.f32 0.0, %v6268
        %v6270 = vpop.f32.mrf.mxu0
        %v6271 = vadd.f32 0.0, %v6270
        %6272 = vmatmul.bf16.gmra.mxu0 %v6188
        %v6273 = vpop.f32.mrf.mxu0
        %v6274 = vadd.f32 0.0, %v6273
        %v6275 = vpop.f32.mrf.mxu0
        %v6276 = vadd.f32 0.0, %v6275
        %6277 = vmatmul.bf16.gmra.mxu0 %v6189
        %v6278 = vpop.f32.mrf.mxu0
        %v6279 = vadd.f32 0.0, %v6278
        %v6280 = vpop.f32.mrf.mxu0
        %v6281 = vadd.f32 0.0, %v6280
        %6282 = vmatmul.bf16.gmra.mxu0 %v6190
        %v6283 = vpop.f32.mrf.mxu0
        %v6284 = vadd.f32 0.0, %v6283
        %v6285 = vpop.f32.mrf.mxu0
        %v6286 = vadd.f32 0.0, %v6285
        %6287 = vmatmul.bf16.gmra.mxu0 %v6191
        %v6288 = vpop.f32.mrf.mxu0
        %v6289 = vadd.f32 0.0, %v6288
        %v6290 = vpop.f32.mrf.mxu0
        %v6291 = vadd.f32 0.0, %v6290
        %6292 = vmatmul.bf16.gmra.mxu0 %v6192
        %v6293 = vpop.f32.mrf.mxu0
        %v6294 = vadd.f32 0.0, %v6293
        %v6295 = vpop.f32.mrf.mxu0
        %v6296 = vadd.f32 0.0, %v6295
        %6297 = vdwg.mxu0
        %6298 = vmatpush.bf16.msra.mxu0 %v4382
        %6299 = vmatpush.bf16.msra.mxu0 %v4381
        %6300 = vmatpush.bf16.msra.mxu0 %v4380
        %6301 = vmatpush.bf16.msra.mxu0 %v4379
        %6302 = vmatpush.bf16.msra.mxu0 %v4378
        %6303 = vmatpush.bf16.msra.mxu0 %v4377
        %6304 = vmatpush.bf16.msra.mxu0 %v4376
        %6305 = vmatpush.bf16.msra.mxu0 %v4375
        %6306 = vmatmul.bf16.gmra.mxu0 %v6233
        %v6307 = vpop.f32.mrf.mxu0
        %v6308 = vadd.f32 %v6259, %v6307
        %v6309 = vpop.f32.mrf.mxu0
        %v6310 = vadd.f32 %v6261, %v6309
        %6311 = vmatmul.bf16.gmra.mxu0 %v6234
        %v6312 = vpop.f32.mrf.mxu0
        %v6313 = vadd.f32 %v6264, %v6312
        %v6314 = vpop.f32.mrf.mxu0
        %v6315 = vadd.f32 %v6266, %v6314
        %6316 = vmatmul.bf16.gmra.mxu0 %v6235
        %v6317 = vpop.f32.mrf.mxu0
        %v6318 = vadd.f32 %v6269, %v6317
        %v6319 = vpop.f32.mrf.mxu0
        %v6320 = vadd.f32 %v6271, %v6319
        %6321 = vmatmul.bf16.gmra.mxu0 %v6236
        %v6322 = vpop.f32.mrf.mxu0
        %v6323 = vadd.f32 %v6274, %v6322
        %v6324 = vpop.f32.mrf.mxu0
        %v6325 = vadd.f32 %v6276, %v6324
        %6326 = vmatmul.bf16.gmra.mxu0 %v6237
        %v6327 = vpop.f32.mrf.mxu0
        %v6328 = vadd.f32 %v6279, %v6327
        %v6329 = vpop.f32.mrf.mxu0
        %v6330 = vadd.f32 %v6281, %v6329
        %6331 = vmatmul.bf16.gmra.mxu0 %v6238
        %v6332 = vpop.f32.mrf.mxu0
        %v6333 = vadd.f32 %v6284, %v6332
        %v6334 = vpop.f32.mrf.mxu0
        %v6335 = vadd.f32 %v6286, %v6334
        %6336 = vmatmul.bf16.gmra.mxu0 %v6239
        %v6337 = vpop.f32.mrf.mxu0
        %v6338 = vadd.f32 %v6289, %v6337
        %v6339 = vpop.f32.mrf.mxu0
        %v6340 = vadd.f32 %v6291, %v6339
        %6341 = vmatmul.bf16.gmra.mxu0 %v6240
        %v6342 = vpop.f32.mrf.mxu0
        %v6343 = vadd.f32 %v6294, %v6342
        %v6344 = vpop.f32.mrf.mxu0
        %v6345 = vadd.f32 %v6296, %v6344
        %6346 = vdwg.mxu0
        %v6347 = vadd.f32 %v5945, %v6308
        %v6348 = vadd.f32 %v5946, %v6310
        %v6349 = vadd.f32 %v5947, %v6313
        %v6350 = vadd.f32 %v5948, %v6315
        %v6351 = vadd.f32 %v5949, %v6318
        %v6352 = vadd.f32 %v5950, %v6320
        %v6353 = vadd.f32 %v5951, %v6323
        %v6354 = vadd.f32 %v5952, %v6325
        %v6355 = vadd.f32 %v5953, %v6328
        %v6356 = vadd.f32 %v5954, %v6330
        %v6357 = vadd.f32 %v5955, %v6333
        %v6358 = vadd.f32 %v5956, %v6335
        %v6359 = vadd.f32 %v5957, %v6338
        %v6360 = vadd.f32 %v5958, %v6340
        %v6361 = vadd.f32 %v5959, %v6343
        %v6362 = vadd.f32 %v5960, %v6345
        %v6363 = vmul.f32 %v6347, 0.33333334
        %v6364 = vmul.f32 %v6348, 0.33333334
        %v6365 = vmul.f32 %v6349, 0.33333334
        %v6366 = vmul.f32 %v6350, 0.33333334
        %v6367 = vmul.f32 %v6351, 0.33333334
        %v6368 = vmul.f32 %v6352, 0.33333334
        %v6369 = vmul.f32 %v6353, 0.33333334
        %v6370 = vmul.f32 %v6354, 0.33333334
        %v6371 = vmul.f32 %v6355, 0.33333334
        %v6372 = vmul.f32 %v6356, 0.33333334
        %v6373 = vmul.f32 %v6357, 0.33333334
        %v6374 = vmul.f32 %v6358, 0.33333334
        %v6375 = vmul.f32 %v6359, 0.33333334
        %v6376 = vmul.f32 %v6360, 0.33333334
        %v6377 = vmul.f32 %v6361, 0.33333334
        %v6378 = vmul.f32 %v6362, 0.33333334
        %s6379 = scalar_lea.vmem %s164, 384 [#allocation2]
        %6380 = vst [vmem:[%s6379] sm:$0xff] %v6363
        %6381 = vst [vmem:[%s6379 + $0x8] sm:$0xff] %v6364
        %6382 = vst [vmem:[%s6379 + $0x10] sm:$0xff] %v6365
        %6383 = vst [vmem:[%s6379 + $0x18] sm:$0xff] %v6366
        %6384 = vst [vmem:[%s6379 + $0x20] sm:$0xff] %v6367
        %6385 = vst [vmem:[%s6379 + $0x28] sm:$0xff] %v6368
        %6386 = vst [vmem:[%s6379 + $0x30] sm:$0xff] %v6369
        %6387 = vst [vmem:[%s6379 + $0x38] sm:$0xff] %v6370
        %6388 = vst [vmem:[%s6379 + $0x40] sm:$0xff] %v6371
        %6389 = vst [vmem:[%s6379 + $0x48] sm:$0xff] %v6372
        %6390 = vst [vmem:[%s6379 + $0x50] sm:$0xff] %v6373
        %6391 = vst [vmem:[%s6379 + $0x58] sm:$0xff] %v6374
        %6392 = vst [vmem:[%s6379 + $0x60] sm:$0xff] %v6375
        %6393 = vst [vmem:[%s6379 + $0x68] sm:$0xff] %v6376
        %6394 = vst [vmem:[%s6379 + $0x70] sm:$0xff] %v6377
        %6395 = vst [vmem:[%s6379 + $0x78] sm:$0xff] %v6378
        %v6396 = vld [vmem:[%s169] sm:$0xff]
        %v6397 = vld [vmem:[%s169 + $0x8] sm:$0xff]
        %v6398 = vld [vmem:[%s169 + $0x10] sm:$0xff]
        %v6399 = vld [vmem:[%s169 + $0x18] sm:$0xff]
        %v6400 = vld [vmem:[%s169 + $0x20] sm:$0xff]
        %v6401 = vld [vmem:[%s169 + $0x28] sm:$0xff]
        %v6402 = vld [vmem:[%s169 + $0x30] sm:$0xff]
        %v6403 = vld [vmem:[%s169 + $0x38] sm:$0xff]
        %v6404 = vld [vmem:[%s169 + $0x40] sm:$0xff]
        %v6405 = vld [vmem:[%s169 + $0x48] sm:$0xff]
        %v6406 = vld [vmem:[%s169 + $0x50] sm:$0xff]
        %v6407 = vld [vmem:[%s169 + $0x58] sm:$0xff]
        %v6408 = vld [vmem:[%s169 + $0x60] sm:$0xff]
        %v6409 = vld [vmem:[%s169 + $0x68] sm:$0xff]
        %v6410 = vld [vmem:[%s169 + $0x70] sm:$0xff]
        %v6411 = vld [vmem:[%s169 + $0x78] sm:$0xff]
        %v6412 = vld [vmem:[%s164] sm:$0xff]
        %v6413 = vld [vmem:[%s164 + $0x8] sm:$0xff]
        %v6414 = vld [vmem:[%s164 + $0x10] sm:$0xff]
        %v6415 = vld [vmem:[%s164 + $0x18] sm:$0xff]
        %v6416 = vld [vmem:[%s164 + $0x20] sm:$0xff]
        %v6417 = vld [vmem:[%s164 + $0x28] sm:$0xff]
        %v6418 = vld [vmem:[%s164 + $0x30] sm:$0xff]
        %v6419 = vld [vmem:[%s164 + $0x38] sm:$0xff]
        %v6420 = vld [vmem:[%s164 + $0x40] sm:$0xff]
        %v6421 = vld [vmem:[%s164 + $0x48] sm:$0xff]
        %v6422 = vld [vmem:[%s164 + $0x50] sm:$0xff]
        %v6423 = vld [vmem:[%s164 + $0x58] sm:$0xff]
        %v6424 = vld [vmem:[%s164 + $0x60] sm:$0xff]
        %v6425 = vld [vmem:[%s164 + $0x68] sm:$0xff]
        %v6426 = vld [vmem:[%s164 + $0x70] sm:$0xff]
        %v6427 = vld [vmem:[%s164 + $0x78] sm:$0xff]
        %v6428 = vpack.c.bf16 %v6412, %v6412
        %v6429 = vpack.c.bf16 %v6413, %v6413
        %v6430 = vpack.c.bf16 %v6414, %v6414
        %v6431 = vpack.c.bf16 %v6415, %v6415
        %v6432 = vpack.c.bf16 %v6416, %v6416
        %v6433 = vpack.c.bf16 %v6417, %v6417
        %v6434 = vpack.c.bf16 %v6418, %v6418
        %v6435 = vpack.c.bf16 %v6419, %v6419
        %v6436 = vpack.c.bf16 %v6420, %v6420
        %v6437 = vpack.c.bf16 %v6421, %v6421
        %v6438 = vpack.c.bf16 %v6422, %v6422
        %v6439 = vpack.c.bf16 %v6423, %v6423
        %v6440 = vpack.c.bf16 %v6424, %v6424
        %v6441 = vpack.c.bf16 %v6425, %v6425
        %v6442 = vpack.c.bf16 %v6426, %v6426
        %v6443 = vpack.c.bf16 %v6427, %v6427
        %vm6444 = vcmp.eq.s32.totalorder %v6396, 0
        %vm6445 = vcmp.eq.s32.totalorder %v6397, 0
        %vm6446 = vcmp.eq.s32.totalorder %v6398, 0
        %vm6447 = vcmp.eq.s32.totalorder %v6399, 0
        %vm6448 = vcmp.eq.s32.totalorder %v6400, 0
        %vm6449 = vcmp.eq.s32.totalorder %v6401, 0
        %vm6450 = vcmp.eq.s32.totalorder %v6402, 0
        %vm6451 = vcmp.eq.s32.totalorder %v6403, 0
        %vm6452 = vcmp.eq.s32.totalorder %v6404, 0
        %vm6453 = vcmp.eq.s32.totalorder %v6405, 0
        %vm6454 = vcmp.eq.s32.totalorder %v6406, 0
        %vm6455 = vcmp.eq.s32.totalorder %v6407, 0
        %vm6456 = vcmp.eq.s32.totalorder %v6408, 0
        %vm6457 = vcmp.eq.s32.totalorder %v6409, 0
        %vm6458 = vcmp.eq.s32.totalorder %v6410, 0
        %vm6459 = vcmp.eq.s32.totalorder %v6411, 0
        %v6460 = vsel %vm6444, 1, 0
        %v6461 = vsel %vm6445, 1, 0
        %v6462 = vsel %vm6446, 1, 0
        %v6463 = vsel %vm6447, 1, 0
        %v6464 = vsel %vm6448, 1, 0
        %v6465 = vsel %vm6449, 1, 0
        %v6466 = vsel %vm6450, 1, 0
        %v6467 = vsel %vm6451, 1, 0
        %v6468 = vsel %vm6452, 1, 0
        %v6469 = vsel %vm6453, 1, 0
        %v6470 = vsel %vm6454, 1, 0
        %v6471 = vsel %vm6455, 1, 0
        %v6472 = vsel %vm6456, 1, 0
        %v6473 = vsel %vm6457, 1, 0
        %v6474 = vsel %vm6458, 1, 0
        %v6475 = vsel %vm6459, 1, 0
        %6476 = vset.pattern.permute.xlu0 6
        %6477 = vperm.xlu0 %6476, %v6460
        %v6478 = vpop.permute.xlu0 %6477
        %6479 = vset.pattern.permute.xlu0 6
        %6480 = vperm.xlu0 %6479, %v6461
        %v6481 = vpop.permute.xlu0 %6480
        %6482 = vset.pattern.permute.xlu0 6
        %6483 = vperm.xlu0 %6482, %v6462
        %v6484 = vpop.permute.xlu0 %6483
        %6485 = vset.pattern.permute.xlu0 6
        %6486 = vperm.xlu0 %6485, %v6463
        %v6487 = vpop.permute.xlu0 %6486
        %6488 = vset.pattern.permute.xlu0 6
        %6489 = vperm.xlu0 %6488, %v6464
        %v6490 = vpop.permute.xlu0 %6489
        %6491 = vset.pattern.permute.xlu0 6
        %6492 = vperm.xlu0 %6491, %v6465
        %v6493 = vpop.permute.xlu0 %6492
        %6494 = vset.pattern.permute.xlu0 6
        %6495 = vperm.xlu0 %6494, %v6466
        %v6496 = vpop.permute.xlu0 %6495
        %6497 = vset.pattern.permute.xlu0 6
        %6498 = vperm.xlu0 %6497, %v6467
        %v6499 = vpop.permute.xlu0 %6498
        %6500 = vset.pattern.permute.xlu0 6
        %6501 = vperm.xlu0 %6500, %v6468
        %v6502 = vpop.permute.xlu0 %6501
        %6503 = vset.pattern.permute.xlu0 6
        %6504 = vperm.xlu0 %6503, %v6469
        %v6505 = vpop.permute.xlu0 %6504
        %6506 = vset.pattern.permute.xlu0 6
        %6507 = vperm.xlu0 %6506, %v6470
        %v6508 = vpop.permute.xlu0 %6507
        %6509 = vset.pattern.permute.xlu0 6
        %6510 = vperm.xlu0 %6509, %v6471
        %v6511 = vpop.permute.xlu0 %6510
        %6512 = vset.pattern.permute.xlu0 6
        %6513 = vperm.xlu0 %6512, %v6472
        %v6514 = vpop.permute.xlu0 %6513
        %6515 = vset.pattern.permute.xlu0 6
        %6516 = vperm.xlu0 %6515, %v6473
        %v6517 = vpop.permute.xlu0 %6516
        %6518 = vset.pattern.permute.xlu0 6
        %6519 = vperm.xlu0 %6518, %v6474
        %v6520 = vpop.permute.xlu0 %6519
        %6521 = vset.pattern.permute.xlu0 6
        %6522 = vperm.xlu0 %6521, %v6475
        %v6523 = vpop.permute.xlu0 %6522
        %vm6524 = vcmp.eq.s32.totalorder %v6478, 1
        %vm6525 = vcmp.eq.s32.totalorder %v6481, 1
        %vm6526 = vcmp.eq.s32.totalorder %v6484, 1
        %vm6527 = vcmp.eq.s32.totalorder %v6487, 1
        %vm6528 = vcmp.eq.s32.totalorder %v6490, 1
        %vm6529 = vcmp.eq.s32.totalorder %v6493, 1
        %vm6530 = vcmp.eq.s32.totalorder %v6496, 1
        %vm6531 = vcmp.eq.s32.totalorder %v6499, 1
        %vm6532 = vcmp.eq.s32.totalorder %v6502, 1
        %vm6533 = vcmp.eq.s32.totalorder %v6505, 1
        %vm6534 = vcmp.eq.s32.totalorder %v6508, 1
        %vm6535 = vcmp.eq.s32.totalorder %v6511, 1
        %vm6536 = vcmp.eq.s32.totalorder %v6514, 1
        %vm6537 = vcmp.eq.s32.totalorder %v6517, 1
        %vm6538 = vcmp.eq.s32.totalorder %v6520, 1
        %vm6539 = vcmp.eq.s32.totalorder %v6523, 1
        %vm6540 = vmpackc.low %vm6524, %vm6524
        %vm6541 = vmpackc.low %vm6525, %vm6525
        %vm6542 = vmpackc.low %vm6526, %vm6526
        %vm6543 = vmpackc.low %vm6527, %vm6527
        %vm6544 = vmpackc.low %vm6528, %vm6528
        %vm6545 = vmpackc.low %vm6529, %vm6529
        %vm6546 = vmpackc.low %vm6530, %vm6530
        %vm6547 = vmpackc.low %vm6531, %vm6531
        %vm6548 = vmpackc.low %vm6532, %vm6532
        %vm6549 = vmpackc.low %vm6533, %vm6533
        %vm6550 = vmpackc.low %vm6534, %vm6534
        %vm6551 = vmpackc.low %vm6535, %vm6535
        %vm6552 = vmpackc.low %vm6536, %vm6536
        %vm6553 = vmpackc.low %vm6537, %vm6537
        %vm6554 = vmpackc.low %vm6538, %vm6538
        %vm6555 = vmpackc.low %vm6539, %vm6539
        %v6556 = vsel %vm6540, %v6428, 0
        %v6557 = vsel %vm6541, %v6429, 0
        %v6558 = vsel %vm6542, %v6430, 0
        %v6559 = vsel %vm6543, %v6431, 0
        %v6560 = vsel %vm6544, %v6432, 0
        %v6561 = vsel %vm6545, %v6433, 0
        %v6562 = vsel %vm6546, %v6434, 0
        %v6563 = vsel %vm6547, %v6435, 0
        %v6564 = vsel %vm6548, %v6436, 0
        %v6565 = vsel %vm6549, %v6437, 0
        %v6566 = vsel %vm6550, %v6438, 0
        %v6567 = vsel %vm6551, %v6439, 0
        %v6568 = vsel %vm6552, %v6440, 0
        %v6569 = vsel %vm6553, %v6441, 0
        %v6570 = vsel %vm6554, %v6442, 0
        %v6571 = vsel %vm6555, %v6443, 0
        %vm6572 = vcmp.eq.s32.totalorder %v6396, 1
        %vm6573 = vcmp.eq.s32.totalorder %v6397, 1
        %vm6574 = vcmp.eq.s32.totalorder %v6398, 1
        %vm6575 = vcmp.eq.s32.totalorder %v6399, 1
        %vm6576 = vcmp.eq.s32.totalorder %v6400, 1
        %vm6577 = vcmp.eq.s32.totalorder %v6401, 1
        %vm6578 = vcmp.eq.s32.totalorder %v6402, 1
        %vm6579 = vcmp.eq.s32.totalorder %v6403, 1
        %vm6580 = vcmp.eq.s32.totalorder %v6404, 1
        %vm6581 = vcmp.eq.s32.totalorder %v6405, 1
        %vm6582 = vcmp.eq.s32.totalorder %v6406, 1
        %vm6583 = vcmp.eq.s32.totalorder %v6407, 1
        %vm6584 = vcmp.eq.s32.totalorder %v6408, 1
        %vm6585 = vcmp.eq.s32.totalorder %v6409, 1
        %vm6586 = vcmp.eq.s32.totalorder %v6410, 1
        %vm6587 = vcmp.eq.s32.totalorder %v6411, 1
        %v6588 = vsel %vm6572, 1, 0
        %v6589 = vsel %vm6573, 1, 0
        %v6590 = vsel %vm6574, 1, 0
        %v6591 = vsel %vm6575, 1, 0
        %v6592 = vsel %vm6576, 1, 0
        %v6593 = vsel %vm6577, 1, 0
        %v6594 = vsel %vm6578, 1, 0
        %v6595 = vsel %vm6579, 1, 0
        %v6596 = vsel %vm6580, 1, 0
        %v6597 = vsel %vm6581, 1, 0
        %v6598 = vsel %vm6582, 1, 0
        %v6599 = vsel %vm6583, 1, 0
        %v6600 = vsel %vm6584, 1, 0
        %v6601 = vsel %vm6585, 1, 0
        %v6602 = vsel %vm6586, 1, 0
        %v6603 = vsel %vm6587, 1, 0
        %6604 = vset.pattern.permute.xlu0 6
        %6605 = vperm.xlu0 %6604, %v6588
        %v6606 = vpop.permute.xlu0 %6605
        %6607 = vset.pattern.permute.xlu0 6
        %6608 = vperm.xlu0 %6607, %v6589
        %v6609 = vpop.permute.xlu0 %6608
        %6610 = vset.pattern.permute.xlu0 6
        %6611 = vperm.xlu0 %6610, %v6590
        %v6612 = vpop.permute.xlu0 %6611
        %6613 = vset.pattern.permute.xlu0 6
        %6614 = vperm.xlu0 %6613, %v6591
        %v6615 = vpop.permute.xlu0 %6614
        %6616 = vset.pattern.permute.xlu0 6
        %6617 = vperm.xlu0 %6616, %v6592
        %v6618 = vpop.permute.xlu0 %6617
        %6619 = vset.pattern.permute.xlu0 6
        %6620 = vperm.xlu0 %6619, %v6593
        %v6621 = vpop.permute.xlu0 %6620
        %6622 = vset.pattern.permute.xlu0 6
        %6623 = vperm.xlu0 %6622, %v6594
        %v6624 = vpop.permute.xlu0 %6623
        %6625 = vset.pattern.permute.xlu0 6
        %6626 = vperm.xlu0 %6625, %v6595
        %v6627 = vpop.permute.xlu0 %6626
        %6628 = vset.pattern.permute.xlu0 6
        %6629 = vperm.xlu0 %6628, %v6596
        %v6630 = vpop.permute.xlu0 %6629
        %6631 = vset.pattern.permute.xlu0 6
        %6632 = vperm.xlu0 %6631, %v6597
        %v6633 = vpop.permute.xlu0 %6632
        %6634 = vset.pattern.permute.xlu0 6
        %6635 = vperm.xlu0 %6634, %v6598
        %v6636 = vpop.permute.xlu0 %6635
        %6637 = vset.pattern.permute.xlu0 6
        %6638 = vperm.xlu0 %6637, %v6599
        %v6639 = vpop.permute.xlu0 %6638
        %6640 = vset.pattern.permute.xlu0 6
        %6641 = vperm.xlu0 %6640, %v6600
        %v6642 = vpop.permute.xlu0 %6641
        %6643 = vset.pattern.permute.xlu0 6
        %6644 = vperm.xlu0 %6643, %v6601
        %v6645 = vpop.permute.xlu0 %6644
        %6646 = vset.pattern.permute.xlu0 6
        %6647 = vperm.xlu0 %6646, %v6602
        %v6648 = vpop.permute.xlu0 %6647
        %6649 = vset.pattern.permute.xlu0 6
        %6650 = vperm.xlu0 %6649, %v6603
        %v6651 = vpop.permute.xlu0 %6650
        %vm6652 = vcmp.eq.s32.totalorder %v6606, 1
        %vm6653 = vcmp.eq.s32.totalorder %v6609, 1
        %vm6654 = vcmp.eq.s32.totalorder %v6612, 1
        %vm6655 = vcmp.eq.s32.totalorder %v6615, 1
        %vm6656 = vcmp.eq.s32.totalorder %v6618, 1
        %vm6657 = vcmp.eq.s32.totalorder %v6621, 1
        %vm6658 = vcmp.eq.s32.totalorder %v6624, 1
        %vm6659 = vcmp.eq.s32.totalorder %v6627, 1
        %vm6660 = vcmp.eq.s32.totalorder %v6630, 1
        %vm6661 = vcmp.eq.s32.totalorder %v6633, 1
        %vm6662 = vcmp.eq.s32.totalorder %v6636, 1
        %vm6663 = vcmp.eq.s32.totalorder %v6639, 1
        %vm6664 = vcmp.eq.s32.totalorder %v6642, 1
        %vm6665 = vcmp.eq.s32.totalorder %v6645, 1
        %vm6666 = vcmp.eq.s32.totalorder %v6648, 1
        %vm6667 = vcmp.eq.s32.totalorder %v6651, 1
        %vm6668 = vmpackc.low %vm6652, %vm6652
        %vm6669 = vmpackc.low %vm6653, %vm6653
        %vm6670 = vmpackc.low %vm6654, %vm6654
        %vm6671 = vmpackc.low %vm6655, %vm6655
        %vm6672 = vmpackc.low %vm6656, %vm6656
        %vm6673 = vmpackc.low %vm6657, %vm6657
        %vm6674 = vmpackc.low %vm6658, %vm6658
        %vm6675 = vmpackc.low %vm6659, %vm6659
        %vm6676 = vmpackc.low %vm6660, %vm6660
        %vm6677 = vmpackc.low %vm6661, %vm6661
        %vm6678 = vmpackc.low %vm6662, %vm6662
        %vm6679 = vmpackc.low %vm6663, %vm6663
        %vm6680 = vmpackc.low %vm6664, %vm6664
        %vm6681 = vmpackc.low %vm6665, %vm6665
        %vm6682 = vmpackc.low %vm6666, %vm6666
        %vm6683 = vmpackc.low %vm6667, %vm6667
        %v6684 = vsel %vm6668, %v6428, 0
        %v6685 = vsel %vm6669, %v6429, 0
        %v6686 = vsel %vm6670, %v6430, 0
        %v6687 = vsel %vm6671, %v6431, 0
        %v6688 = vsel %vm6672, %v6432, 0
        %v6689 = vsel %vm6673, %v6433, 0
        %v6690 = vsel %vm6674, %v6434, 0
        %v6691 = vsel %vm6675, %v6435, 0
        %v6692 = vsel %vm6676, %v6436, 0
        %v6693 = vsel %vm6677, %v6437, 0
        %v6694 = vsel %vm6678, %v6438, 0
        %v6695 = vsel %vm6679, %v6439, 0
        %v6696 = vsel %vm6680, %v6440, 0
        %v6697 = vsel %vm6681, %v6441, 0
        %v6698 = vsel %vm6682, %v6442, 0
        %v6699 = vsel %vm6683, %v6443, 0
        %v6716 = vunpack.c.l.b16 %v6556
        %v6717 = vunpack.c.l.b16 %v6557
        %v6718 = vunpack.c.l.b16 %v6558
        %v6719 = vunpack.c.l.b16 %v6559
        %v6720 = vunpack.c.l.b16 %v6560
        %v6721 = vunpack.c.l.b16 %v6561
        %v6722 = vunpack.c.l.b16 %v6562
        %v6723 = vunpack.c.l.b16 %v6563
        %v6724 = vunpack.c.l.b16 %v6564
        %v6725 = vunpack.c.l.b16 %v6565
        %v6726 = vunpack.c.l.b16 %v6566
        %v6727 = vunpack.c.l.b16 %v6567
        %v6728 = vunpack.c.l.b16 %v6568
        %v6729 = vunpack.c.l.b16 %v6569
        %v6730 = vunpack.c.l.b16 %v6570
        %v6731 = vunpack.c.l.b16 %v6571
        %v6732 = vpack.c.b16 %v6717, %v6716
        %v6733 = vpack.c.b16 %v6719, %v6718
        %v6734 = vpack.c.b16 %v6721, %v6720
        %v6735 = vpack.c.b16 %v6723, %v6722
        %v6736 = vpack.c.b16 %v6725, %v6724
        %v6737 = vpack.c.b16 %v6727, %v6726
        %v6738 = vpack.c.b16 %v6729, %v6728
        %v6739 = vpack.c.b16 %v6731, %v6730
        %v6764 = vunpack.c.l.b16 %v6684
        %v6765 = vunpack.c.l.b16 %v6685
        %v6766 = vunpack.c.l.b16 %v6686
        %v6767 = vunpack.c.l.b16 %v6687
        %v6768 = vunpack.c.l.b16 %v6688
        %v6769 = vunpack.c.l.b16 %v6689
        %v6770 = vunpack.c.l.b16 %v6690
        %v6771 = vunpack.c.l.b16 %v6691
        %v6772 = vunpack.c.l.b16 %v6692
        %v6773 = vunpack.c.l.b16 %v6693
        %v6774 = vunpack.c.l.b16 %v6694
        %v6775 = vunpack.c.l.b16 %v6695
        %v6776 = vunpack.c.l.b16 %v6696
        %v6777 = vunpack.c.l.b16 %v6697
        %v6778 = vunpack.c.l.b16 %v6698
        %v6779 = vunpack.c.l.b16 %v6699
        %v6780 = vpack.c.b16 %v6765, %v6764
        %v6781 = vpack.c.b16 %v6767, %v6766
        %v6782 = vpack.c.b16 %v6769, %v6768
        %v6783 = vpack.c.b16 %v6771, %v6770
        %v6784 = vpack.c.b16 %v6773, %v6772
        %v6785 = vpack.c.b16 %v6775, %v6774
        %v6786 = vpack.c.b16 %v6777, %v6776
        %v6787 = vpack.c.b16 %v6779, %v6778
        %v6796 = vld [vmem:[%s1] sm:$0xf]
        %v6797 = vld [vmem:[%s1 + $0x4] sm:$0xf]
        %v6798 = vld [vmem:[%s1 + $0x8] sm:$0xf]
        %v6799 = vld [vmem:[%s1 + $0xc] sm:$0xf]
        %v6800 = vld [vmem:[%s1 + $0x10] sm:$0xf]
        %v6801 = vld [vmem:[%s1 + $0x14] sm:$0xf]
        %v6802 = vld [vmem:[%s1 + $0x18] sm:$0xf]
        %v6803 = vld [vmem:[%s1 + $0x1c] sm:$0xf]
        %v6804 = vld [vmem:[%s1 + $0x20] sm:$0xf]
        %v6805 = vld [vmem:[%s1 + $0x24] sm:$0xf]
        %v6806 = vld [vmem:[%s1 + $0x28] sm:$0xf]
        %v6807 = vld [vmem:[%s1 + $0x2c] sm:$0xf]
        %v6808 = vld [vmem:[%s1 + $0x30] sm:$0xf]
        %v6809 = vld [vmem:[%s1 + $0x34] sm:$0xf]
        %v6810 = vld [vmem:[%s1 + $0x38] sm:$0xf]
        %v6811 = vld [vmem:[%s1 + $0x3c] sm:$0xf]
        %v6812 = vld [vmem:[%s1 + $0x40] sm:$0xf]
        %v6813 = vld [vmem:[%s1 + $0x44] sm:$0xf]
        %v6814 = vld [vmem:[%s1 + $0x48] sm:$0xf]
        %v6815 = vld [vmem:[%s1 + $0x4c] sm:$0xf]
        %v6816 = vld [vmem:[%s1 + $0x50] sm:$0xf]
        %v6817 = vld [vmem:[%s1 + $0x54] sm:$0xf]
        %v6818 = vld [vmem:[%s1 + $0x58] sm:$0xf]
        %v6819 = vld [vmem:[%s1 + $0x5c] sm:$0xf]
        %v6820 = vld [vmem:[%s1 + $0x60] sm:$0xf]
        %v6821 = vld [vmem:[%s1 + $0x64] sm:$0xf]
        %v6822 = vld [vmem:[%s1 + $0x68] sm:$0xf]
        %v6823 = vld [vmem:[%s1 + $0x6c] sm:$0xf]
        %v6824 = vld [vmem:[%s1 + $0x70] sm:$0xf]
        %v6825 = vld [vmem:[%s1 + $0x74] sm:$0xf]
        %v6826 = vld [vmem:[%s1 + $0x78] sm:$0xf]
        %v6827 = vld [vmem:[%s1 + $0x7c] sm:$0xf]
        %vm6828 = vcmp.eq.s32.totalorder %v6396, 2
        %vm6829 = vcmp.eq.s32.totalorder %v6397, 2
        %vm6830 = vcmp.eq.s32.totalorder %v6398, 2
        %vm6831 = vcmp.eq.s32.totalorder %v6399, 2
        %vm6832 = vcmp.eq.s32.totalorder %v6400, 2
        %vm6833 = vcmp.eq.s32.totalorder %v6401, 2
        %vm6834 = vcmp.eq.s32.totalorder %v6402, 2
        %vm6835 = vcmp.eq.s32.totalorder %v6403, 2
        %vm6836 = vcmp.eq.s32.totalorder %v6404, 2
        %vm6837 = vcmp.eq.s32.totalorder %v6405, 2
        %vm6838 = vcmp.eq.s32.totalorder %v6406, 2
        %vm6839 = vcmp.eq.s32.totalorder %v6407, 2
        %vm6840 = vcmp.eq.s32.totalorder %v6408, 2
        %vm6841 = vcmp.eq.s32.totalorder %v6409, 2
        %vm6842 = vcmp.eq.s32.totalorder %v6410, 2
        %vm6843 = vcmp.eq.s32.totalorder %v6411, 2
        %v6844 = vsel %vm6828, 1, 0
        %v6845 = vsel %vm6829, 1, 0
        %v6846 = vsel %vm6830, 1, 0
        %v6847 = vsel %vm6831, 1, 0
        %v6848 = vsel %vm6832, 1, 0
        %v6849 = vsel %vm6833, 1, 0
        %v6850 = vsel %vm6834, 1, 0
        %v6851 = vsel %vm6835, 1, 0
        %v6852 = vsel %vm6836, 1, 0
        %v6853 = vsel %vm6837, 1, 0
        %v6854 = vsel %vm6838, 1, 0
        %v6855 = vsel %vm6839, 1, 0
        %v6856 = vsel %vm6840, 1, 0
        %v6857 = vsel %vm6841, 1, 0
        %v6858 = vsel %vm6842, 1, 0
        %v6859 = vsel %vm6843, 1, 0
        %6860 = vset.pattern.permute.xlu0 6
        %6861 = vperm.xlu0 %6860, %v6844
        %v6862 = vpop.permute.xlu0 %6861
        %6863 = vset.pattern.permute.xlu0 6
        %6864 = vperm.xlu0 %6863, %v6845
        %v6865 = vpop.permute.xlu0 %6864
        %6866 = vset.pattern.permute.xlu0 6
        %6867 = vperm.xlu0 %6866, %v6846
        %v6868 = vpop.permute.xlu0 %6867
        %6869 = vset.pattern.permute.xlu0 6
        %6870 = vperm.xlu0 %6869, %v6847
        %v6871 = vpop.permute.xlu0 %6870
        %6872 = vset.pattern.permute.xlu0 6
        %6873 = vperm.xlu0 %6872, %v6848
        %v6874 = vpop.permute.xlu0 %6873
        %6875 = vset.pattern.permute.xlu0 6
        %6876 = vperm.xlu0 %6875, %v6849
        %v6877 = vpop.permute.xlu0 %6876
        %6878 = vset.pattern.permute.xlu0 6
        %6879 = vperm.xlu0 %6878, %v6850
        %v6880 = vpop.permute.xlu0 %6879
        %6881 = vset.pattern.permute.xlu0 6
        %6882 = vperm.xlu0 %6881, %v6851
        %v6883 = vpop.permute.xlu0 %6882
        %6884 = vset.pattern.permute.xlu0 6
        %6885 = vperm.xlu0 %6884, %v6852
        %v6886 = vpop.permute.xlu0 %6885
        %6887 = vset.pattern.permute.xlu0 6
        %6888 = vperm.xlu0 %6887, %v6853
        %v6889 = vpop.permute.xlu0 %6888
        %6890 = vset.pattern.permute.xlu0 6
        %6891 = vperm.xlu0 %6890, %v6854
        %v6892 = vpop.permute.xlu0 %6891
        %6893 = vset.pattern.permute.xlu0 6
        %6894 = vperm.xlu0 %6893, %v6855
        %v6895 = vpop.permute.xlu0 %6894
        %6896 = vset.pattern.permute.xlu0 6
        %6897 = vperm.xlu0 %6896, %v6856
        %v6898 = vpop.permute.xlu0 %6897
        %6899 = vset.pattern.permute.xlu0 6
        %6900 = vperm.xlu0 %6899, %v6857
        %v6901 = vpop.permute.xlu0 %6900
        %6902 = vset.pattern.permute.xlu0 6
        %6903 = vperm.xlu0 %6902, %v6858
        %v6904 = vpop.permute.xlu0 %6903
        %6905 = vset.pattern.permute.xlu0 6
        %6906 = vperm.xlu0 %6905, %v6859
        %v6907 = vpop.permute.xlu0 %6906
        %vm6908 = vcmp.eq.s32.totalorder %v6862, 1
        %vm6909 = vcmp.eq.s32.totalorder %v6865, 1
        %vm6910 = vcmp.eq.s32.totalorder %v6868, 1
        %vm6911 = vcmp.eq.s32.totalorder %v6871, 1
        %vm6912 = vcmp.eq.s32.totalorder %v6874, 1
        %vm6913 = vcmp.eq.s32.totalorder %v6877, 1
        %vm6914 = vcmp.eq.s32.totalorder %v6880, 1
        %vm6915 = vcmp.eq.s32.totalorder %v6883, 1
        %vm6916 = vcmp.eq.s32.totalorder %v6886, 1
        %vm6917 = vcmp.eq.s32.totalorder %v6889, 1
        %vm6918 = vcmp.eq.s32.totalorder %v6892, 1
        %vm6919 = vcmp.eq.s32.totalorder %v6895, 1
        %vm6920 = vcmp.eq.s32.totalorder %v6898, 1
        %vm6921 = vcmp.eq.s32.totalorder %v6901, 1
        %vm6922 = vcmp.eq.s32.totalorder %v6904, 1
        %vm6923 = vcmp.eq.s32.totalorder %v6907, 1
        %vm6924 = vmpackc.low %vm6908, %vm6908
        %vm6925 = vmpackc.low %vm6909, %vm6909
        %vm6926 = vmpackc.low %vm6910, %vm6910
        %vm6927 = vmpackc.low %vm6911, %vm6911
        %vm6928 = vmpackc.low %vm6912, %vm6912
        %vm6929 = vmpackc.low %vm6913, %vm6913
        %vm6930 = vmpackc.low %vm6914, %vm6914
        %vm6931 = vmpackc.low %vm6915, %vm6915
        %vm6932 = vmpackc.low %vm6916, %vm6916
        %vm6933 = vmpackc.low %vm6917, %vm6917
        %vm6934 = vmpackc.low %vm6918, %vm6918
        %vm6935 = vmpackc.low %vm6919, %vm6919
        %vm6936 = vmpackc.low %vm6920, %vm6920
        %vm6937 = vmpackc.low %vm6921, %vm6921
        %vm6938 = vmpackc.low %vm6922, %vm6922
        %vm6939 = vmpackc.low %vm6923, %vm6923
        %v6940 = vsel %vm6924, %v6428, 0
        %v6941 = vsel %vm6925, %v6429, 0
        %v6942 = vsel %vm6926, %v6430, 0
        %v6943 = vsel %vm6927, %v6431, 0
        %v6944 = vsel %vm6928, %v6432, 0
        %v6945 = vsel %vm6929, %v6433, 0
        %v6946 = vsel %vm6930, %v6434, 0
        %v6947 = vsel %vm6931, %v6435, 0
        %v6948 = vsel %vm6932, %v6436, 0
        %v6949 = vsel %vm6933, %v6437, 0
        %v6950 = vsel %vm6934, %v6438, 0
        %v6951 = vsel %vm6935, %v6439, 0
        %v6952 = vsel %vm6936, %v6440, 0
        %v6953 = vsel %vm6937, %v6441, 0
        %v6954 = vsel %vm6938, %v6442, 0
        %v6955 = vsel %vm6939, %v6443, 0
        %vm6956 = vcmp.eq.s32.totalorder %v6396, 3
        %vm6957 = vcmp.eq.s32.totalorder %v6397, 3
        %vm6958 = vcmp.eq.s32.totalorder %v6398, 3
        %vm6959 = vcmp.eq.s32.totalorder %v6399, 3
        %vm6960 = vcmp.eq.s32.totalorder %v6400, 3
        %vm6961 = vcmp.eq.s32.totalorder %v6401, 3
        %vm6962 = vcmp.eq.s32.totalorder %v6402, 3
        %vm6963 = vcmp.eq.s32.totalorder %v6403, 3
        %vm6964 = vcmp.eq.s32.totalorder %v6404, 3
        %vm6965 = vcmp.eq.s32.totalorder %v6405, 3
        %vm6966 = vcmp.eq.s32.totalorder %v6406, 3
        %vm6967 = vcmp.eq.s32.totalorder %v6407, 3
        %vm6968 = vcmp.eq.s32.totalorder %v6408, 3
        %vm6969 = vcmp.eq.s32.totalorder %v6409, 3
        %vm6970 = vcmp.eq.s32.totalorder %v6410, 3
        %vm6971 = vcmp.eq.s32.totalorder %v6411, 3
        %v6972 = vsel %vm6956, 1, 0
        %v6973 = vsel %vm6957, 1, 0
        %v6974 = vsel %vm6958, 1, 0
        %v6975 = vsel %vm6959, 1, 0
        %v6976 = vsel %vm6960, 1, 0
        %v6977 = vsel %vm6961, 1, 0
        %v6978 = vsel %vm6962, 1, 0
        %v6979 = vsel %vm6963, 1, 0
        %v6980 = vsel %vm6964, 1, 0
        %v6981 = vsel %vm6965, 1, 0
        %v6982 = vsel %vm6966, 1, 0
        %v6983 = vsel %vm6967, 1, 0
        %v6984 = vsel %vm6968, 1, 0
        %v6985 = vsel %vm6969, 1, 0
        %v6986 = vsel %vm6970, 1, 0
        %v6987 = vsel %vm6971, 1, 0
        %6988 = vset.pattern.permute.xlu0 6
        %6989 = vperm.xlu0 %6988, %v6972
        %v6990 = vpop.permute.xlu0 %6989
        %6991 = vset.pattern.permute.xlu0 6
        %6992 = vperm.xlu0 %6991, %v6973
        %v6993 = vpop.permute.xlu0 %6992
        %6994 = vset.pattern.permute.xlu0 6
        %6995 = vperm.xlu0 %6994, %v6974
        %v6996 = vpop.permute.xlu0 %6995
        %6997 = vset.pattern.permute.xlu0 6
        %6998 = vperm.xlu0 %6997, %v6975
        %v6999 = vpop.permute.xlu0 %6998
        %7000 = vset.pattern.permute.xlu0 6
        %7001 = vperm.xlu0 %7000, %v6976
        %v7002 = vpop.permute.xlu0 %7001
        %7003 = vset.pattern.permute.xlu0 6
        %7004 = vperm.xlu0 %7003, %v6977
        %v7005 = vpop.permute.xlu0 %7004
        %7006 = vset.pattern.permute.xlu0 6
        %7007 = vperm.xlu0 %7006, %v6978
        %v7008 = vpop.permute.xlu0 %7007
        %7009 = vset.pattern.permute.xlu0 6
        %7010 = vperm.xlu0 %7009, %v6979
        %v7011 = vpop.permute.xlu0 %7010
        %7012 = vset.pattern.permute.xlu0 6
        %7013 = vperm.xlu0 %7012, %v6980
        %v7014 = vpop.permute.xlu0 %7013
        %7015 = vset.pattern.permute.xlu0 6
        %7016 = vperm.xlu0 %7015, %v6981
        %v7017 = vpop.permute.xlu0 %7016
        %7018 = vset.pattern.permute.xlu0 6
        %7019 = vperm.xlu0 %7018, %v6982
        %v7020 = vpop.permute.xlu0 %7019
        %7021 = vset.pattern.permute.xlu0 6
        %7022 = vperm.xlu0 %7021, %v6983
        %v7023 = vpop.permute.xlu0 %7022
        %7024 = vset.pattern.permute.xlu0 6
        %7025 = vperm.xlu0 %7024, %v6984
        %v7026 = vpop.permute.xlu0 %7025
        %7027 = vset.pattern.permute.xlu0 6
        %7028 = vperm.xlu0 %7027, %v6985
        %v7029 = vpop.permute.xlu0 %7028
        %7030 = vset.pattern.permute.xlu0 6
        %7031 = vperm.xlu0 %7030, %v6986
        %v7032 = vpop.permute.xlu0 %7031
        %7033 = vset.pattern.permute.xlu0 6
        %7034 = vperm.xlu0 %7033, %v6987
        %v7035 = vpop.permute.xlu0 %7034
        %vm7036 = vcmp.eq.s32.totalorder %v6990, 1
        %vm7037 = vcmp.eq.s32.totalorder %v6993, 1
        %vm7038 = vcmp.eq.s32.totalorder %v6996, 1
        %vm7039 = vcmp.eq.s32.totalorder %v6999, 1
        %vm7040 = vcmp.eq.s32.totalorder %v7002, 1
        %vm7041 = vcmp.eq.s32.totalorder %v7005, 1
        %vm7042 = vcmp.eq.s32.totalorder %v7008, 1
        %vm7043 = vcmp.eq.s32.totalorder %v7011, 1
        %vm7044 = vcmp.eq.s32.totalorder %v7014, 1
        %vm7045 = vcmp.eq.s32.totalorder %v7017, 1
        %vm7046 = vcmp.eq.s32.totalorder %v7020, 1
        %vm7047 = vcmp.eq.s32.totalorder %v7023, 1
        %vm7048 = vcmp.eq.s32.totalorder %v7026, 1
        %vm7049 = vcmp.eq.s32.totalorder %v7029, 1
        %vm7050 = vcmp.eq.s32.totalorder %v7032, 1
        %vm7051 = vcmp.eq.s32.totalorder %v7035, 1
        %vm7052 = vmpackc.low %vm7036, %vm7036
        %vm7053 = vmpackc.low %vm7037, %vm7037
        %vm7054 = vmpackc.low %vm7038, %vm7038
        %vm7055 = vmpackc.low %vm7039, %vm7039
        %vm7056 = vmpackc.low %vm7040, %vm7040
        %vm7057 = vmpackc.low %vm7041, %vm7041
        %vm7058 = vmpackc.low %vm7042, %vm7042
        %vm7059 = vmpackc.low %vm7043, %vm7043
        %vm7060 = vmpackc.low %vm7044, %vm7044
        %vm7061 = vmpackc.low %vm7045, %vm7045
        %vm7062 = vmpackc.low %vm7046, %vm7046
        %vm7063 = vmpackc.low %vm7047, %vm7047
        %vm7064 = vmpackc.low %vm7048, %vm7048
        %vm7065 = vmpackc.low %vm7049, %vm7049
        %vm7066 = vmpackc.low %vm7050, %vm7050
        %vm7067 = vmpackc.low %vm7051, %vm7051
        %v7068 = vsel %vm7052, %v6428, 0
        %v7069 = vsel %vm7053, %v6429, 0
        %v7070 = vsel %vm7054, %v6430, 0
        %v7071 = vsel %vm7055, %v6431, 0
        %v7072 = vsel %vm7056, %v6432, 0
        %v7073 = vsel %vm7057, %v6433, 0
        %v7074 = vsel %vm7058, %v6434, 0
        %v7075 = vsel %vm7059, %v6435, 0
        %v7076 = vsel %vm7060, %v6436, 0
        %v7077 = vsel %vm7061, %v6437, 0
        %v7078 = vsel %vm7062, %v6438, 0
        %v7079 = vsel %vm7063, %v6439, 0
        %v7080 = vsel %vm7064, %v6440, 0
        %v7081 = vsel %vm7065, %v6441, 0
        %v7082 = vsel %vm7066, %v6442, 0
        %v7083 = vsel %vm7067, %v6443, 0
        %v7100 = vunpack.c.l.b16 %v6940
        %v7101 = vunpack.c.l.b16 %v6941
        %v7102 = vunpack.c.l.b16 %v6942
        %v7103 = vunpack.c.l.b16 %v6943
        %v7104 = vunpack.c.l.b16 %v6944
        %v7105 = vunpack.c.l.b16 %v6945
        %v7106 = vunpack.c.l.b16 %v6946
        %v7107 = vunpack.c.l.b16 %v6947
        %v7108 = vunpack.c.l.b16 %v6948
        %v7109 = vunpack.c.l.b16 %v6949
        %v7110 = vunpack.c.l.b16 %v6950
        %v7111 = vunpack.c.l.b16 %v6951
        %v7112 = vunpack.c.l.b16 %v6952
        %v7113 = vunpack.c.l.b16 %v6953
        %v7114 = vunpack.c.l.b16 %v6954
        %v7115 = vunpack.c.l.b16 %v6955
        %v7116 = vpack.c.b16 %v7101, %v7100
        %v7117 = vpack.c.b16 %v7103, %v7102
        %v7118 = vpack.c.b16 %v7105, %v7104
        %v7119 = vpack.c.b16 %v7107, %v7106
        %v7120 = vpack.c.b16 %v7109, %v7108
        %v7121 = vpack.c.b16 %v7111, %v7110
        %v7122 = vpack.c.b16 %v7113, %v7112
        %v7123 = vpack.c.b16 %v7115, %v7114
        %v7148 = vunpack.c.l.b16 %v7068
        %v7149 = vunpack.c.l.b16 %v7069
        %v7150 = vunpack.c.l.b16 %v7070
        %v7151 = vunpack.c.l.b16 %v7071
        %v7152 = vunpack.c.l.b16 %v7072
        %v7153 = vunpack.c.l.b16 %v7073
        %v7154 = vunpack.c.l.b16 %v7074
        %v7155 = vunpack.c.l.b16 %v7075
        %v7156 = vunpack.c.l.b16 %v7076
        %v7157 = vunpack.c.l.b16 %v7077
        %v7158 = vunpack.c.l.b16 %v7078
        %v7159 = vunpack.c.l.b16 %v7079
        %v7160 = vunpack.c.l.b16 %v7080
        %v7161 = vunpack.c.l.b16 %v7081
        %v7162 = vunpack.c.l.b16 %v7082
        %v7163 = vunpack.c.l.b16 %v7083
        %v7164 = vpack.c.b16 %v7149, %v7148
        %v7165 = vpack.c.b16 %v7151, %v7150
        %v7166 = vpack.c.b16 %v7153, %v7152
        %v7167 = vpack.c.b16 %v7155, %v7154
        %v7168 = vpack.c.b16 %v7157, %v7156
        %v7169 = vpack.c.b16 %v7159, %v7158
        %v7170 = vpack.c.b16 %v7161, %v7160
        %v7171 = vpack.c.b16 %v7163, %v7162
        %v7180 = vld [vmem:[%s1 + $0x80] sm:$0xf]
        %v7181 = vld [vmem:[%s1 + $0x84] sm:$0xf]
        %v7182 = vld [vmem:[%s1 + $0x88] sm:$0xf]
        %v7183 = vld [vmem:[%s1 + $0x8c] sm:$0xf]
        %v7184 = vld [vmem:[%s1 + $0x90] sm:$0xf]
        %v7185 = vld [vmem:[%s1 + $0x94] sm:$0xf]
        %v7186 = vld [vmem:[%s1 + $0x98] sm:$0xf]
        %v7187 = vld [vmem:[%s1 + $0x9c] sm:$0xf]
        %v7188 = vld [vmem:[%s1 + $0xa0] sm:$0xf]
        %v7189 = vld [vmem:[%s1 + $0xa4] sm:$0xf]
        %v7190 = vld [vmem:[%s1 + $0xa8] sm:$0xf]
        %v7191 = vld [vmem:[%s1 + $0xac] sm:$0xf]
        %v7192 = vld [vmem:[%s1 + $0xb0] sm:$0xf]
        %v7193 = vld [vmem:[%s1 + $0xb4] sm:$0xf]
        %v7194 = vld [vmem:[%s1 + $0xb8] sm:$0xf]
        %v7195 = vld [vmem:[%s1 + $0xbc] sm:$0xf]
        %v7196 = vld [vmem:[%s1 + $0xc0] sm:$0xf]
        %v7197 = vld [vmem:[%s1 + $0xc4] sm:$0xf]
        %v7198 = vld [vmem:[%s1 + $0xc8] sm:$0xf]
        %v7199 = vld [vmem:[%s1 + $0xcc] sm:$0xf]
        %v7200 = vld [vmem:[%s1 + $0xd0] sm:$0xf]
        %v7201 = vld [vmem:[%s1 + $0xd4] sm:$0xf]
        %v7202 = vld [vmem:[%s1 + $0xd8] sm:$0xf]
        %v7203 = vld [vmem:[%s1 + $0xdc] sm:$0xf]
        %v7204 = vld [vmem:[%s1 + $0xe0] sm:$0xf]
        %v7205 = vld [vmem:[%s1 + $0xe4] sm:$0xf]
        %v7206 = vld [vmem:[%s1 + $0xe8] sm:$0xf]
        %v7207 = vld [vmem:[%s1 + $0xec] sm:$0xf]
        %v7208 = vld [vmem:[%s1 + $0xf0] sm:$0xf]
        %v7209 = vld [vmem:[%s1 + $0xf4] sm:$0xf]
        %v7210 = vld [vmem:[%s1 + $0xf8] sm:$0xf]
        %v7211 = vld [vmem:[%s1 + $0xfc] sm:$0xf]
        %v7244 = vunpack.c.l.b16 %v7180
        %v7245 = vunpack.c.l.b16 %v7181
        %v7246 = vunpack.c.l.b16 %v7182
        %v7247 = vunpack.c.l.b16 %v7183
        %v7248 = vunpack.c.l.b16 %v7184
        %v7249 = vunpack.c.l.b16 %v7185
        %v7250 = vunpack.c.l.b16 %v7186
        %v7251 = vunpack.c.l.b16 %v7187
        %v7252 = vunpack.c.l.b16 %v7188
        %v7253 = vunpack.c.l.b16 %v7189
        %v7254 = vunpack.c.l.b16 %v7190
        %v7255 = vunpack.c.l.b16 %v7191
        %v7256 = vunpack.c.l.b16 %v7192
        %v7257 = vunpack.c.l.b16 %v7193
        %v7258 = vunpack.c.l.b16 %v7194
        %v7259 = vunpack.c.l.b16 %v7195
        %v7260 = vunpack.c.l.b16 %v7196
        %v7261 = vunpack.c.l.b16 %v7197
        %v7262 = vunpack.c.l.b16 %v7198
        %v7263 = vunpack.c.l.b16 %v7199
        %v7264 = vunpack.c.l.b16 %v7200
        %v7265 = vunpack.c.l.b16 %v7201
        %v7266 = vunpack.c.l.b16 %v7202
        %v7267 = vunpack.c.l.b16 %v7203
        %v7268 = vunpack.c.l.b16 %v7204
        %v7269 = vunpack.c.l.b16 %v7205
        %v7270 = vunpack.c.l.b16 %v7206
        %v7271 = vunpack.c.l.b16 %v7207
        %v7272 = vunpack.c.l.b16 %v7208
        %v7273 = vunpack.c.l.b16 %v7209
        %v7274 = vunpack.c.l.b16 %v7210
        %v7275 = vunpack.c.l.b16 %v7211
        %v7276 = vpack.c.b16 %v7245, %v7244
        %v7277 = vpack.c.b16 %v7247, %v7246
        %v7278 = vpack.c.b16 %v7249, %v7248
        %v7279 = vpack.c.b16 %v7251, %v7250
        %v7280 = vpack.c.b16 %v7253, %v7252
        %v7281 = vpack.c.b16 %v7255, %v7254
        %v7282 = vpack.c.b16 %v7257, %v7256
        %v7283 = vpack.c.b16 %v7259, %v7258
        %v7284 = vpack.c.b16 %v7261, %v7260
        %v7285 = vpack.c.b16 %v7263, %v7262
        %v7286 = vpack.c.b16 %v7265, %v7264
        %v7287 = vpack.c.b16 %v7267, %v7266
        %v7288 = vpack.c.b16 %v7269, %v7268
        %v7289 = vpack.c.b16 %v7271, %v7270
        %v7290 = vpack.c.b16 %v7273, %v7272
        %v7291 = vpack.c.b16 %v7275, %v7274
        %7308 = vmatpush.bf16.msra.mxu0 %v7283
        %7309 = vmatpush.bf16.msra.mxu0 %v7282
        %7310 = vmatpush.bf16.msra.mxu0 %v7281
        %7311 = vmatpush.bf16.msra.mxu0 %v7280
        %7312 = vmatpush.bf16.msra.mxu0 %v7279
        %7313 = vmatpush.bf16.msra.mxu0 %v7278
        %7314 = vmatpush.bf16.msra.mxu0 %v7277
        %7315 = vmatpush.bf16.msra.mxu0 %v7276
        %7316 = vmatmul.bf16.gmra.mxu0 %v7116
        %v7317 = vpop.f32.mrf.mxu0
        %v7318 = vadd.f32 0.0, %v7317
        %v7319 = vpop.f32.mrf.mxu0
        %v7320 = vadd.f32 0.0, %v7319
        %7321 = vmatmul.bf16.gmra.mxu0 %v7117
        %v7322 = vpop.f32.mrf.mxu0
        %v7323 = vadd.f32 0.0, %v7322
        %v7324 = vpop.f32.mrf.mxu0
        %v7325 = vadd.f32 0.0, %v7324
        %7326 = vmatmul.bf16.gmra.mxu0 %v7118
        %v7327 = vpop.f32.mrf.mxu0
        %v7328 = vadd.f32 0.0, %v7327
        %v7329 = vpop.f32.mrf.mxu0
        %v7330 = vadd.f32 0.0, %v7329
        %7331 = vmatmul.bf16.gmra.mxu0 %v7119
        %v7332 = vpop.f32.mrf.mxu0
        %v7333 = vadd.f32 0.0, %v7332
        %v7334 = vpop.f32.mrf.mxu0
        %v7335 = vadd.f32 0.0, %v7334
        %7336 = vmatmul.bf16.gmra.mxu0 %v7120
        %v7337 = vpop.f32.mrf.mxu0
        %v7338 = vadd.f32 0.0, %v7337
        %v7339 = vpop.f32.mrf.mxu0
        %v7340 = vadd.f32 0.0, %v7339
        %7341 = vmatmul.bf16.gmra.mxu0 %v7121
        %v7342 = vpop.f32.mrf.mxu0
        %v7343 = vadd.f32 0.0, %v7342
        %v7344 = vpop.f32.mrf.mxu0
        %v7345 = vadd.f32 0.0, %v7344
        %7346 = vmatmul.bf16.gmra.mxu0 %v7122
        %v7347 = vpop.f32.mrf.mxu0
        %v7348 = vadd.f32 0.0, %v7347
        %v7349 = vpop.f32.mrf.mxu0
        %v7350 = vadd.f32 0.0, %v7349
        %7351 = vmatmul.bf16.gmra.mxu0 %v7123
        %v7352 = vpop.f32.mrf.mxu0
        %v7353 = vadd.f32 0.0, %v7352
        %v7354 = vpop.f32.mrf.mxu0
        %v7355 = vadd.f32 0.0, %v7354
        %7356 = vdwg.mxu0
        %7357 = vmatpush.bf16.msra.mxu0 %v7291
        %7358 = vmatpush.bf16.msra.mxu0 %v7290
        %7359 = vmatpush.bf16.msra.mxu0 %v7289
        %7360 = vmatpush.bf16.msra.mxu0 %v7288
        %7361 = vmatpush.bf16.msra.mxu0 %v7287
        %7362 = vmatpush.bf16.msra.mxu0 %v7286
        %7363 = vmatpush.bf16.msra.mxu0 %v7285
        %7364 = vmatpush.bf16.msra.mxu0 %v7284
        %7365 = vmatmul.bf16.gmra.mxu0 %v7164
        %v7366 = vpop.f32.mrf.mxu0
        %v7367 = vadd.f32 %v7318, %v7366
        %v7368 = vpop.f32.mrf.mxu0
        %v7369 = vadd.f32 %v7320, %v7368
        %7370 = vmatmul.bf16.gmra.mxu0 %v7165
        %v7371 = vpop.f32.mrf.mxu0
        %v7372 = vadd.f32 %v7323, %v7371
        %v7373 = vpop.f32.mrf.mxu0
        %v7374 = vadd.f32 %v7325, %v7373
        %7375 = vmatmul.bf16.gmra.mxu0 %v7166
        %v7376 = vpop.f32.mrf.mxu0
        %v7377 = vadd.f32 %v7328, %v7376
        %v7378 = vpop.f32.mrf.mxu0
        %v7379 = vadd.f32 %v7330, %v7378
        %7380 = vmatmul.bf16.gmra.mxu0 %v7167
        %v7381 = vpop.f32.mrf.mxu0
        %v7382 = vadd.f32 %v7333, %v7381
        %v7383 = vpop.f32.mrf.mxu0
        %v7384 = vadd.f32 %v7335, %v7383
        %7385 = vmatmul.bf16.gmra.mxu0 %v7168
        %v7386 = vpop.f32.mrf.mxu0
        %v7387 = vadd.f32 %v7338, %v7386
        %v7388 = vpop.f32.mrf.mxu0
        %v7389 = vadd.f32 %v7340, %v7388
        %7390 = vmatmul.bf16.gmra.mxu0 %v7169
        %v7391 = vpop.f32.mrf.mxu0
        %v7392 = vadd.f32 %v7343, %v7391
        %v7393 = vpop.f32.mrf.mxu0
        %v7394 = vadd.f32 %v7345, %v7393
        %7395 = vmatmul.bf16.gmra.mxu0 %v7170
        %v7396 = vpop.f32.mrf.mxu0
        %v7397 = vadd.f32 %v7348, %v7396
        %v7398 = vpop.f32.mrf.mxu0
        %v7399 = vadd.f32 %v7350, %v7398
        %7400 = vmatmul.bf16.gmra.mxu0 %v7171
        %v7401 = vpop.f32.mrf.mxu0
        %v7402 = vadd.f32 %v7353, %v7401
        %v7403 = vpop.f32.mrf.mxu0
        %v7404 = vadd.f32 %v7355, %v7403
        %7405 = vdwg.mxu0
        %v7438 = vunpack.c.l.b16 %v6796
        %v7439 = vunpack.c.l.b16 %v6797
        %v7440 = vunpack.c.l.b16 %v6798
        %v7441 = vunpack.c.l.b16 %v6799
        %v7442 = vunpack.c.l.b16 %v6800
        %v7443 = vunpack.c.l.b16 %v6801
        %v7444 = vunpack.c.l.b16 %v6802
        %v7445 = vunpack.c.l.b16 %v6803
        %v7446 = vunpack.c.l.b16 %v6804
        %v7447 = vunpack.c.l.b16 %v6805
        %v7448 = vunpack.c.l.b16 %v6806
        %v7449 = vunpack.c.l.b16 %v6807
        %v7450 = vunpack.c.l.b16 %v6808
        %v7451 = vunpack.c.l.b16 %v6809
        %v7452 = vunpack.c.l.b16 %v6810
        %v7453 = vunpack.c.l.b16 %v6811
        %v7454 = vunpack.c.l.b16 %v6812
        %v7455 = vunpack.c.l.b16 %v6813
        %v7456 = vunpack.c.l.b16 %v6814
        %v7457 = vunpack.c.l.b16 %v6815
        %v7458 = vunpack.c.l.b16 %v6816
        %v7459 = vunpack.c.l.b16 %v6817
        %v7460 = vunpack.c.l.b16 %v6818
        %v7461 = vunpack.c.l.b16 %v6819
        %v7462 = vunpack.c.l.b16 %v6820
        %v7463 = vunpack.c.l.b16 %v6821
        %v7464 = vunpack.c.l.b16 %v6822
        %v7465 = vunpack.c.l.b16 %v6823
        %v7466 = vunpack.c.l.b16 %v6824
        %v7467 = vunpack.c.l.b16 %v6825
        %v7468 = vunpack.c.l.b16 %v6826
        %v7469 = vunpack.c.l.b16 %v6827
        %v7470 = vpack.c.b16 %v7439, %v7438
        %v7471 = vpack.c.b16 %v7441, %v7440
        %v7472 = vpack.c.b16 %v7443, %v7442
        %v7473 = vpack.c.b16 %v7445, %v7444
        %v7474 = vpack.c.b16 %v7447, %v7446
        %v7475 = vpack.c.b16 %v7449, %v7448
        %v7476 = vpack.c.b16 %v7451, %v7450
        %v7477 = vpack.c.b16 %v7453, %v7452
        %v7478 = vpack.c.b16 %v7455, %v7454
        %v7479 = vpack.c.b16 %v7457, %v7456
        %v7480 = vpack.c.b16 %v7459, %v7458
        %v7481 = vpack.c.b16 %v7461, %v7460
        %v7482 = vpack.c.b16 %v7463, %v7462
        %v7483 = vpack.c.b16 %v7465, %v7464
        %v7484 = vpack.c.b16 %v7467, %v7466
        %v7485 = vpack.c.b16 %v7469, %v7468
        %7502 = vmatpush.bf16.msra.mxu0 %v7477
        %7503 = vmatpush.bf16.msra.mxu0 %v7476
        %7504 = vmatpush.bf16.msra.mxu0 %v7475
        %7505 = vmatpush.bf16.msra.mxu0 %v7474
        %7506 = vmatpush.bf16.msra.mxu0 %v7473
        %7507 = vmatpush.bf16.msra.mxu0 %v7472
        %7508 = vmatpush.bf16.msra.mxu0 %v7471
        %7509 = vmatpush.bf16.msra.mxu0 %v7470
        %7510 = vmatmul.bf16.gmra.mxu0 %v6732
        %v7511 = vpop.f32.mrf.mxu0
        %v7512 = vadd.f32 %v7367, %v7511
        %v7513 = vpop.f32.mrf.mxu0
        %v7514 = vadd.f32 %v7369, %v7513
        %7515 = vmatmul.bf16.gmra.mxu0 %v6733
        %v7516 = vpop.f32.mrf.mxu0
        %v7517 = vadd.f32 %v7372, %v7516
        %v7518 = vpop.f32.mrf.mxu0
        %v7519 = vadd.f32 %v7374, %v7518
        %7520 = vmatmul.bf16.gmra.mxu0 %v6734
        %v7521 = vpop.f32.mrf.mxu0
        %v7522 = vadd.f32 %v7377, %v7521
        %v7523 = vpop.f32.mrf.mxu0
        %v7524 = vadd.f32 %v7379, %v7523
        %7525 = vmatmul.bf16.gmra.mxu0 %v6735
        %v7526 = vpop.f32.mrf.mxu0
        %v7527 = vadd.f32 %v7382, %v7526
        %v7528 = vpop.f32.mrf.mxu0
        %v7529 = vadd.f32 %v7384, %v7528
        %7530 = vmatmul.bf16.gmra.mxu0 %v6736
        %v7531 = vpop.f32.mrf.mxu0
        %v7532 = vadd.f32 %v7387, %v7531
        %v7533 = vpop.f32.mrf.mxu0
        %v7534 = vadd.f32 %v7389, %v7533
        %7535 = vmatmul.bf16.gmra.mxu0 %v6737
        %v7536 = vpop.f32.mrf.mxu0
        %v7537 = vadd.f32 %v7392, %v7536
        %v7538 = vpop.f32.mrf.mxu0
        %v7539 = vadd.f32 %v7394, %v7538
        %7540 = vmatmul.bf16.gmra.mxu0 %v6738
        %v7541 = vpop.f32.mrf.mxu0
        %v7542 = vadd.f32 %v7397, %v7541
        %v7543 = vpop.f32.mrf.mxu0
        %v7544 = vadd.f32 %v7399, %v7543
        %7545 = vmatmul.bf16.gmra.mxu0 %v6739
        %v7546 = vpop.f32.mrf.mxu0
        %v7547 = vadd.f32 %v7402, %v7546
        %v7548 = vpop.f32.mrf.mxu0
        %v7549 = vadd.f32 %v7404, %v7548
        %7550 = vdwg.mxu0
        %7551 = vmatpush.bf16.msra.mxu0 %v7485
        %7552 = vmatpush.bf16.msra.mxu0 %v7484
        %7553 = vmatpush.bf16.msra.mxu0 %v7483
        %7554 = vmatpush.bf16.msra.mxu0 %v7482
        %7555 = vmatpush.bf16.msra.mxu0 %v7481
        %7556 = vmatpush.bf16.msra.mxu0 %v7480
        %7557 = vmatpush.bf16.msra.mxu0 %v7479
        %7558 = vmatpush.bf16.msra.mxu0 %v7478
        %7559 = vmatmul.bf16.gmra.mxu0 %v6780
        %v7560 = vpop.f32.mrf.mxu0
        %v7561 = vadd.f32 %v7512, %v7560
        %v7562 = vpop.f32.mrf.mxu0
        %v7563 = vadd.f32 %v7514, %v7562
        %7564 = vmatmul.bf16.gmra.mxu0 %v6781
        %v7565 = vpop.f32.mrf.mxu0
        %v7566 = vadd.f32 %v7517, %v7565
        %v7567 = vpop.f32.mrf.mxu0
        %v7568 = vadd.f32 %v7519, %v7567
        %7569 = vmatmul.bf16.gmra.mxu0 %v6782
        %v7570 = vpop.f32.mrf.mxu0
        %v7571 = vadd.f32 %v7522, %v7570
        %v7572 = vpop.f32.mrf.mxu0
        %v7573 = vadd.f32 %v7524, %v7572
        %7574 = vmatmul.bf16.gmra.mxu0 %v6783
        %v7575 = vpop.f32.mrf.mxu0
        %v7576 = vadd.f32 %v7527, %v7575
        %v7577 = vpop.f32.mrf.mxu0
        %v7578 = vadd.f32 %v7529, %v7577
        %7579 = vmatmul.bf16.gmra.mxu0 %v6784
        %v7580 = vpop.f32.mrf.mxu0
        %v7581 = vadd.f32 %v7532, %v7580
        %v7582 = vpop.f32.mrf.mxu0
        %v7583 = vadd.f32 %v7534, %v7582
        %7584 = vmatmul.bf16.gmra.mxu0 %v6785
        %v7585 = vpop.f32.mrf.mxu0
        %v7586 = vadd.f32 %v7537, %v7585
        %v7587 = vpop.f32.mrf.mxu0
        %v7588 = vadd.f32 %v7539, %v7587
        %7589 = vmatmul.bf16.gmra.mxu0 %v6786
        %v7590 = vpop.f32.mrf.mxu0
        %v7591 = vadd.f32 %v7542, %v7590
        %v7592 = vpop.f32.mrf.mxu0
        %v7593 = vadd.f32 %v7544, %v7592
        %7594 = vmatmul.bf16.gmra.mxu0 %v6787
        %v7595 = vpop.f32.mrf.mxu0
        %v7596 = vadd.f32 %v7547, %v7595
        %v7597 = vpop.f32.mrf.mxu0
        %v7598 = vadd.f32 %v7549, %v7597
        %7599 = vdwg.mxu0
        %v7600 = vld [vmem:[%s1397] sm:$0xff]
        %v7601 = vld [vmem:[%s1397 + $0x8] sm:$0xff]
        %v7602 = vld [vmem:[%s1397 + $0x10] sm:$0xff]
        %v7603 = vld [vmem:[%s1397 + $0x18] sm:$0xff]
        %v7604 = vld [vmem:[%s1397 + $0x20] sm:$0xff]
        %v7605 = vld [vmem:[%s1397 + $0x28] sm:$0xff]
        %v7606 = vld [vmem:[%s1397 + $0x30] sm:$0xff]
        %v7607 = vld [vmem:[%s1397 + $0x38] sm:$0xff]
        %v7608 = vld [vmem:[%s1397 + $0x40] sm:$0xff]
        %v7609 = vld [vmem:[%s1397 + $0x48] sm:$0xff]
        %v7610 = vld [vmem:[%s1397 + $0x50] sm:$0xff]
        %v7611 = vld [vmem:[%s1397 + $0x58] sm:$0xff]
        %v7612 = vld [vmem:[%s1397 + $0x60] sm:$0xff]
        %v7613 = vld [vmem:[%s1397 + $0x68] sm:$0xff]
        %v7614 = vld [vmem:[%s1397 + $0x70] sm:$0xff]
        %v7615 = vld [vmem:[%s1397 + $0x78] sm:$0xff]
        %v7616 = vpack.c.bf16 %v7600, %v7600
        %v7617 = vpack.c.bf16 %v7601, %v7601
        %v7618 = vpack.c.bf16 %v7602, %v7602
        %v7619 = vpack.c.bf16 %v7603, %v7603
        %v7620 = vpack.c.bf16 %v7604, %v7604
        %v7621 = vpack.c.bf16 %v7605, %v7605
        %v7622 = vpack.c.bf16 %v7606, %v7606
        %v7623 = vpack.c.bf16 %v7607, %v7607
        %v7624 = vpack.c.bf16 %v7608, %v7608
        %v7625 = vpack.c.bf16 %v7609, %v7609
        %v7626 = vpack.c.bf16 %v7610, %v7610
        %v7627 = vpack.c.bf16 %v7611, %v7611
        %v7628 = vpack.c.bf16 %v7612, %v7612
        %v7629 = vpack.c.bf16 %v7613, %v7613
        %v7630 = vpack.c.bf16 %v7614, %v7614
        %v7631 = vpack.c.bf16 %v7615, %v7615
        %7632 = vset.pattern.permute.xlu0 7
        %7633 = vperm.xlu0 %7632, %v6460
        %v7634 = vpop.permute.xlu0 %7633
        %7635 = vset.pattern.permute.xlu0 7
        %7636 = vperm.xlu0 %7635, %v6461
        %v7637 = vpop.permute.xlu0 %7636
        %7638 = vset.pattern.permute.xlu0 7
        %7639 = vperm.xlu0 %7638, %v6462
        %v7640 = vpop.permute.xlu0 %7639
        %7641 = vset.pattern.permute.xlu0 7
        %7642 = vperm.xlu0 %7641, %v6463
        %v7643 = vpop.permute.xlu0 %7642
        %7644 = vset.pattern.permute.xlu0 7
        %7645 = vperm.xlu0 %7644, %v6464
        %v7646 = vpop.permute.xlu0 %7645
        %7647 = vset.pattern.permute.xlu0 7
        %7648 = vperm.xlu0 %7647, %v6465
        %v7649 = vpop.permute.xlu0 %7648
        %7650 = vset.pattern.permute.xlu0 7
        %7651 = vperm.xlu0 %7650, %v6466
        %v7652 = vpop.permute.xlu0 %7651
        %7653 = vset.pattern.permute.xlu0 7
        %7654 = vperm.xlu0 %7653, %v6467
        %v7655 = vpop.permute.xlu0 %7654
        %7656 = vset.pattern.permute.xlu0 7
        %7657 = vperm.xlu0 %7656, %v6468
        %v7658 = vpop.permute.xlu0 %7657
        %7659 = vset.pattern.permute.xlu0 7
        %7660 = vperm.xlu0 %7659, %v6469
        %v7661 = vpop.permute.xlu0 %7660
        %7662 = vset.pattern.permute.xlu0 7
        %7663 = vperm.xlu0 %7662, %v6470
        %v7664 = vpop.permute.xlu0 %7663
        %7665 = vset.pattern.permute.xlu0 7
        %7666 = vperm.xlu0 %7665, %v6471
        %v7667 = vpop.permute.xlu0 %7666
        %7668 = vset.pattern.permute.xlu0 7
        %7669 = vperm.xlu0 %7668, %v6472
        %v7670 = vpop.permute.xlu0 %7669
        %7671 = vset.pattern.permute.xlu0 7
        %7672 = vperm.xlu0 %7671, %v6473
        %v7673 = vpop.permute.xlu0 %7672
        %7674 = vset.pattern.permute.xlu0 7
        %7675 = vperm.xlu0 %7674, %v6474
        %v7676 = vpop.permute.xlu0 %7675
        %7677 = vset.pattern.permute.xlu0 7
        %7678 = vperm.xlu0 %7677, %v6475
        %v7679 = vpop.permute.xlu0 %7678
        %vm7680 = vcmp.eq.s32.totalorder %v7634, 1
        %vm7681 = vcmp.eq.s32.totalorder %v7637, 1
        %vm7682 = vcmp.eq.s32.totalorder %v7640, 1
        %vm7683 = vcmp.eq.s32.totalorder %v7643, 1
        %vm7684 = vcmp.eq.s32.totalorder %v7646, 1
        %vm7685 = vcmp.eq.s32.totalorder %v7649, 1
        %vm7686 = vcmp.eq.s32.totalorder %v7652, 1
        %vm7687 = vcmp.eq.s32.totalorder %v7655, 1
        %vm7688 = vcmp.eq.s32.totalorder %v7658, 1
        %vm7689 = vcmp.eq.s32.totalorder %v7661, 1
        %vm7690 = vcmp.eq.s32.totalorder %v7664, 1
        %vm7691 = vcmp.eq.s32.totalorder %v7667, 1
        %vm7692 = vcmp.eq.s32.totalorder %v7670, 1
        %vm7693 = vcmp.eq.s32.totalorder %v7673, 1
        %vm7694 = vcmp.eq.s32.totalorder %v7676, 1
        %vm7695 = vcmp.eq.s32.totalorder %v7679, 1
        %vm7696 = vmpackc.low %vm7680, %vm7680
        %vm7697 = vmpackc.low %vm7681, %vm7681
        %vm7698 = vmpackc.low %vm7682, %vm7682
        %vm7699 = vmpackc.low %vm7683, %vm7683
        %vm7700 = vmpackc.low %vm7684, %vm7684
        %vm7701 = vmpackc.low %vm7685, %vm7685
        %vm7702 = vmpackc.low %vm7686, %vm7686
        %vm7703 = vmpackc.low %vm7687, %vm7687
        %vm7704 = vmpackc.low %vm7688, %vm7688
        %vm7705 = vmpackc.low %vm7689, %vm7689
        %vm7706 = vmpackc.low %vm7690, %vm7690
        %vm7707 = vmpackc.low %vm7691, %vm7691
        %vm7708 = vmpackc.low %vm7692, %vm7692
        %vm7709 = vmpackc.low %vm7693, %vm7693
        %vm7710 = vmpackc.low %vm7694, %vm7694
        %vm7711 = vmpackc.low %vm7695, %vm7695
        %v7712 = vsel %vm7696, %v7616, 0
        %v7713 = vsel %vm7697, %v7617, 0
        %v7714 = vsel %vm7698, %v7618, 0
        %v7715 = vsel %vm7699, %v7619, 0
        %v7716 = vsel %vm7700, %v7620, 0
        %v7717 = vsel %vm7701, %v7621, 0
        %v7718 = vsel %vm7702, %v7622, 0
        %v7719 = vsel %vm7703, %v7623, 0
        %v7720 = vsel %vm7704, %v7624, 0
        %v7721 = vsel %vm7705, %v7625, 0
        %v7722 = vsel %vm7706, %v7626, 0
        %v7723 = vsel %vm7707, %v7627, 0
        %v7724 = vsel %vm7708, %v7628, 0
        %v7725 = vsel %vm7709, %v7629, 0
        %v7726 = vsel %vm7710, %v7630, 0
        %v7727 = vsel %vm7711, %v7631, 0
        %7728 = vset.pattern.permute.xlu0 7
        %7729 = vperm.xlu0 %7728, %v6588
        %v7730 = vpop.permute.xlu0 %7729
        %7731 = vset.pattern.permute.xlu0 7
        %7732 = vperm.xlu0 %7731, %v6589
        %v7733 = vpop.permute.xlu0 %7732
        %7734 = vset.pattern.permute.xlu0 7
        %7735 = vperm.xlu0 %7734, %v6590
        %v7736 = vpop.permute.xlu0 %7735
        %7737 = vset.pattern.permute.xlu0 7
        %7738 = vperm.xlu0 %7737, %v6591
        %v7739 = vpop.permute.xlu0 %7738
        %7740 = vset.pattern.permute.xlu0 7
        %7741 = vperm.xlu0 %7740, %v6592
        %v7742 = vpop.permute.xlu0 %7741
        %7743 = vset.pattern.permute.xlu0 7
        %7744 = vperm.xlu0 %7743, %v6593
        %v7745 = vpop.permute.xlu0 %7744
        %7746 = vset.pattern.permute.xlu0 7
        %7747 = vperm.xlu0 %7746, %v6594
        %v7748 = vpop.permute.xlu0 %7747
        %7749 = vset.pattern.permute.xlu0 7
        %7750 = vperm.xlu0 %7749, %v6595
        %v7751 = vpop.permute.xlu0 %7750
        %7752 = vset.pattern.permute.xlu0 7
        %7753 = vperm.xlu0 %7752, %v6596
        %v7754 = vpop.permute.xlu0 %7753
        %7755 = vset.pattern.permute.xlu0 7
        %7756 = vperm.xlu0 %7755, %v6597
        %v7757 = vpop.permute.xlu0 %7756
        %7758 = vset.pattern.permute.xlu0 7
        %7759 = vperm.xlu0 %7758, %v6598
        %v7760 = vpop.permute.xlu0 %7759
        %7761 = vset.pattern.permute.xlu0 7
        %7762 = vperm.xlu0 %7761, %v6599
        %v7763 = vpop.permute.xlu0 %7762
        %7764 = vset.pattern.permute.xlu0 7
        %7765 = vperm.xlu0 %7764, %v6600
        %v7766 = vpop.permute.xlu0 %7765
        %7767 = vset.pattern.permute.xlu0 7
        %7768 = vperm.xlu0 %7767, %v6601
        %v7769 = vpop.permute.xlu0 %7768
        %7770 = vset.pattern.permute.xlu0 7
        %7771 = vperm.xlu0 %7770, %v6602
        %v7772 = vpop.permute.xlu0 %7771
        %7773 = vset.pattern.permute.xlu0 7
        %7774 = vperm.xlu0 %7773, %v6603
        %v7775 = vpop.permute.xlu0 %7774
        %vm7776 = vcmp.eq.s32.totalorder %v7730, 1
        %vm7777 = vcmp.eq.s32.totalorder %v7733, 1
        %vm7778 = vcmp.eq.s32.totalorder %v7736, 1
        %vm7779 = vcmp.eq.s32.totalorder %v7739, 1
        %vm7780 = vcmp.eq.s32.totalorder %v7742, 1
        %vm7781 = vcmp.eq.s32.totalorder %v7745, 1
        %vm7782 = vcmp.eq.s32.totalorder %v7748, 1
        %vm7783 = vcmp.eq.s32.totalorder %v7751, 1
        %vm7784 = vcmp.eq.s32.totalorder %v7754, 1
        %vm7785 = vcmp.eq.s32.totalorder %v7757, 1
        %vm7786 = vcmp.eq.s32.totalorder %v7760, 1
        %vm7787 = vcmp.eq.s32.totalorder %v7763, 1
        %vm7788 = vcmp.eq.s32.totalorder %v7766, 1
        %vm7789 = vcmp.eq.s32.totalorder %v7769, 1
        %vm7790 = vcmp.eq.s32.totalorder %v7772, 1
        %vm7791 = vcmp.eq.s32.totalorder %v7775, 1
        %vm7792 = vmpackc.low %vm7776, %vm7776
        %vm7793 = vmpackc.low %vm7777, %vm7777
        %vm7794 = vmpackc.low %vm7778, %vm7778
        %vm7795 = vmpackc.low %vm7779, %vm7779
        %vm7796 = vmpackc.low %vm7780, %vm7780
        %vm7797 = vmpackc.low %vm7781, %vm7781
        %vm7798 = vmpackc.low %vm7782, %vm7782
        %vm7799 = vmpackc.low %vm7783, %vm7783
        %vm7800 = vmpackc.low %vm7784, %vm7784
        %vm7801 = vmpackc.low %vm7785, %vm7785
        %vm7802 = vmpackc.low %vm7786, %vm7786
        %vm7803 = vmpackc.low %vm7787, %vm7787
        %vm7804 = vmpackc.low %vm7788, %vm7788
        %vm7805 = vmpackc.low %vm7789, %vm7789
        %vm7806 = vmpackc.low %vm7790, %vm7790
        %vm7807 = vmpackc.low %vm7791, %vm7791
        %v7808 = vsel %vm7792, %v7616, 0
        %v7809 = vsel %vm7793, %v7617, 0
        %v7810 = vsel %vm7794, %v7618, 0
        %v7811 = vsel %vm7795, %v7619, 0
        %v7812 = vsel %vm7796, %v7620, 0
        %v7813 = vsel %vm7797, %v7621, 0
        %v7814 = vsel %vm7798, %v7622, 0
        %v7815 = vsel %vm7799, %v7623, 0
        %v7816 = vsel %vm7800, %v7624, 0
        %v7817 = vsel %vm7801, %v7625, 0
        %v7818 = vsel %vm7802, %v7626, 0
        %v7819 = vsel %vm7803, %v7627, 0
        %v7820 = vsel %vm7804, %v7628, 0
        %v7821 = vsel %vm7805, %v7629, 0
        %v7822 = vsel %vm7806, %v7630, 0
        %v7823 = vsel %vm7807, %v7631, 0
        %v7840 = vunpack.c.l.b16 %v7712
        %v7841 = vunpack.c.l.b16 %v7713
        %v7842 = vunpack.c.l.b16 %v7714
        %v7843 = vunpack.c.l.b16 %v7715
        %v7844 = vunpack.c.l.b16 %v7716
        %v7845 = vunpack.c.l.b16 %v7717
        %v7846 = vunpack.c.l.b16 %v7718
        %v7847 = vunpack.c.l.b16 %v7719
        %v7848 = vunpack.c.l.b16 %v7720
        %v7849 = vunpack.c.l.b16 %v7721
        %v7850 = vunpack.c.l.b16 %v7722
        %v7851 = vunpack.c.l.b16 %v7723
        %v7852 = vunpack.c.l.b16 %v7724
        %v7853 = vunpack.c.l.b16 %v7725
        %v7854 = vunpack.c.l.b16 %v7726
        %v7855 = vunpack.c.l.b16 %v7727
        %v7856 = vpack.c.b16 %v7841, %v7840
        %v7857 = vpack.c.b16 %v7843, %v7842
        %v7858 = vpack.c.b16 %v7845, %v7844
        %v7859 = vpack.c.b16 %v7847, %v7846
        %v7860 = vpack.c.b16 %v7849, %v7848
        %v7861 = vpack.c.b16 %v7851, %v7850
        %v7862 = vpack.c.b16 %v7853, %v7852
        %v7863 = vpack.c.b16 %v7855, %v7854
        %v7888 = vunpack.c.l.b16 %v7808
        %v7889 = vunpack.c.l.b16 %v7809
        %v7890 = vunpack.c.l.b16 %v7810
        %v7891 = vunpack.c.l.b16 %v7811
        %v7892 = vunpack.c.l.b16 %v7812
        %v7893 = vunpack.c.l.b16 %v7813
        %v7894 = vunpack.c.l.b16 %v7814
        %v7895 = vunpack.c.l.b16 %v7815
        %v7896 = vunpack.c.l.b16 %v7816
        %v7897 = vunpack.c.l.b16 %v7817
        %v7898 = vunpack.c.l.b16 %v7818
        %v7899 = vunpack.c.l.b16 %v7819
        %v7900 = vunpack.c.l.b16 %v7820
        %v7901 = vunpack.c.l.b16 %v7821
        %v7902 = vunpack.c.l.b16 %v7822
        %v7903 = vunpack.c.l.b16 %v7823
        %v7904 = vpack.c.b16 %v7889, %v7888
        %v7905 = vpack.c.b16 %v7891, %v7890
        %v7906 = vpack.c.b16 %v7893, %v7892
        %v7907 = vpack.c.b16 %v7895, %v7894
        %v7908 = vpack.c.b16 %v7897, %v7896
        %v7909 = vpack.c.b16 %v7899, %v7898
        %v7910 = vpack.c.b16 %v7901, %v7900
        %v7911 = vpack.c.b16 %v7903, %v7902
        %7920 = vmatpush.bf16.msra.mxu0 %v7477
        %7921 = vmatpush.bf16.msra.mxu0 %v7476
        %7922 = vmatpush.bf16.msra.mxu0 %v7475
        %7923 = vmatpush.bf16.msra.mxu0 %v7474
        %7924 = vmatpush.bf16.msra.mxu0 %v7473
        %7925 = vmatpush.bf16.msra.mxu0 %v7472
        %7926 = vmatpush.bf16.msra.mxu0 %v7471
        %7927 = vmatpush.bf16.msra.mxu0 %v7470
        %7928 = vmatmul.bf16.gmra.mxu0 %v7856
        %v7929 = vpop.f32.mrf.mxu0
        %v7930 = vadd.f32 0.0, %v7929
        %v7931 = vpop.f32.mrf.mxu0
        %v7932 = vadd.f32 0.0, %v7931
        %7933 = vmatmul.bf16.gmra.mxu0 %v7857
        %v7934 = vpop.f32.mrf.mxu0
        %v7935 = vadd.f32 0.0, %v7934
        %v7936 = vpop.f32.mrf.mxu0
        %v7937 = vadd.f32 0.0, %v7936
        %7938 = vmatmul.bf16.gmra.mxu0 %v7858
        %v7939 = vpop.f32.mrf.mxu0
        %v7940 = vadd.f32 0.0, %v7939
        %v7941 = vpop.f32.mrf.mxu0
        %v7942 = vadd.f32 0.0, %v7941
        %7943 = vmatmul.bf16.gmra.mxu0 %v7859
        %v7944 = vpop.f32.mrf.mxu0
        %v7945 = vadd.f32 0.0, %v7944
        %v7946 = vpop.f32.mrf.mxu0
        %v7947 = vadd.f32 0.0, %v7946
        %7948 = vmatmul.bf16.gmra.mxu0 %v7860
        %v7949 = vpop.f32.mrf.mxu0
        %v7950 = vadd.f32 0.0, %v7949
        %v7951 = vpop.f32.mrf.mxu0
        %v7952 = vadd.f32 0.0, %v7951
        %7953 = vmatmul.bf16.gmra.mxu0 %v7861
        %v7954 = vpop.f32.mrf.mxu0
        %v7955 = vadd.f32 0.0, %v7954
        %v7956 = vpop.f32.mrf.mxu0
        %v7957 = vadd.f32 0.0, %v7956
        %7958 = vmatmul.bf16.gmra.mxu0 %v7862
        %v7959 = vpop.f32.mrf.mxu0
        %v7960 = vadd.f32 0.0, %v7959
        %v7961 = vpop.f32.mrf.mxu0
        %v7962 = vadd.f32 0.0, %v7961
        %7963 = vmatmul.bf16.gmra.mxu0 %v7863
        %v7964 = vpop.f32.mrf.mxu0
        %v7965 = vadd.f32 0.0, %v7964
        %v7966 = vpop.f32.mrf.mxu0
        %v7967 = vadd.f32 0.0, %v7966
        %7968 = vdwg.mxu0
        %7969 = vmatpush.bf16.msra.mxu0 %v7485
        %7970 = vmatpush.bf16.msra.mxu0 %v7484
        %7971 = vmatpush.bf16.msra.mxu0 %v7483
        %7972 = vmatpush.bf16.msra.mxu0 %v7482
        %7973 = vmatpush.bf16.msra.mxu0 %v7481
        %7974 = vmatpush.bf16.msra.mxu0 %v7480
        %7975 = vmatpush.bf16.msra.mxu0 %v7479
        %7976 = vmatpush.bf16.msra.mxu0 %v7478
        %7977 = vmatmul.bf16.gmra.mxu0 %v7904
        %v7978 = vpop.f32.mrf.mxu0
        %v7979 = vadd.f32 %v7930, %v7978
        %v7980 = vpop.f32.mrf.mxu0
        %v7981 = vadd.f32 %v7932, %v7980
        %7982 = vmatmul.bf16.gmra.mxu0 %v7905
        %v7983 = vpop.f32.mrf.mxu0
        %v7984 = vadd.f32 %v7935, %v7983
        %v7985 = vpop.f32.mrf.mxu0
        %v7986 = vadd.f32 %v7937, %v7985
        %7987 = vmatmul.bf16.gmra.mxu0 %v7906
        %v7988 = vpop.f32.mrf.mxu0
        %v7989 = vadd.f32 %v7940, %v7988
        %v7990 = vpop.f32.mrf.mxu0
        %v7991 = vadd.f32 %v7942, %v7990
        %7992 = vmatmul.bf16.gmra.mxu0 %v7907
        %v7993 = vpop.f32.mrf.mxu0
        %v7994 = vadd.f32 %v7945, %v7993
        %v7995 = vpop.f32.mrf.mxu0
        %v7996 = vadd.f32 %v7947, %v7995
        %7997 = vmatmul.bf16.gmra.mxu0 %v7908
        %v7998 = vpop.f32.mrf.mxu0
        %v7999 = vadd.f32 %v7950, %v7998
        %v8000 = vpop.f32.mrf.mxu0
        %v8001 = vadd.f32 %v7952, %v8000
        %8002 = vmatmul.bf16.gmra.mxu0 %v7909
        %v8003 = vpop.f32.mrf.mxu0
        %v8004 = vadd.f32 %v7955, %v8003
        %v8005 = vpop.f32.mrf.mxu0
        %v8006 = vadd.f32 %v7957, %v8005
        %8007 = vmatmul.bf16.gmra.mxu0 %v7910
        %v8008 = vpop.f32.mrf.mxu0
        %v8009 = vadd.f32 %v7960, %v8008
        %v8010 = vpop.f32.mrf.mxu0
        %v8011 = vadd.f32 %v7962, %v8010
        %8012 = vmatmul.bf16.gmra.mxu0 %v7911
        %v8013 = vpop.f32.mrf.mxu0
        %v8014 = vadd.f32 %v7965, %v8013
        %v8015 = vpop.f32.mrf.mxu0
        %v8016 = vadd.f32 %v7967, %v8015
        %8017 = vdwg.mxu0
        %v8018 = vadd.f32 %v7561, %v7979
        %v8019 = vadd.f32 %v7563, %v7981
        %v8020 = vadd.f32 %v7566, %v7984
        %v8021 = vadd.f32 %v7568, %v7986
        %v8022 = vadd.f32 %v7571, %v7989
        %v8023 = vadd.f32 %v7573, %v7991
        %v8024 = vadd.f32 %v7576, %v7994
        %v8025 = vadd.f32 %v7578, %v7996
        %v8026 = vadd.f32 %v7581, %v7999
        %v8027 = vadd.f32 %v7583, %v8001
        %v8028 = vadd.f32 %v7586, %v8004
        %v8029 = vadd.f32 %v7588, %v8006
        %v8030 = vadd.f32 %v7591, %v8009
        %v8031 = vadd.f32 %v7593, %v8011
        %v8032 = vadd.f32 %v7596, %v8014
        %v8033 = vadd.f32 %v7598, %v8016
        %8034 = vset.pattern.permute.xlu0 7
        %8035 = vperm.xlu0 %8034, %v6844
        %v8036 = vpop.permute.xlu0 %8035
        %8037 = vset.pattern.permute.xlu0 7
        %8038 = vperm.xlu0 %8037, %v6845
        %v8039 = vpop.permute.xlu0 %8038
        %8040 = vset.pattern.permute.xlu0 7
        %8041 = vperm.xlu0 %8040, %v6846
        %v8042 = vpop.permute.xlu0 %8041
        %8043 = vset.pattern.permute.xlu0 7
        %8044 = vperm.xlu0 %8043, %v6847
        %v8045 = vpop.permute.xlu0 %8044
        %8046 = vset.pattern.permute.xlu0 7
        %8047 = vperm.xlu0 %8046, %v6848
        %v8048 = vpop.permute.xlu0 %8047
        %8049 = vset.pattern.permute.xlu0 7
        %8050 = vperm.xlu0 %8049, %v6849
        %v8051 = vpop.permute.xlu0 %8050
        %8052 = vset.pattern.permute.xlu0 7
        %8053 = vperm.xlu0 %8052, %v6850
        %v8054 = vpop.permute.xlu0 %8053
        %8055 = vset.pattern.permute.xlu0 7
        %8056 = vperm.xlu0 %8055, %v6851
        %v8057 = vpop.permute.xlu0 %8056
        %8058 = vset.pattern.permute.xlu0 7
        %8059 = vperm.xlu0 %8058, %v6852
        %v8060 = vpop.permute.xlu0 %8059
        %8061 = vset.pattern.permute.xlu0 7
        %8062 = vperm.xlu0 %8061, %v6853
        %v8063 = vpop.permute.xlu0 %8062
        %8064 = vset.pattern.permute.xlu0 7
        %8065 = vperm.xlu0 %8064, %v6854
        %v8066 = vpop.permute.xlu0 %8065
        %8067 = vset.pattern.permute.xlu0 7
        %8068 = vperm.xlu0 %8067, %v6855
        %v8069 = vpop.permute.xlu0 %8068
        %8070 = vset.pattern.permute.xlu0 7
        %8071 = vperm.xlu0 %8070, %v6856
        %v8072 = vpop.permute.xlu0 %8071
        %8073 = vset.pattern.permute.xlu0 7
        %8074 = vperm.xlu0 %8073, %v6857
        %v8075 = vpop.permute.xlu0 %8074
        %8076 = vset.pattern.permute.xlu0 7
        %8077 = vperm.xlu0 %8076, %v6858
        %v8078 = vpop.permute.xlu0 %8077
        %8079 = vset.pattern.permute.xlu0 7
        %8080 = vperm.xlu0 %8079, %v6859
        %v8081 = vpop.permute.xlu0 %8080
        %vm8082 = vcmp.eq.s32.totalorder %v8036, 1
        %vm8083 = vcmp.eq.s32.totalorder %v8039, 1
        %vm8084 = vcmp.eq.s32.totalorder %v8042, 1
        %vm8085 = vcmp.eq.s32.totalorder %v8045, 1
        %vm8086 = vcmp.eq.s32.totalorder %v8048, 1
        %vm8087 = vcmp.eq.s32.totalorder %v8051, 1
        %vm8088 = vcmp.eq.s32.totalorder %v8054, 1
        %vm8089 = vcmp.eq.s32.totalorder %v8057, 1
        %vm8090 = vcmp.eq.s32.totalorder %v8060, 1
        %vm8091 = vcmp.eq.s32.totalorder %v8063, 1
        %vm8092 = vcmp.eq.s32.totalorder %v8066, 1
        %vm8093 = vcmp.eq.s32.totalorder %v8069, 1
        %vm8094 = vcmp.eq.s32.totalorder %v8072, 1
        %vm8095 = vcmp.eq.s32.totalorder %v8075, 1
        %vm8096 = vcmp.eq.s32.totalorder %v8078, 1
        %vm8097 = vcmp.eq.s32.totalorder %v8081, 1
        %vm8098 = vmpackc.low %vm8082, %vm8082
        %vm8099 = vmpackc.low %vm8083, %vm8083
        %vm8100 = vmpackc.low %vm8084, %vm8084
        %vm8101 = vmpackc.low %vm8085, %vm8085
        %vm8102 = vmpackc.low %vm8086, %vm8086
        %vm8103 = vmpackc.low %vm8087, %vm8087
        %vm8104 = vmpackc.low %vm8088, %vm8088
        %vm8105 = vmpackc.low %vm8089, %vm8089
        %vm8106 = vmpackc.low %vm8090, %vm8090
        %vm8107 = vmpackc.low %vm8091, %vm8091
        %vm8108 = vmpackc.low %vm8092, %vm8092
        %vm8109 = vmpackc.low %vm8093, %vm8093
        %vm8110 = vmpackc.low %vm8094, %vm8094
        %vm8111 = vmpackc.low %vm8095, %vm8095
        %vm8112 = vmpackc.low %vm8096, %vm8096
        %vm8113 = vmpackc.low %vm8097, %vm8097
        %v8114 = vsel %vm8098, %v7616, 0
        %v8115 = vsel %vm8099, %v7617, 0
        %v8116 = vsel %vm8100, %v7618, 0
        %v8117 = vsel %vm8101, %v7619, 0
        %v8118 = vsel %vm8102, %v7620, 0
        %v8119 = vsel %vm8103, %v7621, 0
        %v8120 = vsel %vm8104, %v7622, 0
        %v8121 = vsel %vm8105, %v7623, 0
        %v8122 = vsel %vm8106, %v7624, 0
        %v8123 = vsel %vm8107, %v7625, 0
        %v8124 = vsel %vm8108, %v7626, 0
        %v8125 = vsel %vm8109, %v7627, 0
        %v8126 = vsel %vm8110, %v7628, 0
        %v8127 = vsel %vm8111, %v7629, 0
        %v8128 = vsel %vm8112, %v7630, 0
        %v8129 = vsel %vm8113, %v7631, 0
        %8130 = vset.pattern.permute.xlu0 7
        %8131 = vperm.xlu0 %8130, %v6972
        %v8132 = vpop.permute.xlu0 %8131
        %8133 = vset.pattern.permute.xlu0 7
        %8134 = vperm.xlu0 %8133, %v6973
        %v8135 = vpop.permute.xlu0 %8134
        %8136 = vset.pattern.permute.xlu0 7
        %8137 = vperm.xlu0 %8136, %v6974
        %v8138 = vpop.permute.xlu0 %8137
        %8139 = vset.pattern.permute.xlu0 7
        %8140 = vperm.xlu0 %8139, %v6975
        %v8141 = vpop.permute.xlu0 %8140
        %8142 = vset.pattern.permute.xlu0 7
        %8143 = vperm.xlu0 %8142, %v6976
        %v8144 = vpop.permute.xlu0 %8143
        %8145 = vset.pattern.permute.xlu0 7
        %8146 = vperm.xlu0 %8145, %v6977
        %v8147 = vpop.permute.xlu0 %8146
        %8148 = vset.pattern.permute.xlu0 7
        %8149 = vperm.xlu0 %8148, %v6978
        %v8150 = vpop.permute.xlu0 %8149
        %8151 = vset.pattern.permute.xlu0 7
        %8152 = vperm.xlu0 %8151, %v6979
        %v8153 = vpop.permute.xlu0 %8152
        %8154 = vset.pattern.permute.xlu0 7
        %8155 = vperm.xlu0 %8154, %v6980
        %v8156 = vpop.permute.xlu0 %8155
        %8157 = vset.pattern.permute.xlu0 7
        %8158 = vperm.xlu0 %8157, %v6981
        %v8159 = vpop.permute.xlu0 %8158
        %8160 = vset.pattern.permute.xlu0 7
        %8161 = vperm.xlu0 %8160, %v6982
        %v8162 = vpop.permute.xlu0 %8161
        %8163 = vset.pattern.permute.xlu0 7
        %8164 = vperm.xlu0 %8163, %v6983
        %v8165 = vpop.permute.xlu0 %8164
        %8166 = vset.pattern.permute.xlu0 7
        %8167 = vperm.xlu0 %8166, %v6984
        %v8168 = vpop.permute.xlu0 %8167
        %8169 = vset.pattern.permute.xlu0 7
        %8170 = vperm.xlu0 %8169, %v6985
        %v8171 = vpop.permute.xlu0 %8170
        %8172 = vset.pattern.permute.xlu0 7
        %8173 = vperm.xlu0 %8172, %v6986
        %v8174 = vpop.permute.xlu0 %8173
        %8175 = vset.pattern.permute.xlu0 7
        %8176 = vperm.xlu0 %8175, %v6987
        %v8177 = vpop.permute.xlu0 %8176
        %vm8178 = vcmp.eq.s32.totalorder %v8132, 1
        %vm8179 = vcmp.eq.s32.totalorder %v8135, 1
        %vm8180 = vcmp.eq.s32.totalorder %v8138, 1
        %vm8181 = vcmp.eq.s32.totalorder %v8141, 1
        %vm8182 = vcmp.eq.s32.totalorder %v8144, 1
        %vm8183 = vcmp.eq.s32.totalorder %v8147, 1
        %vm8184 = vcmp.eq.s32.totalorder %v8150, 1
        %vm8185 = vcmp.eq.s32.totalorder %v8153, 1
        %vm8186 = vcmp.eq.s32.totalorder %v8156, 1
        %vm8187 = vcmp.eq.s32.totalorder %v8159, 1
        %vm8188 = vcmp.eq.s32.totalorder %v8162, 1
        %vm8189 = vcmp.eq.s32.totalorder %v8165, 1
        %vm8190 = vcmp.eq.s32.totalorder %v8168, 1
        %vm8191 = vcmp.eq.s32.totalorder %v8171, 1
        %vm8192 = vcmp.eq.s32.totalorder %v8174, 1
        %vm8193 = vcmp.eq.s32.totalorder %v8177, 1
        %vm8194 = vmpackc.low %vm8178, %vm8178
        %vm8195 = vmpackc.low %vm8179, %vm8179
        %vm8196 = vmpackc.low %vm8180, %vm8180
        %vm8197 = vmpackc.low %vm8181, %vm8181
        %vm8198 = vmpackc.low %vm8182, %vm8182
        %vm8199 = vmpackc.low %vm8183, %vm8183
        %vm8200 = vmpackc.low %vm8184, %vm8184
        %vm8201 = vmpackc.low %vm8185, %vm8185
        %vm8202 = vmpackc.low %vm8186, %vm8186
        %vm8203 = vmpackc.low %vm8187, %vm8187
        %vm8204 = vmpackc.low %vm8188, %vm8188
        %vm8205 = vmpackc.low %vm8189, %vm8189
        %vm8206 = vmpackc.low %vm8190, %vm8190
        %vm8207 = vmpackc.low %vm8191, %vm8191
        %vm8208 = vmpackc.low %vm8192, %vm8192
        %vm8209 = vmpackc.low %vm8193, %vm8193
        %v8210 = vsel %vm8194, %v7616, 0
        %v8211 = vsel %vm8195, %v7617, 0
        %v8212 = vsel %vm8196, %v7618, 0
        %v8213 = vsel %vm8197, %v7619, 0
        %v8214 = vsel %vm8198, %v7620, 0
        %v8215 = vsel %vm8199, %v7621, 0
        %v8216 = vsel %vm8200, %v7622, 0
        %v8217 = vsel %vm8201, %v7623, 0
        %v8218 = vsel %vm8202, %v7624, 0
        %v8219 = vsel %vm8203, %v7625, 0
        %v8220 = vsel %vm8204, %v7626, 0
        %v8221 = vsel %vm8205, %v7627, 0
        %v8222 = vsel %vm8206, %v7628, 0
        %v8223 = vsel %vm8207, %v7629, 0
        %v8224 = vsel %vm8208, %v7630, 0
        %v8225 = vsel %vm8209, %v7631, 0
        %v8242 = vunpack.c.l.b16 %v8114
        %v8243 = vunpack.c.l.b16 %v8115
        %v8244 = vunpack.c.l.b16 %v8116
        %v8245 = vunpack.c.l.b16 %v8117
        %v8246 = vunpack.c.l.b16 %v8118
        %v8247 = vunpack.c.l.b16 %v8119
        %v8248 = vunpack.c.l.b16 %v8120
        %v8249 = vunpack.c.l.b16 %v8121
        %v8250 = vunpack.c.l.b16 %v8122
        %v8251 = vunpack.c.l.b16 %v8123
        %v8252 = vunpack.c.l.b16 %v8124
        %v8253 = vunpack.c.l.b16 %v8125
        %v8254 = vunpack.c.l.b16 %v8126
        %v8255 = vunpack.c.l.b16 %v8127
        %v8256 = vunpack.c.l.b16 %v8128
        %v8257 = vunpack.c.l.b16 %v8129
        %v8258 = vpack.c.b16 %v8243, %v8242
        %v8259 = vpack.c.b16 %v8245, %v8244
        %v8260 = vpack.c.b16 %v8247, %v8246
        %v8261 = vpack.c.b16 %v8249, %v8248
        %v8262 = vpack.c.b16 %v8251, %v8250
        %v8263 = vpack.c.b16 %v8253, %v8252
        %v8264 = vpack.c.b16 %v8255, %v8254
        %v8265 = vpack.c.b16 %v8257, %v8256
        %v8290 = vunpack.c.l.b16 %v8210
        %v8291 = vunpack.c.l.b16 %v8211
        %v8292 = vunpack.c.l.b16 %v8212
        %v8293 = vunpack.c.l.b16 %v8213
        %v8294 = vunpack.c.l.b16 %v8214
        %v8295 = vunpack.c.l.b16 %v8215
        %v8296 = vunpack.c.l.b16 %v8216
        %v8297 = vunpack.c.l.b16 %v8217
        %v8298 = vunpack.c.l.b16 %v8218
        %v8299 = vunpack.c.l.b16 %v8219
        %v8300 = vunpack.c.l.b16 %v8220
        %v8301 = vunpack.c.l.b16 %v8221
        %v8302 = vunpack.c.l.b16 %v8222
        %v8303 = vunpack.c.l.b16 %v8223
        %v8304 = vunpack.c.l.b16 %v8224
        %v8305 = vunpack.c.l.b16 %v8225
        %v8306 = vpack.c.b16 %v8291, %v8290
        %v8307 = vpack.c.b16 %v8293, %v8292
        %v8308 = vpack.c.b16 %v8295, %v8294
        %v8309 = vpack.c.b16 %v8297, %v8296
        %v8310 = vpack.c.b16 %v8299, %v8298
        %v8311 = vpack.c.b16 %v8301, %v8300
        %v8312 = vpack.c.b16 %v8303, %v8302
        %v8313 = vpack.c.b16 %v8305, %v8304
        %8322 = vmatpush.bf16.msra.mxu0 %v7283
        %8323 = vmatpush.bf16.msra.mxu0 %v7282
        %8324 = vmatpush.bf16.msra.mxu0 %v7281
        %8325 = vmatpush.bf16.msra.mxu0 %v7280
        %8326 = vmatpush.bf16.msra.mxu0 %v7279
        %8327 = vmatpush.bf16.msra.mxu0 %v7278
        %8328 = vmatpush.bf16.msra.mxu0 %v7277
        %8329 = vmatpush.bf16.msra.mxu0 %v7276
        %8330 = vmatmul.bf16.gmra.mxu0 %v8258
        %v8331 = vpop.f32.mrf.mxu0
        %v8332 = vadd.f32 0.0, %v8331
        %v8333 = vpop.f32.mrf.mxu0
        %v8334 = vadd.f32 0.0, %v8333
        %8335 = vmatmul.bf16.gmra.mxu0 %v8259
        %v8336 = vpop.f32.mrf.mxu0
        %v8337 = vadd.f32 0.0, %v8336
        %v8338 = vpop.f32.mrf.mxu0
        %v8339 = vadd.f32 0.0, %v8338
        %8340 = vmatmul.bf16.gmra.mxu0 %v8260
        %v8341 = vpop.f32.mrf.mxu0
        %v8342 = vadd.f32 0.0, %v8341
        %v8343 = vpop.f32.mrf.mxu0
        %v8344 = vadd.f32 0.0, %v8343
        %8345 = vmatmul.bf16.gmra.mxu0 %v8261
        %v8346 = vpop.f32.mrf.mxu0
        %v8347 = vadd.f32 0.0, %v8346
        %v8348 = vpop.f32.mrf.mxu0
        %v8349 = vadd.f32 0.0, %v8348
        %8350 = vmatmul.bf16.gmra.mxu0 %v8262
        %v8351 = vpop.f32.mrf.mxu0
        %v8352 = vadd.f32 0.0, %v8351
        %v8353 = vpop.f32.mrf.mxu0
        %v8354 = vadd.f32 0.0, %v8353
        %8355 = vmatmul.bf16.gmra.mxu0 %v8263
        %v8356 = vpop.f32.mrf.mxu0
        %v8357 = vadd.f32 0.0, %v8356
        %v8358 = vpop.f32.mrf.mxu0
        %v8359 = vadd.f32 0.0, %v8358
        %8360 = vmatmul.bf16.gmra.mxu0 %v8264
        %v8361 = vpop.f32.mrf.mxu0
        %v8362 = vadd.f32 0.0, %v8361
        %v8363 = vpop.f32.mrf.mxu0
        %v8364 = vadd.f32 0.0, %v8363
        %8365 = vmatmul.bf16.gmra.mxu0 %v8265
        %v8366 = vpop.f32.mrf.mxu0
        %v8367 = vadd.f32 0.0, %v8366
        %v8368 = vpop.f32.mrf.mxu0
        %v8369 = vadd.f32 0.0, %v8368
        %8370 = vdwg.mxu0
        %8371 = vmatpush.bf16.msra.mxu0 %v7291
        %8372 = vmatpush.bf16.msra.mxu0 %v7290
        %8373 = vmatpush.bf16.msra.mxu0 %v7289
        %8374 = vmatpush.bf16.msra.mxu0 %v7288
        %8375 = vmatpush.bf16.msra.mxu0 %v7287
        %8376 = vmatpush.bf16.msra.mxu0 %v7286
        %8377 = vmatpush.bf16.msra.mxu0 %v7285
        %8378 = vmatpush.bf16.msra.mxu0 %v7284
        %8379 = vmatmul.bf16.gmra.mxu0 %v8306
        %v8380 = vpop.f32.mrf.mxu0
        %v8381 = vadd.f32 %v8332, %v8380
        %v8382 = vpop.f32.mrf.mxu0
        %v8383 = vadd.f32 %v8334, %v8382
        %8384 = vmatmul.bf16.gmra.mxu0 %v8307
        %v8385 = vpop.f32.mrf.mxu0
        %v8386 = vadd.f32 %v8337, %v8385
        %v8387 = vpop.f32.mrf.mxu0
        %v8388 = vadd.f32 %v8339, %v8387
        %8389 = vmatmul.bf16.gmra.mxu0 %v8308
        %v8390 = vpop.f32.mrf.mxu0
        %v8391 = vadd.f32 %v8342, %v8390
        %v8392 = vpop.f32.mrf.mxu0
        %v8393 = vadd.f32 %v8344, %v8392
        %8394 = vmatmul.bf16.gmra.mxu0 %v8309
        %v8395 = vpop.f32.mrf.mxu0
        %v8396 = vadd.f32 %v8347, %v8395
        %v8397 = vpop.f32.mrf.mxu0
        %v8398 = vadd.f32 %v8349, %v8397
        %8399 = vmatmul.bf16.gmra.mxu0 %v8310
        %v8400 = vpop.f32.mrf.mxu0
        %v8401 = vadd.f32 %v8352, %v8400
        %v8402 = vpop.f32.mrf.mxu0
        %v8403 = vadd.f32 %v8354, %v8402
        %8404 = vmatmul.bf16.gmra.mxu0 %v8311
        %v8405 = vpop.f32.mrf.mxu0
        %v8406 = vadd.f32 %v8357, %v8405
        %v8407 = vpop.f32.mrf.mxu0
        %v8408 = vadd.f32 %v8359, %v8407
        %8409 = vmatmul.bf16.gmra.mxu0 %v8312
        %v8410 = vpop.f32.mrf.mxu0
        %v8411 = vadd.f32 %v8362, %v8410
        %v8412 = vpop.f32.mrf.mxu0
        %v8413 = vadd.f32 %v8364, %v8412
        %8414 = vmatmul.bf16.gmra.mxu0 %v8313
        %v8415 = vpop.f32.mrf.mxu0
        %v8416 = vadd.f32 %v8367, %v8415
        %v8417 = vpop.f32.mrf.mxu0
        %v8418 = vadd.f32 %v8369, %v8417
        %8419 = vdwg.mxu0
        %v8420 = vadd.f32 %v8018, %v8381
        %v8421 = vadd.f32 %v8019, %v8383
        %v8422 = vadd.f32 %v8020, %v8386
        %v8423 = vadd.f32 %v8021, %v8388
        %v8424 = vadd.f32 %v8022, %v8391
        %v8425 = vadd.f32 %v8023, %v8393
        %v8426 = vadd.f32 %v8024, %v8396
        %v8427 = vadd.f32 %v8025, %v8398
        %v8428 = vadd.f32 %v8026, %v8401
        %v8429 = vadd.f32 %v8027, %v8403
        %v8430 = vadd.f32 %v8028, %v8406
        %v8431 = vadd.f32 %v8029, %v8408
        %v8432 = vadd.f32 %v8030, %v8411
        %v8433 = vadd.f32 %v8031, %v8413
        %v8434 = vadd.f32 %v8032, %v8416
        %v8435 = vadd.f32 %v8033, %v8418
        %v8436 = vld [vmem:[%s3470] sm:$0xff]
        %v8437 = vld [vmem:[%s3470 + $0x8] sm:$0xff]
        %v8438 = vld [vmem:[%s3470 + $0x10] sm:$0xff]
        %v8439 = vld [vmem:[%s3470 + $0x18] sm:$0xff]
        %v8440 = vld [vmem:[%s3470 + $0x20] sm:$0xff]
        %v8441 = vld [vmem:[%s3470 + $0x28] sm:$0xff]
        %v8442 = vld [vmem:[%s3470 + $0x30] sm:$0xff]
        %v8443 = vld [vmem:[%s3470 + $0x38] sm:$0xff]
        %v8444 = vld [vmem:[%s3470 + $0x40] sm:$0xff]
        %v8445 = vld [vmem:[%s3470 + $0x48] sm:$0xff]
        %v8446 = vld [vmem:[%s3470 + $0x50] sm:$0xff]
        %v8447 = vld [vmem:[%s3470 + $0x58] sm:$0xff]
        %v8448 = vld [vmem:[%s3470 + $0x60] sm:$0xff]
        %v8449 = vld [vmem:[%s3470 + $0x68] sm:$0xff]
        %v8450 = vld [vmem:[%s3470 + $0x70] sm:$0xff]
        %v8451 = vld [vmem:[%s3470 + $0x78] sm:$0xff]
        %v8452 = vpack.c.bf16 %v8436, %v8436
        %v8453 = vpack.c.bf16 %v8437, %v8437
        %v8454 = vpack.c.bf16 %v8438, %v8438
        %v8455 = vpack.c.bf16 %v8439, %v8439
        %v8456 = vpack.c.bf16 %v8440, %v8440
        %v8457 = vpack.c.bf16 %v8441, %v8441
        %v8458 = vpack.c.bf16 %v8442, %v8442
        %v8459 = vpack.c.bf16 %v8443, %v8443
        %v8460 = vpack.c.bf16 %v8444, %v8444
        %v8461 = vpack.c.bf16 %v8445, %v8445
        %v8462 = vpack.c.bf16 %v8446, %v8446
        %v8463 = vpack.c.bf16 %v8447, %v8447
        %v8464 = vpack.c.bf16 %v8448, %v8448
        %v8465 = vpack.c.bf16 %v8449, %v8449
        %v8466 = vpack.c.bf16 %v8450, %v8450
        %v8467 = vpack.c.bf16 %v8451, %v8451
        %8468 = vset.pattern.permute.xlu0 8
        %8469 = vperm.xlu0 %8468, %v6460
        %v8470 = vpop.permute.xlu0 %8469
        %8471 = vset.pattern.permute.xlu0 8
        %8472 = vperm.xlu0 %8471, %v6461
        %v8473 = vpop.permute.xlu0 %8472
        %8474 = vset.pattern.permute.xlu0 8
        %8475 = vperm.xlu0 %8474, %v6462
        %v8476 = vpop.permute.xlu0 %8475
        %8477 = vset.pattern.permute.xlu0 8
        %8478 = vperm.xlu0 %8477, %v6463
        %v8479 = vpop.permute.xlu0 %8478
        %8480 = vset.pattern.permute.xlu0 8
        %8481 = vperm.xlu0 %8480, %v6464
        %v8482 = vpop.permute.xlu0 %8481
        %8483 = vset.pattern.permute.xlu0 8
        %8484 = vperm.xlu0 %8483, %v6465
        %v8485 = vpop.permute.xlu0 %8484
        %8486 = vset.pattern.permute.xlu0 8
        %8487 = vperm.xlu0 %8486, %v6466
        %v8488 = vpop.permute.xlu0 %8487
        %8489 = vset.pattern.permute.xlu0 8
        %8490 = vperm.xlu0 %8489, %v6467
        %v8491 = vpop.permute.xlu0 %8490
        %8492 = vset.pattern.permute.xlu0 8
        %8493 = vperm.xlu0 %8492, %v6468
        %v8494 = vpop.permute.xlu0 %8493
        %8495 = vset.pattern.permute.xlu0 8
        %8496 = vperm.xlu0 %8495, %v6469
        %v8497 = vpop.permute.xlu0 %8496
        %8498 = vset.pattern.permute.xlu0 8
        %8499 = vperm.xlu0 %8498, %v6470
        %v8500 = vpop.permute.xlu0 %8499
        %8501 = vset.pattern.permute.xlu0 8
        %8502 = vperm.xlu0 %8501, %v6471
        %v8503 = vpop.permute.xlu0 %8502
        %8504 = vset.pattern.permute.xlu0 8
        %8505 = vperm.xlu0 %8504, %v6472
        %v8506 = vpop.permute.xlu0 %8505
        %8507 = vset.pattern.permute.xlu0 8
        %8508 = vperm.xlu0 %8507, %v6473
        %v8509 = vpop.permute.xlu0 %8508
        %8510 = vset.pattern.permute.xlu0 8
        %8511 = vperm.xlu0 %8510, %v6474
        %v8512 = vpop.permute.xlu0 %8511
        %8513 = vset.pattern.permute.xlu0 8
        %8514 = vperm.xlu0 %8513, %v6475
        %v8515 = vpop.permute.xlu0 %8514
        %vm8516 = vcmp.eq.s32.totalorder %v8470, 1
        %vm8517 = vcmp.eq.s32.totalorder %v8473, 1
        %vm8518 = vcmp.eq.s32.totalorder %v8476, 1
        %vm8519 = vcmp.eq.s32.totalorder %v8479, 1
        %vm8520 = vcmp.eq.s32.totalorder %v8482, 1
        %vm8521 = vcmp.eq.s32.totalorder %v8485, 1
        %vm8522 = vcmp.eq.s32.totalorder %v8488, 1
        %vm8523 = vcmp.eq.s32.totalorder %v8491, 1
        %vm8524 = vcmp.eq.s32.totalorder %v8494, 1
        %vm8525 = vcmp.eq.s32.totalorder %v8497, 1
        %vm8526 = vcmp.eq.s32.totalorder %v8500, 1
        %vm8527 = vcmp.eq.s32.totalorder %v8503, 1
        %vm8528 = vcmp.eq.s32.totalorder %v8506, 1
        %vm8529 = vcmp.eq.s32.totalorder %v8509, 1
        %vm8530 = vcmp.eq.s32.totalorder %v8512, 1
        %vm8531 = vcmp.eq.s32.totalorder %v8515, 1
        %vm8532 = vmpackc.low %vm8516, %vm8516
        %vm8533 = vmpackc.low %vm8517, %vm8517
        %vm8534 = vmpackc.low %vm8518, %vm8518
        %vm8535 = vmpackc.low %vm8519, %vm8519
        %vm8536 = vmpackc.low %vm8520, %vm8520
        %vm8537 = vmpackc.low %vm8521, %vm8521
        %vm8538 = vmpackc.low %vm8522, %vm8522
        %vm8539 = vmpackc.low %vm8523, %vm8523
        %vm8540 = vmpackc.low %vm8524, %vm8524
        %vm8541 = vmpackc.low %vm8525, %vm8525
        %vm8542 = vmpackc.low %vm8526, %vm8526
        %vm8543 = vmpackc.low %vm8527, %vm8527
        %vm8544 = vmpackc.low %vm8528, %vm8528
        %vm8545 = vmpackc.low %vm8529, %vm8529
        %vm8546 = vmpackc.low %vm8530, %vm8530
        %vm8547 = vmpackc.low %vm8531, %vm8531
        %v8548 = vsel %vm8532, %v8452, 0
        %v8549 = vsel %vm8533, %v8453, 0
        %v8550 = vsel %vm8534, %v8454, 0
        %v8551 = vsel %vm8535, %v8455, 0
        %v8552 = vsel %vm8536, %v8456, 0
        %v8553 = vsel %vm8537, %v8457, 0
        %v8554 = vsel %vm8538, %v8458, 0
        %v8555 = vsel %vm8539, %v8459, 0
        %v8556 = vsel %vm8540, %v8460, 0
        %v8557 = vsel %vm8541, %v8461, 0
        %v8558 = vsel %vm8542, %v8462, 0
        %v8559 = vsel %vm8543, %v8463, 0
        %v8560 = vsel %vm8544, %v8464, 0
        %v8561 = vsel %vm8545, %v8465, 0
        %v8562 = vsel %vm8546, %v8466, 0
        %v8563 = vsel %vm8547, %v8467, 0
        %8564 = vset.pattern.permute.xlu0 8
        %8565 = vperm.xlu0 %8564, %v6588
        %v8566 = vpop.permute.xlu0 %8565
        %8567 = vset.pattern.permute.xlu0 8
        %8568 = vperm.xlu0 %8567, %v6589
        %v8569 = vpop.permute.xlu0 %8568
        %8570 = vset.pattern.permute.xlu0 8
        %8571 = vperm.xlu0 %8570, %v6590
        %v8572 = vpop.permute.xlu0 %8571
        %8573 = vset.pattern.permute.xlu0 8
        %8574 = vperm.xlu0 %8573, %v6591
        %v8575 = vpop.permute.xlu0 %8574
        %8576 = vset.pattern.permute.xlu0 8
        %8577 = vperm.xlu0 %8576, %v6592
        %v8578 = vpop.permute.xlu0 %8577
        %8579 = vset.pattern.permute.xlu0 8
        %8580 = vperm.xlu0 %8579, %v6593
        %v8581 = vpop.permute.xlu0 %8580
        %8582 = vset.pattern.permute.xlu0 8
        %8583 = vperm.xlu0 %8582, %v6594
        %v8584 = vpop.permute.xlu0 %8583
        %8585 = vset.pattern.permute.xlu0 8
        %8586 = vperm.xlu0 %8585, %v6595
        %v8587 = vpop.permute.xlu0 %8586
        %8588 = vset.pattern.permute.xlu0 8
        %8589 = vperm.xlu0 %8588, %v6596
        %v8590 = vpop.permute.xlu0 %8589
        %8591 = vset.pattern.permute.xlu0 8
        %8592 = vperm.xlu0 %8591, %v6597
        %v8593 = vpop.permute.xlu0 %8592
        %8594 = vset.pattern.permute.xlu0 8
        %8595 = vperm.xlu0 %8594, %v6598
        %v8596 = vpop.permute.xlu0 %8595
        %8597 = vset.pattern.permute.xlu0 8
        %8598 = vperm.xlu0 %8597, %v6599
        %v8599 = vpop.permute.xlu0 %8598
        %8600 = vset.pattern.permute.xlu0 8
        %8601 = vperm.xlu0 %8600, %v6600
        %v8602 = vpop.permute.xlu0 %8601
        %8603 = vset.pattern.permute.xlu0 8
        %8604 = vperm.xlu0 %8603, %v6601
        %v8605 = vpop.permute.xlu0 %8604
        %8606 = vset.pattern.permute.xlu0 8
        %8607 = vperm.xlu0 %8606, %v6602
        %v8608 = vpop.permute.xlu0 %8607
        %8609 = vset.pattern.permute.xlu0 8
        %8610 = vperm.xlu0 %8609, %v6603
        %v8611 = vpop.permute.xlu0 %8610
        %vm8612 = vcmp.eq.s32.totalorder %v8566, 1
        %vm8613 = vcmp.eq.s32.totalorder %v8569, 1
        %vm8614 = vcmp.eq.s32.totalorder %v8572, 1
        %vm8615 = vcmp.eq.s32.totalorder %v8575, 1
        %vm8616 = vcmp.eq.s32.totalorder %v8578, 1
        %vm8617 = vcmp.eq.s32.totalorder %v8581, 1
        %vm8618 = vcmp.eq.s32.totalorder %v8584, 1
        %vm8619 = vcmp.eq.s32.totalorder %v8587, 1
        %vm8620 = vcmp.eq.s32.totalorder %v8590, 1
        %vm8621 = vcmp.eq.s32.totalorder %v8593, 1
        %vm8622 = vcmp.eq.s32.totalorder %v8596, 1
        %vm8623 = vcmp.eq.s32.totalorder %v8599, 1
        %vm8624 = vcmp.eq.s32.totalorder %v8602, 1
        %vm8625 = vcmp.eq.s32.totalorder %v8605, 1
        %vm8626 = vcmp.eq.s32.totalorder %v8608, 1
        %vm8627 = vcmp.eq.s32.totalorder %v8611, 1
        %vm8628 = vmpackc.low %vm8612, %vm8612
        %vm8629 = vmpackc.low %vm8613, %vm8613
        %vm8630 = vmpackc.low %vm8614, %vm8614
        %vm8631 = vmpackc.low %vm8615, %vm8615
        %vm8632 = vmpackc.low %vm8616, %vm8616
        %vm8633 = vmpackc.low %vm8617, %vm8617
        %vm8634 = vmpackc.low %vm8618, %vm8618
        %vm8635 = vmpackc.low %vm8619, %vm8619
        %vm8636 = vmpackc.low %vm8620, %vm8620
        %vm8637 = vmpackc.low %vm8621, %vm8621
        %vm8638 = vmpackc.low %vm8622, %vm8622
        %vm8639 = vmpackc.low %vm8623, %vm8623
        %vm8640 = vmpackc.low %vm8624, %vm8624
        %vm8641 = vmpackc.low %vm8625, %vm8625
        %vm8642 = vmpackc.low %vm8626, %vm8626
        %vm8643 = vmpackc.low %vm8627, %vm8627
        %v8644 = vsel %vm8628, %v8452, 0
        %v8645 = vsel %vm8629, %v8453, 0
        %v8646 = vsel %vm8630, %v8454, 0
        %v8647 = vsel %vm8631, %v8455, 0
        %v8648 = vsel %vm8632, %v8456, 0
        %v8649 = vsel %vm8633, %v8457, 0
        %v8650 = vsel %vm8634, %v8458, 0
        %v8651 = vsel %vm8635, %v8459, 0
        %v8652 = vsel %vm8636, %v8460, 0
        %v8653 = vsel %vm8637, %v8461, 0
        %v8654 = vsel %vm8638, %v8462, 0
        %v8655 = vsel %vm8639, %v8463, 0
        %v8656 = vsel %vm8640, %v8464, 0
        %v8657 = vsel %vm8641, %v8465, 0
        %v8658 = vsel %vm8642, %v8466, 0
        %v8659 = vsel %vm8643, %v8467, 0
        %v8676 = vunpack.c.l.b16 %v8548
        %v8677 = vunpack.c.l.b16 %v8549
        %v8678 = vunpack.c.l.b16 %v8550
        %v8679 = vunpack.c.l.b16 %v8551
        %v8680 = vunpack.c.l.b16 %v8552
        %v8681 = vunpack.c.l.b16 %v8553
        %v8682 = vunpack.c.l.b16 %v8554
        %v8683 = vunpack.c.l.b16 %v8555
        %v8684 = vunpack.c.l.b16 %v8556
        %v8685 = vunpack.c.l.b16 %v8557
        %v8686 = vunpack.c.l.b16 %v8558
        %v8687 = vunpack.c.l.b16 %v8559
        %v8688 = vunpack.c.l.b16 %v8560
        %v8689 = vunpack.c.l.b16 %v8561
        %v8690 = vunpack.c.l.b16 %v8562
        %v8691 = vunpack.c.l.b16 %v8563
        %v8692 = vpack.c.b16 %v8677, %v8676
        %v8693 = vpack.c.b16 %v8679, %v8678
        %v8694 = vpack.c.b16 %v8681, %v8680
        %v8695 = vpack.c.b16 %v8683, %v8682
        %v8696 = vpack.c.b16 %v8685, %v8684
        %v8697 = vpack.c.b16 %v8687, %v8686
        %v8698 = vpack.c.b16 %v8689, %v8688
        %v8699 = vpack.c.b16 %v8691, %v8690
        %v8724 = vunpack.c.l.b16 %v8644
        %v8725 = vunpack.c.l.b16 %v8645
        %v8726 = vunpack.c.l.b16 %v8646
        %v8727 = vunpack.c.l.b16 %v8647
        %v8728 = vunpack.c.l.b16 %v8648
        %v8729 = vunpack.c.l.b16 %v8649
        %v8730 = vunpack.c.l.b16 %v8650
        %v8731 = vunpack.c.l.b16 %v8651
        %v8732 = vunpack.c.l.b16 %v8652
        %v8733 = vunpack.c.l.b16 %v8653
        %v8734 = vunpack.c.l.b16 %v8654
        %v8735 = vunpack.c.l.b16 %v8655
        %v8736 = vunpack.c.l.b16 %v8656
        %v8737 = vunpack.c.l.b16 %v8657
        %v8738 = vunpack.c.l.b16 %v8658
        %v8739 = vunpack.c.l.b16 %v8659
        %v8740 = vpack.c.b16 %v8725, %v8724
        %v8741 = vpack.c.b16 %v8727, %v8726
        %v8742 = vpack.c.b16 %v8729, %v8728
        %v8743 = vpack.c.b16 %v8731, %v8730
        %v8744 = vpack.c.b16 %v8733, %v8732
        %v8745 = vpack.c.b16 %v8735, %v8734
        %v8746 = vpack.c.b16 %v8737, %v8736
        %v8747 = vpack.c.b16 %v8739, %v8738
        %8756 = vmatpush.bf16.msra.mxu0 %v7477
        %8757 = vmatpush.bf16.msra.mxu0 %v7476
        %8758 = vmatpush.bf16.msra.mxu0 %v7475
        %8759 = vmatpush.bf16.msra.mxu0 %v7474
        %8760 = vmatpush.bf16.msra.mxu0 %v7473
        %8761 = vmatpush.bf16.msra.mxu0 %v7472
        %8762 = vmatpush.bf16.msra.mxu0 %v7471
        %8763 = vmatpush.bf16.msra.mxu0 %v7470
        %8764 = vmatmul.bf16.gmra.mxu0 %v8692
        %v8765 = vpop.f32.mrf.mxu0
        %v8766 = vadd.f32 0.0, %v8765
        %v8767 = vpop.f32.mrf.mxu0
        %v8768 = vadd.f32 0.0, %v8767
        %8769 = vmatmul.bf16.gmra.mxu0 %v8693
        %v8770 = vpop.f32.mrf.mxu0
        %v8771 = vadd.f32 0.0, %v8770
        %v8772 = vpop.f32.mrf.mxu0
        %v8773 = vadd.f32 0.0, %v8772
        %8774 = vmatmul.bf16.gmra.mxu0 %v8694
        %v8775 = vpop.f32.mrf.mxu0
        %v8776 = vadd.f32 0.0, %v8775
        %v8777 = vpop.f32.mrf.mxu0
        %v8778 = vadd.f32 0.0, %v8777
        %8779 = vmatmul.bf16.gmra.mxu0 %v8695
        %v8780 = vpop.f32.mrf.mxu0
        %v8781 = vadd.f32 0.0, %v8780
        %v8782 = vpop.f32.mrf.mxu0
        %v8783 = vadd.f32 0.0, %v8782
        %8784 = vmatmul.bf16.gmra.mxu0 %v8696
        %v8785 = vpop.f32.mrf.mxu0
        %v8786 = vadd.f32 0.0, %v8785
        %v8787 = vpop.f32.mrf.mxu0
        %v8788 = vadd.f32 0.0, %v8787
        %8789 = vmatmul.bf16.gmra.mxu0 %v8697
        %v8790 = vpop.f32.mrf.mxu0
        %v8791 = vadd.f32 0.0, %v8790
        %v8792 = vpop.f32.mrf.mxu0
        %v8793 = vadd.f32 0.0, %v8792
        %8794 = vmatmul.bf16.gmra.mxu0 %v8698
        %v8795 = vpop.f32.mrf.mxu0
        %v8796 = vadd.f32 0.0, %v8795
        %v8797 = vpop.f32.mrf.mxu0
        %v8798 = vadd.f32 0.0, %v8797
        %8799 = vmatmul.bf16.gmra.mxu0 %v8699
        %v8800 = vpop.f32.mrf.mxu0
        %v8801 = vadd.f32 0.0, %v8800
        %v8802 = vpop.f32.mrf.mxu0
        %v8803 = vadd.f32 0.0, %v8802
        %8804 = vdwg.mxu0
        %8805 = vmatpush.bf16.msra.mxu0 %v7485
        %8806 = vmatpush.bf16.msra.mxu0 %v7484
        %8807 = vmatpush.bf16.msra.mxu0 %v7483
        %8808 = vmatpush.bf16.msra.mxu0 %v7482
        %8809 = vmatpush.bf16.msra.mxu0 %v7481
        %8810 = vmatpush.bf16.msra.mxu0 %v7480
        %8811 = vmatpush.bf16.msra.mxu0 %v7479
        %8812 = vmatpush.bf16.msra.mxu0 %v7478
        %8813 = vmatmul.bf16.gmra.mxu0 %v8740
        %v8814 = vpop.f32.mrf.mxu0
        %v8815 = vadd.f32 %v8766, %v8814
        %v8816 = vpop.f32.mrf.mxu0
        %v8817 = vadd.f32 %v8768, %v8816
        %8818 = vmatmul.bf16.gmra.mxu0 %v8741
        %v8819 = vpop.f32.mrf.mxu0
        %v8820 = vadd.f32 %v8771, %v8819
        %v8821 = vpop.f32.mrf.mxu0
        %v8822 = vadd.f32 %v8773, %v8821
        %8823 = vmatmul.bf16.gmra.mxu0 %v8742
        %v8824 = vpop.f32.mrf.mxu0
        %v8825 = vadd.f32 %v8776, %v8824
        %v8826 = vpop.f32.mrf.mxu0
        %v8827 = vadd.f32 %v8778, %v8826
        %8828 = vmatmul.bf16.gmra.mxu0 %v8743
        %v8829 = vpop.f32.mrf.mxu0
        %v8830 = vadd.f32 %v8781, %v8829
        %v8831 = vpop.f32.mrf.mxu0
        %v8832 = vadd.f32 %v8783, %v8831
        %8833 = vmatmul.bf16.gmra.mxu0 %v8744
        %v8834 = vpop.f32.mrf.mxu0
        %v8835 = vadd.f32 %v8786, %v8834
        %v8836 = vpop.f32.mrf.mxu0
        %v8837 = vadd.f32 %v8788, %v8836
        %8838 = vmatmul.bf16.gmra.mxu0 %v8745
        %v8839 = vpop.f32.mrf.mxu0
        %v8840 = vadd.f32 %v8791, %v8839
        %v8841 = vpop.f32.mrf.mxu0
        %v8842 = vadd.f32 %v8793, %v8841
        %8843 = vmatmul.bf16.gmra.mxu0 %v8746
        %v8844 = vpop.f32.mrf.mxu0
        %v8845 = vadd.f32 %v8796, %v8844
        %v8846 = vpop.f32.mrf.mxu0
        %v8847 = vadd.f32 %v8798, %v8846
        %8848 = vmatmul.bf16.gmra.mxu0 %v8747
        %v8849 = vpop.f32.mrf.mxu0
        %v8850 = vadd.f32 %v8801, %v8849
        %v8851 = vpop.f32.mrf.mxu0
        %v8852 = vadd.f32 %v8803, %v8851
        %8853 = vdwg.mxu0
        %v8854 = vadd.f32 %v8420, %v8815
        %v8855 = vadd.f32 %v8421, %v8817
        %v8856 = vadd.f32 %v8422, %v8820
        %v8857 = vadd.f32 %v8423, %v8822
        %v8858 = vadd.f32 %v8424, %v8825
        %v8859 = vadd.f32 %v8425, %v8827
        %v8860 = vadd.f32 %v8426, %v8830
        %v8861 = vadd.f32 %v8427, %v8832
        %v8862 = vadd.f32 %v8428, %v8835
        %v8863 = vadd.f32 %v8429, %v8837
        %v8864 = vadd.f32 %v8430, %v8840
        %v8865 = vadd.f32 %v8431, %v8842
        %v8866 = vadd.f32 %v8432, %v8845
        %v8867 = vadd.f32 %v8433, %v8847
        %v8868 = vadd.f32 %v8434, %v8850
        %v8869 = vadd.f32 %v8435, %v8852
        %8870 = vset.pattern.permute.xlu0 8
        %8871 = vperm.xlu0 %8870, %v6844
        %v8872 = vpop.permute.xlu0 %8871
        %8873 = vset.pattern.permute.xlu0 8
        %8874 = vperm.xlu0 %8873, %v6845
        %v8875 = vpop.permute.xlu0 %8874
        %8876 = vset.pattern.permute.xlu0 8
        %8877 = vperm.xlu0 %8876, %v6846
        %v8878 = vpop.permute.xlu0 %8877
        %8879 = vset.pattern.permute.xlu0 8
        %8880 = vperm.xlu0 %8879, %v6847
        %v8881 = vpop.permute.xlu0 %8880
        %8882 = vset.pattern.permute.xlu0 8
        %8883 = vperm.xlu0 %8882, %v6848
        %v8884 = vpop.permute.xlu0 %8883
        %8885 = vset.pattern.permute.xlu0 8
        %8886 = vperm.xlu0 %8885, %v6849
        %v8887 = vpop.permute.xlu0 %8886
        %8888 = vset.pattern.permute.xlu0 8
        %8889 = vperm.xlu0 %8888, %v6850
        %v8890 = vpop.permute.xlu0 %8889
        %8891 = vset.pattern.permute.xlu0 8
        %8892 = vperm.xlu0 %8891, %v6851
        %v8893 = vpop.permute.xlu0 %8892
        %8894 = vset.pattern.permute.xlu0 8
        %8895 = vperm.xlu0 %8894, %v6852
        %v8896 = vpop.permute.xlu0 %8895
        %8897 = vset.pattern.permute.xlu0 8
        %8898 = vperm.xlu0 %8897, %v6853
        %v8899 = vpop.permute.xlu0 %8898
        %8900 = vset.pattern.permute.xlu0 8
        %8901 = vperm.xlu0 %8900, %v6854
        %v8902 = vpop.permute.xlu0 %8901
        %8903 = vset.pattern.permute.xlu0 8
        %8904 = vperm.xlu0 %8903, %v6855
        %v8905 = vpop.permute.xlu0 %8904
        %8906 = vset.pattern.permute.xlu0 8
        %8907 = vperm.xlu0 %8906, %v6856
        %v8908 = vpop.permute.xlu0 %8907
        %8909 = vset.pattern.permute.xlu0 8
        %8910 = vperm.xlu0 %8909, %v6857
        %v8911 = vpop.permute.xlu0 %8910
        %8912 = vset.pattern.permute.xlu0 8
        %8913 = vperm.xlu0 %8912, %v6858
        %v8914 = vpop.permute.xlu0 %8913
        %8915 = vset.pattern.permute.xlu0 8
        %8916 = vperm.xlu0 %8915, %v6859
        %v8917 = vpop.permute.xlu0 %8916
        %vm8918 = vcmp.eq.s32.totalorder %v8872, 1
        %vm8919 = vcmp.eq.s32.totalorder %v8875, 1
        %vm8920 = vcmp.eq.s32.totalorder %v8878, 1
        %vm8921 = vcmp.eq.s32.totalorder %v8881, 1
        %vm8922 = vcmp.eq.s32.totalorder %v8884, 1
        %vm8923 = vcmp.eq.s32.totalorder %v8887, 1
        %vm8924 = vcmp.eq.s32.totalorder %v8890, 1
        %vm8925 = vcmp.eq.s32.totalorder %v8893, 1
        %vm8926 = vcmp.eq.s32.totalorder %v8896, 1
        %vm8927 = vcmp.eq.s32.totalorder %v8899, 1
        %vm8928 = vcmp.eq.s32.totalorder %v8902, 1
        %vm8929 = vcmp.eq.s32.totalorder %v8905, 1
        %vm8930 = vcmp.eq.s32.totalorder %v8908, 1
        %vm8931 = vcmp.eq.s32.totalorder %v8911, 1
        %vm8932 = vcmp.eq.s32.totalorder %v8914, 1
        %vm8933 = vcmp.eq.s32.totalorder %v8917, 1
        %vm8934 = vmpackc.low %vm8918, %vm8918
        %vm8935 = vmpackc.low %vm8919, %vm8919
        %vm8936 = vmpackc.low %vm8920, %vm8920
        %vm8937 = vmpackc.low %vm8921, %vm8921
        %vm8938 = vmpackc.low %vm8922, %vm8922
        %vm8939 = vmpackc.low %vm8923, %vm8923
        %vm8940 = vmpackc.low %vm8924, %vm8924
        %vm8941 = vmpackc.low %vm8925, %vm8925
        %vm8942 = vmpackc.low %vm8926, %vm8926
        %vm8943 = vmpackc.low %vm8927, %vm8927
        %vm8944 = vmpackc.low %vm8928, %vm8928
        %vm8945 = vmpackc.low %vm8929, %vm8929
        %vm8946 = vmpackc.low %vm8930, %vm8930
        %vm8947 = vmpackc.low %vm8931, %vm8931
        %vm8948 = vmpackc.low %vm8932, %vm8932
        %vm8949 = vmpackc.low %vm8933, %vm8933
        %v8950 = vsel %vm8934, %v8452, 0
        %v8951 = vsel %vm8935, %v8453, 0
        %v8952 = vsel %vm8936, %v8454, 0
        %v8953 = vsel %vm8937, %v8455, 0
        %v8954 = vsel %vm8938, %v8456, 0
        %v8955 = vsel %vm8939, %v8457, 0
        %v8956 = vsel %vm8940, %v8458, 0
        %v8957 = vsel %vm8941, %v8459, 0
        %v8958 = vsel %vm8942, %v8460, 0
        %v8959 = vsel %vm8943, %v8461, 0
        %v8960 = vsel %vm8944, %v8462, 0
        %v8961 = vsel %vm8945, %v8463, 0
        %v8962 = vsel %vm8946, %v8464, 0
        %v8963 = vsel %vm8947, %v8465, 0
        %v8964 = vsel %vm8948, %v8466, 0
        %v8965 = vsel %vm8949, %v8467, 0
        %8966 = vset.pattern.permute.xlu0 8
        %8967 = vperm.xlu0 %8966, %v6972
        %v8968 = vpop.permute.xlu0 %8967
        %8969 = vset.pattern.permute.xlu0 8
        %8970 = vperm.xlu0 %8969, %v6973
        %v8971 = vpop.permute.xlu0 %8970
        %8972 = vset.pattern.permute.xlu0 8
        %8973 = vperm.xlu0 %8972, %v6974
        %v8974 = vpop.permute.xlu0 %8973
        %8975 = vset.pattern.permute.xlu0 8
        %8976 = vperm.xlu0 %8975, %v6975
        %v8977 = vpop.permute.xlu0 %8976
        %8978 = vset.pattern.permute.xlu0 8
        %8979 = vperm.xlu0 %8978, %v6976
        %v8980 = vpop.permute.xlu0 %8979
        %8981 = vset.pattern.permute.xlu0 8
        %8982 = vperm.xlu0 %8981, %v6977
        %v8983 = vpop.permute.xlu0 %8982
        %8984 = vset.pattern.permute.xlu0 8
        %8985 = vperm.xlu0 %8984, %v6978
        %v8986 = vpop.permute.xlu0 %8985
        %8987 = vset.pattern.permute.xlu0 8
        %8988 = vperm.xlu0 %8987, %v6979
        %v8989 = vpop.permute.xlu0 %8988
        %8990 = vset.pattern.permute.xlu0 8
        %8991 = vperm.xlu0 %8990, %v6980
        %v8992 = vpop.permute.xlu0 %8991
        %8993 = vset.pattern.permute.xlu0 8
        %8994 = vperm.xlu0 %8993, %v6981
        %v8995 = vpop.permute.xlu0 %8994
        %8996 = vset.pattern.permute.xlu0 8
        %8997 = vperm.xlu0 %8996, %v6982
        %v8998 = vpop.permute.xlu0 %8997
        %8999 = vset.pattern.permute.xlu0 8
        %9000 = vperm.xlu0 %8999, %v6983
        %v9001 = vpop.permute.xlu0 %9000
        %9002 = vset.pattern.permute.xlu0 8
        %9003 = vperm.xlu0 %9002, %v6984
        %v9004 = vpop.permute.xlu0 %9003
        %9005 = vset.pattern.permute.xlu0 8
        %9006 = vperm.xlu0 %9005, %v6985
        %v9007 = vpop.permute.xlu0 %9006
        %9008 = vset.pattern.permute.xlu0 8
        %9009 = vperm.xlu0 %9008, %v6986
        %v9010 = vpop.permute.xlu0 %9009
        %9011 = vset.pattern.permute.xlu0 8
        %9012 = vperm.xlu0 %9011, %v6987
        %v9013 = vpop.permute.xlu0 %9012
        %vm9014 = vcmp.eq.s32.totalorder %v8968, 1
        %vm9015 = vcmp.eq.s32.totalorder %v8971, 1
        %vm9016 = vcmp.eq.s32.totalorder %v8974, 1
        %vm9017 = vcmp.eq.s32.totalorder %v8977, 1
        %vm9018 = vcmp.eq.s32.totalorder %v8980, 1
        %vm9019 = vcmp.eq.s32.totalorder %v8983, 1
        %vm9020 = vcmp.eq.s32.totalorder %v8986, 1
        %vm9021 = vcmp.eq.s32.totalorder %v8989, 1
        %vm9022 = vcmp.eq.s32.totalorder %v8992, 1
        %vm9023 = vcmp.eq.s32.totalorder %v8995, 1
        %vm9024 = vcmp.eq.s32.totalorder %v8998, 1
        %vm9025 = vcmp.eq.s32.totalorder %v9001, 1
        %vm9026 = vcmp.eq.s32.totalorder %v9004, 1
        %vm9027 = vcmp.eq.s32.totalorder %v9007, 1
        %vm9028 = vcmp.eq.s32.totalorder %v9010, 1
        %vm9029 = vcmp.eq.s32.totalorder %v9013, 1
        %vm9030 = vmpackc.low %vm9014, %vm9014
        %vm9031 = vmpackc.low %vm9015, %vm9015
        %vm9032 = vmpackc.low %vm9016, %vm9016
        %vm9033 = vmpackc.low %vm9017, %vm9017
        %vm9034 = vmpackc.low %vm9018, %vm9018
        %vm9035 = vmpackc.low %vm9019, %vm9019
        %vm9036 = vmpackc.low %vm9020, %vm9020
        %vm9037 = vmpackc.low %vm9021, %vm9021
        %vm9038 = vmpackc.low %vm9022, %vm9022
        %vm9039 = vmpackc.low %vm9023, %vm9023
        %vm9040 = vmpackc.low %vm9024, %vm9024
        %vm9041 = vmpackc.low %vm9025, %vm9025
        %vm9042 = vmpackc.low %vm9026, %vm9026
        %vm9043 = vmpackc.low %vm9027, %vm9027
        %vm9044 = vmpackc.low %vm9028, %vm9028
        %vm9045 = vmpackc.low %vm9029, %vm9029
        %v9046 = vsel %vm9030, %v8452, 0
        %v9047 = vsel %vm9031, %v8453, 0
        %v9048 = vsel %vm9032, %v8454, 0
        %v9049 = vsel %vm9033, %v8455, 0
        %v9050 = vsel %vm9034, %v8456, 0
        %v9051 = vsel %vm9035, %v8457, 0
        %v9052 = vsel %vm9036, %v8458, 0
        %v9053 = vsel %vm9037, %v8459, 0
        %v9054 = vsel %vm9038, %v8460, 0
        %v9055 = vsel %vm9039, %v8461, 0
        %v9056 = vsel %vm9040, %v8462, 0
        %v9057 = vsel %vm9041, %v8463, 0
        %v9058 = vsel %vm9042, %v8464, 0
        %v9059 = vsel %vm9043, %v8465, 0
        %v9060 = vsel %vm9044, %v8466, 0
        %v9061 = vsel %vm9045, %v8467, 0
        %v9078 = vunpack.c.l.b16 %v8950
        %v9079 = vunpack.c.l.b16 %v8951
        %v9080 = vunpack.c.l.b16 %v8952
        %v9081 = vunpack.c.l.b16 %v8953
        %v9082 = vunpack.c.l.b16 %v8954
        %v9083 = vunpack.c.l.b16 %v8955
        %v9084 = vunpack.c.l.b16 %v8956
        %v9085 = vunpack.c.l.b16 %v8957
        %v9086 = vunpack.c.l.b16 %v8958
        %v9087 = vunpack.c.l.b16 %v8959
        %v9088 = vunpack.c.l.b16 %v8960
        %v9089 = vunpack.c.l.b16 %v8961
        %v9090 = vunpack.c.l.b16 %v8962
        %v9091 = vunpack.c.l.b16 %v8963
        %v9092 = vunpack.c.l.b16 %v8964
        %v9093 = vunpack.c.l.b16 %v8965
        %v9094 = vpack.c.b16 %v9079, %v9078
        %v9095 = vpack.c.b16 %v9081, %v9080
        %v9096 = vpack.c.b16 %v9083, %v9082
        %v9097 = vpack.c.b16 %v9085, %v9084
        %v9098 = vpack.c.b16 %v9087, %v9086
        %v9099 = vpack.c.b16 %v9089, %v9088
        %v9100 = vpack.c.b16 %v9091, %v9090
        %v9101 = vpack.c.b16 %v9093, %v9092
        %v9126 = vunpack.c.l.b16 %v9046
        %v9127 = vunpack.c.l.b16 %v9047
        %v9128 = vunpack.c.l.b16 %v9048
        %v9129 = vunpack.c.l.b16 %v9049
        %v9130 = vunpack.c.l.b16 %v9050
        %v9131 = vunpack.c.l.b16 %v9051
        %v9132 = vunpack.c.l.b16 %v9052
        %v9133 = vunpack.c.l.b16 %v9053
        %v9134 = vunpack.c.l.b16 %v9054
        %v9135 = vunpack.c.l.b16 %v9055
        %v9136 = vunpack.c.l.b16 %v9056
        %v9137 = vunpack.c.l.b16 %v9057
        %v9138 = vunpack.c.l.b16 %v9058
        %v9139 = vunpack.c.l.b16 %v9059
        %v9140 = vunpack.c.l.b16 %v9060
        %v9141 = vunpack.c.l.b16 %v9061
        %v9142 = vpack.c.b16 %v9127, %v9126
        %v9143 = vpack.c.b16 %v9129, %v9128
        %v9144 = vpack.c.b16 %v9131, %v9130
        %v9145 = vpack.c.b16 %v9133, %v9132
        %v9146 = vpack.c.b16 %v9135, %v9134
        %v9147 = vpack.c.b16 %v9137, %v9136
        %v9148 = vpack.c.b16 %v9139, %v9138
        %v9149 = vpack.c.b16 %v9141, %v9140
        %9158 = vmatpush.bf16.msra.mxu0 %v7283
        %9159 = vmatpush.bf16.msra.mxu0 %v7282
        %9160 = vmatpush.bf16.msra.mxu0 %v7281
        %9161 = vmatpush.bf16.msra.mxu0 %v7280
        %9162 = vmatpush.bf16.msra.mxu0 %v7279
        %9163 = vmatpush.bf16.msra.mxu0 %v7278
        %9164 = vmatpush.bf16.msra.mxu0 %v7277
        %9165 = vmatpush.bf16.msra.mxu0 %v7276
        %9166 = vmatmul.bf16.gmra.mxu0 %v9094
        %v9167 = vpop.f32.mrf.mxu0
        %v9168 = vadd.f32 0.0, %v9167
        %v9169 = vpop.f32.mrf.mxu0
        %v9170 = vadd.f32 0.0, %v9169
        %9171 = vmatmul.bf16.gmra.mxu0 %v9095
        %v9172 = vpop.f32.mrf.mxu0
        %v9173 = vadd.f32 0.0, %v9172
        %v9174 = vpop.f32.mrf.mxu0
        %v9175 = vadd.f32 0.0, %v9174
        %9176 = vmatmul.bf16.gmra.mxu0 %v9096
        %v9177 = vpop.f32.mrf.mxu0
        %v9178 = vadd.f32 0.0, %v9177
        %v9179 = vpop.f32.mrf.mxu0
        %v9180 = vadd.f32 0.0, %v9179
        %9181 = vmatmul.bf16.gmra.mxu0 %v9097
        %v9182 = vpop.f32.mrf.mxu0
        %v9183 = vadd.f32 0.0, %v9182
        %v9184 = vpop.f32.mrf.mxu0
        %v9185 = vadd.f32 0.0, %v9184
        %9186 = vmatmul.bf16.gmra.mxu0 %v9098
        %v9187 = vpop.f32.mrf.mxu0
        %v9188 = vadd.f32 0.0, %v9187
        %v9189 = vpop.f32.mrf.mxu0
        %v9190 = vadd.f32 0.0, %v9189
        %9191 = vmatmul.bf16.gmra.mxu0 %v9099
        %v9192 = vpop.f32.mrf.mxu0
        %v9193 = vadd.f32 0.0, %v9192
        %v9194 = vpop.f32.mrf.mxu0
        %v9195 = vadd.f32 0.0, %v9194
        %9196 = vmatmul.bf16.gmra.mxu0 %v9100
        %v9197 = vpop.f32.mrf.mxu0
        %v9198 = vadd.f32 0.0, %v9197
        %v9199 = vpop.f32.mrf.mxu0
        %v9200 = vadd.f32 0.0, %v9199
        %9201 = vmatmul.bf16.gmra.mxu0 %v9101
        %v9202 = vpop.f32.mrf.mxu0
        %v9203 = vadd.f32 0.0, %v9202
        %v9204 = vpop.f32.mrf.mxu0
        %v9205 = vadd.f32 0.0, %v9204
        %9206 = vdwg.mxu0
        %9207 = vmatpush.bf16.msra.mxu0 %v7291
        %9208 = vmatpush.bf16.msra.mxu0 %v7290
        %9209 = vmatpush.bf16.msra.mxu0 %v7289
        %9210 = vmatpush.bf16.msra.mxu0 %v7288
        %9211 = vmatpush.bf16.msra.mxu0 %v7287
        %9212 = vmatpush.bf16.msra.mxu0 %v7286
        %9213 = vmatpush.bf16.msra.mxu0 %v7285
        %9214 = vmatpush.bf16.msra.mxu0 %v7284
        %9215 = vmatmul.bf16.gmra.mxu0 %v9142
        %v9216 = vpop.f32.mrf.mxu0
        %v9217 = vadd.f32 %v9168, %v9216
        %v9218 = vpop.f32.mrf.mxu0
        %v9219 = vadd.f32 %v9170, %v9218
        %9220 = vmatmul.bf16.gmra.mxu0 %v9143
        %v9221 = vpop.f32.mrf.mxu0
        %v9222 = vadd.f32 %v9173, %v9221
        %v9223 = vpop.f32.mrf.mxu0
        %v9224 = vadd.f32 %v9175, %v9223
        %9225 = vmatmul.bf16.gmra.mxu0 %v9144
        %v9226 = vpop.f32.mrf.mxu0
        %v9227 = vadd.f32 %v9178, %v9226
        %v9228 = vpop.f32.mrf.mxu0
        %v9229 = vadd.f32 %v9180, %v9228
        %9230 = vmatmul.bf16.gmra.mxu0 %v9145
        %v9231 = vpop.f32.mrf.mxu0
        %v9232 = vadd.f32 %v9183, %v9231
        %v9233 = vpop.f32.mrf.mxu0
        %v9234 = vadd.f32 %v9185, %v9233
        %9235 = vmatmul.bf16.gmra.mxu0 %v9146
        %v9236 = vpop.f32.mrf.mxu0
        %v9237 = vadd.f32 %v9188, %v9236
        %v9238 = vpop.f32.mrf.mxu0
        %v9239 = vadd.f32 %v9190, %v9238
        %9240 = vmatmul.bf16.gmra.mxu0 %v9147
        %v9241 = vpop.f32.mrf.mxu0
        %v9242 = vadd.f32 %v9193, %v9241
        %v9243 = vpop.f32.mrf.mxu0
        %v9244 = vadd.f32 %v9195, %v9243
        %9245 = vmatmul.bf16.gmra.mxu0 %v9148
        %v9246 = vpop.f32.mrf.mxu0
        %v9247 = vadd.f32 %v9198, %v9246
        %v9248 = vpop.f32.mrf.mxu0
        %v9249 = vadd.f32 %v9200, %v9248
        %9250 = vmatmul.bf16.gmra.mxu0 %v9149
        %v9251 = vpop.f32.mrf.mxu0
        %v9252 = vadd.f32 %v9203, %v9251
        %v9253 = vpop.f32.mrf.mxu0
        %v9254 = vadd.f32 %v9205, %v9253
        %9255 = vdwg.mxu0
        %v9256 = vadd.f32 %v8854, %v9217
        %v9257 = vadd.f32 %v8855, %v9219
        %v9258 = vadd.f32 %v8856, %v9222
        %v9259 = vadd.f32 %v8857, %v9224
        %v9260 = vadd.f32 %v8858, %v9227
        %v9261 = vadd.f32 %v8859, %v9229
        %v9262 = vadd.f32 %v8860, %v9232
        %v9263 = vadd.f32 %v8861, %v9234
        %v9264 = vadd.f32 %v8862, %v9237
        %v9265 = vadd.f32 %v8863, %v9239
        %v9266 = vadd.f32 %v8864, %v9242
        %v9267 = vadd.f32 %v8865, %v9244
        %v9268 = vadd.f32 %v8866, %v9247
        %v9269 = vadd.f32 %v8867, %v9249
        %v9270 = vadd.f32 %v8868, %v9252
        %v9271 = vadd.f32 %v8869, %v9254
        %v9272 = vld [vmem:[%s6379] sm:$0xff]
        %v9273 = vld [vmem:[%s6379 + $0x8] sm:$0xff]
        %v9274 = vld [vmem:[%s6379 + $0x10] sm:$0xff]
        %v9275 = vld [vmem:[%s6379 + $0x18] sm:$0xff]
        %v9276 = vld [vmem:[%s6379 + $0x20] sm:$0xff]
        %v9277 = vld [vmem:[%s6379 + $0x28] sm:$0xff]
        %v9278 = vld [vmem:[%s6379 + $0x30] sm:$0xff]
        %v9279 = vld [vmem:[%s6379 + $0x38] sm:$0xff]
        %v9280 = vld [vmem:[%s6379 + $0x40] sm:$0xff]
        %v9281 = vld [vmem:[%s6379 + $0x48] sm:$0xff]
        %v9282 = vld [vmem:[%s6379 + $0x50] sm:$0xff]
        %v9283 = vld [vmem:[%s6379 + $0x58] sm:$0xff]
        %v9284 = vld [vmem:[%s6379 + $0x60] sm:$0xff]
        %v9285 = vld [vmem:[%s6379 + $0x68] sm:$0xff]
        %v9286 = vld [vmem:[%s6379 + $0x70] sm:$0xff]
        %v9287 = vld [vmem:[%s6379 + $0x78] sm:$0xff]
        %v9288 = vpack.c.bf16 %v9272, %v9272
        %v9289 = vpack.c.bf16 %v9273, %v9273
        %v9290 = vpack.c.bf16 %v9274, %v9274
        %v9291 = vpack.c.bf16 %v9275, %v9275
        %v9292 = vpack.c.bf16 %v9276, %v9276
        %v9293 = vpack.c.bf16 %v9277, %v9277
        %v9294 = vpack.c.bf16 %v9278, %v9278
        %v9295 = vpack.c.bf16 %v9279, %v9279
        %v9296 = vpack.c.bf16 %v9280, %v9280
        %v9297 = vpack.c.bf16 %v9281, %v9281
        %v9298 = vpack.c.bf16 %v9282, %v9282
        %v9299 = vpack.c.bf16 %v9283, %v9283
        %v9300 = vpack.c.bf16 %v9284, %v9284
        %v9301 = vpack.c.bf16 %v9285, %v9285
        %v9302 = vpack.c.bf16 %v9286, %v9286
        %v9303 = vpack.c.bf16 %v9287, %v9287
        %9304 = vset.pattern.permute.xlu0 9
        %9305 = vperm.xlu0 %9304, %v6460
        %v9306 = vpop.permute.xlu0 %9305
        %9307 = vset.pattern.permute.xlu0 9
        %9308 = vperm.xlu0 %9307, %v6461
        %v9309 = vpop.permute.xlu0 %9308
        %9310 = vset.pattern.permute.xlu0 9
        %9311 = vperm.xlu0 %9310, %v6462
        %v9312 = vpop.permute.xlu0 %9311
        %9313 = vset.pattern.permute.xlu0 9
        %9314 = vperm.xlu0 %9313, %v6463
        %v9315 = vpop.permute.xlu0 %9314
        %9316 = vset.pattern.permute.xlu0 9
        %9317 = vperm.xlu0 %9316, %v6464
        %v9318 = vpop.permute.xlu0 %9317
        %9319 = vset.pattern.permute.xlu0 9
        %9320 = vperm.xlu0 %9319, %v6465
        %v9321 = vpop.permute.xlu0 %9320
        %9322 = vset.pattern.permute.xlu0 9
        %9323 = vperm.xlu0 %9322, %v6466
        %v9324 = vpop.permute.xlu0 %9323
        %9325 = vset.pattern.permute.xlu0 9
        %9326 = vperm.xlu0 %9325, %v6467
        %v9327 = vpop.permute.xlu0 %9326
        %9328 = vset.pattern.permute.xlu0 9
        %9329 = vperm.xlu0 %9328, %v6468
        %v9330 = vpop.permute.xlu0 %9329
        %9331 = vset.pattern.permute.xlu0 9
        %9332 = vperm.xlu0 %9331, %v6469
        %v9333 = vpop.permute.xlu0 %9332
        %9334 = vset.pattern.permute.xlu0 9
        %9335 = vperm.xlu0 %9334, %v6470
        %v9336 = vpop.permute.xlu0 %9335
        %9337 = vset.pattern.permute.xlu0 9
        %9338 = vperm.xlu0 %9337, %v6471
        %v9339 = vpop.permute.xlu0 %9338
        %9340 = vset.pattern.permute.xlu0 9
        %9341 = vperm.xlu0 %9340, %v6472
        %v9342 = vpop.permute.xlu0 %9341
        %9343 = vset.pattern.permute.xlu0 9
        %9344 = vperm.xlu0 %9343, %v6473
        %v9345 = vpop.permute.xlu0 %9344
        %9346 = vset.pattern.permute.xlu0 9
        %9347 = vperm.xlu0 %9346, %v6474
        %v9348 = vpop.permute.xlu0 %9347
        %9349 = vset.pattern.permute.xlu0 9
        %9350 = vperm.xlu0 %9349, %v6475
        %v9351 = vpop.permute.xlu0 %9350
        %vm9352 = vcmp.eq.s32.totalorder %v9306, 1
        %vm9353 = vcmp.eq.s32.totalorder %v9309, 1
        %vm9354 = vcmp.eq.s32.totalorder %v9312, 1
        %vm9355 = vcmp.eq.s32.totalorder %v9315, 1
        %vm9356 = vcmp.eq.s32.totalorder %v9318, 1
        %vm9357 = vcmp.eq.s32.totalorder %v9321, 1
        %vm9358 = vcmp.eq.s32.totalorder %v9324, 1
        %vm9359 = vcmp.eq.s32.totalorder %v9327, 1
        %vm9360 = vcmp.eq.s32.totalorder %v9330, 1
        %vm9361 = vcmp.eq.s32.totalorder %v9333, 1
        %vm9362 = vcmp.eq.s32.totalorder %v9336, 1
        %vm9363 = vcmp.eq.s32.totalorder %v9339, 1
        %vm9364 = vcmp.eq.s32.totalorder %v9342, 1
        %vm9365 = vcmp.eq.s32.totalorder %v9345, 1
        %vm9366 = vcmp.eq.s32.totalorder %v9348, 1
        %vm9367 = vcmp.eq.s32.totalorder %v9351, 1
        %vm9368 = vmpackc.low %vm9352, %vm9352
        %vm9369 = vmpackc.low %vm9353, %vm9353
        %vm9370 = vmpackc.low %vm9354, %vm9354
        %vm9371 = vmpackc.low %vm9355, %vm9355
        %vm9372 = vmpackc.low %vm9356, %vm9356
        %vm9373 = vmpackc.low %vm9357, %vm9357
        %vm9374 = vmpackc.low %vm9358, %vm9358
        %vm9375 = vmpackc.low %vm9359, %vm9359
        %vm9376 = vmpackc.low %vm9360, %vm9360
        %vm9377 = vmpackc.low %vm9361, %vm9361
        %vm9378 = vmpackc.low %vm9362, %vm9362
        %vm9379 = vmpackc.low %vm9363, %vm9363
        %vm9380 = vmpackc.low %vm9364, %vm9364
        %vm9381 = vmpackc.low %vm9365, %vm9365
        %vm9382 = vmpackc.low %vm9366, %vm9366
        %vm9383 = vmpackc.low %vm9367, %vm9367
        %v9384 = vsel %vm9368, %v9288, 0
        %v9385 = vsel %vm9369, %v9289, 0
        %v9386 = vsel %vm9370, %v9290, 0
        %v9387 = vsel %vm9371, %v9291, 0
        %v9388 = vsel %vm9372, %v9292, 0
        %v9389 = vsel %vm9373, %v9293, 0
        %v9390 = vsel %vm9374, %v9294, 0
        %v9391 = vsel %vm9375, %v9295, 0
        %v9392 = vsel %vm9376, %v9296, 0
        %v9393 = vsel %vm9377, %v9297, 0
        %v9394 = vsel %vm9378, %v9298, 0
        %v9395 = vsel %vm9379, %v9299, 0
        %v9396 = vsel %vm9380, %v9300, 0
        %v9397 = vsel %vm9381, %v9301, 0
        %v9398 = vsel %vm9382, %v9302, 0
        %v9399 = vsel %vm9383, %v9303, 0
        %9400 = vset.pattern.permute.xlu0 9
        %9401 = vperm.xlu0 %9400, %v6588
        %v9402 = vpop.permute.xlu0 %9401
        %9403 = vset.pattern.permute.xlu0 9
        %9404 = vperm.xlu0 %9403, %v6589
        %v9405 = vpop.permute.xlu0 %9404
        %9406 = vset.pattern.permute.xlu0 9
        %9407 = vperm.xlu0 %9406, %v6590
        %v9408 = vpop.permute.xlu0 %9407
        %9409 = vset.pattern.permute.xlu0 9
        %9410 = vperm.xlu0 %9409, %v6591
        %v9411 = vpop.permute.xlu0 %9410
        %9412 = vset.pattern.permute.xlu0 9
        %9413 = vperm.xlu0 %9412, %v6592
        %v9414 = vpop.permute.xlu0 %9413
        %9415 = vset.pattern.permute.xlu0 9
        %9416 = vperm.xlu0 %9415, %v6593
        %v9417 = vpop.permute.xlu0 %9416
        %9418 = vset.pattern.permute.xlu0 9
        %9419 = vperm.xlu0 %9418, %v6594
        %v9420 = vpop.permute.xlu0 %9419
        %9421 = vset.pattern.permute.xlu0 9
        %9422 = vperm.xlu0 %9421, %v6595
        %v9423 = vpop.permute.xlu0 %9422
        %9424 = vset.pattern.permute.xlu0 9
        %9425 = vperm.xlu0 %9424, %v6596
        %v9426 = vpop.permute.xlu0 %9425
        %9427 = vset.pattern.permute.xlu0 9
        %9428 = vperm.xlu0 %9427, %v6597
        %v9429 = vpop.permute.xlu0 %9428
        %9430 = vset.pattern.permute.xlu0 9
        %9431 = vperm.xlu0 %9430, %v6598
        %v9432 = vpop.permute.xlu0 %9431
        %9433 = vset.pattern.permute.xlu0 9
        %9434 = vperm.xlu0 %9433, %v6599
        %v9435 = vpop.permute.xlu0 %9434
        %9436 = vset.pattern.permute.xlu0 9
        %9437 = vperm.xlu0 %9436, %v6600
        %v9438 = vpop.permute.xlu0 %9437
        %9439 = vset.pattern.permute.xlu0 9
        %9440 = vperm.xlu0 %9439, %v6601
        %v9441 = vpop.permute.xlu0 %9440
        %9442 = vset.pattern.permute.xlu0 9
        %9443 = vperm.xlu0 %9442, %v6602
        %v9444 = vpop.permute.xlu0 %9443
        %9445 = vset.pattern.permute.xlu0 9
        %9446 = vperm.xlu0 %9445, %v6603
        %v9447 = vpop.permute.xlu0 %9446
        %vm9448 = vcmp.eq.s32.totalorder %v9402, 1
        %vm9449 = vcmp.eq.s32.totalorder %v9405, 1
        %vm9450 = vcmp.eq.s32.totalorder %v9408, 1
        %vm9451 = vcmp.eq.s32.totalorder %v9411, 1
        %vm9452 = vcmp.eq.s32.totalorder %v9414, 1
        %vm9453 = vcmp.eq.s32.totalorder %v9417, 1
        %vm9454 = vcmp.eq.s32.totalorder %v9420, 1
        %vm9455 = vcmp.eq.s32.totalorder %v9423, 1
        %vm9456 = vcmp.eq.s32.totalorder %v9426, 1
        %vm9457 = vcmp.eq.s32.totalorder %v9429, 1
        %vm9458 = vcmp.eq.s32.totalorder %v9432, 1
        %vm9459 = vcmp.eq.s32.totalorder %v9435, 1
        %vm9460 = vcmp.eq.s32.totalorder %v9438, 1
        %vm9461 = vcmp.eq.s32.totalorder %v9441, 1
        %vm9462 = vcmp.eq.s32.totalorder %v9444, 1
        %vm9463 = vcmp.eq.s32.totalorder %v9447, 1
        %vm9464 = vmpackc.low %vm9448, %vm9448
        %vm9465 = vmpackc.low %vm9449, %vm9449
        %vm9466 = vmpackc.low %vm9450, %vm9450
        %vm9467 = vmpackc.low %vm9451, %vm9451
        %vm9468 = vmpackc.low %vm9452, %vm9452
        %vm9469 = vmpackc.low %vm9453, %vm9453
        %vm9470 = vmpackc.low %vm9454, %vm9454
        %vm9471 = vmpackc.low %vm9455, %vm9455
        %vm9472 = vmpackc.low %vm9456, %vm9456
        %vm9473 = vmpackc.low %vm9457, %vm9457
        %vm9474 = vmpackc.low %vm9458, %vm9458
        %vm9475 = vmpackc.low %vm9459, %vm9459
        %vm9476 = vmpackc.low %vm9460, %vm9460
        %vm9477 = vmpackc.low %vm9461, %vm9461
        %vm9478 = vmpackc.low %vm9462, %vm9462
        %vm9479 = vmpackc.low %vm9463, %vm9463
        %v9480 = vsel %vm9464, %v9288, 0
        %v9481 = vsel %vm9465, %v9289, 0
        %v9482 = vsel %vm9466, %v9290, 0
        %v9483 = vsel %vm9467, %v9291, 0
        %v9484 = vsel %vm9468, %v9292, 0
        %v9485 = vsel %vm9469, %v9293, 0
        %v9486 = vsel %vm9470, %v9294, 0
        %v9487 = vsel %vm9471, %v9295, 0
        %v9488 = vsel %vm9472, %v9296, 0
        %v9489 = vsel %vm9473, %v9297, 0
        %v9490 = vsel %vm9474, %v9298, 0
        %v9491 = vsel %vm9475, %v9299, 0
        %v9492 = vsel %vm9476, %v9300, 0
        %v9493 = vsel %vm9477, %v9301, 0
        %v9494 = vsel %vm9478, %v9302, 0
        %v9495 = vsel %vm9479, %v9303, 0
        %v9512 = vunpack.c.l.b16 %v9384
        %v9513 = vunpack.c.l.b16 %v9385
        %v9514 = vunpack.c.l.b16 %v9386
        %v9515 = vunpack.c.l.b16 %v9387
        %v9516 = vunpack.c.l.b16 %v9388
        %v9517 = vunpack.c.l.b16 %v9389
        %v9518 = vunpack.c.l.b16 %v9390
        %v9519 = vunpack.c.l.b16 %v9391
        %v9520 = vunpack.c.l.b16 %v9392
        %v9521 = vunpack.c.l.b16 %v9393
        %v9522 = vunpack.c.l.b16 %v9394
        %v9523 = vunpack.c.l.b16 %v9395
        %v9524 = vunpack.c.l.b16 %v9396
        %v9525 = vunpack.c.l.b16 %v9397
        %v9526 = vunpack.c.l.b16 %v9398
        %v9527 = vunpack.c.l.b16 %v9399
        %v9528 = vpack.c.b16 %v9513, %v9512
        %v9529 = vpack.c.b16 %v9515, %v9514
        %v9530 = vpack.c.b16 %v9517, %v9516
        %v9531 = vpack.c.b16 %v9519, %v9518
        %v9532 = vpack.c.b16 %v9521, %v9520
        %v9533 = vpack.c.b16 %v9523, %v9522
        %v9534 = vpack.c.b16 %v9525, %v9524
        %v9535 = vpack.c.b16 %v9527, %v9526
        %v9560 = vunpack.c.l.b16 %v9480
        %v9561 = vunpack.c.l.b16 %v9481
        %v9562 = vunpack.c.l.b16 %v9482
        %v9563 = vunpack.c.l.b16 %v9483
        %v9564 = vunpack.c.l.b16 %v9484
        %v9565 = vunpack.c.l.b16 %v9485
        %v9566 = vunpack.c.l.b16 %v9486
        %v9567 = vunpack.c.l.b16 %v9487
        %v9568 = vunpack.c.l.b16 %v9488
        %v9569 = vunpack.c.l.b16 %v9489
        %v9570 = vunpack.c.l.b16 %v9490
        %v9571 = vunpack.c.l.b16 %v9491
        %v9572 = vunpack.c.l.b16 %v9492
        %v9573 = vunpack.c.l.b16 %v9493
        %v9574 = vunpack.c.l.b16 %v9494
        %v9575 = vunpack.c.l.b16 %v9495
        %v9576 = vpack.c.b16 %v9561, %v9560
        %v9577 = vpack.c.b16 %v9563, %v9562
        %v9578 = vpack.c.b16 %v9565, %v9564
        %v9579 = vpack.c.b16 %v9567, %v9566
        %v9580 = vpack.c.b16 %v9569, %v9568
        %v9581 = vpack.c.b16 %v9571, %v9570
        %v9582 = vpack.c.b16 %v9573, %v9572
        %v9583 = vpack.c.b16 %v9575, %v9574
        %9592 = vmatpush.bf16.msra.mxu0 %v7477
        %9593 = vmatpush.bf16.msra.mxu0 %v7476
        %9594 = vmatpush.bf16.msra.mxu0 %v7475
        %9595 = vmatpush.bf16.msra.mxu0 %v7474
        %9596 = vmatpush.bf16.msra.mxu0 %v7473
        %9597 = vmatpush.bf16.msra.mxu0 %v7472
        %9598 = vmatpush.bf16.msra.mxu0 %v7471
        %9599 = vmatpush.bf16.msra.mxu0 %v7470
        %9600 = vmatmul.bf16.gmra.mxu0 %v9528
        %v9601 = vpop.f32.mrf.mxu0
        %v9602 = vadd.f32 0.0, %v9601
        %v9603 = vpop.f32.mrf.mxu0
        %v9604 = vadd.f32 0.0, %v9603
        %9605 = vmatmul.bf16.gmra.mxu0 %v9529
        %v9606 = vpop.f32.mrf.mxu0
        %v9607 = vadd.f32 0.0, %v9606
        %v9608 = vpop.f32.mrf.mxu0
        %v9609 = vadd.f32 0.0, %v9608
        %9610 = vmatmul.bf16.gmra.mxu0 %v9530
        %v9611 = vpop.f32.mrf.mxu0
        %v9612 = vadd.f32 0.0, %v9611
        %v9613 = vpop.f32.mrf.mxu0
        %v9614 = vadd.f32 0.0, %v9613
        %9615 = vmatmul.bf16.gmra.mxu0 %v9531
        %v9616 = vpop.f32.mrf.mxu0
        %v9617 = vadd.f32 0.0, %v9616
        %v9618 = vpop.f32.mrf.mxu0
        %v9619 = vadd.f32 0.0, %v9618
        %9620 = vmatmul.bf16.gmra.mxu0 %v9532
        %v9621 = vpop.f32.mrf.mxu0
        %v9622 = vadd.f32 0.0, %v9621
        %v9623 = vpop.f32.mrf.mxu0
        %v9624 = vadd.f32 0.0, %v9623
        %9625 = vmatmul.bf16.gmra.mxu0 %v9533
        %v9626 = vpop.f32.mrf.mxu0
        %v9627 = vadd.f32 0.0, %v9626
        %v9628 = vpop.f32.mrf.mxu0
        %v9629 = vadd.f32 0.0, %v9628
        %9630 = vmatmul.bf16.gmra.mxu0 %v9534
        %v9631 = vpop.f32.mrf.mxu0
        %v9632 = vadd.f32 0.0, %v9631
        %v9633 = vpop.f32.mrf.mxu0
        %v9634 = vadd.f32 0.0, %v9633
        %9635 = vmatmul.bf16.gmra.mxu0 %v9535
        %v9636 = vpop.f32.mrf.mxu0
        %v9637 = vadd.f32 0.0, %v9636
        %v9638 = vpop.f32.mrf.mxu0
        %v9639 = vadd.f32 0.0, %v9638
        %9640 = vdwg.mxu0
        %9641 = vmatpush.bf16.msra.mxu0 %v7485
        %9642 = vmatpush.bf16.msra.mxu0 %v7484
        %9643 = vmatpush.bf16.msra.mxu0 %v7483
        %9644 = vmatpush.bf16.msra.mxu0 %v7482
        %9645 = vmatpush.bf16.msra.mxu0 %v7481
        %9646 = vmatpush.bf16.msra.mxu0 %v7480
        %9647 = vmatpush.bf16.msra.mxu0 %v7479
        %9648 = vmatpush.bf16.msra.mxu0 %v7478
        %9649 = vmatmul.bf16.gmra.mxu0 %v9576
        %v9650 = vpop.f32.mrf.mxu0
        %v9651 = vadd.f32 %v9602, %v9650
        %v9652 = vpop.f32.mrf.mxu0
        %v9653 = vadd.f32 %v9604, %v9652
        %9654 = vmatmul.bf16.gmra.mxu0 %v9577
        %v9655 = vpop.f32.mrf.mxu0
        %v9656 = vadd.f32 %v9607, %v9655
        %v9657 = vpop.f32.mrf.mxu0
        %v9658 = vadd.f32 %v9609, %v9657
        %9659 = vmatmul.bf16.gmra.mxu0 %v9578
        %v9660 = vpop.f32.mrf.mxu0
        %v9661 = vadd.f32 %v9612, %v9660
        %v9662 = vpop.f32.mrf.mxu0
        %v9663 = vadd.f32 %v9614, %v9662
        %9664 = vmatmul.bf16.gmra.mxu0 %v9579
        %v9665 = vpop.f32.mrf.mxu0
        %v9666 = vadd.f32 %v9617, %v9665
        %v9667 = vpop.f32.mrf.mxu0
        %v9668 = vadd.f32 %v9619, %v9667
        %9669 = vmatmul.bf16.gmra.mxu0 %v9580
        %v9670 = vpop.f32.mrf.mxu0
        %v9671 = vadd.f32 %v9622, %v9670
        %v9672 = vpop.f32.mrf.mxu0
        %v9673 = vadd.f32 %v9624, %v9672
        %9674 = vmatmul.bf16.gmra.mxu0 %v9581
        %v9675 = vpop.f32.mrf.mxu0
        %v9676 = vadd.f32 %v9627, %v9675
        %v9677 = vpop.f32.mrf.mxu0
        %v9678 = vadd.f32 %v9629, %v9677
        %9679 = vmatmul.bf16.gmra.mxu0 %v9582
        %v9680 = vpop.f32.mrf.mxu0
        %v9681 = vadd.f32 %v9632, %v9680
        %v9682 = vpop.f32.mrf.mxu0
        %v9683 = vadd.f32 %v9634, %v9682
        %9684 = vmatmul.bf16.gmra.mxu0 %v9583
        %v9685 = vpop.f32.mrf.mxu0
        %v9686 = vadd.f32 %v9637, %v9685
        %v9687 = vpop.f32.mrf.mxu0
        %v9688 = vadd.f32 %v9639, %v9687
        %9689 = vdwg.mxu0
        %v9690 = vadd.f32 %v9256, %v9651
        %v9691 = vadd.f32 %v9257, %v9653
        %v9692 = vadd.f32 %v9258, %v9656
        %v9693 = vadd.f32 %v9259, %v9658
        %v9694 = vadd.f32 %v9260, %v9661
        %v9695 = vadd.f32 %v9261, %v9663
        %v9696 = vadd.f32 %v9262, %v9666
        %v9697 = vadd.f32 %v9263, %v9668
        %v9698 = vadd.f32 %v9264, %v9671
        %v9699 = vadd.f32 %v9265, %v9673
        %v9700 = vadd.f32 %v9266, %v9676
        %v9701 = vadd.f32 %v9267, %v9678
        %v9702 = vadd.f32 %v9268, %v9681
        %v9703 = vadd.f32 %v9269, %v9683
        %v9704 = vadd.f32 %v9270, %v9686
        %v9705 = vadd.f32 %v9271, %v9688
        %9706 = vset.pattern.permute.xlu0 9
        %9707 = vperm.xlu0 %9706, %v6844
        %v9708 = vpop.permute.xlu0 %9707
        %9709 = vset.pattern.permute.xlu0 9
        %9710 = vperm.xlu0 %9709, %v6845
        %v9711 = vpop.permute.xlu0 %9710
        %9712 = vset.pattern.permute.xlu0 9
        %9713 = vperm.xlu0 %9712, %v6846
        %v9714 = vpop.permute.xlu0 %9713
        %9715 = vset.pattern.permute.xlu0 9
        %9716 = vperm.xlu0 %9715, %v6847
        %v9717 = vpop.permute.xlu0 %9716
        %9718 = vset.pattern.permute.xlu0 9
        %9719 = vperm.xlu0 %9718, %v6848
        %v9720 = vpop.permute.xlu0 %9719
        %9721 = vset.pattern.permute.xlu0 9
        %9722 = vperm.xlu0 %9721, %v6849
        %v9723 = vpop.permute.xlu0 %9722
        %9724 = vset.pattern.permute.xlu0 9
        %9725 = vperm.xlu0 %9724, %v6850
        %v9726 = vpop.permute.xlu0 %9725
        %9727 = vset.pattern.permute.xlu0 9
        %9728 = vperm.xlu0 %9727, %v6851
        %v9729 = vpop.permute.xlu0 %9728
        %9730 = vset.pattern.permute.xlu0 9
        %9731 = vperm.xlu0 %9730, %v6852
        %v9732 = vpop.permute.xlu0 %9731
        %9733 = vset.pattern.permute.xlu0 9
        %9734 = vperm.xlu0 %9733, %v6853
        %v9735 = vpop.permute.xlu0 %9734
        %9736 = vset.pattern.permute.xlu0 9
        %9737 = vperm.xlu0 %9736, %v6854
        %v9738 = vpop.permute.xlu0 %9737
        %9739 = vset.pattern.permute.xlu0 9
        %9740 = vperm.xlu0 %9739, %v6855
        %v9741 = vpop.permute.xlu0 %9740
        %9742 = vset.pattern.permute.xlu0 9
        %9743 = vperm.xlu0 %9742, %v6856
        %v9744 = vpop.permute.xlu0 %9743
        %9745 = vset.pattern.permute.xlu0 9
        %9746 = vperm.xlu0 %9745, %v6857
        %v9747 = vpop.permute.xlu0 %9746
        %9748 = vset.pattern.permute.xlu0 9
        %9749 = vperm.xlu0 %9748, %v6858
        %v9750 = vpop.permute.xlu0 %9749
        %9751 = vset.pattern.permute.xlu0 9
        %9752 = vperm.xlu0 %9751, %v6859
        %v9753 = vpop.permute.xlu0 %9752
        %vm9754 = vcmp.eq.s32.totalorder %v9708, 1
        %vm9755 = vcmp.eq.s32.totalorder %v9711, 1
        %vm9756 = vcmp.eq.s32.totalorder %v9714, 1
        %vm9757 = vcmp.eq.s32.totalorder %v9717, 1
        %vm9758 = vcmp.eq.s32.totalorder %v9720, 1
        %vm9759 = vcmp.eq.s32.totalorder %v9723, 1
        %vm9760 = vcmp.eq.s32.totalorder %v9726, 1
        %vm9761 = vcmp.eq.s32.totalorder %v9729, 1
        %vm9762 = vcmp.eq.s32.totalorder %v9732, 1
        %vm9763 = vcmp.eq.s32.totalorder %v9735, 1
        %vm9764 = vcmp.eq.s32.totalorder %v9738, 1
        %vm9765 = vcmp.eq.s32.totalorder %v9741, 1
        %vm9766 = vcmp.eq.s32.totalorder %v9744, 1
        %vm9767 = vcmp.eq.s32.totalorder %v9747, 1
        %vm9768 = vcmp.eq.s32.totalorder %v9750, 1
        %vm9769 = vcmp.eq.s32.totalorder %v9753, 1
        %vm9770 = vmpackc.low %vm9754, %vm9754
        %vm9771 = vmpackc.low %vm9755, %vm9755
        %vm9772 = vmpackc.low %vm9756, %vm9756
        %vm9773 = vmpackc.low %vm9757, %vm9757
        %vm9774 = vmpackc.low %vm9758, %vm9758
        %vm9775 = vmpackc.low %vm9759, %vm9759
        %vm9776 = vmpackc.low %vm9760, %vm9760
        %vm9777 = vmpackc.low %vm9761, %vm9761
        %vm9778 = vmpackc.low %vm9762, %vm9762
        %vm9779 = vmpackc.low %vm9763, %vm9763
        %vm9780 = vmpackc.low %vm9764, %vm9764
        %vm9781 = vmpackc.low %vm9765, %vm9765
        %vm9782 = vmpackc.low %vm9766, %vm9766
        %vm9783 = vmpackc.low %vm9767, %vm9767
        %vm9784 = vmpackc.low %vm9768, %vm9768
        %vm9785 = vmpackc.low %vm9769, %vm9769
        %v9786 = vsel %vm9770, %v9288, 0
        %v9787 = vsel %vm9771, %v9289, 0
        %v9788 = vsel %vm9772, %v9290, 0
        %v9789 = vsel %vm9773, %v9291, 0
        %v9790 = vsel %vm9774, %v9292, 0
        %v9791 = vsel %vm9775, %v9293, 0
        %v9792 = vsel %vm9776, %v9294, 0
        %v9793 = vsel %vm9777, %v9295, 0
        %v9794 = vsel %vm9778, %v9296, 0
        %v9795 = vsel %vm9779, %v9297, 0
        %v9796 = vsel %vm9780, %v9298, 0
        %v9797 = vsel %vm9781, %v9299, 0
        %v9798 = vsel %vm9782, %v9300, 0
        %v9799 = vsel %vm9783, %v9301, 0
        %v9800 = vsel %vm9784, %v9302, 0
        %v9801 = vsel %vm9785, %v9303, 0
        %9802 = vset.pattern.permute.xlu0 9
        %9803 = vperm.xlu0 %9802, %v6972
        %v9804 = vpop.permute.xlu0 %9803
        %9805 = vset.pattern.permute.xlu0 9
        %9806 = vperm.xlu0 %9805, %v6973
        %v9807 = vpop.permute.xlu0 %9806
        %9808 = vset.pattern.permute.xlu0 9
        %9809 = vperm.xlu0 %9808, %v6974
        %v9810 = vpop.permute.xlu0 %9809
        %9811 = vset.pattern.permute.xlu0 9
        %9812 = vperm.xlu0 %9811, %v6975
        %v9813 = vpop.permute.xlu0 %9812
        %9814 = vset.pattern.permute.xlu0 9
        %9815 = vperm.xlu0 %9814, %v6976
        %v9816 = vpop.permute.xlu0 %9815
        %9817 = vset.pattern.permute.xlu0 9
        %9818 = vperm.xlu0 %9817, %v6977
        %v9819 = vpop.permute.xlu0 %9818
        %9820 = vset.pattern.permute.xlu0 9
        %9821 = vperm.xlu0 %9820, %v6978
        %v9822 = vpop.permute.xlu0 %9821
        %9823 = vset.pattern.permute.xlu0 9
        %9824 = vperm.xlu0 %9823, %v6979
        %v9825 = vpop.permute.xlu0 %9824
        %9826 = vset.pattern.permute.xlu0 9
        %9827 = vperm.xlu0 %9826, %v6980
        %v9828 = vpop.permute.xlu0 %9827
        %9829 = vset.pattern.permute.xlu0 9
        %9830 = vperm.xlu0 %9829, %v6981
        %v9831 = vpop.permute.xlu0 %9830
        %9832 = vset.pattern.permute.xlu0 9
        %9833 = vperm.xlu0 %9832, %v6982
        %v9834 = vpop.permute.xlu0 %9833
        %9835 = vset.pattern.permute.xlu0 9
        %9836 = vperm.xlu0 %9835, %v6983
        %v9837 = vpop.permute.xlu0 %9836
        %9838 = vset.pattern.permute.xlu0 9
        %9839 = vperm.xlu0 %9838, %v6984
        %v9840 = vpop.permute.xlu0 %9839
        %9841 = vset.pattern.permute.xlu0 9
        %9842 = vperm.xlu0 %9841, %v6985
        %v9843 = vpop.permute.xlu0 %9842
        %9844 = vset.pattern.permute.xlu0 9
        %9845 = vperm.xlu0 %9844, %v6986
        %v9846 = vpop.permute.xlu0 %9845
        %9847 = vset.pattern.permute.xlu0 9
        %9848 = vperm.xlu0 %9847, %v6987
        %v9849 = vpop.permute.xlu0 %9848
        %vm9850 = vcmp.eq.s32.totalorder %v9804, 1
        %vm9851 = vcmp.eq.s32.totalorder %v9807, 1
        %vm9852 = vcmp.eq.s32.totalorder %v9810, 1
        %vm9853 = vcmp.eq.s32.totalorder %v9813, 1
        %vm9854 = vcmp.eq.s32.totalorder %v9816, 1
        %vm9855 = vcmp.eq.s32.totalorder %v9819, 1
        %vm9856 = vcmp.eq.s32.totalorder %v9822, 1
        %vm9857 = vcmp.eq.s32.totalorder %v9825, 1
        %vm9858 = vcmp.eq.s32.totalorder %v9828, 1
        %vm9859 = vcmp.eq.s32.totalorder %v9831, 1
        %vm9860 = vcmp.eq.s32.totalorder %v9834, 1
        %vm9861 = vcmp.eq.s32.totalorder %v9837, 1
        %vm9862 = vcmp.eq.s32.totalorder %v9840, 1
        %vm9863 = vcmp.eq.s32.totalorder %v9843, 1
        %vm9864 = vcmp.eq.s32.totalorder %v9846, 1
        %vm9865 = vcmp.eq.s32.totalorder %v9849, 1
        %vm9866 = vmpackc.low %vm9850, %vm9850
        %vm9867 = vmpackc.low %vm9851, %vm9851
        %vm9868 = vmpackc.low %vm9852, %vm9852
        %vm9869 = vmpackc.low %vm9853, %vm9853
        %vm9870 = vmpackc.low %vm9854, %vm9854
        %vm9871 = vmpackc.low %vm9855, %vm9855
        %vm9872 = vmpackc.low %vm9856, %vm9856
        %vm9873 = vmpackc.low %vm9857, %vm9857
        %vm9874 = vmpackc.low %vm9858, %vm9858
        %vm9875 = vmpackc.low %vm9859, %vm9859
        %vm9876 = vmpackc.low %vm9860, %vm9860
        %vm9877 = vmpackc.low %vm9861, %vm9861
        %vm9878 = vmpackc.low %vm9862, %vm9862
        %vm9879 = vmpackc.low %vm9863, %vm9863
        %vm9880 = vmpackc.low %vm9864, %vm9864
        %vm9881 = vmpackc.low %vm9865, %vm9865
        %v9882 = vsel %vm9866, %v9288, 0
        %v9883 = vsel %vm9867, %v9289, 0
        %v9884 = vsel %vm9868, %v9290, 0
        %v9885 = vsel %vm9869, %v9291, 0
        %v9886 = vsel %vm9870, %v9292, 0
        %v9887 = vsel %vm9871, %v9293, 0
        %v9888 = vsel %vm9872, %v9294, 0
        %v9889 = vsel %vm9873, %v9295, 0
        %v9890 = vsel %vm9874, %v9296, 0
        %v9891 = vsel %vm9875, %v9297, 0
        %v9892 = vsel %vm9876, %v9298, 0
        %v9893 = vsel %vm9877, %v9299, 0
        %v9894 = vsel %vm9878, %v9300, 0
        %v9895 = vsel %vm9879, %v9301, 0
        %v9896 = vsel %vm9880, %v9302, 0
        %v9897 = vsel %vm9881, %v9303, 0
        %v9914 = vunpack.c.l.b16 %v9786
        %v9915 = vunpack.c.l.b16 %v9787
        %v9916 = vunpack.c.l.b16 %v9788
        %v9917 = vunpack.c.l.b16 %v9789
        %v9918 = vunpack.c.l.b16 %v9790
        %v9919 = vunpack.c.l.b16 %v9791
        %v9920 = vunpack.c.l.b16 %v9792
        %v9921 = vunpack.c.l.b16 %v9793
        %v9922 = vunpack.c.l.b16 %v9794
        %v9923 = vunpack.c.l.b16 %v9795
        %v9924 = vunpack.c.l.b16 %v9796
        %v9925 = vunpack.c.l.b16 %v9797
        %v9926 = vunpack.c.l.b16 %v9798
        %v9927 = vunpack.c.l.b16 %v9799
        %v9928 = vunpack.c.l.b16 %v9800
        %v9929 = vunpack.c.l.b16 %v9801
        %v9930 = vpack.c.b16 %v9915, %v9914
        %v9931 = vpack.c.b16 %v9917, %v9916
        %v9932 = vpack.c.b16 %v9919, %v9918
        %v9933 = vpack.c.b16 %v9921, %v9920
        %v9934 = vpack.c.b16 %v9923, %v9922
        %v9935 = vpack.c.b16 %v9925, %v9924
        %v9936 = vpack.c.b16 %v9927, %v9926
        %v9937 = vpack.c.b16 %v9929, %v9928
        %v9962 = vunpack.c.l.b16 %v9882
        %v9963 = vunpack.c.l.b16 %v9883
        %v9964 = vunpack.c.l.b16 %v9884
        %v9965 = vunpack.c.l.b16 %v9885
        %v9966 = vunpack.c.l.b16 %v9886
        %v9967 = vunpack.c.l.b16 %v9887
        %v9968 = vunpack.c.l.b16 %v9888
        %v9969 = vunpack.c.l.b16 %v9889
        %v9970 = vunpack.c.l.b16 %v9890
        %v9971 = vunpack.c.l.b16 %v9891
        %v9972 = vunpack.c.l.b16 %v9892
        %v9973 = vunpack.c.l.b16 %v9893
        %v9974 = vunpack.c.l.b16 %v9894
        %v9975 = vunpack.c.l.b16 %v9895
        %v9976 = vunpack.c.l.b16 %v9896
        %v9977 = vunpack.c.l.b16 %v9897
        %v9978 = vpack.c.b16 %v9963, %v9962
        %v9979 = vpack.c.b16 %v9965, %v9964
        %v9980 = vpack.c.b16 %v9967, %v9966
        %v9981 = vpack.c.b16 %v9969, %v9968
        %v9982 = vpack.c.b16 %v9971, %v9970
        %v9983 = vpack.c.b16 %v9973, %v9972
        %v9984 = vpack.c.b16 %v9975, %v9974
        %v9985 = vpack.c.b16 %v9977, %v9976
        %9994 = vmatpush.bf16.msra.mxu0 %v7283
        %9995 = vmatpush.bf16.msra.mxu0 %v7282
        %9996 = vmatpush.bf16.msra.mxu0 %v7281
        %9997 = vmatpush.bf16.msra.mxu0 %v7280
        %9998 = vmatpush.bf16.msra.mxu0 %v7279
        %9999 = vmatpush.bf16.msra.mxu0 %v7278
        %10000 = vmatpush.bf16.msra.mxu0 %v7277
        %10001 = vmatpush.bf16.msra.mxu0 %v7276
        %10002 = vmatmul.bf16.gmra.mxu0 %v9930
        %v10003 = vpop.f32.mrf.mxu0
        %v10004 = vadd.f32 0.0, %v10003
        %v10005 = vpop.f32.mrf.mxu0
        %v10006 = vadd.f32 0.0, %v10005
        %10007 = vmatmul.bf16.gmra.mxu0 %v9931
        %v10008 = vpop.f32.mrf.mxu0
        %v10009 = vadd.f32 0.0, %v10008
        %v10010 = vpop.f32.mrf.mxu0
        %v10011 = vadd.f32 0.0, %v10010
        %10012 = vmatmul.bf16.gmra.mxu0 %v9932
        %v10013 = vpop.f32.mrf.mxu0
        %v10014 = vadd.f32 0.0, %v10013
        %v10015 = vpop.f32.mrf.mxu0
        %v10016 = vadd.f32 0.0, %v10015
        %10017 = vmatmul.bf16.gmra.mxu0 %v9933
        %v10018 = vpop.f32.mrf.mxu0
        %v10019 = vadd.f32 0.0, %v10018
        %v10020 = vpop.f32.mrf.mxu0
        %v10021 = vadd.f32 0.0, %v10020
        %10022 = vmatmul.bf16.gmra.mxu0 %v9934
        %v10023 = vpop.f32.mrf.mxu0
        %v10024 = vadd.f32 0.0, %v10023
        %v10025 = vpop.f32.mrf.mxu0
        %v10026 = vadd.f32 0.0, %v10025
        %10027 = vmatmul.bf16.gmra.mxu0 %v9935
        %v10028 = vpop.f32.mrf.mxu0
        %v10029 = vadd.f32 0.0, %v10028
        %v10030 = vpop.f32.mrf.mxu0
        %v10031 = vadd.f32 0.0, %v10030
        %10032 = vmatmul.bf16.gmra.mxu0 %v9936
        %v10033 = vpop.f32.mrf.mxu0
        %v10034 = vadd.f32 0.0, %v10033
        %v10035 = vpop.f32.mrf.mxu0
        %v10036 = vadd.f32 0.0, %v10035
        %10037 = vmatmul.bf16.gmra.mxu0 %v9937
        %v10038 = vpop.f32.mrf.mxu0
        %v10039 = vadd.f32 0.0, %v10038
        %v10040 = vpop.f32.mrf.mxu0
        %v10041 = vadd.f32 0.0, %v10040
        %10042 = vdwg.mxu0
        %10043 = vmatpush.bf16.msra.mxu0 %v7291
        %10044 = vmatpush.bf16.msra.mxu0 %v7290
        %10045 = vmatpush.bf16.msra.mxu0 %v7289
        %10046 = vmatpush.bf16.msra.mxu0 %v7288
        %10047 = vmatpush.bf16.msra.mxu0 %v7287
        %10048 = vmatpush.bf16.msra.mxu0 %v7286
        %10049 = vmatpush.bf16.msra.mxu0 %v7285
        %10050 = vmatpush.bf16.msra.mxu0 %v7284
        %10051 = vmatmul.bf16.gmra.mxu0 %v9978
        %v10052 = vpop.f32.mrf.mxu0
        %v10053 = vadd.f32 %v10004, %v10052
        %v10054 = vpop.f32.mrf.mxu0
        %v10055 = vadd.f32 %v10006, %v10054
        %10056 = vmatmul.bf16.gmra.mxu0 %v9979
        %v10057 = vpop.f32.mrf.mxu0
        %v10058 = vadd.f32 %v10009, %v10057
        %v10059 = vpop.f32.mrf.mxu0
        %v10060 = vadd.f32 %v10011, %v10059
        %10061 = vmatmul.bf16.gmra.mxu0 %v9980
        %v10062 = vpop.f32.mrf.mxu0
        %v10063 = vadd.f32 %v10014, %v10062
        %v10064 = vpop.f32.mrf.mxu0
        %v10065 = vadd.f32 %v10016, %v10064
        %10066 = vmatmul.bf16.gmra.mxu0 %v9981
        %v10067 = vpop.f32.mrf.mxu0
        %v10068 = vadd.f32 %v10019, %v10067
        %v10069 = vpop.f32.mrf.mxu0
        %v10070 = vadd.f32 %v10021, %v10069
        %10071 = vmatmul.bf16.gmra.mxu0 %v9982
        %v10072 = vpop.f32.mrf.mxu0
        %v10073 = vadd.f32 %v10024, %v10072
        %v10074 = vpop.f32.mrf.mxu0
        %v10075 = vadd.f32 %v10026, %v10074
        %10076 = vmatmul.bf16.gmra.mxu0 %v9983
        %v10077 = vpop.f32.mrf.mxu0
        %v10078 = vadd.f32 %v10029, %v10077
        %v10079 = vpop.f32.mrf.mxu0
        %v10080 = vadd.f32 %v10031, %v10079
        %10081 = vmatmul.bf16.gmra.mxu0 %v9984
        %v10082 = vpop.f32.mrf.mxu0
        %v10083 = vadd.f32 %v10034, %v10082
        %v10084 = vpop.f32.mrf.mxu0
        %v10085 = vadd.f32 %v10036, %v10084
        %10086 = vmatmul.bf16.gmra.mxu0 %v9985
        %v10087 = vpop.f32.mrf.mxu0
        %v10088 = vadd.f32 %v10039, %v10087
        %v10089 = vpop.f32.mrf.mxu0
        %v10090 = vadd.f32 %v10041, %v10089
        %10091 = vdwg.mxu0
        %v10092 = vadd.f32 %v9690, %v10053
        %v10093 = vadd.f32 %v9691, %v10055
        %v10094 = vadd.f32 %v9692, %v10058
        %v10095 = vadd.f32 %v9693, %v10060
        %v10096 = vadd.f32 %v9694, %v10063
        %v10097 = vadd.f32 %v9695, %v10065
        %v10098 = vadd.f32 %v9696, %v10068
        %v10099 = vadd.f32 %v9697, %v10070
        %v10100 = vadd.f32 %v9698, %v10073
        %v10101 = vadd.f32 %v9699, %v10075
        %v10102 = vadd.f32 %v9700, %v10078
        %v10103 = vadd.f32 %v9701, %v10080
        %v10104 = vadd.f32 %v9702, %v10083
        %v10105 = vadd.f32 %v9703, %v10085
        %v10106 = vadd.f32 %v9704, %v10088
        %v10107 = vadd.f32 %v9705, %v10090
        %v10108 = vmul.f32 %v10092, 0.25
        %v10109 = vmul.f32 %v10093, 0.25
        %v10110 = vmul.f32 %v10094, 0.25
        %v10111 = vmul.f32 %v10095, 0.25
        %v10112 = vmul.f32 %v10096, 0.25
        %v10113 = vmul.f32 %v10097, 0.25
        %v10114 = vmul.f32 %v10098, 0.25
        %v10115 = vmul.f32 %v10099, 0.25
        %v10116 = vmul.f32 %v10100, 0.25
        %v10117 = vmul.f32 %v10101, 0.25
        %v10118 = vmul.f32 %v10102, 0.25
        %v10119 = vmul.f32 %v10103, 0.25
        %v10120 = vmul.f32 %v10104, 0.25
        %v10121 = vmul.f32 %v10105, 0.25
        %v10122 = vmul.f32 %v10106, 0.25
        %v10123 = vmul.f32 %v10107, 0.25
        %s10124 = scalar_lea.vmem %s164, 512 [#allocation2]
        %10125 = vst [vmem:[%s10124] sm:$0xff] %v10108
        %10126 = vst [vmem:[%s10124 + $0x8] sm:$0xff] %v10109
        %10127 = vst [vmem:[%s10124 + $0x10] sm:$0xff] %v10110
        %10128 = vst [vmem:[%s10124 + $0x18] sm:$0xff] %v10111
        %10129 = vst [vmem:[%s10124 + $0x20] sm:$0xff] %v10112
        %10130 = vst [vmem:[%s10124 + $0x28] sm:$0xff] %v10113
        %10131 = vst [vmem:[%s10124 + $0x30] sm:$0xff] %v10114
        %10132 = vst [vmem:[%s10124 + $0x38] sm:$0xff] %v10115
        %10133 = vst [vmem:[%s10124 + $0x40] sm:$0xff] %v10116
        %10134 = vst [vmem:[%s10124 + $0x48] sm:$0xff] %v10117
        %10135 = vst [vmem:[%s10124 + $0x50] sm:$0xff] %v10118
        %10136 = vst [vmem:[%s10124 + $0x58] sm:$0xff] %v10119
        %10137 = vst [vmem:[%s10124 + $0x60] sm:$0xff] %v10120
        %10138 = vst [vmem:[%s10124 + $0x68] sm:$0xff] %v10121
        %10139 = vst [vmem:[%s10124 + $0x70] sm:$0xff] %v10122
        %10140 = vst [vmem:[%s10124 + $0x78] sm:$0xff] %v10123
        %s10141 = sand.u32 %s93, 1
        %s10142 = scalar_lea.sflag [#allocation3], %s10141
        %s10143 = sand.u32 %s93, 1
        %s10144 = smul.addr %s10143, 640
        %s10145 = scalar_lea.vmem [#allocation2], %s10144
        // Predicated region
        $region33: #{tpu_custom_call.1} parent=31 // pred_check
          %p10146 = pneg %p103
        $region34: #{tpu_custom_call.1} parent=31 // pred_check_branch
          %10148 = sbr.rel (%p10146) target = $region36
        $region35: #{tpu_custom_call.1} parent=31 // pred_region
          #allocation5 [shape = 'u32[6]{0}', space=smem, size = 0x18, scoped, tag = 'DMA stride descriptor']
          %s10149 = smul.u32 16, %s17
          %10151 = vsyncadd %s10142, 0
          %s10152 = smul.addr %s10149, 8
          %s10153 = scalar_lea.hbm %s3, %s10152
          %s10155 = sshll.u32 1, 14
          %s10156 = sxor.u32 4294967295, %s10155
          %s10159 = sshll.u32 7, 18
          %s10160 = sxor.u32 4294967295, %s10159
          %s10161 = sand.u32 0, %s10160
          %s10163 = sor.u32 %s10161, 0
          %s10164 = sshll.u32 %s10145, 4
          %s10165 = int_to_ptr.vmem [resolvable:$true] %s10164
          %s10166 = sshll.u32 %s10153, 4
          %s10167 = int_to_ptr.hbm [resolvable:$true] %s10166
          %10173 = sst [smem:[#allocation5]] 2048
          %s10174 = scalar_lea.smem [#allocation5], 1
          %10175 = sst [smem:[%s10174]] 4096
          %s10176 = scalar_lea.smem [#allocation5], 2
          %10177 = sst [smem:[%s10176]] 16
          %s10178 = scalar_lea.smem [#allocation5], 3
          %10179 = sst [smem:[%s10178]] 128
          %s10180 = scalar_lea.smem [#allocation5], 4
          %10181 = sst [smem:[%s10180]] 128
          %s10182 = scalar_lea.smem [#allocation5], 5
          %10183 = sst [smem:[%s10182]] 8
          %10185 = dma.general %s10165, 10240, %s10167, %s10142, [#allocation4], [#allocation5], %s10163, 0
        $region36: #{tpu_custom_call.1} parent=31 // pred_fallthru
          _
      $region32: #{tpu_custom_call.1} parent=5 // pred_fallthru
        _
      %p10186 = scmp.le.s32.totalorder 2, %s12
      // Predicated region
      $region37: #{tpu_custom_call.1} parent=5 // pred_check
        %p10187 = pneg %p10186
      $region38: #{tpu_custom_call.1} parent=5 // pred_check_branch
        %10189 = sbr.rel (%p10187) target = $region40
      $region39: #{tpu_custom_call.1} parent=5 // pred_region
        %s10190 = ssub.s32 %s12, 2
        // Predicated region
        $region41: #{tpu_custom_call.1} parent=39 // pred_check
          %p10191 = pneg %p109
        $region42: #{tpu_custom_call.1} parent=39 // pred_check_branch
          %10193 = sbr.rel (%p10191) target = $region44
        $region43: #{tpu_custom_call.1} parent=39 // pred_region
          %s10194 = sand.u32 %s94, 1
          %s10195 = scalar_lea.sflag [#allocation3], %s10194
          %s10196 = sand.u32 %s94, 1
          %s10197 = smul.addr %s10196, 640
          %s10198 = scalar_lea.vmem [#allocation2], %s10197
          %10200 = dma.done %s10195, 10240
        $region44: #{tpu_custom_call.1} parent=39 // pred_fallthru
          _
      $region40: #{tpu_custom_call.1} parent=5 // pred_fallthru
        _
    $region6: #{tpu_custom_call.1} parent=1 // loop_footer
      %s16 = sadd.s32 1, %s12
    $region7: #{tpu_custom_call.1} parent=1 // loop_footer_branch
      %11 = sbr.rel target = $region3
    $region8: #{tpu_custom_call.1} parent=1 // loop_exit
      _
    %10201 = vsyncpa [#allocation3], 1
    %s10202 = scalar_lea.sflag [#allocation3], 1
    %10203 = vsyncpa %s10202, 1

</llo_original>
